<compile_context>
chip_gen: v6e
topology: v6e:2x2x1
jax: 0.10.0
libtpu: 0.0.40
codegen_flags: <defaults>
</compile_context>

<pallas_src>
import jax
import jax.numpy as jnp
from jax import lax
from jax.experimental import pallas as pl
from jax.experimental.pallas import tpu as pltpu

# ---- module constants (globals in the reference code) -----------------------
MLP_DIM = 64                    # unused in forward
EMBEDDING_DIM = 16
NUM_LAYERS = 1                  # DROPOUT only matters between layers; N/A here
DROPOUT = 0.0
MULTI_CONDITIONAL_MODEL = False
H_DIM = 32
MLP_INPUT_DIM = 3               # 2 (traj) + 1 (speed)

SEQ_LEN = 8
BATCH = 2

_HIGHEST = lax.Precision.HIGHEST


def _encoder_kernel(traj_ref, speed_ref, wxt_ref, wxs_ref, wh_ref, b_ref,
                    out_ref):
    """Single-invocation Encoder kernel (no Pallas grid, no scratch).

    traj_ref : (S, B, 2)   observed trajectory (xy)
    speed_ref: (S, B, 1)   pedestrian speed
    wxt_ref  : (2, 4H)     folded input projection, traj columns  (We^T@Wih^T)
    wxs_ref  : (1, 4H)     folded input projection, speed row
    wh_ref   : (H, 4H)     LSTM W_hh^T                (gate order i, f, g, o)
    b_ref    : (1, 4H)     folded bias  be@Wih^T + b_ih + b_hh
    out_ref  : (1, B, H)   final hidden state (written exactly once)
    """
    s, b_rows, _ = traj_ref.shape
    hd = wh_ref.shape[0]

    wxt = wxt_ref[...]
    wxs = wxs_ref[...]
    wh = wh_ref[...]                      # loop-invariant; loaded once
    bias = b_ref[...]

    # x-side gate pre-activations for every timestep (embedding Linear already
    # folded into wxt/wxs/bias).  These are independent of the recurrence, so
    # the scheduler hoists them off the serial h/c chain; they live in vregs
    # (no VMEM scratch round trip).
    xg = [
        jnp.dot(traj_ref[t], wxt, preferred_element_type=jnp.float32,
                precision=_HIGHEST)
        + speed_ref[t] * wxs              # (B,1)*(1,4H) broadcast, VPU only
        + bias
        for t in range(s)
    ]

    h_t = jnp.zeros((b_rows, hd), jnp.float32)
    c_t = jnp.zeros((b_rows, hd), jnp.float32)

    # Serial 8-step LSTM recurrence, fully unrolled (static indices).
    for t in range(s):
        gates = xg[t] + jnp.dot(h_t, wh, preferred_element_type=jnp.float32,
                                precision=_HIGHEST)          # (B, 4H)

        # Transcendentals on the full 128-lane vreg; static slices afterwards.
        # (The i-gate slice at lane offset 0 is free; f/g/o cost one lane
        # rotate each — same XLU count as the wide/replicated-state layout.)
        sig = jax.nn.sigmoid(gates)
        tnh = jnp.tanh(gates)
        i_g = sig[:, 0 * hd:1 * hd]
        f_g = sig[:, 1 * hd:2 * hd]
        g_g = tnh[:, 2 * hd:3 * hd]
        o_g = sig[:, 3 * hd:4 * hd]

        c_t = f_g * c_t + i_g * g_g
        h_t = o_g * jnp.tanh(c_t)

    out_ref[0] = h_t


def prepare_params(params):
    """One-time parameter layout prep (kept off the per-call hot path)."""
    wih_t = params["wih"].astype(jnp.float32).T                       # (E, 4H)
    wx = jnp.dot(params["we"].astype(jnp.float32).T, wih_t,
                 precision=_HIGHEST)                                  # (3, 4H)
    b = (jnp.dot(params["be"].astype(jnp.float32), wih_t, precision=_HIGHEST)
         + params["bih"] + params["bhh"]).reshape(1, 4 * H_DIM)       # (1, 4H)
    return {
        "wx_traj": wx[0:2, :],                                        # (2, 4H)
        "wx_speed": wx[2:3, :],                                       # (1, 4H)
        "wh": params["whh"].astype(jnp.float32).T,                    # (H, 4H)
        "b": b,
    }


@jax.jit
def encoder_forward(obs_traj, obs_ped_speed, prepped):
    """Pallas equivalent of Encoder.forward (MULTI_CONDITIONAL_MODEL=False).

    obs_traj      : (seq, batch, 2)   float32
    obs_ped_speed : (seq, batch, 1)   float32
    returns final_h : (NUM_LAYERS, batch, h_dim) float32
    """
    _, batch, _ = obs_traj.shape
    vmem = pl.BlockSpec(memory_space=pltpu.MemorySpace.VMEM)
    return pl.pallas_call(
        _encoder_kernel,
        out_shape=jax.ShapeDtypeStruct((NUM_LAYERS, batch, H_DIM), jnp.float32),
        in_specs=[vmem] * 6,
        out_specs=vmem,
    )(obs_traj, obs_ped_speed,
      prepped["wx_traj"], prepped["wx_speed"], prepped["wh"], prepped["b"])


def encoder_reference(obs_traj, obs_ped_speed, params):
    """Pure-JAX reference (lax.scan, unfused weights) for correctness."""
    x = jnp.concatenate([obs_traj, obs_ped_speed], axis=2)            # (S, B, 3)
    emb = jnp.einsum("sbi,ei->sbe", x, params["we"],
                     precision=_HIGHEST) + params["be"]
    H = H_DIM

    def step(carry, x_t):
        h, c = carry
        gates = (jnp.dot(x_t, params["wih"].T, precision=_HIGHEST)
                 + params["bih"]
                 + jnp.dot(h, params["whh"].T, precision=_HIGHEST)
                 + params["bhh"])
        i = jax.nn.sigmoid(gates[:, 0 * H:1 * H])
        f = jax.nn.sigmoid(gates[:, 1 * H:2 * H])
        g = jnp.tanh(gates[:, 2 * H:3 * H])
        o = jax.nn.sigmoid(gates[:, 3 * H:4 * H])
        c = f * c + i * g
        h = o * jnp.tanh(c)
        return (h, c), None

    batch = x.shape[1]
    h0 = jnp.zeros((batch, H), jnp.float32)
    c0 = jnp.zeros((batch, H), jnp.float32)
    (h_f, _), _ = lax.scan(step, (h0, c0), emb)
    return h_f[None]                                                  # (1, B, H)


def init_params(key):
    """Deterministic parameter init matching the PyTorch module's shapes."""
    ks = jax.random.split(key, 6)
    bound_lin = 1.0 / jnp.sqrt(MLP_INPUT_DIM)
    bound_lstm = 1.0 / jnp.sqrt(H_DIM)
    u = lambda k, shape, b: jax.random.uniform(k, shape, jnp.float32, -b, b)
    return {
        # nn.Linear(mlp_input_dim, EMBEDDING_DIM)
        "we": u(ks[0], (EMBEDDING_DIM, MLP_INPUT_DIM), bound_lin),
        "be": u(ks[1], (EMBEDDING_DIM,), bound_lin),
        # nn.LSTM(EMBEDDING_DIM, h_dim, 1) layer 0  (gate order i, f, g, o)
        "wih": u(ks[2], (4 * H_DIM, EMBEDDING_DIM), bound_lstm),
        "whh": u(ks[3], (4 * H_DIM, H_DIM), bound_lstm),
        "bih": u(ks[4], (4 * H_DIM,), bound_lstm),
        "bhh": u(ks[5], (4 * H_DIM,), bound_lstm),
    }
    # TODO(synk): if NUM_LAYERS > 1, stack per-layer weights and add
    # inter-layer dropout (eval mode would skip it anyway).


if __name__ == "__main__":
    key = jax.random.PRNGKey(0)
    k_params, k_traj, k_speed = jax.random.split(key, 3)

    params = init_params(k_params)
    prepped = prepare_params(params)     # one-time weight fold / layout prep

    obs_traj = jax.random.normal(k_traj, (SEQ_LEN, BATCH, 2), jnp.float32)
    obs_ped_speed = jax.random.uniform(k_speed, (SEQ_LEN, BATCH, 1), jnp.float32)

    final_h = encoder_forward(obs_traj, obs_ped_speed, prepped)
    final_h = jax.block_until_ready(final_h)

    ref = encoder_reference(obs_traj, obs_ped_speed, params)
    assert final_h.shape == (NUM_LAYERS, BATCH, H_DIM), final_h.shape
    max_err = jnp.max(jnp.abs(final_h - ref))
    assert jnp.allclose(final_h, ref, atol=5e-5, rtol=1e-4), max_err

    print("KERNEL_OK")
</pallas_src>

<mosaic_0001>
module attributes {stable_mosaic.version = 11 : i64} {
  func.func @_encoder_kernel(%arg0: memref<8x2x2xf32, #tpu.memory_space<vmem>>, %arg1: memref<8x2x1xf32, #tpu.memory_space<vmem>>, %arg2: memref<2x128xf32, #tpu.memory_space<vmem>>, %arg3: memref<1x128xf32, #tpu.memory_space<vmem>>, %arg4: memref<32x128xf32, #tpu.memory_space<vmem>>, %arg5: memref<1x128xf32, #tpu.memory_space<vmem>>, %arg6: memref<1x2x32xf32, #tpu.memory_space<vmem>>) attributes {dimension_semantics = [], scalar_prefetch = 0 : i64, scratch_operands = 0 : i64, tpu.core_type = #tpu.core_type<tc>} {
    %c0 = arith.constant 0 : index
    %c0_0 = arith.constant 0 : index
    %0 = vector.load %arg2[%c0, %c0_0] : memref<2x128xf32, #tpu.memory_space<vmem>>, vector<2x128xf32>
    %c0_1 = arith.constant 0 : index
    %c0_2 = arith.constant 0 : index
    %1 = vector.load %arg3[%c0_1, %c0_2] : memref<1x128xf32, #tpu.memory_space<vmem>>, vector<1x128xf32>
    %c0_3 = arith.constant 0 : index
    %c0_4 = arith.constant 0 : index
    %2 = vector.load %arg4[%c0_3, %c0_4] : memref<32x128xf32, #tpu.memory_space<vmem>>, vector<32x128xf32>
    %c0_5 = arith.constant 0 : index
    %c0_6 = arith.constant 0 : index
    %3 = vector.load %arg5[%c0_5, %c0_6] : memref<1x128xf32, #tpu.memory_space<vmem>>, vector<1x128xf32>
    %c0_7 = arith.constant 0 : index
    %c0_8 = arith.constant 0 : index
    %c0_9 = arith.constant 0 : index
    %4 = vector.load %arg0[%c0_7, %c0_8, %c0_9] : memref<8x2x2xf32, #tpu.memory_space<vmem>>, vector<1x2x2xf32>
    %5 = vector.shape_cast %4 : vector<1x2x2xf32> to vector<2x2xf32>
    %cst = arith.constant dense<0.000000e+00> : vector<2x128xf32>
    %6 = tpu.matmul %5, %0, %cst {dimension_numbers = #tpu.dot_dimension_numbers<[1], [0], [0], [1], [0, 0, 1, 1], [], []>, precision = #tpu.contract_precision<fp32>} : vector<2x2xf32>, vector<2x128xf32>, vector<2x128xf32> -> vector<2x128xf32>
    %c0_10 = arith.constant 0 : index
    %c0_11 = arith.constant 0 : index
    %c0_12 = arith.constant 0 : index
    %7 = vector.load %arg1[%c0_10, %c0_11, %c0_12] : memref<8x2x1xf32, #tpu.memory_space<vmem>>, vector<1x2x1xf32>
    %8 = vector.shape_cast %7 : vector<1x2x1xf32> to vector<2x1xf32>
    %9 = vector.broadcast %8 : vector<2x1xf32> to vector<2x128xf32>
    %10 = vector.broadcast %1 : vector<1x128xf32> to vector<2x128xf32>
    %11 = arith.mulf %9, %10 : vector<2x128xf32>
    %12 = arith.addf %6, %11 : vector<2x128xf32>
    %13 = vector.broadcast %3 : vector<1x128xf32> to vector<2x128xf32>
    %14 = arith.addf %12, %13 : vector<2x128xf32>
    %c1 = arith.constant 1 : index
    %c0_13 = arith.constant 0 : index
    %c0_14 = arith.constant 0 : index
    %15 = vector.load %arg0[%c1, %c0_13, %c0_14] : memref<8x2x2xf32, #tpu.memory_space<vmem>>, vector<1x2x2xf32>
    %16 = vector.shape_cast %15 : vector<1x2x2xf32> to vector<2x2xf32>
    %cst_15 = arith.constant dense<0.000000e+00> : vector<2x128xf32>
    %17 = tpu.matmul %16, %0, %cst_15 {dimension_numbers = #tpu.dot_dimension_numbers<[1], [0], [0], [1], [0, 0, 1, 1], [], []>, precision = #tpu.contract_precision<fp32>} : vector<2x2xf32>, vector<2x128xf32>, vector<2x128xf32> -> vector<2x128xf32>
    %c1_16 = arith.constant 1 : index
    %c0_17 = arith.constant 0 : index
    %c0_18 = arith.constant 0 : index
    %18 = vector.load %arg1[%c1_16, %c0_17, %c0_18] : memref<8x2x1xf32, #tpu.memory_space<vmem>>, vector<1x2x1xf32>
    %19 = vector.shape_cast %18 : vector<1x2x1xf32> to vector<2x1xf32>
    %20 = vector.broadcast %19 : vector<2x1xf32> to vector<2x128xf32>
    %21 = vector.broadcast %1 : vector<1x128xf32> to vector<2x128xf32>
    %22 = arith.mulf %20, %21 : vector<2x128xf32>
    %23 = arith.addf %17, %22 : vector<2x128xf32>
    %24 = vector.broadcast %3 : vector<1x128xf32> to vector<2x128xf32>
    %25 = arith.addf %23, %24 : vector<2x128xf32>
    %c2 = arith.constant 2 : index
    %c0_19 = arith.constant 0 : index
    %c0_20 = arith.constant 0 : index
    %26 = vector.load %arg0[%c2, %c0_19, %c0_20] : memref<8x2x2xf32, #tpu.memory_space<vmem>>, vector<1x2x2xf32>
    %27 = vector.shape_cast %26 : vector<1x2x2xf32> to vector<2x2xf32>
    %cst_21 = arith.constant dense<0.000000e+00> : vector<2x128xf32>
    %28 = tpu.matmul %27, %0, %cst_21 {dimension_numbers = #tpu.dot_dimension_numbers<[1], [0], [0], [1], [0, 0, 1, 1], [], []>, precision = #tpu.contract_precision<fp32>} : vector<2x2xf32>, vector<2x128xf32>, vector<2x128xf32> -> vector<2x128xf32>
    %c2_22 = arith.constant 2 : index
    %c0_23 = arith.constant 0 : index
    %c0_24 = arith.constant 0 : index
    %29 = vector.load %arg1[%c2_22, %c0_23, %c0_24] : memref<8x2x1xf32, #tpu.memory_space<vmem>>, vector<1x2x1xf32>
    %30 = vector.shape_cast %29 : vector<1x2x1xf32> to vector<2x1xf32>
    %31 = vector.broadcast %30 : vector<2x1xf32> to vector<2x128xf32>
    %32 = vector.broadcast %1 : vector<1x128xf32> to vector<2x128xf32>
    %33 = arith.mulf %31, %32 : vector<2x128xf32>
    %34 = arith.addf %28, %33 : vector<2x128xf32>
    %35 = vector.broadcast %3 : vector<1x128xf32> to vector<2x128xf32>
    %36 = arith.addf %34, %35 : vector<2x128xf32>
    %c3 = arith.constant 3 : index
    %c0_25 = arith.constant 0 : index
    %c0_26 = arith.constant 0 : index
    %37 = vector.load %arg0[%c3, %c0_25, %c0_26] : memref<8x2x2xf32, #tpu.memory_space<vmem>>, vector<1x2x2xf32>
    %38 = vector.shape_cast %37 : vector<1x2x2xf32> to vector<2x2xf32>
    %cst_27 = arith.constant dense<0.000000e+00> : vector<2x128xf32>
    %39 = tpu.matmul %38, %0, %cst_27 {dimension_numbers = #tpu.dot_dimension_numbers<[1], [0], [0], [1], [0, 0, 1, 1], [], []>, precision = #tpu.contract_precision<fp32>} : vector<2x2xf32>, vector<2x128xf32>, vector<2x128xf32> -> vector<2x128xf32>
    %c3_28 = arith.constant 3 : index
    %c0_29 = arith.constant 0 : index
    %c0_30 = arith.constant 0 : index
    %40 = vector.load %arg1[%c3_28, %c0_29, %c0_30] : memref<8x2x1xf32, #tpu.memory_space<vmem>>, vector<1x2x1xf32>
    %41 = vector.shape_cast %40 : vector<1x2x1xf32> to vector<2x1xf32>
    %42 = vector.broadcast %41 : vector<2x1xf32> to vector<2x128xf32>
    %43 = vector.broadcast %1 : vector<1x128xf32> to vector<2x128xf32>
    %44 = arith.mulf %42, %43 : vector<2x128xf32>
    %45 = arith.addf %39, %44 : vector<2x128xf32>
    %46 = vector.broadcast %3 : vector<1x128xf32> to vector<2x128xf32>
    %47 = arith.addf %45, %46 : vector<2x128xf32>
    %c4 = arith.constant 4 : index
    %c0_31 = arith.constant 0 : index
    %c0_32 = arith.constant 0 : index
    %48 = vector.load %arg0[%c4, %c0_31, %c0_32] : memref<8x2x2xf32, #tpu.memory_space<vmem>>, vector<1x2x2xf32>
    %49 = vector.shape_cast %48 : vector<1x2x2xf32> to vector<2x2xf32>
    %cst_33 = arith.constant dense<0.000000e+00> : vector<2x128xf32>
    %50 = tpu.matmul %49, %0, %cst_33 {dimension_numbers = #tpu.dot_dimension_numbers<[1], [0], [0], [1], [0, 0, 1, 1], [], []>, precision = #tpu.contract_precision<fp32>} : vector<2x2xf32>, vector<2x128xf32>, vector<2x128xf32> -> vector<2x128xf32>
    %c4_34 = arith.constant 4 : index
    %c0_35 = arith.constant 0 : index
    %c0_36 = arith.constant 0 : index
    %51 = vector.load %arg1[%c4_34, %c0_35, %c0_36] : memref<8x2x1xf32, #tpu.memory_space<vmem>>, vector<1x2x1xf32>
    %52 = vector.shape_cast %51 : vector<1x2x1xf32> to vector<2x1xf32>
    %53 = vector.broadcast %52 : vector<2x1xf32> to vector<2x128xf32>
    %54 = vector.broadcast %1 : vector<1x128xf32> to vector<2x128xf32>
    %55 = arith.mulf %53, %54 : vector<2x128xf32>
    %56 = arith.addf %50, %55 : vector<2x128xf32>
    %57 = vector.broadcast %3 : vector<1x128xf32> to vector<2x128xf32>
    %58 = arith.addf %56, %57 : vector<2x128xf32>
    %c5 = arith.constant 5 : index
    %c0_37 = arith.constant 0 : index
    %c0_38 = arith.constant 0 : index
    %59 = vector.load %arg0[%c5, %c0_37, %c0_38] : memref<8x2x2xf32, #tpu.memory_space<vmem>>, vector<1x2x2xf32>
    %60 = vector.shape_cast %59 : vector<1x2x2xf32> to vector<2x2xf32>
    %cst_39 = arith.constant dense<0.000000e+00> : vector<2x128xf32>
    %61 = tpu.matmul %60, %0, %cst_39 {dimension_numbers = #tpu.dot_dimension_numbers<[1], [0], [0], [1], [0, 0, 1, 1], [], []>, precision = #tpu.contract_precision<fp32>} : vector<2x2xf32>, vector<2x128xf32>, vector<2x128xf32> -> vector<2x128xf32>
    %c5_40 = arith.constant 5 : index
    %c0_41 = arith.constant 0 : index
    %c0_42 = arith.constant 0 : index
    %62 = vector.load %arg1[%c5_40, %c0_41, %c0_42] : memref<8x2x1xf32, #tpu.memory_space<vmem>>, vector<1x2x1xf32>
    %63 = vector.shape_cast %62 : vector<1x2x1xf32> to vector<2x1xf32>
    %64 = vector.broadcast %63 : vector<2x1xf32> to vector<2x128xf32>
    %65 = vector.broadcast %1 : vector<1x128xf32> to vector<2x128xf32>
    %66 = arith.mulf %64, %65 : vector<2x128xf32>
    %67 = arith.addf %61, %66 : vector<2x128xf32>
    %68 = vector.broadcast %3 : vector<1x128xf32> to vector<2x128xf32>
    %69 = arith.addf %67, %68 : vector<2x128xf32>
    %c6 = arith.constant 6 : index
    %c0_43 = arith.constant 0 : index
    %c0_44 = arith.constant 0 : index
    %70 = vector.load %arg0[%c6, %c0_43, %c0_44] : memref<8x2x2xf32, #tpu.memory_space<vmem>>, vector<1x2x2xf32>
    %71 = vector.shape_cast %70 : vector<1x2x2xf32> to vector<2x2xf32>
    %cst_45 = arith.constant dense<0.000000e+00> : vector<2x128xf32>
    %72 = tpu.matmul %71, %0, %cst_45 {dimension_numbers = #tpu.dot_dimension_numbers<[1], [0], [0], [1], [0, 0, 1, 1], [], []>, precision = #tpu.contract_precision<fp32>} : vector<2x2xf32>, vector<2x128xf32>, vector<2x128xf32> -> vector<2x128xf32>
    %c6_46 = arith.constant 6 : index
    %c0_47 = arith.constant 0 : index
    %c0_48 = arith.constant 0 : index
    %73 = vector.load %arg1[%c6_46, %c0_47, %c0_48] : memref<8x2x1xf32, #tpu.memory_space<vmem>>, vector<1x2x1xf32>
    %74 = vector.shape_cast %73 : vector<1x2x1xf32> to vector<2x1xf32>
    %75 = vector.broadcast %74 : vector<2x1xf32> to vector<2x128xf32>
    %76 = vector.broadcast %1 : vector<1x128xf32> to vector<2x128xf32>
    %77 = arith.mulf %75, %76 : vector<2x128xf32>
    %78 = arith.addf %72, %77 : vector<2x128xf32>
    %79 = vector.broadcast %3 : vector<1x128xf32> to vector<2x128xf32>
    %80 = arith.addf %78, %79 : vector<2x128xf32>
    %c7 = arith.constant 7 : index
    %c0_49 = arith.constant 0 : index
    %c0_50 = arith.constant 0 : index
    %81 = vector.load %arg0[%c7, %c0_49, %c0_50] : memref<8x2x2xf32, #tpu.memory_space<vmem>>, vector<1x2x2xf32>
    %82 = vector.shape_cast %81 : vector<1x2x2xf32> to vector<2x2xf32>
    %cst_51 = arith.constant dense<0.000000e+00> : vector<2x128xf32>
    %83 = tpu.matmul %82, %0, %cst_51 {dimension_numbers = #tpu.dot_dimension_numbers<[1], [0], [0], [1], [0, 0, 1, 1], [], []>, precision = #tpu.contract_precision<fp32>} : vector<2x2xf32>, vector<2x128xf32>, vector<2x128xf32> -> vector<2x128xf32>
    %c7_52 = arith.constant 7 : index
    %c0_53 = arith.constant 0 : index
    %c0_54 = arith.constant 0 : index
    %84 = vector.load %arg1[%c7_52, %c0_53, %c0_54] : memref<8x2x1xf32, #tpu.memory_space<vmem>>, vector<1x2x1xf32>
    %85 = vector.shape_cast %84 : vector<1x2x1xf32> to vector<2x1xf32>
    %86 = vector.broadcast %85 : vector<2x1xf32> to vector<2x128xf32>
    %87 = vector.broadcast %1 : vector<1x128xf32> to vector<2x128xf32>
    %88 = arith.mulf %86, %87 : vector<2x128xf32>
    %89 = arith.addf %83, %88 : vector<2x128xf32>
    %90 = vector.broadcast %3 : vector<1x128xf32> to vector<2x128xf32>
    %91 = arith.addf %89, %90 : vector<2x128xf32>
    %cst_55 = arith.constant 0.000000e+00 : f32
    %92 = vector.broadcast %cst_55 : f32 to vector<2x32xf32>
    %cst_56 = arith.constant 0.000000e+00 : f32
    %93 = vector.broadcast %cst_56 : f32 to vector<2x32xf32>
    %cst_57 = arith.constant dense<0.000000e+00> : vector<2x128xf32>
    %94 = tpu.matmul %92, %2, %cst_57 {dimension_numbers = #tpu.dot_dimension_numbers<[1], [0], [0], [1], [0, 0, 1, 1], [], []>, precision = #tpu.contract_precision<fp32>} : vector<2x32xf32>, vector<32x128xf32>, vector<2x128xf32> -> vector<2x128xf32>
    %95 = arith.addf %14, %94 : vector<2x128xf32>
    %96 = arith.negf %95 : vector<2x128xf32>
    %97 = math.exp %96 : vector<2x128xf32>
    %cst_58 = arith.constant 1.000000e+00 : f32
    %98 = vector.broadcast %cst_58 : f32 to vector<2x128xf32>
    %99 = arith.addf %98, %97 : vector<2x128xf32>
    %100 = arith.divf %98, %99 : vector<2x128xf32>
    %101 = math.tanh %95 : vector<2x128xf32>
    %102 = vector.extract_strided_slice %100 {offsets = [0, 0], sizes = [2, 32], strides = [1, 1]} : vector<2x128xf32> to vector<2x32xf32>
    %103 = vector.extract_strided_slice %100 {offsets = [0, 32], sizes = [2, 32], strides = [1, 1]} : vector<2x128xf32> to vector<2x32xf32>
    %104 = vector.extract_strided_slice %101 {offsets = [0, 64], sizes = [2, 32], strides = [1, 1]} : vector<2x128xf32> to vector<2x32xf32>
    %105 = vector.extract_strided_slice %100 {offsets = [0, 96], sizes = [2, 32], strides = [1, 1]} : vector<2x128xf32> to vector<2x32xf32>
    %106 = arith.mulf %103, %93 : vector<2x32xf32>
    %107 = arith.mulf %102, %104 : vector<2x32xf32>
    %108 = arith.addf %106, %107 : vector<2x32xf32>
    %109 = math.tanh %108 : vector<2x32xf32>
    %110 = arith.mulf %105, %109 : vector<2x32xf32>
    %cst_59 = arith.constant dense<0.000000e+00> : vector<2x128xf32>
    %111 = tpu.matmul %110, %2, %cst_59 {dimension_numbers = #tpu.dot_dimension_numbers<[1], [0], [0], [1], [0, 0, 1, 1], [], []>, precision = #tpu.contract_precision<fp32>} : vector<2x32xf32>, vector<32x128xf32>, vector<2x128xf32> -> vector<2x128xf32>
    %112 = arith.addf %25, %111 : vector<2x128xf32>
    %113 = arith.negf %112 : vector<2x128xf32>
    %114 = math.exp %113 : vector<2x128xf32>
    %cst_60 = arith.constant 1.000000e+00 : f32
    %115 = vector.broadcast %cst_60 : f32 to vector<2x128xf32>
    %116 = arith.addf %115, %114 : vector<2x128xf32>
    %117 = arith.divf %115, %116 : vector<2x128xf32>
    %118 = math.tanh %112 : vector<2x128xf32>
    %119 = vector.extract_strided_slice %117 {offsets = [0, 0], sizes = [2, 32], strides = [1, 1]} : vector<2x128xf32> to vector<2x32xf32>
    %120 = vector.extract_strided_slice %117 {offsets = [0, 32], sizes = [2, 32], strides = [1, 1]} : vector<2x128xf32> to vector<2x32xf32>
    %121 = vector.extract_strided_slice %118 {offsets = [0, 64], sizes = [2, 32], strides = [1, 1]} : vector<2x128xf32> to vector<2x32xf32>
    %122 = vector.extract_strided_slice %117 {offsets = [0, 96], sizes = [2, 32], strides = [1, 1]} : vector<2x128xf32> to vector<2x32xf32>
    %123 = arith.mulf %120, %108 : vector<2x32xf32>
    %124 = arith.mulf %119, %121 : vector<2x32xf32>
    %125 = arith.addf %123, %124 : vector<2x32xf32>
    %126 = math.tanh %125 : vector<2x32xf32>
    %127 = arith.mulf %122, %126 : vector<2x32xf32>
    %cst_61 = arith.constant dense<0.000000e+00> : vector<2x128xf32>
    %128 = tpu.matmul %127, %2, %cst_61 {dimension_numbers = #tpu.dot_dimension_numbers<[1], [0], [0], [1], [0, 0, 1, 1], [], []>, precision = #tpu.contract_precision<fp32>} : vector<2x32xf32>, vector<32x128xf32>, vector<2x128xf32> -> vector<2x128xf32>
    %129 = arith.addf %36, %128 : vector<2x128xf32>
    %130 = arith.negf %129 : vector<2x128xf32>
    %131 = math.exp %130 : vector<2x128xf32>
    %cst_62 = arith.constant 1.000000e+00 : f32
    %132 = vector.broadcast %cst_62 : f32 to vector<2x128xf32>
    %133 = arith.addf %132, %131 : vector<2x128xf32>
    %134 = arith.divf %132, %133 : vector<2x128xf32>
    %135 = math.tanh %129 : vector<2x128xf32>
    %136 = vector.extract_strided_slice %134 {offsets = [0, 0], sizes = [2, 32], strides = [1, 1]} : vector<2x128xf32> to vector<2x32xf32>
    %137 = vector.extract_strided_slice %134 {offsets = [0, 32], sizes = [2, 32], strides = [1, 1]} : vector<2x128xf32> to vector<2x32xf32>
    %138 = vector.extract_strided_slice %135 {offsets = [0, 64], sizes = [2, 32], strides = [1, 1]} : vector<2x128xf32> to vector<2x32xf32>
    %139 = vector.extract_strided_slice %134 {offsets = [0, 96], sizes = [2, 32], strides = [1, 1]} : vector<2x128xf32> to vector<2x32xf32>
    %140 = arith.mulf %137, %125 : vector<2x32xf32>
    %141 = arith.mulf %136, %138 : vector<2x32xf32>
    %142 = arith.addf %140, %141 : vector<2x32xf32>
    %143 = math.tanh %142 : vector<2x32xf32>
    %144 = arith.mulf %139, %143 : vector<2x32xf32>
    %cst_63 = arith.constant dense<0.000000e+00> : vector<2x128xf32>
    %145 = tpu.matmul %144, %2, %cst_63 {dimension_numbers = #tpu.dot_dimension_numbers<[1], [0], [0], [1], [0, 0, 1, 1], [], []>, precision = #tpu.contract_precision<fp32>} : vector<2x32xf32>, vector<32x128xf32>, vector<2x128xf32> -> vector<2x128xf32>
    %146 = arith.addf %47, %145 : vector<2x128xf32>
    %147 = arith.negf %146 : vector<2x128xf32>
    %148 = math.exp %147 : vector<2x128xf32>
    %cst_64 = arith.constant 1.000000e+00 : f32
    %149 = vector.broadcast %cst_64 : f32 to vector<2x128xf32>
    %150 = arith.addf %149, %148 : vector<2x128xf32>
    %151 = arith.divf %149, %150 : vector<2x128xf32>
    %152 = math.tanh %146 : vector<2x128xf32>
    %153 = vector.extract_strided_slice %151 {offsets = [0, 0], sizes = [2, 32], strides = [1, 1]} : vector<2x128xf32> to vector<2x32xf32>
    %154 = vector.extract_strided_slice %151 {offsets = [0, 32], sizes = [2, 32], strides = [1, 1]} : vector<2x128xf32> to vector<2x32xf32>
    %155 = vector.extract_strided_slice %152 {offsets = [0, 64], sizes = [2, 32], strides = [1, 1]} : vector<2x128xf32> to vector<2x32xf32>
    %156 = vector.extract_strided_slice %151 {offsets = [0, 96], sizes = [2, 32], strides = [1, 1]} : vector<2x128xf32> to vector<2x32xf32>
    %157 = arith.mulf %154, %142 : vector<2x32xf32>
    %158 = arith.mulf %153, %155 : vector<2x32xf32>
    %159 = arith.addf %157, %158 : vector<2x32xf32>
    %160 = math.tanh %159 : vector<2x32xf32>
    %161 = arith.mulf %156, %160 : vector<2x32xf32>
    %cst_65 = arith.constant dense<0.000000e+00> : vector<2x128xf32>
    %162 = tpu.matmul %161, %2, %cst_65 {dimension_numbers = #tpu.dot_dimension_numbers<[1], [0], [0], [1], [0, 0, 1, 1], [], []>, precision = #tpu.contract_precision<fp32>} : vector<2x32xf32>, vector<32x128xf32>, vector<2x128xf32> -> vector<2x128xf32>
    %163 = arith.addf %58, %162 : vector<2x128xf32>
    %164 = arith.negf %163 : vector<2x128xf32>
    %165 = math.exp %164 : vector<2x128xf32>
    %cst_66 = arith.constant 1.000000e+00 : f32
    %166 = vector.broadcast %cst_66 : f32 to vector<2x128xf32>
    %167 = arith.addf %166, %165 : vector<2x128xf32>
    %168 = arith.divf %166, %167 : vector<2x128xf32>
    %169 = math.tanh %163 : vector<2x128xf32>
    %170 = vector.extract_strided_slice %168 {offsets = [0, 0], sizes = [2, 32], strides = [1, 1]} : vector<2x128xf32> to vector<2x32xf32>
    %171 = vector.extract_strided_slice %168 {offsets = [0, 32], sizes = [2, 32], strides = [1, 1]} : vector<2x128xf32> to vector<2x32xf32>
    %172 = vector.extract_strided_slice %169 {offsets = [0, 64], sizes = [2, 32], strides = [1, 1]} : vector<2x128xf32> to vector<2x32xf32>
    %173 = vector.extract_strided_slice %168 {offsets = [0, 96], sizes = [2, 32], strides = [1, 1]} : vector<2x128xf32> to vector<2x32xf32>
    %174 = arith.mulf %171, %159 : vector<2x32xf32>
    %175 = arith.mulf %170, %172 : vector<2x32xf32>
    %176 = arith.addf %174, %175 : vector<2x32xf32>
    %177 = math.tanh %176 : vector<2x32xf32>
    %178 = arith.mulf %173, %177 : vector<2x32xf32>
    %cst_67 = arith.constant dense<0.000000e+00> : vector<2x128xf32>
    %179 = tpu.matmul %178, %2, %cst_67 {dimension_numbers = #tpu.dot_dimension_numbers<[1], [0], [0], [1], [0, 0, 1, 1], [], []>, precision = #tpu.contract_precision<fp32>} : vector<2x32xf32>, vector<32x128xf32>, vector<2x128xf32> -> vector<2x128xf32>
    %180 = arith.addf %69, %179 : vector<2x128xf32>
    %181 = arith.negf %180 : vector<2x128xf32>
    %182 = math.exp %181 : vector<2x128xf32>
    %cst_68 = arith.constant 1.000000e+00 : f32
    %183 = vector.broadcast %cst_68 : f32 to vector<2x128xf32>
    %184 = arith.addf %183, %182 : vector<2x128xf32>
    %185 = arith.divf %183, %184 : vector<2x128xf32>
    %186 = math.tanh %180 : vector<2x128xf32>
    %187 = vector.extract_strided_slice %185 {offsets = [0, 0], sizes = [2, 32], strides = [1, 1]} : vector<2x128xf32> to vector<2x32xf32>
    %188 = vector.extract_strided_slice %185 {offsets = [0, 32], sizes = [2, 32], strides = [1, 1]} : vector<2x128xf32> to vector<2x32xf32>
    %189 = vector.extract_strided_slice %186 {offsets = [0, 64], sizes = [2, 32], strides = [1, 1]} : vector<2x128xf32> to vector<2x32xf32>
    %190 = vector.extract_strided_slice %185 {offsets = [0, 96], sizes = [2, 32], strides = [1, 1]} : vector<2x128xf32> to vector<2x32xf32>
    %191 = arith.mulf %188, %176 : vector<2x32xf32>
    %192 = arith.mulf %187, %189 : vector<2x32xf32>
    %193 = arith.addf %191, %192 : vector<2x32xf32>
    %194 = math.tanh %193 : vector<2x32xf32>
    %195 = arith.mulf %190, %194 : vector<2x32xf32>
    %cst_69 = arith.constant dense<0.000000e+00> : vector<2x128xf32>
    %196 = tpu.matmul %195, %2, %cst_69 {dimension_numbers = #tpu.dot_dimension_numbers<[1], [0], [0], [1], [0, 0, 1, 1], [], []>, precision = #tpu.contract_precision<fp32>} : vector<2x32xf32>, vector<32x128xf32>, vector<2x128xf32> -> vector<2x128xf32>
    %197 = arith.addf %80, %196 : vector<2x128xf32>
    %198 = arith.negf %197 : vector<2x128xf32>
    %199 = math.exp %198 : vector<2x128xf32>
    %cst_70 = arith.constant 1.000000e+00 : f32
    %200 = vector.broadcast %cst_70 : f32 to vector<2x128xf32>
    %201 = arith.addf %200, %199 : vector<2x128xf32>
    %202 = arith.divf %200, %201 : vector<2x128xf32>
    %203 = math.tanh %197 : vector<2x128xf32>
    %204 = vector.extract_strided_slice %202 {offsets = [0, 0], sizes = [2, 32], strides = [1, 1]} : vector<2x128xf32> to vector<2x32xf32>
    %205 = vector.extract_strided_slice %202 {offsets = [0, 32], sizes = [2, 32], strides = [1, 1]} : vector<2x128xf32> to vector<2x32xf32>
    %206 = vector.extract_strided_slice %203 {offsets = [0, 64], sizes = [2, 32], strides = [1, 1]} : vector<2x128xf32> to vector<2x32xf32>
    %207 = vector.extract_strided_slice %202 {offsets = [0, 96], sizes = [2, 32], strides = [1, 1]} : vector<2x128xf32> to vector<2x32xf32>
    %208 = arith.mulf %205, %193 : vector<2x32xf32>
    %209 = arith.mulf %204, %206 : vector<2x32xf32>
    %210 = arith.addf %208, %209 : vector<2x32xf32>
    %211 = math.tanh %210 : vector<2x32xf32>
    %212 = arith.mulf %207, %211 : vector<2x32xf32>
    %cst_71 = arith.constant dense<0.000000e+00> : vector<2x128xf32>
    %213 = tpu.matmul %212, %2, %cst_71 {dimension_numbers = #tpu.dot_dimension_numbers<[1], [0], [0], [1], [0, 0, 1, 1], [], []>, precision = #tpu.contract_precision<fp32>} : vector<2x32xf32>, vector<32x128xf32>, vector<2x128xf32> -> vector<2x128xf32>
    %214 = arith.addf %91, %213 : vector<2x128xf32>
    %215 = arith.negf %214 : vector<2x128xf32>
    %216 = math.exp %215 : vector<2x128xf32>
    %cst_72 = arith.constant 1.000000e+00 : f32
    %217 = vector.broadcast %cst_72 : f32 to vector<2x128xf32>
    %218 = arith.addf %217, %216 : vector<2x128xf32>
    %219 = arith.divf %217, %218 : vector<2x128xf32>
    %220 = math.tanh %214 : vector<2x128xf32>
    %221 = vector.extract_strided_slice %219 {offsets = [0, 0], sizes = [2, 32], strides = [1, 1]} : vector<2x128xf32> to vector<2x32xf32>
    %222 = vector.extract_strided_slice %219 {offsets = [0, 32], sizes = [2, 32], strides = [1, 1]} : vector<2x128xf32> to vector<2x32xf32>
    %223 = vector.extract_strided_slice %220 {offsets = [0, 64], sizes = [2, 32], strides = [1, 1]} : vector<2x128xf32> to vector<2x32xf32>
    %224 = vector.extract_strided_slice %219 {offsets = [0, 96], sizes = [2, 32], strides = [1, 1]} : vector<2x128xf32> to vector<2x32xf32>
    %225 = arith.mulf %222, %210 : vector<2x32xf32>
    %226 = arith.mulf %221, %223 : vector<2x32xf32>
    %227 = arith.addf %225, %226 : vector<2x32xf32>
    %228 = math.tanh %227 : vector<2x32xf32>
    %229 = arith.mulf %224, %228 : vector<2x32xf32>
    %c0_73 = arith.constant 0 : index
    %c0_74 = arith.constant 0 : index
    %c0_75 = arith.constant 0 : index
    %230 = vector.load %arg6[%c0_73, %c0_74, %c0_75] : memref<1x2x32xf32, #tpu.memory_space<vmem>>, vector<1x2x32xf32>
    %231 = vector.shape_cast %230 : vector<1x2x32xf32> to vector<2x32xf32>
    %232 = vector.shape_cast %229 : vector<2x32xf32> to vector<1x2x32xf32>
    tpu.vector_store %arg6[%c0_73, %c0_74, %c0_75], %232 {strides = array<i32>} : memref<1x2x32xf32, #tpu.memory_space<vmem>>, vector<1x2x32xf32>,
    return
  }
}

</mosaic_0001>

<llo_original>
// kernel: encoder_forward.1
$region0: #{encoder_forward.1}
  #allocation0 [shape = 'u32[]', space=smem, size = 0x4, offset = 0x4, fixed_abs, tag = 'smem constant byte address 0x4 - core index']
  #allocation1 [shape = 'u32[144,128]{1,0:T(1,128)}', space=vmem, size = 0x12000, scoped, tag = 'internal scratch']
  %s0 = inlined_call_operand.vmem [shape: f32[8,2,2], index: 0, kind: input, shape index: {}]
  %s1 = inlined_call_operand.vmem [shape: f32[8,2,1], index: 1, kind: input, shape index: {}]
  %s2 = inlined_call_operand.vmem [shape: f32[2,128], index: 2, kind: input, shape index: {}]
  %s3 = inlined_call_operand.vmem [shape: f32[1,128], index: 3, kind: input, shape index: {}]
  %s4 = inlined_call_operand.vmem [shape: f32[32,128], index: 4, kind: input, shape index: {}]
  %s5 = inlined_call_operand.vmem [shape: f32[1,128], index: 5, kind: input, shape index: {}]
  %s6 = inlined_call_operand.hbm [shape: f32[1,2,32], index: 6, kind: output, shape index: {}]
  %s7 = sld [smem:[#allocation0]]
  $region34: #{encoder_forward.1} parent=0
    _
  %s9 = ssub.s32 1, %s7
  %s10 = scalar_select 0, %s9, %s7
  $region1: #{encoder_forward.1} parent=0
    #allocation2 [shape = 'u8[1024]{0}', space=vmem, size = 0x400, scoped, tag = 'output window, operand 0, single buffered']
    #allocation3 [shape = 's32[1]{0}', space=sflag, size = 0x4, scoped, tag = 'scoped memory for encoder_forward.1']
    %11 = vsyncpa [#allocation3], 0
    // Predicated region
    $region2: #{encoder_forward.1} parent=1 // pred_check
      _
    $region3: #{encoder_forward.1} parent=1 // pred_check_branch
      %13 = sbr.rel (0) target = $region5
    $region4: #{encoder_forward.1} parent=1 // pred_region
      _
    $region5: #{encoder_forward.1} parent=1 // pred_fallthru
      _
    // Predicated region
    $region6: #{encoder_forward.1} parent=1 // pred_check
      _
    $region7: #{encoder_forward.1} parent=1 // pred_check_branch
      %15 = sbr.rel (0) target = $region9
    $region8: #{encoder_forward.1} parent=1 // pred_region
      _
    $region9: #{encoder_forward.1} parent=1 // pred_fallthru
      _
    // Predicated region
    $region10: #{encoder_forward.1} parent=1 // pred_check
      _
    $region11: #{encoder_forward.1} parent=1 // pred_check_branch
      %17 = sbr.rel (0) target = $region13
    $region12: #{encoder_forward.1} parent=1 // pred_region
      _
    $region13: #{encoder_forward.1} parent=1 // pred_fallthru
      _
    // Predicated region
    $region14: #{encoder_forward.1} parent=1 // pred_check
      _
    $region15: #{encoder_forward.1} parent=1 // pred_check_branch
      %19 = sbr.rel (0) target = $region17
    $region16: #{encoder_forward.1} parent=1 // pred_region
      _
    $region17: #{encoder_forward.1} parent=1 // pred_fallthru
      _
    // Predicated region
    $region18: #{encoder_forward.1} parent=1 // pred_check
      _
    $region19: #{encoder_forward.1} parent=1 // pred_check_branch
      %21 = sbr.rel (0) target = $region21
    $region20: #{encoder_forward.1} parent=1 // pred_region
      _
    $region21: #{encoder_forward.1} parent=1 // pred_fallthru
      _
    // Predicated region
    $region22: #{encoder_forward.1} parent=1 // pred_check
      _
    $region23: #{encoder_forward.1} parent=1 // pred_check_branch
      %23 = sbr.rel (0) target = $region25
    $region24: #{encoder_forward.1} parent=1 // pred_region
      _
    $region25: #{encoder_forward.1} parent=1 // pred_fallthru
      _
    %v24 = vld [vmem:[%s2] sm:$0x3]
    %v25 = vld [vmem:[%s3] sm:$0x1]
    %v26 = vld [vmem:[%s4] sm:$0xff]
    %v27 = vld [vmem:[%s4 + $0x8] sm:$0xff]
    %v28 = vld [vmem:[%s4 + $0x10] sm:$0xff]
    %v29 = vld [vmem:[%s4 + $0x18] sm:$0xff]
    %v30 = vld [vmem:[%s5] sm:$0x1]
    %v31 = vld [vmem:[%s0] sm:$0x3]
    %v32 = vld [vmem:[%s1] sm:$0x3]
    %34 = vset.pattern.permute.xlu0 0
    %35 = vperm.xlu0 %34, %v32
    %v36 = vpop.permute.xlu0 %35
    %v39 = vlaneseq
    %v40 = vshrl.u32 %v39, 7
    %v41 = vsub.s32 0, %v40
    %v42 = vrot.slane %v25, %v41
    %v44 = vmul.f32 %v36, %v42
    %vm45 = vcmask 15360
    %v47 = vsel %vm45, %v31, 0
    %vm49 = vcmask 1041408
    %v51 = vsel %vm49, %v24, 0
    %53 = vmatprep.subr.mxu0 0.0
    %54 = vmatpush1.msra.mxu0 0.0
    %55 = vmatprep.subr.mxu0 0.0
    %56 = vmatpush1.msra.mxu0 0.0
    %57 = vmatprep.subr.mxu0 0.0
    %58 = vmatpush1.msra.mxu0 0.0
    %59 = vmatprep.subr.mxu0 0.0
    %60 = vmatpush1.msra.mxu0 0.0
    %61 = vmatprep.subr.mxu0 0.0
    %62 = vmatpush1.msra.mxu0 0.0
    %63 = vmatprep.subr.mxu0 0.0
    %64 = vmatpush1.msra.mxu0 0.0
    %65 = vmatprep.subr.mxu0 0.0
    %66 = vmatpush1.msra.mxu0 0.0
    %67 = vmatprep.subr.mxu0 0.0
    %68 = vmatpush1.msra.mxu0 0.0
    %69 = vmatprep.subr.mxu0 0.0
    %70 = vmatpush1.msra.mxu0 0.0
    %71 = vmatprep.subr.mxu0 0.0
    %72 = vmatpush1.msra.mxu0 0.0
    %73 = vmatprep.subr.mxu0 0.0
    %74 = vmatpush1.msra.mxu0 0.0
    %75 = vmatprep.subr.mxu0 0.0
    %76 = vmatpush1.msra.mxu0 0.0
    %77 = vmatprep.subr.mxu0 0.0
    %78 = vmatpush1.msra.mxu0 0.0
    %79 = vmatprep.subr.mxu0 0.0
    %80 = vmatpush1.msra.mxu0 0.0
    %81 = vmatprep.subr.mxu0 0.0
    %82 = vmatpush1.msra.mxu0 0.0
    %83 = vmatprep.subr.mxu0 0.0
    %v84 = vand.u32 %v51, 4294901760
    %85 = vmatpush1.msra.mxu0 %v84
    %86 = vmatprep.subr.mxu0 0.0
    %87 = vmatpush2.msra.mxu0 0.0
    %88 = vmatprep.subr.mxu0 0.0
    %89 = vmatpush2.msra.mxu0 0.0
    %90 = vmatprep.subr.mxu0 0.0
    %91 = vmatpush2.msra.mxu0 0.0
    %92 = vmatprep.subr.mxu0 0.0
    %93 = vmatpush2.msra.mxu0 0.0
    %94 = vmatprep.subr.mxu0 0.0
    %95 = vmatpush2.msra.mxu0 0.0
    %96 = vmatprep.subr.mxu0 0.0
    %97 = vmatpush2.msra.mxu0 0.0
    %98 = vmatprep.subr.mxu0 0.0
    %99 = vmatpush2.msra.mxu0 0.0
    %100 = vmatprep.subr.mxu0 0.0
    %101 = vmatpush2.msra.mxu0 0.0
    %102 = vmatprep.subr.mxu0 0.0
    %103 = vmatpush2.msra.mxu0 0.0
    %104 = vmatprep.subr.mxu0 0.0
    %105 = vmatpush2.msra.mxu0 0.0
    %106 = vmatprep.subr.mxu0 0.0
    %107 = vmatpush2.msra.mxu0 0.0
    %108 = vmatprep.subr.mxu0 0.0
    %109 = vmatpush2.msra.mxu0 0.0
    %110 = vmatprep.subr.mxu0 0.0
    %111 = vmatpush2.msra.mxu0 0.0
    %112 = vmatprep.subr.mxu0 0.0
    %113 = vmatpush2.msra.mxu0 0.0
    %114 = vmatprep.subr.mxu0 0.0
    %115 = vmatpush2.msra.mxu0 0.0
    %116 = vmatprep.subr.mxu0 0.0
    %117 = vmatpush2.msra.mxu0 0.0
    %118 = vmatprep.mubr.f32.mxu0 0.0
    %v119 = vand.u32 %v47, 4294901760
    %v120 = vsub.f32 %v47, %v119
    %v121 = vand.u32 %v120, 4294901760
    %v122 = vsub.f32 %v120, %v121
    %v123 = vand.u32 %v122, 4294901760
    %124 = vmatmul.mubr.f32.gmra.mxu0 %v123
    %v125 = vpop.f32.mrf.mxu0
    %v126 = vadd.f32 %v44, %v125
    %v127 = vpop.f32.mrf.mxu0
    %128 = vdwg.mxu0
    %129 = vmatprep.subr.mxu0 0.0
    %130 = vmatpush1.msra.mxu0 0.0
    %131 = vmatprep.subr.mxu0 0.0
    %132 = vmatpush1.msra.mxu0 0.0
    %133 = vmatprep.subr.mxu0 0.0
    %134 = vmatpush1.msra.mxu0 0.0
    %135 = vmatprep.subr.mxu0 0.0
    %136 = vmatpush1.msra.mxu0 0.0
    %137 = vmatprep.subr.mxu0 0.0
    %138 = vmatpush1.msra.mxu0 0.0
    %139 = vmatprep.subr.mxu0 0.0
    %140 = vmatpush1.msra.mxu0 0.0
    %141 = vmatprep.subr.mxu0 0.0
    %142 = vmatpush1.msra.mxu0 0.0
    %143 = vmatprep.subr.mxu0 0.0
    %144 = vmatpush1.msra.mxu0 0.0
    %145 = vmatprep.subr.mxu0 0.0
    %146 = vmatpush1.msra.mxu0 0.0
    %147 = vmatprep.subr.mxu0 0.0
    %148 = vmatpush1.msra.mxu0 0.0
    %149 = vmatprep.subr.mxu0 0.0
    %150 = vmatpush1.msra.mxu0 0.0
    %151 = vmatprep.subr.mxu0 0.0
    %152 = vmatpush1.msra.mxu0 0.0
    %153 = vmatprep.subr.mxu0 0.0
    %154 = vmatpush1.msra.mxu0 0.0
    %155 = vmatprep.subr.mxu0 0.0
    %156 = vmatpush1.msra.mxu0 0.0
    %157 = vmatprep.subr.mxu0 0.0
    %158 = vmatpush1.msra.mxu0 0.0
    %159 = vmatprep.subr.mxu0 0.0
    %v160 = vand.u32 %v51, 4294901760
    %v161 = vsub.f32 %v51, %v160
    %v162 = vand.u32 %v161, 4294901760
    %v163 = vsub.f32 %v161, %v162
    %v164 = vand.u32 %v163, 4294901760
    %165 = vmatpush1.msra.mxu0 %v164
    %166 = vmatprep.subr.mxu0 0.0
    %167 = vmatpush2.msra.mxu0 0.0
    %168 = vmatprep.subr.mxu0 0.0
    %169 = vmatpush2.msra.mxu0 0.0
    %170 = vmatprep.subr.mxu0 0.0
    %171 = vmatpush2.msra.mxu0 0.0
    %172 = vmatprep.subr.mxu0 0.0
    %173 = vmatpush2.msra.mxu0 0.0
    %174 = vmatprep.subr.mxu0 0.0
    %175 = vmatpush2.msra.mxu0 0.0
    %176 = vmatprep.subr.mxu0 0.0
    %177 = vmatpush2.msra.mxu0 0.0
    %178 = vmatprep.subr.mxu0 0.0
    %179 = vmatpush2.msra.mxu0 0.0
    %180 = vmatprep.subr.mxu0 0.0
    %181 = vmatpush2.msra.mxu0 0.0
    %182 = vmatprep.subr.mxu0 0.0
    %183 = vmatpush2.msra.mxu0 0.0
    %184 = vmatprep.subr.mxu0 0.0
    %185 = vmatpush2.msra.mxu0 0.0
    %186 = vmatprep.subr.mxu0 0.0
    %187 = vmatpush2.msra.mxu0 0.0
    %188 = vmatprep.subr.mxu0 0.0
    %189 = vmatpush2.msra.mxu0 0.0
    %190 = vmatprep.subr.mxu0 0.0
    %191 = vmatpush2.msra.mxu0 0.0
    %192 = vmatprep.subr.mxu0 0.0
    %193 = vmatpush2.msra.mxu0 0.0
    %194 = vmatprep.subr.mxu0 0.0
    %195 = vmatpush2.msra.mxu0 0.0
    %196 = vmatprep.subr.mxu0 0.0
    %197 = vmatpush2.msra.mxu0 0.0
    %198 = vmatprep.mubr.f32.mxu0 0.0
    %v199 = vand.u32 %v47, 4294901760
    %200 = vmatmul.mubr.f32.gmra.mxu0 %v199
    %v201 = vpop.f32.mrf.mxu0
    %v202 = vadd.f32 %v126, %v201
    %v203 = vpop.f32.mrf.mxu0
    %204 = vdwg.mxu0
    %205 = vmatprep.subr.mxu0 0.0
    %206 = vmatpush1.msra.mxu0 0.0
    %207 = vmatprep.subr.mxu0 0.0
    %208 = vmatpush1.msra.mxu0 0.0
    %209 = vmatprep.subr.mxu0 0.0
    %210 = vmatpush1.msra.mxu0 0.0
    %211 = vmatprep.subr.mxu0 0.0
    %212 = vmatpush1.msra.mxu0 0.0
    %213 = vmatprep.subr.mxu0 0.0
    %214 = vmatpush1.msra.mxu0 0.0
    %215 = vmatprep.subr.mxu0 0.0
    %216 = vmatpush1.msra.mxu0 0.0
    %217 = vmatprep.subr.mxu0 0.0
    %218 = vmatpush1.msra.mxu0 0.0
    %219 = vmatprep.subr.mxu0 0.0
    %220 = vmatpush1.msra.mxu0 0.0
    %221 = vmatprep.subr.mxu0 0.0
    %222 = vmatpush1.msra.mxu0 0.0
    %223 = vmatprep.subr.mxu0 0.0
    %224 = vmatpush1.msra.mxu0 0.0
    %225 = vmatprep.subr.mxu0 0.0
    %226 = vmatpush1.msra.mxu0 0.0
    %227 = vmatprep.subr.mxu0 0.0
    %228 = vmatpush1.msra.mxu0 0.0
    %229 = vmatprep.subr.mxu0 0.0
    %230 = vmatpush1.msra.mxu0 0.0
    %231 = vmatprep.subr.mxu0 0.0
    %232 = vmatpush1.msra.mxu0 0.0
    %233 = vmatprep.subr.mxu0 0.0
    %234 = vmatpush1.msra.mxu0 0.0
    %235 = vmatprep.subr.mxu0 0.0
    %v236 = vand.u32 %v51, 4294901760
    %v237 = vsub.f32 %v51, %v236
    %238 = vmatpush1.msra.mxu0 %v237
    %239 = vmatprep.subr.mxu0 0.0
    %240 = vmatpush2.msra.mxu0 0.0
    %241 = vmatprep.subr.mxu0 0.0
    %242 = vmatpush2.msra.mxu0 0.0
    %243 = vmatprep.subr.mxu0 0.0
    %244 = vmatpush2.msra.mxu0 0.0
    %245 = vmatprep.subr.mxu0 0.0
    %246 = vmatpush2.msra.mxu0 0.0
    %247 = vmatprep.subr.mxu0 0.0
    %248 = vmatpush2.msra.mxu0 0.0
    %249 = vmatprep.subr.mxu0 0.0
    %250 = vmatpush2.msra.mxu0 0.0
    %251 = vmatprep.subr.mxu0 0.0
    %252 = vmatpush2.msra.mxu0 0.0
    %253 = vmatprep.subr.mxu0 0.0
    %254 = vmatpush2.msra.mxu0 0.0
    %255 = vmatprep.subr.mxu0 0.0
    %256 = vmatpush2.msra.mxu0 0.0
    %257 = vmatprep.subr.mxu0 0.0
    %258 = vmatpush2.msra.mxu0 0.0
    %259 = vmatprep.subr.mxu0 0.0
    %260 = vmatpush2.msra.mxu0 0.0
    %261 = vmatprep.subr.mxu0 0.0
    %262 = vmatpush2.msra.mxu0 0.0
    %263 = vmatprep.subr.mxu0 0.0
    %264 = vmatpush2.msra.mxu0 0.0
    %265 = vmatprep.subr.mxu0 0.0
    %266 = vmatpush2.msra.mxu0 0.0
    %267 = vmatprep.subr.mxu0 0.0
    %268 = vmatpush2.msra.mxu0 0.0
    %269 = vmatprep.subr.mxu0 0.0
    %270 = vmatpush2.msra.mxu0 0.0
    %271 = vmatprep.mubr.f32.mxu0 0.0
    %v272 = vand.u32 %v47, 4294901760
    %v273 = vsub.f32 %v47, %v272
    %274 = vmatmul.mubr.f32.gmra.mxu0 %v273
    %v275 = vpop.f32.mrf.mxu0
    %v276 = vadd.f32 %v202, %v275
    %v277 = vpop.f32.mrf.mxu0
    %278 = vdwg.mxu0
    %279 = vmatprep.subr.mxu0 0.0
    %280 = vmatpush1.msra.mxu0 0.0
    %281 = vmatprep.subr.mxu0 0.0
    %282 = vmatpush1.msra.mxu0 0.0
    %283 = vmatprep.subr.mxu0 0.0
    %284 = vmatpush1.msra.mxu0 0.0
    %285 = vmatprep.subr.mxu0 0.0
    %286 = vmatpush1.msra.mxu0 0.0
    %287 = vmatprep.subr.mxu0 0.0
    %288 = vmatpush1.msra.mxu0 0.0
    %289 = vmatprep.subr.mxu0 0.0
    %290 = vmatpush1.msra.mxu0 0.0
    %291 = vmatprep.subr.mxu0 0.0
    %292 = vmatpush1.msra.mxu0 0.0
    %293 = vmatprep.subr.mxu0 0.0
    %294 = vmatpush1.msra.mxu0 0.0
    %295 = vmatprep.subr.mxu0 0.0
    %296 = vmatpush1.msra.mxu0 0.0
    %297 = vmatprep.subr.mxu0 0.0
    %298 = vmatpush1.msra.mxu0 0.0
    %299 = vmatprep.subr.mxu0 0.0
    %300 = vmatpush1.msra.mxu0 0.0
    %301 = vmatprep.subr.mxu0 0.0
    %302 = vmatpush1.msra.mxu0 0.0
    %303 = vmatprep.subr.mxu0 0.0
    %304 = vmatpush1.msra.mxu0 0.0
    %305 = vmatprep.subr.mxu0 0.0
    %306 = vmatpush1.msra.mxu0 0.0
    %307 = vmatprep.subr.mxu0 0.0
    %308 = vmatpush1.msra.mxu0 0.0
    %309 = vmatprep.subr.mxu0 0.0
    %v310 = vand.u32 %v51, 4294901760
    %311 = vmatpush1.msra.mxu0 %v310
    %312 = vmatprep.subr.mxu0 0.0
    %313 = vmatpush2.msra.mxu0 0.0
    %314 = vmatprep.subr.mxu0 0.0
    %315 = vmatpush2.msra.mxu0 0.0
    %316 = vmatprep.subr.mxu0 0.0
    %317 = vmatpush2.msra.mxu0 0.0
    %318 = vmatprep.subr.mxu0 0.0
    %319 = vmatpush2.msra.mxu0 0.0
    %320 = vmatprep.subr.mxu0 0.0
    %321 = vmatpush2.msra.mxu0 0.0
    %322 = vmatprep.subr.mxu0 0.0
    %323 = vmatpush2.msra.mxu0 0.0
    %324 = vmatprep.subr.mxu0 0.0
    %325 = vmatpush2.msra.mxu0 0.0
    %326 = vmatprep.subr.mxu0 0.0
    %327 = vmatpush2.msra.mxu0 0.0
    %328 = vmatprep.subr.mxu0 0.0
    %329 = vmatpush2.msra.mxu0 0.0
    %330 = vmatprep.subr.mxu0 0.0
    %331 = vmatpush2.msra.mxu0 0.0
    %332 = vmatprep.subr.mxu0 0.0
    %333 = vmatpush2.msra.mxu0 0.0
    %334 = vmatprep.subr.mxu0 0.0
    %335 = vmatpush2.msra.mxu0 0.0
    %336 = vmatprep.subr.mxu0 0.0
    %337 = vmatpush2.msra.mxu0 0.0
    %338 = vmatprep.subr.mxu0 0.0
    %339 = vmatpush2.msra.mxu0 0.0
    %340 = vmatprep.subr.mxu0 0.0
    %341 = vmatpush2.msra.mxu0 0.0
    %342 = vmatprep.subr.mxu0 0.0
    %343 = vmatpush2.msra.mxu0 0.0
    %344 = vmatprep.mubr.f32.mxu0 0.0
    %v345 = vand.u32 %v47, 4294901760
    %v346 = vsub.f32 %v47, %v345
    %v347 = vand.u32 %v346, 4294901760
    %348 = vmatmul.mubr.f32.gmra.mxu0 %v347
    %v349 = vpop.f32.mrf.mxu0
    %v350 = vadd.f32 %v276, %v349
    %v351 = vpop.f32.mrf.mxu0
    %352 = vdwg.mxu0
    %353 = vmatprep.subr.mxu0 0.0
    %354 = vmatpush1.msra.mxu0 0.0
    %355 = vmatprep.subr.mxu0 0.0
    %356 = vmatpush1.msra.mxu0 0.0
    %357 = vmatprep.subr.mxu0 0.0
    %358 = vmatpush1.msra.mxu0 0.0
    %359 = vmatprep.subr.mxu0 0.0
    %360 = vmatpush1.msra.mxu0 0.0
    %361 = vmatprep.subr.mxu0 0.0
    %362 = vmatpush1.msra.mxu0 0.0
    %363 = vmatprep.subr.mxu0 0.0
    %364 = vmatpush1.msra.mxu0 0.0
    %365 = vmatprep.subr.mxu0 0.0
    %366 = vmatpush1.msra.mxu0 0.0
    %367 = vmatprep.subr.mxu0 0.0
    %368 = vmatpush1.msra.mxu0 0.0
    %369 = vmatprep.subr.mxu0 0.0
    %370 = vmatpush1.msra.mxu0 0.0
    %371 = vmatprep.subr.mxu0 0.0
    %372 = vmatpush1.msra.mxu0 0.0
    %373 = vmatprep.subr.mxu0 0.0
    %374 = vmatpush1.msra.mxu0 0.0
    %375 = vmatprep.subr.mxu0 0.0
    %376 = vmatpush1.msra.mxu0 0.0
    %377 = vmatprep.subr.mxu0 0.0
    %378 = vmatpush1.msra.mxu0 0.0
    %379 = vmatprep.subr.mxu0 0.0
    %380 = vmatpush1.msra.mxu0 0.0
    %381 = vmatprep.subr.mxu0 0.0
    %382 = vmatpush1.msra.mxu0 0.0
    %383 = vmatprep.subr.mxu0 0.0
    %v384 = vand.u32 %v51, 4294901760
    %v385 = vsub.f32 %v51, %v384
    %v386 = vand.u32 %v385, 4294901760
    %387 = vmatpush1.msra.mxu0 %v386
    %388 = vmatprep.subr.mxu0 0.0
    %389 = vmatpush2.msra.mxu0 0.0
    %390 = vmatprep.subr.mxu0 0.0
    %391 = vmatpush2.msra.mxu0 0.0
    %392 = vmatprep.subr.mxu0 0.0
    %393 = vmatpush2.msra.mxu0 0.0
    %394 = vmatprep.subr.mxu0 0.0
    %395 = vmatpush2.msra.mxu0 0.0
    %396 = vmatprep.subr.mxu0 0.0
    %397 = vmatpush2.msra.mxu0 0.0
    %398 = vmatprep.subr.mxu0 0.0
    %399 = vmatpush2.msra.mxu0 0.0
    %400 = vmatprep.subr.mxu0 0.0
    %401 = vmatpush2.msra.mxu0 0.0
    %402 = vmatprep.subr.mxu0 0.0
    %403 = vmatpush2.msra.mxu0 0.0
    %404 = vmatprep.subr.mxu0 0.0
    %405 = vmatpush2.msra.mxu0 0.0
    %406 = vmatprep.subr.mxu0 0.0
    %407 = vmatpush2.msra.mxu0 0.0
    %408 = vmatprep.subr.mxu0 0.0
    %409 = vmatpush2.msra.mxu0 0.0
    %410 = vmatprep.subr.mxu0 0.0
    %411 = vmatpush2.msra.mxu0 0.0
    %412 = vmatprep.subr.mxu0 0.0
    %413 = vmatpush2.msra.mxu0 0.0
    %414 = vmatprep.subr.mxu0 0.0
    %415 = vmatpush2.msra.mxu0 0.0
    %416 = vmatprep.subr.mxu0 0.0
    %417 = vmatpush2.msra.mxu0 0.0
    %418 = vmatprep.subr.mxu0 0.0
    %419 = vmatpush2.msra.mxu0 0.0
    %420 = vmatprep.mubr.f32.mxu0 0.0
    %v421 = vand.u32 %v47, 4294901760
    %422 = vmatmul.mubr.f32.gmra.mxu0 %v421
    %v423 = vpop.f32.mrf.mxu0
    %v424 = vadd.f32 %v350, %v423
    %v425 = vpop.f32.mrf.mxu0
    %426 = vdwg.mxu0
    %427 = vmatprep.subr.mxu0 0.0
    %428 = vmatpush1.msra.mxu0 0.0
    %429 = vmatprep.subr.mxu0 0.0
    %430 = vmatpush1.msra.mxu0 0.0
    %431 = vmatprep.subr.mxu0 0.0
    %432 = vmatpush1.msra.mxu0 0.0
    %433 = vmatprep.subr.mxu0 0.0
    %434 = vmatpush1.msra.mxu0 0.0
    %435 = vmatprep.subr.mxu0 0.0
    %436 = vmatpush1.msra.mxu0 0.0
    %437 = vmatprep.subr.mxu0 0.0
    %438 = vmatpush1.msra.mxu0 0.0
    %439 = vmatprep.subr.mxu0 0.0
    %440 = vmatpush1.msra.mxu0 0.0
    %441 = vmatprep.subr.mxu0 0.0
    %442 = vmatpush1.msra.mxu0 0.0
    %443 = vmatprep.subr.mxu0 0.0
    %444 = vmatpush1.msra.mxu0 0.0
    %445 = vmatprep.subr.mxu0 0.0
    %446 = vmatpush1.msra.mxu0 0.0
    %447 = vmatprep.subr.mxu0 0.0
    %448 = vmatpush1.msra.mxu0 0.0
    %449 = vmatprep.subr.mxu0 0.0
    %450 = vmatpush1.msra.mxu0 0.0
    %451 = vmatprep.subr.mxu0 0.0
    %452 = vmatpush1.msra.mxu0 0.0
    %453 = vmatprep.subr.mxu0 0.0
    %454 = vmatpush1.msra.mxu0 0.0
    %455 = vmatprep.subr.mxu0 0.0
    %456 = vmatpush1.msra.mxu0 0.0
    %457 = vmatprep.subr.mxu0 0.0
    %v458 = vand.u32 %v51, 4294901760
    %459 = vmatpush1.msra.mxu0 %v458
    %460 = vmatprep.subr.mxu0 0.0
    %461 = vmatpush2.msra.mxu0 0.0
    %462 = vmatprep.subr.mxu0 0.0
    %463 = vmatpush2.msra.mxu0 0.0
    %464 = vmatprep.subr.mxu0 0.0
    %465 = vmatpush2.msra.mxu0 0.0
    %466 = vmatprep.subr.mxu0 0.0
    %467 = vmatpush2.msra.mxu0 0.0
    %468 = vmatprep.subr.mxu0 0.0
    %469 = vmatpush2.msra.mxu0 0.0
    %470 = vmatprep.subr.mxu0 0.0
    %471 = vmatpush2.msra.mxu0 0.0
    %472 = vmatprep.subr.mxu0 0.0
    %473 = vmatpush2.msra.mxu0 0.0
    %474 = vmatprep.subr.mxu0 0.0
    %475 = vmatpush2.msra.mxu0 0.0
    %476 = vmatprep.subr.mxu0 0.0
    %477 = vmatpush2.msra.mxu0 0.0
    %478 = vmatprep.subr.mxu0 0.0
    %479 = vmatpush2.msra.mxu0 0.0
    %480 = vmatprep.subr.mxu0 0.0
    %481 = vmatpush2.msra.mxu0 0.0
    %482 = vmatprep.subr.mxu0 0.0
    %483 = vmatpush2.msra.mxu0 0.0
    %484 = vmatprep.subr.mxu0 0.0
    %485 = vmatpush2.msra.mxu0 0.0
    %486 = vmatprep.subr.mxu0 0.0
    %487 = vmatpush2.msra.mxu0 0.0
    %488 = vmatprep.subr.mxu0 0.0
    %489 = vmatpush2.msra.mxu0 0.0
    %490 = vmatprep.subr.mxu0 0.0
    %491 = vmatpush2.msra.mxu0 0.0
    %492 = vmatprep.mubr.f32.mxu0 0.0
    %v493 = vand.u32 %v47, 4294901760
    %494 = vmatmul.mubr.f32.gmra.mxu0 %v493
    %v495 = vpop.f32.mrf.mxu0
    %v496 = vadd.f32 %v424, %v495
    %v497 = vpop.f32.mrf.mxu0
    %498 = vdwg.mxu0
    %v500 = vlaneseq
    %v501 = vshrl.u32 %v500, 7
    %v502 = vsub.s32 0, %v501
    %v503 = vrot.slane %v30, %v502
    %v505 = vadd.f32 %v496, %v503
    %s506 = scalar_lea.vmem %s0, 2
    %v507 = vld [vmem:[%s506] sm:$0x3]
    %s508 = scalar_lea.vmem %s1, 2
    %v509 = vld [vmem:[%s508] sm:$0x3]
    %511 = vset.pattern.permute.xlu0 0
    %512 = vperm.xlu0 %511, %v509
    %v513 = vpop.permute.xlu0 %512
    %v515 = vmul.f32 %v513, %v42
    %v517 = vsel %vm45, %v507, 0
    %519 = vmatprep.subr.mxu0 0.0
    %520 = vmatpush1.msra.mxu0 0.0
    %521 = vmatprep.subr.mxu0 0.0
    %522 = vmatpush1.msra.mxu0 0.0
    %523 = vmatprep.subr.mxu0 0.0
    %524 = vmatpush1.msra.mxu0 0.0
    %525 = vmatprep.subr.mxu0 0.0
    %526 = vmatpush1.msra.mxu0 0.0
    %527 = vmatprep.subr.mxu0 0.0
    %528 = vmatpush1.msra.mxu0 0.0
    %529 = vmatprep.subr.mxu0 0.0
    %530 = vmatpush1.msra.mxu0 0.0
    %531 = vmatprep.subr.mxu0 0.0
    %532 = vmatpush1.msra.mxu0 0.0
    %533 = vmatprep.subr.mxu0 0.0
    %534 = vmatpush1.msra.mxu0 0.0
    %535 = vmatprep.subr.mxu0 0.0
    %536 = vmatpush1.msra.mxu0 0.0
    %537 = vmatprep.subr.mxu0 0.0
    %538 = vmatpush1.msra.mxu0 0.0
    %539 = vmatprep.subr.mxu0 0.0
    %540 = vmatpush1.msra.mxu0 0.0
    %541 = vmatprep.subr.mxu0 0.0
    %542 = vmatpush1.msra.mxu0 0.0
    %543 = vmatprep.subr.mxu0 0.0
    %544 = vmatpush1.msra.mxu0 0.0
    %545 = vmatprep.subr.mxu0 0.0
    %546 = vmatpush1.msra.mxu0 0.0
    %547 = vmatprep.subr.mxu0 0.0
    %548 = vmatpush1.msra.mxu0 0.0
    %549 = vmatprep.subr.mxu0 0.0
    %v550 = vand.u32 %v51, 4294901760
    %551 = vmatpush1.msra.mxu0 %v550
    %552 = vmatprep.subr.mxu0 0.0
    %553 = vmatpush2.msra.mxu0 0.0
    %554 = vmatprep.subr.mxu0 0.0
    %555 = vmatpush2.msra.mxu0 0.0
    %556 = vmatprep.subr.mxu0 0.0
    %557 = vmatpush2.msra.mxu0 0.0
    %558 = vmatprep.subr.mxu0 0.0
    %559 = vmatpush2.msra.mxu0 0.0
    %560 = vmatprep.subr.mxu0 0.0
    %561 = vmatpush2.msra.mxu0 0.0
    %562 = vmatprep.subr.mxu0 0.0
    %563 = vmatpush2.msra.mxu0 0.0
    %564 = vmatprep.subr.mxu0 0.0
    %565 = vmatpush2.msra.mxu0 0.0
    %566 = vmatprep.subr.mxu0 0.0
    %567 = vmatpush2.msra.mxu0 0.0
    %568 = vmatprep.subr.mxu0 0.0
    %569 = vmatpush2.msra.mxu0 0.0
    %570 = vmatprep.subr.mxu0 0.0
    %571 = vmatpush2.msra.mxu0 0.0
    %572 = vmatprep.subr.mxu0 0.0
    %573 = vmatpush2.msra.mxu0 0.0
    %574 = vmatprep.subr.mxu0 0.0
    %575 = vmatpush2.msra.mxu0 0.0
    %576 = vmatprep.subr.mxu0 0.0
    %577 = vmatpush2.msra.mxu0 0.0
    %578 = vmatprep.subr.mxu0 0.0
    %579 = vmatpush2.msra.mxu0 0.0
    %580 = vmatprep.subr.mxu0 0.0
    %581 = vmatpush2.msra.mxu0 0.0
    %582 = vmatprep.subr.mxu0 0.0
    %583 = vmatpush2.msra.mxu0 0.0
    %584 = vmatprep.mubr.f32.mxu0 0.0
    %v585 = vand.u32 %v517, 4294901760
    %v586 = vsub.f32 %v517, %v585
    %v587 = vand.u32 %v586, 4294901760
    %v588 = vsub.f32 %v586, %v587
    %v589 = vand.u32 %v588, 4294901760
    %590 = vmatmul.mubr.f32.gmra.mxu0 %v589
    %v591 = vpop.f32.mrf.mxu0
    %v592 = vadd.f32 %v515, %v591
    %v593 = vpop.f32.mrf.mxu0
    %594 = vdwg.mxu0
    %595 = vmatprep.subr.mxu0 0.0
    %596 = vmatpush1.msra.mxu0 0.0
    %597 = vmatprep.subr.mxu0 0.0
    %598 = vmatpush1.msra.mxu0 0.0
    %599 = vmatprep.subr.mxu0 0.0
    %600 = vmatpush1.msra.mxu0 0.0
    %601 = vmatprep.subr.mxu0 0.0
    %602 = vmatpush1.msra.mxu0 0.0
    %603 = vmatprep.subr.mxu0 0.0
    %604 = vmatpush1.msra.mxu0 0.0
    %605 = vmatprep.subr.mxu0 0.0
    %606 = vmatpush1.msra.mxu0 0.0
    %607 = vmatprep.subr.mxu0 0.0
    %608 = vmatpush1.msra.mxu0 0.0
    %609 = vmatprep.subr.mxu0 0.0
    %610 = vmatpush1.msra.mxu0 0.0
    %611 = vmatprep.subr.mxu0 0.0
    %612 = vmatpush1.msra.mxu0 0.0
    %613 = vmatprep.subr.mxu0 0.0
    %614 = vmatpush1.msra.mxu0 0.0
    %615 = vmatprep.subr.mxu0 0.0
    %616 = vmatpush1.msra.mxu0 0.0
    %617 = vmatprep.subr.mxu0 0.0
    %618 = vmatpush1.msra.mxu0 0.0
    %619 = vmatprep.subr.mxu0 0.0
    %620 = vmatpush1.msra.mxu0 0.0
    %621 = vmatprep.subr.mxu0 0.0
    %622 = vmatpush1.msra.mxu0 0.0
    %623 = vmatprep.subr.mxu0 0.0
    %624 = vmatpush1.msra.mxu0 0.0
    %625 = vmatprep.subr.mxu0 0.0
    %v626 = vand.u32 %v51, 4294901760
    %v627 = vsub.f32 %v51, %v626
    %v628 = vand.u32 %v627, 4294901760
    %v629 = vsub.f32 %v627, %v628
    %v630 = vand.u32 %v629, 4294901760
    %631 = vmatpush1.msra.mxu0 %v630
    %632 = vmatprep.subr.mxu0 0.0
    %633 = vmatpush2.msra.mxu0 0.0
    %634 = vmatprep.subr.mxu0 0.0
    %635 = vmatpush2.msra.mxu0 0.0
    %636 = vmatprep.subr.mxu0 0.0
    %637 = vmatpush2.msra.mxu0 0.0
    %638 = vmatprep.subr.mxu0 0.0
    %639 = vmatpush2.msra.mxu0 0.0
    %640 = vmatprep.subr.mxu0 0.0
    %641 = vmatpush2.msra.mxu0 0.0
    %642 = vmatprep.subr.mxu0 0.0
    %643 = vmatpush2.msra.mxu0 0.0
    %644 = vmatprep.subr.mxu0 0.0
    %645 = vmatpush2.msra.mxu0 0.0
    %646 = vmatprep.subr.mxu0 0.0
    %647 = vmatpush2.msra.mxu0 0.0
    %648 = vmatprep.subr.mxu0 0.0
    %649 = vmatpush2.msra.mxu0 0.0
    %650 = vmatprep.subr.mxu0 0.0
    %651 = vmatpush2.msra.mxu0 0.0
    %652 = vmatprep.subr.mxu0 0.0
    %653 = vmatpush2.msra.mxu0 0.0
    %654 = vmatprep.subr.mxu0 0.0
    %655 = vmatpush2.msra.mxu0 0.0
    %656 = vmatprep.subr.mxu0 0.0
    %657 = vmatpush2.msra.mxu0 0.0
    %658 = vmatprep.subr.mxu0 0.0
    %659 = vmatpush2.msra.mxu0 0.0
    %660 = vmatprep.subr.mxu0 0.0
    %661 = vmatpush2.msra.mxu0 0.0
    %662 = vmatprep.subr.mxu0 0.0
    %663 = vmatpush2.msra.mxu0 0.0
    %664 = vmatprep.mubr.f32.mxu0 0.0
    %v665 = vand.u32 %v517, 4294901760
    %666 = vmatmul.mubr.f32.gmra.mxu0 %v665
    %v667 = vpop.f32.mrf.mxu0
    %v668 = vadd.f32 %v592, %v667
    %v669 = vpop.f32.mrf.mxu0
    %670 = vdwg.mxu0
    %671 = vmatprep.subr.mxu0 0.0
    %672 = vmatpush1.msra.mxu0 0.0
    %673 = vmatprep.subr.mxu0 0.0
    %674 = vmatpush1.msra.mxu0 0.0
    %675 = vmatprep.subr.mxu0 0.0
    %676 = vmatpush1.msra.mxu0 0.0
    %677 = vmatprep.subr.mxu0 0.0
    %678 = vmatpush1.msra.mxu0 0.0
    %679 = vmatprep.subr.mxu0 0.0
    %680 = vmatpush1.msra.mxu0 0.0
    %681 = vmatprep.subr.mxu0 0.0
    %682 = vmatpush1.msra.mxu0 0.0
    %683 = vmatprep.subr.mxu0 0.0
    %684 = vmatpush1.msra.mxu0 0.0
    %685 = vmatprep.subr.mxu0 0.0
    %686 = vmatpush1.msra.mxu0 0.0
    %687 = vmatprep.subr.mxu0 0.0
    %688 = vmatpush1.msra.mxu0 0.0
    %689 = vmatprep.subr.mxu0 0.0
    %690 = vmatpush1.msra.mxu0 0.0
    %691 = vmatprep.subr.mxu0 0.0
    %692 = vmatpush1.msra.mxu0 0.0
    %693 = vmatprep.subr.mxu0 0.0
    %694 = vmatpush1.msra.mxu0 0.0
    %695 = vmatprep.subr.mxu0 0.0
    %696 = vmatpush1.msra.mxu0 0.0
    %697 = vmatprep.subr.mxu0 0.0
    %698 = vmatpush1.msra.mxu0 0.0
    %699 = vmatprep.subr.mxu0 0.0
    %700 = vmatpush1.msra.mxu0 0.0
    %701 = vmatprep.subr.mxu0 0.0
    %v702 = vand.u32 %v51, 4294901760
    %v703 = vsub.f32 %v51, %v702
    %704 = vmatpush1.msra.mxu0 %v703
    %705 = vmatprep.subr.mxu0 0.0
    %706 = vmatpush2.msra.mxu0 0.0
    %707 = vmatprep.subr.mxu0 0.0
    %708 = vmatpush2.msra.mxu0 0.0
    %709 = vmatprep.subr.mxu0 0.0
    %710 = vmatpush2.msra.mxu0 0.0
    %711 = vmatprep.subr.mxu0 0.0
    %712 = vmatpush2.msra.mxu0 0.0
    %713 = vmatprep.subr.mxu0 0.0
    %714 = vmatpush2.msra.mxu0 0.0
    %715 = vmatprep.subr.mxu0 0.0
    %716 = vmatpush2.msra.mxu0 0.0
    %717 = vmatprep.subr.mxu0 0.0
    %718 = vmatpush2.msra.mxu0 0.0
    %719 = vmatprep.subr.mxu0 0.0
    %720 = vmatpush2.msra.mxu0 0.0
    %721 = vmatprep.subr.mxu0 0.0
    %722 = vmatpush2.msra.mxu0 0.0
    %723 = vmatprep.subr.mxu0 0.0
    %724 = vmatpush2.msra.mxu0 0.0
    %725 = vmatprep.subr.mxu0 0.0
    %726 = vmatpush2.msra.mxu0 0.0
    %727 = vmatprep.subr.mxu0 0.0
    %728 = vmatpush2.msra.mxu0 0.0
    %729 = vmatprep.subr.mxu0 0.0
    %730 = vmatpush2.msra.mxu0 0.0
    %731 = vmatprep.subr.mxu0 0.0
    %732 = vmatpush2.msra.mxu0 0.0
    %733 = vmatprep.subr.mxu0 0.0
    %734 = vmatpush2.msra.mxu0 0.0
    %735 = vmatprep.subr.mxu0 0.0
    %736 = vmatpush2.msra.mxu0 0.0
    %737 = vmatprep.mubr.f32.mxu0 0.0
    %v738 = vand.u32 %v517, 4294901760
    %v739 = vsub.f32 %v517, %v738
    %740 = vmatmul.mubr.f32.gmra.mxu0 %v739
    %v741 = vpop.f32.mrf.mxu0
    %v742 = vadd.f32 %v668, %v741
    %v743 = vpop.f32.mrf.mxu0
    %744 = vdwg.mxu0
    %745 = vmatprep.subr.mxu0 0.0
    %746 = vmatpush1.msra.mxu0 0.0
    %747 = vmatprep.subr.mxu0 0.0
    %748 = vmatpush1.msra.mxu0 0.0
    %749 = vmatprep.subr.mxu0 0.0
    %750 = vmatpush1.msra.mxu0 0.0
    %751 = vmatprep.subr.mxu0 0.0
    %752 = vmatpush1.msra.mxu0 0.0
    %753 = vmatprep.subr.mxu0 0.0
    %754 = vmatpush1.msra.mxu0 0.0
    %755 = vmatprep.subr.mxu0 0.0
    %756 = vmatpush1.msra.mxu0 0.0
    %757 = vmatprep.subr.mxu0 0.0
    %758 = vmatpush1.msra.mxu0 0.0
    %759 = vmatprep.subr.mxu0 0.0
    %760 = vmatpush1.msra.mxu0 0.0
    %761 = vmatprep.subr.mxu0 0.0
    %762 = vmatpush1.msra.mxu0 0.0
    %763 = vmatprep.subr.mxu0 0.0
    %764 = vmatpush1.msra.mxu0 0.0
    %765 = vmatprep.subr.mxu0 0.0
    %766 = vmatpush1.msra.mxu0 0.0
    %767 = vmatprep.subr.mxu0 0.0
    %768 = vmatpush1.msra.mxu0 0.0
    %769 = vmatprep.subr.mxu0 0.0
    %770 = vmatpush1.msra.mxu0 0.0
    %771 = vmatprep.subr.mxu0 0.0
    %772 = vmatpush1.msra.mxu0 0.0
    %773 = vmatprep.subr.mxu0 0.0
    %774 = vmatpush1.msra.mxu0 0.0
    %775 = vmatprep.subr.mxu0 0.0
    %v776 = vand.u32 %v51, 4294901760
    %777 = vmatpush1.msra.mxu0 %v776
    %778 = vmatprep.subr.mxu0 0.0
    %779 = vmatpush2.msra.mxu0 0.0
    %780 = vmatprep.subr.mxu0 0.0
    %781 = vmatpush2.msra.mxu0 0.0
    %782 = vmatprep.subr.mxu0 0.0
    %783 = vmatpush2.msra.mxu0 0.0
    %784 = vmatprep.subr.mxu0 0.0
    %785 = vmatpush2.msra.mxu0 0.0
    %786 = vmatprep.subr.mxu0 0.0
    %787 = vmatpush2.msra.mxu0 0.0
    %788 = vmatprep.subr.mxu0 0.0
    %789 = vmatpush2.msra.mxu0 0.0
    %790 = vmatprep.subr.mxu0 0.0
    %791 = vmatpush2.msra.mxu0 0.0
    %792 = vmatprep.subr.mxu0 0.0
    %793 = vmatpush2.msra.mxu0 0.0
    %794 = vmatprep.subr.mxu0 0.0
    %795 = vmatpush2.msra.mxu0 0.0
    %796 = vmatprep.subr.mxu0 0.0
    %797 = vmatpush2.msra.mxu0 0.0
    %798 = vmatprep.subr.mxu0 0.0
    %799 = vmatpush2.msra.mxu0 0.0
    %800 = vmatprep.subr.mxu0 0.0
    %801 = vmatpush2.msra.mxu0 0.0
    %802 = vmatprep.subr.mxu0 0.0
    %803 = vmatpush2.msra.mxu0 0.0
    %804 = vmatprep.subr.mxu0 0.0
    %805 = vmatpush2.msra.mxu0 0.0
    %806 = vmatprep.subr.mxu0 0.0
    %807 = vmatpush2.msra.mxu0 0.0
    %808 = vmatprep.subr.mxu0 0.0
    %809 = vmatpush2.msra.mxu0 0.0
    %810 = vmatprep.mubr.f32.mxu0 0.0
    %v811 = vand.u32 %v517, 4294901760
    %v812 = vsub.f32 %v517, %v811
    %v813 = vand.u32 %v812, 4294901760
    %814 = vmatmul.mubr.f32.gmra.mxu0 %v813
    %v815 = vpop.f32.mrf.mxu0
    %v816 = vadd.f32 %v742, %v815
    %v817 = vpop.f32.mrf.mxu0
    %818 = vdwg.mxu0
    %819 = vmatprep.subr.mxu0 0.0
    %820 = vmatpush1.msra.mxu0 0.0
    %821 = vmatprep.subr.mxu0 0.0
    %822 = vmatpush1.msra.mxu0 0.0
    %823 = vmatprep.subr.mxu0 0.0
    %824 = vmatpush1.msra.mxu0 0.0
    %825 = vmatprep.subr.mxu0 0.0
    %826 = vmatpush1.msra.mxu0 0.0
    %827 = vmatprep.subr.mxu0 0.0
    %828 = vmatpush1.msra.mxu0 0.0
    %829 = vmatprep.subr.mxu0 0.0
    %830 = vmatpush1.msra.mxu0 0.0
    %831 = vmatprep.subr.mxu0 0.0
    %832 = vmatpush1.msra.mxu0 0.0
    %833 = vmatprep.subr.mxu0 0.0
    %834 = vmatpush1.msra.mxu0 0.0
    %835 = vmatprep.subr.mxu0 0.0
    %836 = vmatpush1.msra.mxu0 0.0
    %837 = vmatprep.subr.mxu0 0.0
    %838 = vmatpush1.msra.mxu0 0.0
    %839 = vmatprep.subr.mxu0 0.0
    %840 = vmatpush1.msra.mxu0 0.0
    %841 = vmatprep.subr.mxu0 0.0
    %842 = vmatpush1.msra.mxu0 0.0
    %843 = vmatprep.subr.mxu0 0.0
    %844 = vmatpush1.msra.mxu0 0.0
    %845 = vmatprep.subr.mxu0 0.0
    %846 = vmatpush1.msra.mxu0 0.0
    %847 = vmatprep.subr.mxu0 0.0
    %848 = vmatpush1.msra.mxu0 0.0
    %849 = vmatprep.subr.mxu0 0.0
    %v850 = vand.u32 %v51, 4294901760
    %v851 = vsub.f32 %v51, %v850
    %v852 = vand.u32 %v851, 4294901760
    %853 = vmatpush1.msra.mxu0 %v852
    %854 = vmatprep.subr.mxu0 0.0
    %855 = vmatpush2.msra.mxu0 0.0
    %856 = vmatprep.subr.mxu0 0.0
    %857 = vmatpush2.msra.mxu0 0.0
    %858 = vmatprep.subr.mxu0 0.0
    %859 = vmatpush2.msra.mxu0 0.0
    %860 = vmatprep.subr.mxu0 0.0
    %861 = vmatpush2.msra.mxu0 0.0
    %862 = vmatprep.subr.mxu0 0.0
    %863 = vmatpush2.msra.mxu0 0.0
    %864 = vmatprep.subr.mxu0 0.0
    %865 = vmatpush2.msra.mxu0 0.0
    %866 = vmatprep.subr.mxu0 0.0
    %867 = vmatpush2.msra.mxu0 0.0
    %868 = vmatprep.subr.mxu0 0.0
    %869 = vmatpush2.msra.mxu0 0.0
    %870 = vmatprep.subr.mxu0 0.0
    %871 = vmatpush2.msra.mxu0 0.0
    %872 = vmatprep.subr.mxu0 0.0
    %873 = vmatpush2.msra.mxu0 0.0
    %874 = vmatprep.subr.mxu0 0.0
    %875 = vmatpush2.msra.mxu0 0.0
    %876 = vmatprep.subr.mxu0 0.0
    %877 = vmatpush2.msra.mxu0 0.0
    %878 = vmatprep.subr.mxu0 0.0
    %879 = vmatpush2.msra.mxu0 0.0
    %880 = vmatprep.subr.mxu0 0.0
    %881 = vmatpush2.msra.mxu0 0.0
    %882 = vmatprep.subr.mxu0 0.0
    %883 = vmatpush2.msra.mxu0 0.0
    %884 = vmatprep.subr.mxu0 0.0
    %885 = vmatpush2.msra.mxu0 0.0
    %886 = vmatprep.mubr.f32.mxu0 0.0
    %v887 = vand.u32 %v517, 4294901760
    %888 = vmatmul.mubr.f32.gmra.mxu0 %v887
    %v889 = vpop.f32.mrf.mxu0
    %v890 = vadd.f32 %v816, %v889
    %v891 = vpop.f32.mrf.mxu0
    %892 = vdwg.mxu0
    %893 = vmatprep.subr.mxu0 0.0
    %894 = vmatpush1.msra.mxu0 0.0
    %895 = vmatprep.subr.mxu0 0.0
    %896 = vmatpush1.msra.mxu0 0.0
    %897 = vmatprep.subr.mxu0 0.0
    %898 = vmatpush1.msra.mxu0 0.0
    %899 = vmatprep.subr.mxu0 0.0
    %900 = vmatpush1.msra.mxu0 0.0
    %901 = vmatprep.subr.mxu0 0.0
    %902 = vmatpush1.msra.mxu0 0.0
    %903 = vmatprep.subr.mxu0 0.0
    %904 = vmatpush1.msra.mxu0 0.0
    %905 = vmatprep.subr.mxu0 0.0
    %906 = vmatpush1.msra.mxu0 0.0
    %907 = vmatprep.subr.mxu0 0.0
    %908 = vmatpush1.msra.mxu0 0.0
    %909 = vmatprep.subr.mxu0 0.0
    %910 = vmatpush1.msra.mxu0 0.0
    %911 = vmatprep.subr.mxu0 0.0
    %912 = vmatpush1.msra.mxu0 0.0
    %913 = vmatprep.subr.mxu0 0.0
    %914 = vmatpush1.msra.mxu0 0.0
    %915 = vmatprep.subr.mxu0 0.0
    %916 = vmatpush1.msra.mxu0 0.0
    %917 = vmatprep.subr.mxu0 0.0
    %918 = vmatpush1.msra.mxu0 0.0
    %919 = vmatprep.subr.mxu0 0.0
    %920 = vmatpush1.msra.mxu0 0.0
    %921 = vmatprep.subr.mxu0 0.0
    %922 = vmatpush1.msra.mxu0 0.0
    %923 = vmatprep.subr.mxu0 0.0
    %v924 = vand.u32 %v51, 4294901760
    %925 = vmatpush1.msra.mxu0 %v924
    %926 = vmatprep.subr.mxu0 0.0
    %927 = vmatpush2.msra.mxu0 0.0
    %928 = vmatprep.subr.mxu0 0.0
    %929 = vmatpush2.msra.mxu0 0.0
    %930 = vmatprep.subr.mxu0 0.0
    %931 = vmatpush2.msra.mxu0 0.0
    %932 = vmatprep.subr.mxu0 0.0
    %933 = vmatpush2.msra.mxu0 0.0
    %934 = vmatprep.subr.mxu0 0.0
    %935 = vmatpush2.msra.mxu0 0.0
    %936 = vmatprep.subr.mxu0 0.0
    %937 = vmatpush2.msra.mxu0 0.0
    %938 = vmatprep.subr.mxu0 0.0
    %939 = vmatpush2.msra.mxu0 0.0
    %940 = vmatprep.subr.mxu0 0.0
    %941 = vmatpush2.msra.mxu0 0.0
    %942 = vmatprep.subr.mxu0 0.0
    %943 = vmatpush2.msra.mxu0 0.0
    %944 = vmatprep.subr.mxu0 0.0
    %945 = vmatpush2.msra.mxu0 0.0
    %946 = vmatprep.subr.mxu0 0.0
    %947 = vmatpush2.msra.mxu0 0.0
    %948 = vmatprep.subr.mxu0 0.0
    %949 = vmatpush2.msra.mxu0 0.0
    %950 = vmatprep.subr.mxu0 0.0
    %951 = vmatpush2.msra.mxu0 0.0
    %952 = vmatprep.subr.mxu0 0.0
    %953 = vmatpush2.msra.mxu0 0.0
    %954 = vmatprep.subr.mxu0 0.0
    %955 = vmatpush2.msra.mxu0 0.0
    %956 = vmatprep.subr.mxu0 0.0
    %957 = vmatpush2.msra.mxu0 0.0
    %958 = vmatprep.mubr.f32.mxu0 0.0
    %v959 = vand.u32 %v517, 4294901760
    %960 = vmatmul.mubr.f32.gmra.mxu0 %v959
    %v961 = vpop.f32.mrf.mxu0
    %v962 = vadd.f32 %v890, %v961
    %v963 = vpop.f32.mrf.mxu0
    %964 = vdwg.mxu0
    %v965 = vadd.f32 %v962, %v503
    %s966 = scalar_lea.vmem %s0, 4
    %v967 = vld [vmem:[%s966] sm:$0x3]
    %s968 = scalar_lea.vmem %s1, 4
    %v969 = vld [vmem:[%s968] sm:$0x3]
    %971 = vset.pattern.permute.xlu0 0
    %972 = vperm.xlu0 %971, %v969
    %v973 = vpop.permute.xlu0 %972
    %v975 = vmul.f32 %v973, %v42
    %v977 = vsel %vm45, %v967, 0
    %979 = vmatprep.subr.mxu0 0.0
    %980 = vmatpush1.msra.mxu0 0.0
    %981 = vmatprep.subr.mxu0 0.0
    %982 = vmatpush1.msra.mxu0 0.0
    %983 = vmatprep.subr.mxu0 0.0
    %984 = vmatpush1.msra.mxu0 0.0
    %985 = vmatprep.subr.mxu0 0.0
    %986 = vmatpush1.msra.mxu0 0.0
    %987 = vmatprep.subr.mxu0 0.0
    %988 = vmatpush1.msra.mxu0 0.0
    %989 = vmatprep.subr.mxu0 0.0
    %990 = vmatpush1.msra.mxu0 0.0
    %991 = vmatprep.subr.mxu0 0.0
    %992 = vmatpush1.msra.mxu0 0.0
    %993 = vmatprep.subr.mxu0 0.0
    %994 = vmatpush1.msra.mxu0 0.0
    %995 = vmatprep.subr.mxu0 0.0
    %996 = vmatpush1.msra.mxu0 0.0
    %997 = vmatprep.subr.mxu0 0.0
    %998 = vmatpush1.msra.mxu0 0.0
    %999 = vmatprep.subr.mxu0 0.0
    %1000 = vmatpush1.msra.mxu0 0.0
    %1001 = vmatprep.subr.mxu0 0.0
    %1002 = vmatpush1.msra.mxu0 0.0
    %1003 = vmatprep.subr.mxu0 0.0
    %1004 = vmatpush1.msra.mxu0 0.0
    %1005 = vmatprep.subr.mxu0 0.0
    %1006 = vmatpush1.msra.mxu0 0.0
    %1007 = vmatprep.subr.mxu0 0.0
    %1008 = vmatpush1.msra.mxu0 0.0
    %1009 = vmatprep.subr.mxu0 0.0
    %v1010 = vand.u32 %v51, 4294901760
    %1011 = vmatpush1.msra.mxu0 %v1010
    %1012 = vmatprep.subr.mxu0 0.0
    %1013 = vmatpush2.msra.mxu0 0.0
    %1014 = vmatprep.subr.mxu0 0.0
    %1015 = vmatpush2.msra.mxu0 0.0
    %1016 = vmatprep.subr.mxu0 0.0
    %1017 = vmatpush2.msra.mxu0 0.0
    %1018 = vmatprep.subr.mxu0 0.0
    %1019 = vmatpush2.msra.mxu0 0.0
    %1020 = vmatprep.subr.mxu0 0.0
    %1021 = vmatpush2.msra.mxu0 0.0
    %1022 = vmatprep.subr.mxu0 0.0
    %1023 = vmatpush2.msra.mxu0 0.0
    %1024 = vmatprep.subr.mxu0 0.0
    %1025 = vmatpush2.msra.mxu0 0.0
    %1026 = vmatprep.subr.mxu0 0.0
    %1027 = vmatpush2.msra.mxu0 0.0
    %1028 = vmatprep.subr.mxu0 0.0
    %1029 = vmatpush2.msra.mxu0 0.0
    %1030 = vmatprep.subr.mxu0 0.0
    %1031 = vmatpush2.msra.mxu0 0.0
    %1032 = vmatprep.subr.mxu0 0.0
    %1033 = vmatpush2.msra.mxu0 0.0
    %1034 = vmatprep.subr.mxu0 0.0
    %1035 = vmatpush2.msra.mxu0 0.0
    %1036 = vmatprep.subr.mxu0 0.0
    %1037 = vmatpush2.msra.mxu0 0.0
    %1038 = vmatprep.subr.mxu0 0.0
    %1039 = vmatpush2.msra.mxu0 0.0
    %1040 = vmatprep.subr.mxu0 0.0
    %1041 = vmatpush2.msra.mxu0 0.0
    %1042 = vmatprep.subr.mxu0 0.0
    %1043 = vmatpush2.msra.mxu0 0.0
    %1044 = vmatprep.mubr.f32.mxu0 0.0
    %v1045 = vand.u32 %v977, 4294901760
    %v1046 = vsub.f32 %v977, %v1045
    %v1047 = vand.u32 %v1046, 4294901760
    %v1048 = vsub.f32 %v1046, %v1047
    %v1049 = vand.u32 %v1048, 4294901760
    %1050 = vmatmul.mubr.f32.gmra.mxu0 %v1049
    %v1051 = vpop.f32.mrf.mxu0
    %v1052 = vadd.f32 %v975, %v1051
    %v1053 = vpop.f32.mrf.mxu0
    %1054 = vdwg.mxu0
    %1055 = vmatprep.subr.mxu0 0.0
    %1056 = vmatpush1.msra.mxu0 0.0
    %1057 = vmatprep.subr.mxu0 0.0
    %1058 = vmatpush1.msra.mxu0 0.0
    %1059 = vmatprep.subr.mxu0 0.0
    %1060 = vmatpush1.msra.mxu0 0.0
    %1061 = vmatprep.subr.mxu0 0.0
    %1062 = vmatpush1.msra.mxu0 0.0
    %1063 = vmatprep.subr.mxu0 0.0
    %1064 = vmatpush1.msra.mxu0 0.0
    %1065 = vmatprep.subr.mxu0 0.0
    %1066 = vmatpush1.msra.mxu0 0.0
    %1067 = vmatprep.subr.mxu0 0.0
    %1068 = vmatpush1.msra.mxu0 0.0
    %1069 = vmatprep.subr.mxu0 0.0
    %1070 = vmatpush1.msra.mxu0 0.0
    %1071 = vmatprep.subr.mxu0 0.0
    %1072 = vmatpush1.msra.mxu0 0.0
    %1073 = vmatprep.subr.mxu0 0.0
    %1074 = vmatpush1.msra.mxu0 0.0
    %1075 = vmatprep.subr.mxu0 0.0
    %1076 = vmatpush1.msra.mxu0 0.0
    %1077 = vmatprep.subr.mxu0 0.0
    %1078 = vmatpush1.msra.mxu0 0.0
    %1079 = vmatprep.subr.mxu0 0.0
    %1080 = vmatpush1.msra.mxu0 0.0
    %1081 = vmatprep.subr.mxu0 0.0
    %1082 = vmatpush1.msra.mxu0 0.0
    %1083 = vmatprep.subr.mxu0 0.0
    %1084 = vmatpush1.msra.mxu0 0.0
    %1085 = vmatprep.subr.mxu0 0.0
    %v1086 = vand.u32 %v51, 4294901760
    %v1087 = vsub.f32 %v51, %v1086
    %v1088 = vand.u32 %v1087, 4294901760
    %v1089 = vsub.f32 %v1087, %v1088
    %v1090 = vand.u32 %v1089, 4294901760
    %1091 = vmatpush1.msra.mxu0 %v1090
    %1092 = vmatprep.subr.mxu0 0.0
    %1093 = vmatpush2.msra.mxu0 0.0
    %1094 = vmatprep.subr.mxu0 0.0
    %1095 = vmatpush2.msra.mxu0 0.0
    %1096 = vmatprep.subr.mxu0 0.0
    %1097 = vmatpush2.msra.mxu0 0.0
    %1098 = vmatprep.subr.mxu0 0.0
    %1099 = vmatpush2.msra.mxu0 0.0
    %1100 = vmatprep.subr.mxu0 0.0
    %1101 = vmatpush2.msra.mxu0 0.0
    %1102 = vmatprep.subr.mxu0 0.0
    %1103 = vmatpush2.msra.mxu0 0.0
    %1104 = vmatprep.subr.mxu0 0.0
    %1105 = vmatpush2.msra.mxu0 0.0
    %1106 = vmatprep.subr.mxu0 0.0
    %1107 = vmatpush2.msra.mxu0 0.0
    %1108 = vmatprep.subr.mxu0 0.0
    %1109 = vmatpush2.msra.mxu0 0.0
    %1110 = vmatprep.subr.mxu0 0.0
    %1111 = vmatpush2.msra.mxu0 0.0
    %1112 = vmatprep.subr.mxu0 0.0
    %1113 = vmatpush2.msra.mxu0 0.0
    %1114 = vmatprep.subr.mxu0 0.0
    %1115 = vmatpush2.msra.mxu0 0.0
    %1116 = vmatprep.subr.mxu0 0.0
    %1117 = vmatpush2.msra.mxu0 0.0
    %1118 = vmatprep.subr.mxu0 0.0
    %1119 = vmatpush2.msra.mxu0 0.0
    %1120 = vmatprep.subr.mxu0 0.0
    %1121 = vmatpush2.msra.mxu0 0.0
    %1122 = vmatprep.subr.mxu0 0.0
    %1123 = vmatpush2.msra.mxu0 0.0
    %1124 = vmatprep.mubr.f32.mxu0 0.0
    %v1125 = vand.u32 %v977, 4294901760
    %1126 = vmatmul.mubr.f32.gmra.mxu0 %v1125
    %v1127 = vpop.f32.mrf.mxu0
    %v1128 = vadd.f32 %v1052, %v1127
    %v1129 = vpop.f32.mrf.mxu0
    %1130 = vdwg.mxu0
    %1131 = vmatprep.subr.mxu0 0.0
    %1132 = vmatpush1.msra.mxu0 0.0
    %1133 = vmatprep.subr.mxu0 0.0
    %1134 = vmatpush1.msra.mxu0 0.0
    %1135 = vmatprep.subr.mxu0 0.0
    %1136 = vmatpush1.msra.mxu0 0.0
    %1137 = vmatprep.subr.mxu0 0.0
    %1138 = vmatpush1.msra.mxu0 0.0
    %1139 = vmatprep.subr.mxu0 0.0
    %1140 = vmatpush1.msra.mxu0 0.0
    %1141 = vmatprep.subr.mxu0 0.0
    %1142 = vmatpush1.msra.mxu0 0.0
    %1143 = vmatprep.subr.mxu0 0.0
    %1144 = vmatpush1.msra.mxu0 0.0
    %1145 = vmatprep.subr.mxu0 0.0
    %1146 = vmatpush1.msra.mxu0 0.0
    %1147 = vmatprep.subr.mxu0 0.0
    %1148 = vmatpush1.msra.mxu0 0.0
    %1149 = vmatprep.subr.mxu0 0.0
    %1150 = vmatpush1.msra.mxu0 0.0
    %1151 = vmatprep.subr.mxu0 0.0
    %1152 = vmatpush1.msra.mxu0 0.0
    %1153 = vmatprep.subr.mxu0 0.0
    %1154 = vmatpush1.msra.mxu0 0.0
    %1155 = vmatprep.subr.mxu0 0.0
    %1156 = vmatpush1.msra.mxu0 0.0
    %1157 = vmatprep.subr.mxu0 0.0
    %1158 = vmatpush1.msra.mxu0 0.0
    %1159 = vmatprep.subr.mxu0 0.0
    %1160 = vmatpush1.msra.mxu0 0.0
    %1161 = vmatprep.subr.mxu0 0.0
    %v1162 = vand.u32 %v51, 4294901760
    %v1163 = vsub.f32 %v51, %v1162
    %1164 = vmatpush1.msra.mxu0 %v1163
    %1165 = vmatprep.subr.mxu0 0.0
    %1166 = vmatpush2.msra.mxu0 0.0
    %1167 = vmatprep.subr.mxu0 0.0
    %1168 = vmatpush2.msra.mxu0 0.0
    %1169 = vmatprep.subr.mxu0 0.0
    %1170 = vmatpush2.msra.mxu0 0.0
    %1171 = vmatprep.subr.mxu0 0.0
    %1172 = vmatpush2.msra.mxu0 0.0
    %1173 = vmatprep.subr.mxu0 0.0
    %1174 = vmatpush2.msra.mxu0 0.0
    %1175 = vmatprep.subr.mxu0 0.0
    %1176 = vmatpush2.msra.mxu0 0.0
    %1177 = vmatprep.subr.mxu0 0.0
    %1178 = vmatpush2.msra.mxu0 0.0
    %1179 = vmatprep.subr.mxu0 0.0
    %1180 = vmatpush2.msra.mxu0 0.0
    %1181 = vmatprep.subr.mxu0 0.0
    %1182 = vmatpush2.msra.mxu0 0.0
    %1183 = vmatprep.subr.mxu0 0.0
    %1184 = vmatpush2.msra.mxu0 0.0
    %1185 = vmatprep.subr.mxu0 0.0
    %1186 = vmatpush2.msra.mxu0 0.0
    %1187 = vmatprep.subr.mxu0 0.0
    %1188 = vmatpush2.msra.mxu0 0.0
    %1189 = vmatprep.subr.mxu0 0.0
    %1190 = vmatpush2.msra.mxu0 0.0
    %1191 = vmatprep.subr.mxu0 0.0
    %1192 = vmatpush2.msra.mxu0 0.0
    %1193 = vmatprep.subr.mxu0 0.0
    %1194 = vmatpush2.msra.mxu0 0.0
    %1195 = vmatprep.subr.mxu0 0.0
    %1196 = vmatpush2.msra.mxu0 0.0
    %1197 = vmatprep.mubr.f32.mxu0 0.0
    %v1198 = vand.u32 %v977, 4294901760
    %v1199 = vsub.f32 %v977, %v1198
    %1200 = vmatmul.mubr.f32.gmra.mxu0 %v1199
    %v1201 = vpop.f32.mrf.mxu0
    %v1202 = vadd.f32 %v1128, %v1201
    %v1203 = vpop.f32.mrf.mxu0
    %1204 = vdwg.mxu0
    %1205 = vmatprep.subr.mxu0 0.0
    %1206 = vmatpush1.msra.mxu0 0.0
    %1207 = vmatprep.subr.mxu0 0.0
    %1208 = vmatpush1.msra.mxu0 0.0
    %1209 = vmatprep.subr.mxu0 0.0
    %1210 = vmatpush1.msra.mxu0 0.0
    %1211 = vmatprep.subr.mxu0 0.0
    %1212 = vmatpush1.msra.mxu0 0.0
    %1213 = vmatprep.subr.mxu0 0.0
    %1214 = vmatpush1.msra.mxu0 0.0
    %1215 = vmatprep.subr.mxu0 0.0
    %1216 = vmatpush1.msra.mxu0 0.0
    %1217 = vmatprep.subr.mxu0 0.0
    %1218 = vmatpush1.msra.mxu0 0.0
    %1219 = vmatprep.subr.mxu0 0.0
    %1220 = vmatpush1.msra.mxu0 0.0
    %1221 = vmatprep.subr.mxu0 0.0
    %1222 = vmatpush1.msra.mxu0 0.0
    %1223 = vmatprep.subr.mxu0 0.0
    %1224 = vmatpush1.msra.mxu0 0.0
    %1225 = vmatprep.subr.mxu0 0.0
    %1226 = vmatpush1.msra.mxu0 0.0
    %1227 = vmatprep.subr.mxu0 0.0
    %1228 = vmatpush1.msra.mxu0 0.0
    %1229 = vmatprep.subr.mxu0 0.0
    %1230 = vmatpush1.msra.mxu0 0.0
    %1231 = vmatprep.subr.mxu0 0.0
    %1232 = vmatpush1.msra.mxu0 0.0
    %1233 = vmatprep.subr.mxu0 0.0
    %1234 = vmatpush1.msra.mxu0 0.0
    %1235 = vmatprep.subr.mxu0 0.0
    %v1236 = vand.u32 %v51, 4294901760
    %1237 = vmatpush1.msra.mxu0 %v1236
    %1238 = vmatprep.subr.mxu0 0.0
    %1239 = vmatpush2.msra.mxu0 0.0
    %1240 = vmatprep.subr.mxu0 0.0
    %1241 = vmatpush2.msra.mxu0 0.0
    %1242 = vmatprep.subr.mxu0 0.0
    %1243 = vmatpush2.msra.mxu0 0.0
    %1244 = vmatprep.subr.mxu0 0.0
    %1245 = vmatpush2.msra.mxu0 0.0
    %1246 = vmatprep.subr.mxu0 0.0
    %1247 = vmatpush2.msra.mxu0 0.0
    %1248 = vmatprep.subr.mxu0 0.0
    %1249 = vmatpush2.msra.mxu0 0.0
    %1250 = vmatprep.subr.mxu0 0.0
    %1251 = vmatpush2.msra.mxu0 0.0
    %1252 = vmatprep.subr.mxu0 0.0
    %1253 = vmatpush2.msra.mxu0 0.0
    %1254 = vmatprep.subr.mxu0 0.0
    %1255 = vmatpush2.msra.mxu0 0.0
    %1256 = vmatprep.subr.mxu0 0.0
    %1257 = vmatpush2.msra.mxu0 0.0
    %1258 = vmatprep.subr.mxu0 0.0
    %1259 = vmatpush2.msra.mxu0 0.0
    %1260 = vmatprep.subr.mxu0 0.0
    %1261 = vmatpush2.msra.mxu0 0.0
    %1262 = vmatprep.subr.mxu0 0.0
    %1263 = vmatpush2.msra.mxu0 0.0
    %1264 = vmatprep.subr.mxu0 0.0
    %1265 = vmatpush2.msra.mxu0 0.0
    %1266 = vmatprep.subr.mxu0 0.0
    %1267 = vmatpush2.msra.mxu0 0.0
    %1268 = vmatprep.subr.mxu0 0.0
    %1269 = vmatpush2.msra.mxu0 0.0
    %1270 = vmatprep.mubr.f32.mxu0 0.0
    %v1271 = vand.u32 %v977, 4294901760
    %v1272 = vsub.f32 %v977, %v1271
    %v1273 = vand.u32 %v1272, 4294901760
    %1274 = vmatmul.mubr.f32.gmra.mxu0 %v1273
    %v1275 = vpop.f32.mrf.mxu0
    %v1276 = vadd.f32 %v1202, %v1275
    %v1277 = vpop.f32.mrf.mxu0
    %1278 = vdwg.mxu0
    %1279 = vmatprep.subr.mxu0 0.0
    %1280 = vmatpush1.msra.mxu0 0.0
    %1281 = vmatprep.subr.mxu0 0.0
    %1282 = vmatpush1.msra.mxu0 0.0
    %1283 = vmatprep.subr.mxu0 0.0
    %1284 = vmatpush1.msra.mxu0 0.0
    %1285 = vmatprep.subr.mxu0 0.0
    %1286 = vmatpush1.msra.mxu0 0.0
    %1287 = vmatprep.subr.mxu0 0.0
    %1288 = vmatpush1.msra.mxu0 0.0
    %1289 = vmatprep.subr.mxu0 0.0
    %1290 = vmatpush1.msra.mxu0 0.0
    %1291 = vmatprep.subr.mxu0 0.0
    %1292 = vmatpush1.msra.mxu0 0.0
    %1293 = vmatprep.subr.mxu0 0.0
    %1294 = vmatpush1.msra.mxu0 0.0
    %1295 = vmatprep.subr.mxu0 0.0
    %1296 = vmatpush1.msra.mxu0 0.0
    %1297 = vmatprep.subr.mxu0 0.0
    %1298 = vmatpush1.msra.mxu0 0.0
    %1299 = vmatprep.subr.mxu0 0.0
    %1300 = vmatpush1.msra.mxu0 0.0
    %1301 = vmatprep.subr.mxu0 0.0
    %1302 = vmatpush1.msra.mxu0 0.0
    %1303 = vmatprep.subr.mxu0 0.0
    %1304 = vmatpush1.msra.mxu0 0.0
    %1305 = vmatprep.subr.mxu0 0.0
    %1306 = vmatpush1.msra.mxu0 0.0
    %1307 = vmatprep.subr.mxu0 0.0
    %1308 = vmatpush1.msra.mxu0 0.0
    %1309 = vmatprep.subr.mxu0 0.0
    %v1310 = vand.u32 %v51, 4294901760
    %v1311 = vsub.f32 %v51, %v1310
    %v1312 = vand.u32 %v1311, 4294901760
    %1313 = vmatpush1.msra.mxu0 %v1312
    %1314 = vmatprep.subr.mxu0 0.0
    %1315 = vmatpush2.msra.mxu0 0.0
    %1316 = vmatprep.subr.mxu0 0.0
    %1317 = vmatpush2.msra.mxu0 0.0
    %1318 = vmatprep.subr.mxu0 0.0
    %1319 = vmatpush2.msra.mxu0 0.0
    %1320 = vmatprep.subr.mxu0 0.0
    %1321 = vmatpush2.msra.mxu0 0.0
    %1322 = vmatprep.subr.mxu0 0.0
    %1323 = vmatpush2.msra.mxu0 0.0
    %1324 = vmatprep.subr.mxu0 0.0
    %1325 = vmatpush2.msra.mxu0 0.0
    %1326 = vmatprep.subr.mxu0 0.0
    %1327 = vmatpush2.msra.mxu0 0.0
    %1328 = vmatprep.subr.mxu0 0.0
    %1329 = vmatpush2.msra.mxu0 0.0
    %1330 = vmatprep.subr.mxu0 0.0
    %1331 = vmatpush2.msra.mxu0 0.0
    %1332 = vmatprep.subr.mxu0 0.0
    %1333 = vmatpush2.msra.mxu0 0.0
    %1334 = vmatprep.subr.mxu0 0.0
    %1335 = vmatpush2.msra.mxu0 0.0
    %1336 = vmatprep.subr.mxu0 0.0
    %1337 = vmatpush2.msra.mxu0 0.0
    %1338 = vmatprep.subr.mxu0 0.0
    %1339 = vmatpush2.msra.mxu0 0.0
    %1340 = vmatprep.subr.mxu0 0.0
    %1341 = vmatpush2.msra.mxu0 0.0
    %1342 = vmatprep.subr.mxu0 0.0
    %1343 = vmatpush2.msra.mxu0 0.0
    %1344 = vmatprep.subr.mxu0 0.0
    %1345 = vmatpush2.msra.mxu0 0.0
    %1346 = vmatprep.mubr.f32.mxu0 0.0
    %v1347 = vand.u32 %v977, 4294901760
    %1348 = vmatmul.mubr.f32.gmra.mxu0 %v1347
    %v1349 = vpop.f32.mrf.mxu0
    %v1350 = vadd.f32 %v1276, %v1349
    %v1351 = vpop.f32.mrf.mxu0
    %1352 = vdwg.mxu0
    %1353 = vmatprep.subr.mxu0 0.0
    %1354 = vmatpush1.msra.mxu0 0.0
    %1355 = vmatprep.subr.mxu0 0.0
    %1356 = vmatpush1.msra.mxu0 0.0
    %1357 = vmatprep.subr.mxu0 0.0
    %1358 = vmatpush1.msra.mxu0 0.0
    %1359 = vmatprep.subr.mxu0 0.0
    %1360 = vmatpush1.msra.mxu0 0.0
    %1361 = vmatprep.subr.mxu0 0.0
    %1362 = vmatpush1.msra.mxu0 0.0
    %1363 = vmatprep.subr.mxu0 0.0
    %1364 = vmatpush1.msra.mxu0 0.0
    %1365 = vmatprep.subr.mxu0 0.0
    %1366 = vmatpush1.msra.mxu0 0.0
    %1367 = vmatprep.subr.mxu0 0.0
    %1368 = vmatpush1.msra.mxu0 0.0
    %1369 = vmatprep.subr.mxu0 0.0
    %1370 = vmatpush1.msra.mxu0 0.0
    %1371 = vmatprep.subr.mxu0 0.0
    %1372 = vmatpush1.msra.mxu0 0.0
    %1373 = vmatprep.subr.mxu0 0.0
    %1374 = vmatpush1.msra.mxu0 0.0
    %1375 = vmatprep.subr.mxu0 0.0
    %1376 = vmatpush1.msra.mxu0 0.0
    %1377 = vmatprep.subr.mxu0 0.0
    %1378 = vmatpush1.msra.mxu0 0.0
    %1379 = vmatprep.subr.mxu0 0.0
    %1380 = vmatpush1.msra.mxu0 0.0
    %1381 = vmatprep.subr.mxu0 0.0
    %1382 = vmatpush1.msra.mxu0 0.0
    %1383 = vmatprep.subr.mxu0 0.0
    %v1384 = vand.u32 %v51, 4294901760
    %1385 = vmatpush1.msra.mxu0 %v1384
    %1386 = vmatprep.subr.mxu0 0.0
    %1387 = vmatpush2.msra.mxu0 0.0
    %1388 = vmatprep.subr.mxu0 0.0
    %1389 = vmatpush2.msra.mxu0 0.0
    %1390 = vmatprep.subr.mxu0 0.0
    %1391 = vmatpush2.msra.mxu0 0.0
    %1392 = vmatprep.subr.mxu0 0.0
    %1393 = vmatpush2.msra.mxu0 0.0
    %1394 = vmatprep.subr.mxu0 0.0
    %1395 = vmatpush2.msra.mxu0 0.0
    %1396 = vmatprep.subr.mxu0 0.0
    %1397 = vmatpush2.msra.mxu0 0.0
    %1398 = vmatprep.subr.mxu0 0.0
    %1399 = vmatpush2.msra.mxu0 0.0
    %1400 = vmatprep.subr.mxu0 0.0
    %1401 = vmatpush2.msra.mxu0 0.0
    %1402 = vmatprep.subr.mxu0 0.0
    %1403 = vmatpush2.msra.mxu0 0.0
    %1404 = vmatprep.subr.mxu0 0.0
    %1405 = vmatpush2.msra.mxu0 0.0
    %1406 = vmatprep.subr.mxu0 0.0
    %1407 = vmatpush2.msra.mxu0 0.0
    %1408 = vmatprep.subr.mxu0 0.0
    %1409 = vmatpush2.msra.mxu0 0.0
    %1410 = vmatprep.subr.mxu0 0.0
    %1411 = vmatpush2.msra.mxu0 0.0
    %1412 = vmatprep.subr.mxu0 0.0
    %1413 = vmatpush2.msra.mxu0 0.0
    %1414 = vmatprep.subr.mxu0 0.0
    %1415 = vmatpush2.msra.mxu0 0.0
    %1416 = vmatprep.subr.mxu0 0.0
    %1417 = vmatpush2.msra.mxu0 0.0
    %1418 = vmatprep.mubr.f32.mxu0 0.0
    %v1419 = vand.u32 %v977, 4294901760
    %1420 = vmatmul.mubr.f32.gmra.mxu0 %v1419
    %v1421 = vpop.f32.mrf.mxu0
    %v1422 = vadd.f32 %v1350, %v1421
    %v1423 = vpop.f32.mrf.mxu0
    %1424 = vdwg.mxu0
    %v1425 = vadd.f32 %v1422, %v503
    %s1426 = scalar_lea.vmem %s0, 6
    %v1427 = vld [vmem:[%s1426] sm:$0x3]
    %s1428 = scalar_lea.vmem %s1, 6
    %v1429 = vld [vmem:[%s1428] sm:$0x3]
    %1431 = vset.pattern.permute.xlu0 0
    %1432 = vperm.xlu0 %1431, %v1429
    %v1433 = vpop.permute.xlu0 %1432
    %v1435 = vmul.f32 %v1433, %v42
    %v1437 = vsel %vm45, %v1427, 0
    %1439 = vmatprep.subr.mxu0 0.0
    %1440 = vmatpush1.msra.mxu0 0.0
    %1441 = vmatprep.subr.mxu0 0.0
    %1442 = vmatpush1.msra.mxu0 0.0
    %1443 = vmatprep.subr.mxu0 0.0
    %1444 = vmatpush1.msra.mxu0 0.0
    %1445 = vmatprep.subr.mxu0 0.0
    %1446 = vmatpush1.msra.mxu0 0.0
    %1447 = vmatprep.subr.mxu0 0.0
    %1448 = vmatpush1.msra.mxu0 0.0
    %1449 = vmatprep.subr.mxu0 0.0
    %1450 = vmatpush1.msra.mxu0 0.0
    %1451 = vmatprep.subr.mxu0 0.0
    %1452 = vmatpush1.msra.mxu0 0.0
    %1453 = vmatprep.subr.mxu0 0.0
    %1454 = vmatpush1.msra.mxu0 0.0
    %1455 = vmatprep.subr.mxu0 0.0
    %1456 = vmatpush1.msra.mxu0 0.0
    %1457 = vmatprep.subr.mxu0 0.0
    %1458 = vmatpush1.msra.mxu0 0.0
    %1459 = vmatprep.subr.mxu0 0.0
    %1460 = vmatpush1.msra.mxu0 0.0
    %1461 = vmatprep.subr.mxu0 0.0
    %1462 = vmatpush1.msra.mxu0 0.0
    %1463 = vmatprep.subr.mxu0 0.0
    %1464 = vmatpush1.msra.mxu0 0.0
    %1465 = vmatprep.subr.mxu0 0.0
    %1466 = vmatpush1.msra.mxu0 0.0
    %1467 = vmatprep.subr.mxu0 0.0
    %1468 = vmatpush1.msra.mxu0 0.0
    %1469 = vmatprep.subr.mxu0 0.0
    %v1470 = vand.u32 %v51, 4294901760
    %1471 = vmatpush1.msra.mxu0 %v1470
    %1472 = vmatprep.subr.mxu0 0.0
    %1473 = vmatpush2.msra.mxu0 0.0
    %1474 = vmatprep.subr.mxu0 0.0
    %1475 = vmatpush2.msra.mxu0 0.0
    %1476 = vmatprep.subr.mxu0 0.0
    %1477 = vmatpush2.msra.mxu0 0.0
    %1478 = vmatprep.subr.mxu0 0.0
    %1479 = vmatpush2.msra.mxu0 0.0
    %1480 = vmatprep.subr.mxu0 0.0
    %1481 = vmatpush2.msra.mxu0 0.0
    %1482 = vmatprep.subr.mxu0 0.0
    %1483 = vmatpush2.msra.mxu0 0.0
    %1484 = vmatprep.subr.mxu0 0.0
    %1485 = vmatpush2.msra.mxu0 0.0
    %1486 = vmatprep.subr.mxu0 0.0
    %1487 = vmatpush2.msra.mxu0 0.0
    %1488 = vmatprep.subr.mxu0 0.0
    %1489 = vmatpush2.msra.mxu0 0.0
    %1490 = vmatprep.subr.mxu0 0.0
    %1491 = vmatpush2.msra.mxu0 0.0
    %1492 = vmatprep.subr.mxu0 0.0
    %1493 = vmatpush2.msra.mxu0 0.0
    %1494 = vmatprep.subr.mxu0 0.0
    %1495 = vmatpush2.msra.mxu0 0.0
    %1496 = vmatprep.subr.mxu0 0.0
    %1497 = vmatpush2.msra.mxu0 0.0
    %1498 = vmatprep.subr.mxu0 0.0
    %1499 = vmatpush2.msra.mxu0 0.0
    %1500 = vmatprep.subr.mxu0 0.0
    %1501 = vmatpush2.msra.mxu0 0.0
    %1502 = vmatprep.subr.mxu0 0.0
    %1503 = vmatpush2.msra.mxu0 0.0
    %1504 = vmatprep.mubr.f32.mxu0 0.0
    %v1505 = vand.u32 %v1437, 4294901760
    %v1506 = vsub.f32 %v1437, %v1505
    %v1507 = vand.u32 %v1506, 4294901760
    %v1508 = vsub.f32 %v1506, %v1507
    %v1509 = vand.u32 %v1508, 4294901760
    %1510 = vmatmul.mubr.f32.gmra.mxu0 %v1509
    %v1511 = vpop.f32.mrf.mxu0
    %v1512 = vadd.f32 %v1435, %v1511
    %v1513 = vpop.f32.mrf.mxu0
    %1514 = vdwg.mxu0
    %1515 = vmatprep.subr.mxu0 0.0
    %1516 = vmatpush1.msra.mxu0 0.0
    %1517 = vmatprep.subr.mxu0 0.0
    %1518 = vmatpush1.msra.mxu0 0.0
    %1519 = vmatprep.subr.mxu0 0.0
    %1520 = vmatpush1.msra.mxu0 0.0
    %1521 = vmatprep.subr.mxu0 0.0
    %1522 = vmatpush1.msra.mxu0 0.0
    %1523 = vmatprep.subr.mxu0 0.0
    %1524 = vmatpush1.msra.mxu0 0.0
    %1525 = vmatprep.subr.mxu0 0.0
    %1526 = vmatpush1.msra.mxu0 0.0
    %1527 = vmatprep.subr.mxu0 0.0
    %1528 = vmatpush1.msra.mxu0 0.0
    %1529 = vmatprep.subr.mxu0 0.0
    %1530 = vmatpush1.msra.mxu0 0.0
    %1531 = vmatprep.subr.mxu0 0.0
    %1532 = vmatpush1.msra.mxu0 0.0
    %1533 = vmatprep.subr.mxu0 0.0
    %1534 = vmatpush1.msra.mxu0 0.0
    %1535 = vmatprep.subr.mxu0 0.0
    %1536 = vmatpush1.msra.mxu0 0.0
    %1537 = vmatprep.subr.mxu0 0.0
    %1538 = vmatpush1.msra.mxu0 0.0
    %1539 = vmatprep.subr.mxu0 0.0
    %1540 = vmatpush1.msra.mxu0 0.0
    %1541 = vmatprep.subr.mxu0 0.0
    %1542 = vmatpush1.msra.mxu0 0.0
    %1543 = vmatprep.subr.mxu0 0.0
    %1544 = vmatpush1.msra.mxu0 0.0
    %1545 = vmatprep.subr.mxu0 0.0
    %v1546 = vand.u32 %v51, 4294901760
    %v1547 = vsub.f32 %v51, %v1546
    %v1548 = vand.u32 %v1547, 4294901760
    %v1549 = vsub.f32 %v1547, %v1548
    %v1550 = vand.u32 %v1549, 4294901760
    %1551 = vmatpush1.msra.mxu0 %v1550
    %1552 = vmatprep.subr.mxu0 0.0
    %1553 = vmatpush2.msra.mxu0 0.0
    %1554 = vmatprep.subr.mxu0 0.0
    %1555 = vmatpush2.msra.mxu0 0.0
    %1556 = vmatprep.subr.mxu0 0.0
    %1557 = vmatpush2.msra.mxu0 0.0
    %1558 = vmatprep.subr.mxu0 0.0
    %1559 = vmatpush2.msra.mxu0 0.0
    %1560 = vmatprep.subr.mxu0 0.0
    %1561 = vmatpush2.msra.mxu0 0.0
    %1562 = vmatprep.subr.mxu0 0.0
    %1563 = vmatpush2.msra.mxu0 0.0
    %1564 = vmatprep.subr.mxu0 0.0
    %1565 = vmatpush2.msra.mxu0 0.0
    %1566 = vmatprep.subr.mxu0 0.0
    %1567 = vmatpush2.msra.mxu0 0.0
    %1568 = vmatprep.subr.mxu0 0.0
    %1569 = vmatpush2.msra.mxu0 0.0
    %1570 = vmatprep.subr.mxu0 0.0
    %1571 = vmatpush2.msra.mxu0 0.0
    %1572 = vmatprep.subr.mxu0 0.0
    %1573 = vmatpush2.msra.mxu0 0.0
    %1574 = vmatprep.subr.mxu0 0.0
    %1575 = vmatpush2.msra.mxu0 0.0
    %1576 = vmatprep.subr.mxu0 0.0
    %1577 = vmatpush2.msra.mxu0 0.0
    %1578 = vmatprep.subr.mxu0 0.0
    %1579 = vmatpush2.msra.mxu0 0.0
    %1580 = vmatprep.subr.mxu0 0.0
    %1581 = vmatpush2.msra.mxu0 0.0
    %1582 = vmatprep.subr.mxu0 0.0
    %1583 = vmatpush2.msra.mxu0 0.0
    %1584 = vmatprep.mubr.f32.mxu0 0.0
    %v1585 = vand.u32 %v1437, 4294901760
    %1586 = vmatmul.mubr.f32.gmra.mxu0 %v1585
    %v1587 = vpop.f32.mrf.mxu0
    %v1588 = vadd.f32 %v1512, %v1587
    %v1589 = vpop.f32.mrf.mxu0
    %1590 = vdwg.mxu0
    %1591 = vmatprep.subr.mxu0 0.0
    %1592 = vmatpush1.msra.mxu0 0.0
    %1593 = vmatprep.subr.mxu0 0.0
    %1594 = vmatpush1.msra.mxu0 0.0
    %1595 = vmatprep.subr.mxu0 0.0
    %1596 = vmatpush1.msra.mxu0 0.0
    %1597 = vmatprep.subr.mxu0 0.0
    %1598 = vmatpush1.msra.mxu0 0.0
    %1599 = vmatprep.subr.mxu0 0.0
    %1600 = vmatpush1.msra.mxu0 0.0
    %1601 = vmatprep.subr.mxu0 0.0
    %1602 = vmatpush1.msra.mxu0 0.0
    %1603 = vmatprep.subr.mxu0 0.0
    %1604 = vmatpush1.msra.mxu0 0.0
    %1605 = vmatprep.subr.mxu0 0.0
    %1606 = vmatpush1.msra.mxu0 0.0
    %1607 = vmatprep.subr.mxu0 0.0
    %1608 = vmatpush1.msra.mxu0 0.0
    %1609 = vmatprep.subr.mxu0 0.0
    %1610 = vmatpush1.msra.mxu0 0.0
    %1611 = vmatprep.subr.mxu0 0.0
    %1612 = vmatpush1.msra.mxu0 0.0
    %1613 = vmatprep.subr.mxu0 0.0
    %1614 = vmatpush1.msra.mxu0 0.0
    %1615 = vmatprep.subr.mxu0 0.0
    %1616 = vmatpush1.msra.mxu0 0.0
    %1617 = vmatprep.subr.mxu0 0.0
    %1618 = vmatpush1.msra.mxu0 0.0
    %1619 = vmatprep.subr.mxu0 0.0
    %1620 = vmatpush1.msra.mxu0 0.0
    %1621 = vmatprep.subr.mxu0 0.0
    %v1622 = vand.u32 %v51, 4294901760
    %v1623 = vsub.f32 %v51, %v1622
    %1624 = vmatpush1.msra.mxu0 %v1623
    %1625 = vmatprep.subr.mxu0 0.0
    %1626 = vmatpush2.msra.mxu0 0.0
    %1627 = vmatprep.subr.mxu0 0.0
    %1628 = vmatpush2.msra.mxu0 0.0
    %1629 = vmatprep.subr.mxu0 0.0
    %1630 = vmatpush2.msra.mxu0 0.0
    %1631 = vmatprep.subr.mxu0 0.0
    %1632 = vmatpush2.msra.mxu0 0.0
    %1633 = vmatprep.subr.mxu0 0.0
    %1634 = vmatpush2.msra.mxu0 0.0
    %1635 = vmatprep.subr.mxu0 0.0
    %1636 = vmatpush2.msra.mxu0 0.0
    %1637 = vmatprep.subr.mxu0 0.0
    %1638 = vmatpush2.msra.mxu0 0.0
    %1639 = vmatprep.subr.mxu0 0.0
    %1640 = vmatpush2.msra.mxu0 0.0
    %1641 = vmatprep.subr.mxu0 0.0
    %1642 = vmatpush2.msra.mxu0 0.0
    %1643 = vmatprep.subr.mxu0 0.0
    %1644 = vmatpush2.msra.mxu0 0.0
    %1645 = vmatprep.subr.mxu0 0.0
    %1646 = vmatpush2.msra.mxu0 0.0
    %1647 = vmatprep.subr.mxu0 0.0
    %1648 = vmatpush2.msra.mxu0 0.0
    %1649 = vmatprep.subr.mxu0 0.0
    %1650 = vmatpush2.msra.mxu0 0.0
    %1651 = vmatprep.subr.mxu0 0.0
    %1652 = vmatpush2.msra.mxu0 0.0
    %1653 = vmatprep.subr.mxu0 0.0
    %1654 = vmatpush2.msra.mxu0 0.0
    %1655 = vmatprep.subr.mxu0 0.0
    %1656 = vmatpush2.msra.mxu0 0.0
    %1657 = vmatprep.mubr.f32.mxu0 0.0
    %v1658 = vand.u32 %v1437, 4294901760
    %v1659 = vsub.f32 %v1437, %v1658
    %1660 = vmatmul.mubr.f32.gmra.mxu0 %v1659
    %v1661 = vpop.f32.mrf.mxu0
    %v1662 = vadd.f32 %v1588, %v1661
    %v1663 = vpop.f32.mrf.mxu0
    %1664 = vdwg.mxu0
    %1665 = vmatprep.subr.mxu0 0.0
    %1666 = vmatpush1.msra.mxu0 0.0
    %1667 = vmatprep.subr.mxu0 0.0
    %1668 = vmatpush1.msra.mxu0 0.0
    %1669 = vmatprep.subr.mxu0 0.0
    %1670 = vmatpush1.msra.mxu0 0.0
    %1671 = vmatprep.subr.mxu0 0.0
    %1672 = vmatpush1.msra.mxu0 0.0
    %1673 = vmatprep.subr.mxu0 0.0
    %1674 = vmatpush1.msra.mxu0 0.0
    %1675 = vmatprep.subr.mxu0 0.0
    %1676 = vmatpush1.msra.mxu0 0.0
    %1677 = vmatprep.subr.mxu0 0.0
    %1678 = vmatpush1.msra.mxu0 0.0
    %1679 = vmatprep.subr.mxu0 0.0
    %1680 = vmatpush1.msra.mxu0 0.0
    %1681 = vmatprep.subr.mxu0 0.0
    %1682 = vmatpush1.msra.mxu0 0.0
    %1683 = vmatprep.subr.mxu0 0.0
    %1684 = vmatpush1.msra.mxu0 0.0
    %1685 = vmatprep.subr.mxu0 0.0
    %1686 = vmatpush1.msra.mxu0 0.0
    %1687 = vmatprep.subr.mxu0 0.0
    %1688 = vmatpush1.msra.mxu0 0.0
    %1689 = vmatprep.subr.mxu0 0.0
    %1690 = vmatpush1.msra.mxu0 0.0
    %1691 = vmatprep.subr.mxu0 0.0
    %1692 = vmatpush1.msra.mxu0 0.0
    %1693 = vmatprep.subr.mxu0 0.0
    %1694 = vmatpush1.msra.mxu0 0.0
    %1695 = vmatprep.subr.mxu0 0.0
    %v1696 = vand.u32 %v51, 4294901760
    %1697 = vmatpush1.msra.mxu0 %v1696
    %1698 = vmatprep.subr.mxu0 0.0
    %1699 = vmatpush2.msra.mxu0 0.0
    %1700 = vmatprep.subr.mxu0 0.0
    %1701 = vmatpush2.msra.mxu0 0.0
    %1702 = vmatprep.subr.mxu0 0.0
    %1703 = vmatpush2.msra.mxu0 0.0
    %1704 = vmatprep.subr.mxu0 0.0
    %1705 = vmatpush2.msra.mxu0 0.0
    %1706 = vmatprep.subr.mxu0 0.0
    %1707 = vmatpush2.msra.mxu0 0.0
    %1708 = vmatprep.subr.mxu0 0.0
    %1709 = vmatpush2.msra.mxu0 0.0
    %1710 = vmatprep.subr.mxu0 0.0
    %1711 = vmatpush2.msra.mxu0 0.0
    %1712 = vmatprep.subr.mxu0 0.0
    %1713 = vmatpush2.msra.mxu0 0.0
    %1714 = vmatprep.subr.mxu0 0.0
    %1715 = vmatpush2.msra.mxu0 0.0
    %1716 = vmatprep.subr.mxu0 0.0
    %1717 = vmatpush2.msra.mxu0 0.0
    %1718 = vmatprep.subr.mxu0 0.0
    %1719 = vmatpush2.msra.mxu0 0.0
    %1720 = vmatprep.subr.mxu0 0.0
    %1721 = vmatpush2.msra.mxu0 0.0
    %1722 = vmatprep.subr.mxu0 0.0
    %1723 = vmatpush2.msra.mxu0 0.0
    %1724 = vmatprep.subr.mxu0 0.0
    %1725 = vmatpush2.msra.mxu0 0.0
    %1726 = vmatprep.subr.mxu0 0.0
    %1727 = vmatpush2.msra.mxu0 0.0
    %1728 = vmatprep.subr.mxu0 0.0
    %1729 = vmatpush2.msra.mxu0 0.0
    %1730 = vmatprep.mubr.f32.mxu0 0.0
    %v1731 = vand.u32 %v1437, 4294901760
    %v1732 = vsub.f32 %v1437, %v1731
    %v1733 = vand.u32 %v1732, 4294901760
    %1734 = vmatmul.mubr.f32.gmra.mxu0 %v1733
    %v1735 = vpop.f32.mrf.mxu0
    %v1736 = vadd.f32 %v1662, %v1735
    %v1737 = vpop.f32.mrf.mxu0
    %1738 = vdwg.mxu0
    %1739 = vmatprep.subr.mxu0 0.0
    %1740 = vmatpush1.msra.mxu0 0.0
    %1741 = vmatprep.subr.mxu0 0.0
    %1742 = vmatpush1.msra.mxu0 0.0
    %1743 = vmatprep.subr.mxu0 0.0
    %1744 = vmatpush1.msra.mxu0 0.0
    %1745 = vmatprep.subr.mxu0 0.0
    %1746 = vmatpush1.msra.mxu0 0.0
    %1747 = vmatprep.subr.mxu0 0.0
    %1748 = vmatpush1.msra.mxu0 0.0
    %1749 = vmatprep.subr.mxu0 0.0
    %1750 = vmatpush1.msra.mxu0 0.0
    %1751 = vmatprep.subr.mxu0 0.0
    %1752 = vmatpush1.msra.mxu0 0.0
    %1753 = vmatprep.subr.mxu0 0.0
    %1754 = vmatpush1.msra.mxu0 0.0
    %1755 = vmatprep.subr.mxu0 0.0
    %1756 = vmatpush1.msra.mxu0 0.0
    %1757 = vmatprep.subr.mxu0 0.0
    %1758 = vmatpush1.msra.mxu0 0.0
    %1759 = vmatprep.subr.mxu0 0.0
    %1760 = vmatpush1.msra.mxu0 0.0
    %1761 = vmatprep.subr.mxu0 0.0
    %1762 = vmatpush1.msra.mxu0 0.0
    %1763 = vmatprep.subr.mxu0 0.0
    %1764 = vmatpush1.msra.mxu0 0.0
    %1765 = vmatprep.subr.mxu0 0.0
    %1766 = vmatpush1.msra.mxu0 0.0
    %1767 = vmatprep.subr.mxu0 0.0
    %1768 = vmatpush1.msra.mxu0 0.0
    %1769 = vmatprep.subr.mxu0 0.0
    %v1770 = vand.u32 %v51, 4294901760
    %v1771 = vsub.f32 %v51, %v1770
    %v1772 = vand.u32 %v1771, 4294901760
    %1773 = vmatpush1.msra.mxu0 %v1772
    %1774 = vmatprep.subr.mxu0 0.0
    %1775 = vmatpush2.msra.mxu0 0.0
    %1776 = vmatprep.subr.mxu0 0.0
    %1777 = vmatpush2.msra.mxu0 0.0
    %1778 = vmatprep.subr.mxu0 0.0
    %1779 = vmatpush2.msra.mxu0 0.0
    %1780 = vmatprep.subr.mxu0 0.0
    %1781 = vmatpush2.msra.mxu0 0.0
    %1782 = vmatprep.subr.mxu0 0.0
    %1783 = vmatpush2.msra.mxu0 0.0
    %1784 = vmatprep.subr.mxu0 0.0
    %1785 = vmatpush2.msra.mxu0 0.0
    %1786 = vmatprep.subr.mxu0 0.0
    %1787 = vmatpush2.msra.mxu0 0.0
    %1788 = vmatprep.subr.mxu0 0.0
    %1789 = vmatpush2.msra.mxu0 0.0
    %1790 = vmatprep.subr.mxu0 0.0
    %1791 = vmatpush2.msra.mxu0 0.0
    %1792 = vmatprep.subr.mxu0 0.0
    %1793 = vmatpush2.msra.mxu0 0.0
    %1794 = vmatprep.subr.mxu0 0.0
    %1795 = vmatpush2.msra.mxu0 0.0
    %1796 = vmatprep.subr.mxu0 0.0
    %1797 = vmatpush2.msra.mxu0 0.0
    %1798 = vmatprep.subr.mxu0 0.0
    %1799 = vmatpush2.msra.mxu0 0.0
    %1800 = vmatprep.subr.mxu0 0.0
    %1801 = vmatpush2.msra.mxu0 0.0
    %1802 = vmatprep.subr.mxu0 0.0
    %1803 = vmatpush2.msra.mxu0 0.0
    %1804 = vmatprep.subr.mxu0 0.0
    %1805 = vmatpush2.msra.mxu0 0.0
    %1806 = vmatprep.mubr.f32.mxu0 0.0
    %v1807 = vand.u32 %v1437, 4294901760
    %1808 = vmatmul.mubr.f32.gmra.mxu0 %v1807
    %v1809 = vpop.f32.mrf.mxu0
    %v1810 = vadd.f32 %v1736, %v1809
    %v1811 = vpop.f32.mrf.mxu0
    %1812 = vdwg.mxu0
    %1813 = vmatprep.subr.mxu0 0.0
    %1814 = vmatpush1.msra.mxu0 0.0
    %1815 = vmatprep.subr.mxu0 0.0
    %1816 = vmatpush1.msra.mxu0 0.0
    %1817 = vmatprep.subr.mxu0 0.0
    %1818 = vmatpush1.msra.mxu0 0.0
    %1819 = vmatprep.subr.mxu0 0.0
    %1820 = vmatpush1.msra.mxu0 0.0
    %1821 = vmatprep.subr.mxu0 0.0
    %1822 = vmatpush1.msra.mxu0 0.0
    %1823 = vmatprep.subr.mxu0 0.0
    %1824 = vmatpush1.msra.mxu0 0.0
    %1825 = vmatprep.subr.mxu0 0.0
    %1826 = vmatpush1.msra.mxu0 0.0
    %1827 = vmatprep.subr.mxu0 0.0
    %1828 = vmatpush1.msra.mxu0 0.0
    %1829 = vmatprep.subr.mxu0 0.0
    %1830 = vmatpush1.msra.mxu0 0.0
    %1831 = vmatprep.subr.mxu0 0.0
    %1832 = vmatpush1.msra.mxu0 0.0
    %1833 = vmatprep.subr.mxu0 0.0
    %1834 = vmatpush1.msra.mxu0 0.0
    %1835 = vmatprep.subr.mxu0 0.0
    %1836 = vmatpush1.msra.mxu0 0.0
    %1837 = vmatprep.subr.mxu0 0.0
    %1838 = vmatpush1.msra.mxu0 0.0
    %1839 = vmatprep.subr.mxu0 0.0
    %1840 = vmatpush1.msra.mxu0 0.0
    %1841 = vmatprep.subr.mxu0 0.0
    %1842 = vmatpush1.msra.mxu0 0.0
    %1843 = vmatprep.subr.mxu0 0.0
    %v1844 = vand.u32 %v51, 4294901760
    %1845 = vmatpush1.msra.mxu0 %v1844
    %1846 = vmatprep.subr.mxu0 0.0
    %1847 = vmatpush2.msra.mxu0 0.0
    %1848 = vmatprep.subr.mxu0 0.0
    %1849 = vmatpush2.msra.mxu0 0.0
    %1850 = vmatprep.subr.mxu0 0.0
    %1851 = vmatpush2.msra.mxu0 0.0
    %1852 = vmatprep.subr.mxu0 0.0
    %1853 = vmatpush2.msra.mxu0 0.0
    %1854 = vmatprep.subr.mxu0 0.0
    %1855 = vmatpush2.msra.mxu0 0.0
    %1856 = vmatprep.subr.mxu0 0.0
    %1857 = vmatpush2.msra.mxu0 0.0
    %1858 = vmatprep.subr.mxu0 0.0
    %1859 = vmatpush2.msra.mxu0 0.0
    %1860 = vmatprep.subr.mxu0 0.0
    %1861 = vmatpush2.msra.mxu0 0.0
    %1862 = vmatprep.subr.mxu0 0.0
    %1863 = vmatpush2.msra.mxu0 0.0
    %1864 = vmatprep.subr.mxu0 0.0
    %1865 = vmatpush2.msra.mxu0 0.0
    %1866 = vmatprep.subr.mxu0 0.0
    %1867 = vmatpush2.msra.mxu0 0.0
    %1868 = vmatprep.subr.mxu0 0.0
    %1869 = vmatpush2.msra.mxu0 0.0
    %1870 = vmatprep.subr.mxu0 0.0
    %1871 = vmatpush2.msra.mxu0 0.0
    %1872 = vmatprep.subr.mxu0 0.0
    %1873 = vmatpush2.msra.mxu0 0.0
    %1874 = vmatprep.subr.mxu0 0.0
    %1875 = vmatpush2.msra.mxu0 0.0
    %1876 = vmatprep.subr.mxu0 0.0
    %1877 = vmatpush2.msra.mxu0 0.0
    %1878 = vmatprep.mubr.f32.mxu0 0.0
    %v1879 = vand.u32 %v1437, 4294901760
    %1880 = vmatmul.mubr.f32.gmra.mxu0 %v1879
    %v1881 = vpop.f32.mrf.mxu0
    %v1882 = vadd.f32 %v1810, %v1881
    %v1883 = vpop.f32.mrf.mxu0
    %1884 = vdwg.mxu0
    %v1885 = vadd.f32 %v1882, %v503
    %s1886 = scalar_lea.vmem %s0, 8
    %v1887 = vld [vmem:[%s1886] sm:$0x3]
    %s1888 = scalar_lea.vmem %s1, 8
    %v1889 = vld [vmem:[%s1888] sm:$0x3]
    %1891 = vset.pattern.permute.xlu0 0
    %1892 = vperm.xlu0 %1891, %v1889
    %v1893 = vpop.permute.xlu0 %1892
    %v1895 = vmul.f32 %v1893, %v42
    %v1897 = vsel %vm45, %v1887, 0
    %1899 = vmatprep.subr.mxu0 0.0
    %1900 = vmatpush1.msra.mxu0 0.0
    %1901 = vmatprep.subr.mxu0 0.0
    %1902 = vmatpush1.msra.mxu0 0.0
    %1903 = vmatprep.subr.mxu0 0.0
    %1904 = vmatpush1.msra.mxu0 0.0
    %1905 = vmatprep.subr.mxu0 0.0
    %1906 = vmatpush1.msra.mxu0 0.0
    %1907 = vmatprep.subr.mxu0 0.0
    %1908 = vmatpush1.msra.mxu0 0.0
    %1909 = vmatprep.subr.mxu0 0.0
    %1910 = vmatpush1.msra.mxu0 0.0
    %1911 = vmatprep.subr.mxu0 0.0
    %1912 = vmatpush1.msra.mxu0 0.0
    %1913 = vmatprep.subr.mxu0 0.0
    %1914 = vmatpush1.msra.mxu0 0.0
    %1915 = vmatprep.subr.mxu0 0.0
    %1916 = vmatpush1.msra.mxu0 0.0
    %1917 = vmatprep.subr.mxu0 0.0
    %1918 = vmatpush1.msra.mxu0 0.0
    %1919 = vmatprep.subr.mxu0 0.0
    %1920 = vmatpush1.msra.mxu0 0.0
    %1921 = vmatprep.subr.mxu0 0.0
    %1922 = vmatpush1.msra.mxu0 0.0
    %1923 = vmatprep.subr.mxu0 0.0
    %1924 = vmatpush1.msra.mxu0 0.0
    %1925 = vmatprep.subr.mxu0 0.0
    %1926 = vmatpush1.msra.mxu0 0.0
    %1927 = vmatprep.subr.mxu0 0.0
    %1928 = vmatpush1.msra.mxu0 0.0
    %1929 = vmatprep.subr.mxu0 0.0
    %v1930 = vand.u32 %v51, 4294901760
    %1931 = vmatpush1.msra.mxu0 %v1930
    %1932 = vmatprep.subr.mxu0 0.0
    %1933 = vmatpush2.msra.mxu0 0.0
    %1934 = vmatprep.subr.mxu0 0.0
    %1935 = vmatpush2.msra.mxu0 0.0
    %1936 = vmatprep.subr.mxu0 0.0
    %1937 = vmatpush2.msra.mxu0 0.0
    %1938 = vmatprep.subr.mxu0 0.0
    %1939 = vmatpush2.msra.mxu0 0.0
    %1940 = vmatprep.subr.mxu0 0.0
    %1941 = vmatpush2.msra.mxu0 0.0
    %1942 = vmatprep.subr.mxu0 0.0
    %1943 = vmatpush2.msra.mxu0 0.0
    %1944 = vmatprep.subr.mxu0 0.0
    %1945 = vmatpush2.msra.mxu0 0.0
    %1946 = vmatprep.subr.mxu0 0.0
    %1947 = vmatpush2.msra.mxu0 0.0
    %1948 = vmatprep.subr.mxu0 0.0
    %1949 = vmatpush2.msra.mxu0 0.0
    %1950 = vmatprep.subr.mxu0 0.0
    %1951 = vmatpush2.msra.mxu0 0.0
    %1952 = vmatprep.subr.mxu0 0.0
    %1953 = vmatpush2.msra.mxu0 0.0
    %1954 = vmatprep.subr.mxu0 0.0
    %1955 = vmatpush2.msra.mxu0 0.0
    %1956 = vmatprep.subr.mxu0 0.0
    %1957 = vmatpush2.msra.mxu0 0.0
    %1958 = vmatprep.subr.mxu0 0.0
    %1959 = vmatpush2.msra.mxu0 0.0
    %1960 = vmatprep.subr.mxu0 0.0
    %1961 = vmatpush2.msra.mxu0 0.0
    %1962 = vmatprep.subr.mxu0 0.0
    %1963 = vmatpush2.msra.mxu0 0.0
    %1964 = vmatprep.mubr.f32.mxu0 0.0
    %v1965 = vand.u32 %v1897, 4294901760
    %v1966 = vsub.f32 %v1897, %v1965
    %v1967 = vand.u32 %v1966, 4294901760
    %v1968 = vsub.f32 %v1966, %v1967
    %v1969 = vand.u32 %v1968, 4294901760
    %1970 = vmatmul.mubr.f32.gmra.mxu0 %v1969
    %v1971 = vpop.f32.mrf.mxu0
    %v1972 = vadd.f32 %v1895, %v1971
    %v1973 = vpop.f32.mrf.mxu0
    %1974 = vdwg.mxu0
    %1975 = vmatprep.subr.mxu0 0.0
    %1976 = vmatpush1.msra.mxu0 0.0
    %1977 = vmatprep.subr.mxu0 0.0
    %1978 = vmatpush1.msra.mxu0 0.0
    %1979 = vmatprep.subr.mxu0 0.0
    %1980 = vmatpush1.msra.mxu0 0.0
    %1981 = vmatprep.subr.mxu0 0.0
    %1982 = vmatpush1.msra.mxu0 0.0
    %1983 = vmatprep.subr.mxu0 0.0
    %1984 = vmatpush1.msra.mxu0 0.0
    %1985 = vmatprep.subr.mxu0 0.0
    %1986 = vmatpush1.msra.mxu0 0.0
    %1987 = vmatprep.subr.mxu0 0.0
    %1988 = vmatpush1.msra.mxu0 0.0
    %1989 = vmatprep.subr.mxu0 0.0
    %1990 = vmatpush1.msra.mxu0 0.0
    %1991 = vmatprep.subr.mxu0 0.0
    %1992 = vmatpush1.msra.mxu0 0.0
    %1993 = vmatprep.subr.mxu0 0.0
    %1994 = vmatpush1.msra.mxu0 0.0
    %1995 = vmatprep.subr.mxu0 0.0
    %1996 = vmatpush1.msra.mxu0 0.0
    %1997 = vmatprep.subr.mxu0 0.0
    %1998 = vmatpush1.msra.mxu0 0.0
    %1999 = vmatprep.subr.mxu0 0.0
    %2000 = vmatpush1.msra.mxu0 0.0
    %2001 = vmatprep.subr.mxu0 0.0
    %2002 = vmatpush1.msra.mxu0 0.0
    %2003 = vmatprep.subr.mxu0 0.0
    %2004 = vmatpush1.msra.mxu0 0.0
    %2005 = vmatprep.subr.mxu0 0.0
    %v2006 = vand.u32 %v51, 4294901760
    %v2007 = vsub.f32 %v51, %v2006
    %v2008 = vand.u32 %v2007, 4294901760
    %v2009 = vsub.f32 %v2007, %v2008
    %v2010 = vand.u32 %v2009, 4294901760
    %2011 = vmatpush1.msra.mxu0 %v2010
    %2012 = vmatprep.subr.mxu0 0.0
    %2013 = vmatpush2.msra.mxu0 0.0
    %2014 = vmatprep.subr.mxu0 0.0
    %2015 = vmatpush2.msra.mxu0 0.0
    %2016 = vmatprep.subr.mxu0 0.0
    %2017 = vmatpush2.msra.mxu0 0.0
    %2018 = vmatprep.subr.mxu0 0.0
    %2019 = vmatpush2.msra.mxu0 0.0
    %2020 = vmatprep.subr.mxu0 0.0
    %2021 = vmatpush2.msra.mxu0 0.0
    %2022 = vmatprep.subr.mxu0 0.0
    %2023 = vmatpush2.msra.mxu0 0.0
    %2024 = vmatprep.subr.mxu0 0.0
    %2025 = vmatpush2.msra.mxu0 0.0
    %2026 = vmatprep.subr.mxu0 0.0
    %2027 = vmatpush2.msra.mxu0 0.0
    %2028 = vmatprep.subr.mxu0 0.0
    %2029 = vmatpush2.msra.mxu0 0.0
    %2030 = vmatprep.subr.mxu0 0.0
    %2031 = vmatpush2.msra.mxu0 0.0
    %2032 = vmatprep.subr.mxu0 0.0
    %2033 = vmatpush2.msra.mxu0 0.0
    %2034 = vmatprep.subr.mxu0 0.0
    %2035 = vmatpush2.msra.mxu0 0.0
    %2036 = vmatprep.subr.mxu0 0.0
    %2037 = vmatpush2.msra.mxu0 0.0
    %2038 = vmatprep.subr.mxu0 0.0
    %2039 = vmatpush2.msra.mxu0 0.0
    %2040 = vmatprep.subr.mxu0 0.0
    %2041 = vmatpush2.msra.mxu0 0.0
    %2042 = vmatprep.subr.mxu0 0.0
    %2043 = vmatpush2.msra.mxu0 0.0
    %2044 = vmatprep.mubr.f32.mxu0 0.0
    %v2045 = vand.u32 %v1897, 4294901760
    %2046 = vmatmul.mubr.f32.gmra.mxu0 %v2045
    %v2047 = vpop.f32.mrf.mxu0
    %v2048 = vadd.f32 %v1972, %v2047
    %v2049 = vpop.f32.mrf.mxu0
    %2050 = vdwg.mxu0
    %2051 = vmatprep.subr.mxu0 0.0
    %2052 = vmatpush1.msra.mxu0 0.0
    %2053 = vmatprep.subr.mxu0 0.0
    %2054 = vmatpush1.msra.mxu0 0.0
    %2055 = vmatprep.subr.mxu0 0.0
    %2056 = vmatpush1.msra.mxu0 0.0
    %2057 = vmatprep.subr.mxu0 0.0
    %2058 = vmatpush1.msra.mxu0 0.0
    %2059 = vmatprep.subr.mxu0 0.0
    %2060 = vmatpush1.msra.mxu0 0.0
    %2061 = vmatprep.subr.mxu0 0.0
    %2062 = vmatpush1.msra.mxu0 0.0
    %2063 = vmatprep.subr.mxu0 0.0
    %2064 = vmatpush1.msra.mxu0 0.0
    %2065 = vmatprep.subr.mxu0 0.0
    %2066 = vmatpush1.msra.mxu0 0.0
    %2067 = vmatprep.subr.mxu0 0.0
    %2068 = vmatpush1.msra.mxu0 0.0
    %2069 = vmatprep.subr.mxu0 0.0
    %2070 = vmatpush1.msra.mxu0 0.0
    %2071 = vmatprep.subr.mxu0 0.0
    %2072 = vmatpush1.msra.mxu0 0.0
    %2073 = vmatprep.subr.mxu0 0.0
    %2074 = vmatpush1.msra.mxu0 0.0
    %2075 = vmatprep.subr.mxu0 0.0
    %2076 = vmatpush1.msra.mxu0 0.0
    %2077 = vmatprep.subr.mxu0 0.0
    %2078 = vmatpush1.msra.mxu0 0.0
    %2079 = vmatprep.subr.mxu0 0.0
    %2080 = vmatpush1.msra.mxu0 0.0
    %2081 = vmatprep.subr.mxu0 0.0
    %v2082 = vand.u32 %v51, 4294901760
    %v2083 = vsub.f32 %v51, %v2082
    %2084 = vmatpush1.msra.mxu0 %v2083
    %2085 = vmatprep.subr.mxu0 0.0
    %2086 = vmatpush2.msra.mxu0 0.0
    %2087 = vmatprep.subr.mxu0 0.0
    %2088 = vmatpush2.msra.mxu0 0.0
    %2089 = vmatprep.subr.mxu0 0.0
    %2090 = vmatpush2.msra.mxu0 0.0
    %2091 = vmatprep.subr.mxu0 0.0
    %2092 = vmatpush2.msra.mxu0 0.0
    %2093 = vmatprep.subr.mxu0 0.0
    %2094 = vmatpush2.msra.mxu0 0.0
    %2095 = vmatprep.subr.mxu0 0.0
    %2096 = vmatpush2.msra.mxu0 0.0
    %2097 = vmatprep.subr.mxu0 0.0
    %2098 = vmatpush2.msra.mxu0 0.0
    %2099 = vmatprep.subr.mxu0 0.0
    %2100 = vmatpush2.msra.mxu0 0.0
    %2101 = vmatprep.subr.mxu0 0.0
    %2102 = vmatpush2.msra.mxu0 0.0
    %2103 = vmatprep.subr.mxu0 0.0
    %2104 = vmatpush2.msra.mxu0 0.0
    %2105 = vmatprep.subr.mxu0 0.0
    %2106 = vmatpush2.msra.mxu0 0.0
    %2107 = vmatprep.subr.mxu0 0.0
    %2108 = vmatpush2.msra.mxu0 0.0
    %2109 = vmatprep.subr.mxu0 0.0
    %2110 = vmatpush2.msra.mxu0 0.0
    %2111 = vmatprep.subr.mxu0 0.0
    %2112 = vmatpush2.msra.mxu0 0.0
    %2113 = vmatprep.subr.mxu0 0.0
    %2114 = vmatpush2.msra.mxu0 0.0
    %2115 = vmatprep.subr.mxu0 0.0
    %2116 = vmatpush2.msra.mxu0 0.0
    %2117 = vmatprep.mubr.f32.mxu0 0.0
    %v2118 = vand.u32 %v1897, 4294901760
    %v2119 = vsub.f32 %v1897, %v2118
    %2120 = vmatmul.mubr.f32.gmra.mxu0 %v2119
    %v2121 = vpop.f32.mrf.mxu0
    %v2122 = vadd.f32 %v2048, %v2121
    %v2123 = vpop.f32.mrf.mxu0
    %2124 = vdwg.mxu0
    %2125 = vmatprep.subr.mxu0 0.0
    %2126 = vmatpush1.msra.mxu0 0.0
    %2127 = vmatprep.subr.mxu0 0.0
    %2128 = vmatpush1.msra.mxu0 0.0
    %2129 = vmatprep.subr.mxu0 0.0
    %2130 = vmatpush1.msra.mxu0 0.0
    %2131 = vmatprep.subr.mxu0 0.0
    %2132 = vmatpush1.msra.mxu0 0.0
    %2133 = vmatprep.subr.mxu0 0.0
    %2134 = vmatpush1.msra.mxu0 0.0
    %2135 = vmatprep.subr.mxu0 0.0
    %2136 = vmatpush1.msra.mxu0 0.0
    %2137 = vmatprep.subr.mxu0 0.0
    %2138 = vmatpush1.msra.mxu0 0.0
    %2139 = vmatprep.subr.mxu0 0.0
    %2140 = vmatpush1.msra.mxu0 0.0
    %2141 = vmatprep.subr.mxu0 0.0
    %2142 = vmatpush1.msra.mxu0 0.0
    %2143 = vmatprep.subr.mxu0 0.0
    %2144 = vmatpush1.msra.mxu0 0.0
    %2145 = vmatprep.subr.mxu0 0.0
    %2146 = vmatpush1.msra.mxu0 0.0
    %2147 = vmatprep.subr.mxu0 0.0
    %2148 = vmatpush1.msra.mxu0 0.0
    %2149 = vmatprep.subr.mxu0 0.0
    %2150 = vmatpush1.msra.mxu0 0.0
    %2151 = vmatprep.subr.mxu0 0.0
    %2152 = vmatpush1.msra.mxu0 0.0
    %2153 = vmatprep.subr.mxu0 0.0
    %2154 = vmatpush1.msra.mxu0 0.0
    %2155 = vmatprep.subr.mxu0 0.0
    %v2156 = vand.u32 %v51, 4294901760
    %2157 = vmatpush1.msra.mxu0 %v2156
    %2158 = vmatprep.subr.mxu0 0.0
    %2159 = vmatpush2.msra.mxu0 0.0
    %2160 = vmatprep.subr.mxu0 0.0
    %2161 = vmatpush2.msra.mxu0 0.0
    %2162 = vmatprep.subr.mxu0 0.0
    %2163 = vmatpush2.msra.mxu0 0.0
    %2164 = vmatprep.subr.mxu0 0.0
    %2165 = vmatpush2.msra.mxu0 0.0
    %2166 = vmatprep.subr.mxu0 0.0
    %2167 = vmatpush2.msra.mxu0 0.0
    %2168 = vmatprep.subr.mxu0 0.0
    %2169 = vmatpush2.msra.mxu0 0.0
    %2170 = vmatprep.subr.mxu0 0.0
    %2171 = vmatpush2.msra.mxu0 0.0
    %2172 = vmatprep.subr.mxu0 0.0
    %2173 = vmatpush2.msra.mxu0 0.0
    %2174 = vmatprep.subr.mxu0 0.0
    %2175 = vmatpush2.msra.mxu0 0.0
    %2176 = vmatprep.subr.mxu0 0.0
    %2177 = vmatpush2.msra.mxu0 0.0
    %2178 = vmatprep.subr.mxu0 0.0
    %2179 = vmatpush2.msra.mxu0 0.0
    %2180 = vmatprep.subr.mxu0 0.0
    %2181 = vmatpush2.msra.mxu0 0.0
    %2182 = vmatprep.subr.mxu0 0.0
    %2183 = vmatpush2.msra.mxu0 0.0
    %2184 = vmatprep.subr.mxu0 0.0
    %2185 = vmatpush2.msra.mxu0 0.0
    %2186 = vmatprep.subr.mxu0 0.0
    %2187 = vmatpush2.msra.mxu0 0.0
    %2188 = vmatprep.subr.mxu0 0.0
    %2189 = vmatpush2.msra.mxu0 0.0
    %2190 = vmatprep.mubr.f32.mxu0 0.0
    %v2191 = vand.u32 %v1897, 4294901760
    %v2192 = vsub.f32 %v1897, %v2191
    %v2193 = vand.u32 %v2192, 4294901760
    %2194 = vmatmul.mubr.f32.gmra.mxu0 %v2193
    %v2195 = vpop.f32.mrf.mxu0
    %v2196 = vadd.f32 %v2122, %v2195
    %v2197 = vpop.f32.mrf.mxu0
    %2198 = vdwg.mxu0
    %2199 = vmatprep.subr.mxu0 0.0
    %2200 = vmatpush1.msra.mxu0 0.0
    %2201 = vmatprep.subr.mxu0 0.0
    %2202 = vmatpush1.msra.mxu0 0.0
    %2203 = vmatprep.subr.mxu0 0.0
    %2204 = vmatpush1.msra.mxu0 0.0
    %2205 = vmatprep.subr.mxu0 0.0
    %2206 = vmatpush1.msra.mxu0 0.0
    %2207 = vmatprep.subr.mxu0 0.0
    %2208 = vmatpush1.msra.mxu0 0.0
    %2209 = vmatprep.subr.mxu0 0.0
    %2210 = vmatpush1.msra.mxu0 0.0
    %2211 = vmatprep.subr.mxu0 0.0
    %2212 = vmatpush1.msra.mxu0 0.0
    %2213 = vmatprep.subr.mxu0 0.0
    %2214 = vmatpush1.msra.mxu0 0.0
    %2215 = vmatprep.subr.mxu0 0.0
    %2216 = vmatpush1.msra.mxu0 0.0
    %2217 = vmatprep.subr.mxu0 0.0
    %2218 = vmatpush1.msra.mxu0 0.0
    %2219 = vmatprep.subr.mxu0 0.0
    %2220 = vmatpush1.msra.mxu0 0.0
    %2221 = vmatprep.subr.mxu0 0.0
    %2222 = vmatpush1.msra.mxu0 0.0
    %2223 = vmatprep.subr.mxu0 0.0
    %2224 = vmatpush1.msra.mxu0 0.0
    %2225 = vmatprep.subr.mxu0 0.0
    %2226 = vmatpush1.msra.mxu0 0.0
    %2227 = vmatprep.subr.mxu0 0.0
    %2228 = vmatpush1.msra.mxu0 0.0
    %2229 = vmatprep.subr.mxu0 0.0
    %v2230 = vand.u32 %v51, 4294901760
    %v2231 = vsub.f32 %v51, %v2230
    %v2232 = vand.u32 %v2231, 4294901760
    %2233 = vmatpush1.msra.mxu0 %v2232
    %2234 = vmatprep.subr.mxu0 0.0
    %2235 = vmatpush2.msra.mxu0 0.0
    %2236 = vmatprep.subr.mxu0 0.0
    %2237 = vmatpush2.msra.mxu0 0.0
    %2238 = vmatprep.subr.mxu0 0.0
    %2239 = vmatpush2.msra.mxu0 0.0
    %2240 = vmatprep.subr.mxu0 0.0
    %2241 = vmatpush2.msra.mxu0 0.0
    %2242 = vmatprep.subr.mxu0 0.0
    %2243 = vmatpush2.msra.mxu0 0.0
    %2244 = vmatprep.subr.mxu0 0.0
    %2245 = vmatpush2.msra.mxu0 0.0
    %2246 = vmatprep.subr.mxu0 0.0
    %2247 = vmatpush2.msra.mxu0 0.0
    %2248 = vmatprep.subr.mxu0 0.0
    %2249 = vmatpush2.msra.mxu0 0.0
    %2250 = vmatprep.subr.mxu0 0.0
    %2251 = vmatpush2.msra.mxu0 0.0
    %2252 = vmatprep.subr.mxu0 0.0
    %2253 = vmatpush2.msra.mxu0 0.0
    %2254 = vmatprep.subr.mxu0 0.0
    %2255 = vmatpush2.msra.mxu0 0.0
    %2256 = vmatprep.subr.mxu0 0.0
    %2257 = vmatpush2.msra.mxu0 0.0
    %2258 = vmatprep.subr.mxu0 0.0
    %2259 = vmatpush2.msra.mxu0 0.0
    %2260 = vmatprep.subr.mxu0 0.0
    %2261 = vmatpush2.msra.mxu0 0.0
    %2262 = vmatprep.subr.mxu0 0.0
    %2263 = vmatpush2.msra.mxu0 0.0
    %2264 = vmatprep.subr.mxu0 0.0
    %2265 = vmatpush2.msra.mxu0 0.0
    %2266 = vmatprep.mubr.f32.mxu0 0.0
    %v2267 = vand.u32 %v1897, 4294901760
    %2268 = vmatmul.mubr.f32.gmra.mxu0 %v2267
    %v2269 = vpop.f32.mrf.mxu0
    %v2270 = vadd.f32 %v2196, %v2269
    %v2271 = vpop.f32.mrf.mxu0
    %2272 = vdwg.mxu0
    %2273 = vmatprep.subr.mxu0 0.0
    %2274 = vmatpush1.msra.mxu0 0.0
    %2275 = vmatprep.subr.mxu0 0.0
    %2276 = vmatpush1.msra.mxu0 0.0
    %2277 = vmatprep.subr.mxu0 0.0
    %2278 = vmatpush1.msra.mxu0 0.0
    %2279 = vmatprep.subr.mxu0 0.0
    %2280 = vmatpush1.msra.mxu0 0.0
    %2281 = vmatprep.subr.mxu0 0.0
    %2282 = vmatpush1.msra.mxu0 0.0
    %2283 = vmatprep.subr.mxu0 0.0
    %2284 = vmatpush1.msra.mxu0 0.0
    %2285 = vmatprep.subr.mxu0 0.0
    %2286 = vmatpush1.msra.mxu0 0.0
    %2287 = vmatprep.subr.mxu0 0.0
    %2288 = vmatpush1.msra.mxu0 0.0
    %2289 = vmatprep.subr.mxu0 0.0
    %2290 = vmatpush1.msra.mxu0 0.0
    %2291 = vmatprep.subr.mxu0 0.0
    %2292 = vmatpush1.msra.mxu0 0.0
    %2293 = vmatprep.subr.mxu0 0.0
    %2294 = vmatpush1.msra.mxu0 0.0
    %2295 = vmatprep.subr.mxu0 0.0
    %2296 = vmatpush1.msra.mxu0 0.0
    %2297 = vmatprep.subr.mxu0 0.0
    %2298 = vmatpush1.msra.mxu0 0.0
    %2299 = vmatprep.subr.mxu0 0.0
    %2300 = vmatpush1.msra.mxu0 0.0
    %2301 = vmatprep.subr.mxu0 0.0
    %2302 = vmatpush1.msra.mxu0 0.0
    %2303 = vmatprep.subr.mxu0 0.0
    %v2304 = vand.u32 %v51, 4294901760
    %2305 = vmatpush1.msra.mxu0 %v2304
    %2306 = vmatprep.subr.mxu0 0.0
    %2307 = vmatpush2.msra.mxu0 0.0
    %2308 = vmatprep.subr.mxu0 0.0
    %2309 = vmatpush2.msra.mxu0 0.0
    %2310 = vmatprep.subr.mxu0 0.0
    %2311 = vmatpush2.msra.mxu0 0.0
    %2312 = vmatprep.subr.mxu0 0.0
    %2313 = vmatpush2.msra.mxu0 0.0
    %2314 = vmatprep.subr.mxu0 0.0
    %2315 = vmatpush2.msra.mxu0 0.0
    %2316 = vmatprep.subr.mxu0 0.0
    %2317 = vmatpush2.msra.mxu0 0.0
    %2318 = vmatprep.subr.mxu0 0.0
    %2319 = vmatpush2.msra.mxu0 0.0
    %2320 = vmatprep.subr.mxu0 0.0
    %2321 = vmatpush2.msra.mxu0 0.0
    %2322 = vmatprep.subr.mxu0 0.0
    %2323 = vmatpush2.msra.mxu0 0.0
    %2324 = vmatprep.subr.mxu0 0.0
    %2325 = vmatpush2.msra.mxu0 0.0
    %2326 = vmatprep.subr.mxu0 0.0
    %2327 = vmatpush2.msra.mxu0 0.0
    %2328 = vmatprep.subr.mxu0 0.0
    %2329 = vmatpush2.msra.mxu0 0.0
    %2330 = vmatprep.subr.mxu0 0.0
    %2331 = vmatpush2.msra.mxu0 0.0
    %2332 = vmatprep.subr.mxu0 0.0
    %2333 = vmatpush2.msra.mxu0 0.0
    %2334 = vmatprep.subr.mxu0 0.0
    %2335 = vmatpush2.msra.mxu0 0.0
    %2336 = vmatprep.subr.mxu0 0.0
    %2337 = vmatpush2.msra.mxu0 0.0
    %2338 = vmatprep.mubr.f32.mxu0 0.0
    %v2339 = vand.u32 %v1897, 4294901760
    %2340 = vmatmul.mubr.f32.gmra.mxu0 %v2339
    %v2341 = vpop.f32.mrf.mxu0
    %v2342 = vadd.f32 %v2270, %v2341
    %v2343 = vpop.f32.mrf.mxu0
    %2344 = vdwg.mxu0
    %v2345 = vadd.f32 %v2342, %v503
    %s2346 = scalar_lea.vmem %s0, 10
    %v2347 = vld [vmem:[%s2346] sm:$0x3]
    %s2348 = scalar_lea.vmem %s1, 10
    %v2349 = vld [vmem:[%s2348] sm:$0x3]
    %2351 = vset.pattern.permute.xlu0 0
    %2352 = vperm.xlu0 %2351, %v2349
    %v2353 = vpop.permute.xlu0 %2352
    %v2355 = vmul.f32 %v2353, %v42
    %v2357 = vsel %vm45, %v2347, 0
    %2359 = vmatprep.subr.mxu0 0.0
    %2360 = vmatpush1.msra.mxu0 0.0
    %2361 = vmatprep.subr.mxu0 0.0
    %2362 = vmatpush1.msra.mxu0 0.0
    %2363 = vmatprep.subr.mxu0 0.0
    %2364 = vmatpush1.msra.mxu0 0.0
    %2365 = vmatprep.subr.mxu0 0.0
    %2366 = vmatpush1.msra.mxu0 0.0
    %2367 = vmatprep.subr.mxu0 0.0
    %2368 = vmatpush1.msra.mxu0 0.0
    %2369 = vmatprep.subr.mxu0 0.0
    %2370 = vmatpush1.msra.mxu0 0.0
    %2371 = vmatprep.subr.mxu0 0.0
    %2372 = vmatpush1.msra.mxu0 0.0
    %2373 = vmatprep.subr.mxu0 0.0
    %2374 = vmatpush1.msra.mxu0 0.0
    %2375 = vmatprep.subr.mxu0 0.0
    %2376 = vmatpush1.msra.mxu0 0.0
    %2377 = vmatprep.subr.mxu0 0.0
    %2378 = vmatpush1.msra.mxu0 0.0
    %2379 = vmatprep.subr.mxu0 0.0
    %2380 = vmatpush1.msra.mxu0 0.0
    %2381 = vmatprep.subr.mxu0 0.0
    %2382 = vmatpush1.msra.mxu0 0.0
    %2383 = vmatprep.subr.mxu0 0.0
    %2384 = vmatpush1.msra.mxu0 0.0
    %2385 = vmatprep.subr.mxu0 0.0
    %2386 = vmatpush1.msra.mxu0 0.0
    %2387 = vmatprep.subr.mxu0 0.0
    %2388 = vmatpush1.msra.mxu0 0.0
    %2389 = vmatprep.subr.mxu0 0.0
    %v2390 = vand.u32 %v51, 4294901760
    %2391 = vmatpush1.msra.mxu0 %v2390
    %2392 = vmatprep.subr.mxu0 0.0
    %2393 = vmatpush2.msra.mxu0 0.0
    %2394 = vmatprep.subr.mxu0 0.0
    %2395 = vmatpush2.msra.mxu0 0.0
    %2396 = vmatprep.subr.mxu0 0.0
    %2397 = vmatpush2.msra.mxu0 0.0
    %2398 = vmatprep.subr.mxu0 0.0
    %2399 = vmatpush2.msra.mxu0 0.0
    %2400 = vmatprep.subr.mxu0 0.0
    %2401 = vmatpush2.msra.mxu0 0.0
    %2402 = vmatprep.subr.mxu0 0.0
    %2403 = vmatpush2.msra.mxu0 0.0
    %2404 = vmatprep.subr.mxu0 0.0
    %2405 = vmatpush2.msra.mxu0 0.0
    %2406 = vmatprep.subr.mxu0 0.0
    %2407 = vmatpush2.msra.mxu0 0.0
    %2408 = vmatprep.subr.mxu0 0.0
    %2409 = vmatpush2.msra.mxu0 0.0
    %2410 = vmatprep.subr.mxu0 0.0
    %2411 = vmatpush2.msra.mxu0 0.0
    %2412 = vmatprep.subr.mxu0 0.0
    %2413 = vmatpush2.msra.mxu0 0.0
    %2414 = vmatprep.subr.mxu0 0.0
    %2415 = vmatpush2.msra.mxu0 0.0
    %2416 = vmatprep.subr.mxu0 0.0
    %2417 = vmatpush2.msra.mxu0 0.0
    %2418 = vmatprep.subr.mxu0 0.0
    %2419 = vmatpush2.msra.mxu0 0.0
    %2420 = vmatprep.subr.mxu0 0.0
    %2421 = vmatpush2.msra.mxu0 0.0
    %2422 = vmatprep.subr.mxu0 0.0
    %2423 = vmatpush2.msra.mxu0 0.0
    %2424 = vmatprep.mubr.f32.mxu0 0.0
    %v2425 = vand.u32 %v2357, 4294901760
    %v2426 = vsub.f32 %v2357, %v2425
    %v2427 = vand.u32 %v2426, 4294901760
    %v2428 = vsub.f32 %v2426, %v2427
    %v2429 = vand.u32 %v2428, 4294901760
    %2430 = vmatmul.mubr.f32.gmra.mxu0 %v2429
    %v2431 = vpop.f32.mrf.mxu0
    %v2432 = vadd.f32 %v2355, %v2431
    %v2433 = vpop.f32.mrf.mxu0
    %2434 = vdwg.mxu0
    %2435 = vmatprep.subr.mxu0 0.0
    %2436 = vmatpush1.msra.mxu0 0.0
    %2437 = vmatprep.subr.mxu0 0.0
    %2438 = vmatpush1.msra.mxu0 0.0
    %2439 = vmatprep.subr.mxu0 0.0
    %2440 = vmatpush1.msra.mxu0 0.0
    %2441 = vmatprep.subr.mxu0 0.0
    %2442 = vmatpush1.msra.mxu0 0.0
    %2443 = vmatprep.subr.mxu0 0.0
    %2444 = vmatpush1.msra.mxu0 0.0
    %2445 = vmatprep.subr.mxu0 0.0
    %2446 = vmatpush1.msra.mxu0 0.0
    %2447 = vmatprep.subr.mxu0 0.0
    %2448 = vmatpush1.msra.mxu0 0.0
    %2449 = vmatprep.subr.mxu0 0.0
    %2450 = vmatpush1.msra.mxu0 0.0
    %2451 = vmatprep.subr.mxu0 0.0
    %2452 = vmatpush1.msra.mxu0 0.0
    %2453 = vmatprep.subr.mxu0 0.0
    %2454 = vmatpush1.msra.mxu0 0.0
    %2455 = vmatprep.subr.mxu0 0.0
    %2456 = vmatpush1.msra.mxu0 0.0
    %2457 = vmatprep.subr.mxu0 0.0
    %2458 = vmatpush1.msra.mxu0 0.0
    %2459 = vmatprep.subr.mxu0 0.0
    %2460 = vmatpush1.msra.mxu0 0.0
    %2461 = vmatprep.subr.mxu0 0.0
    %2462 = vmatpush1.msra.mxu0 0.0
    %2463 = vmatprep.subr.mxu0 0.0
    %2464 = vmatpush1.msra.mxu0 0.0
    %2465 = vmatprep.subr.mxu0 0.0
    %v2466 = vand.u32 %v51, 4294901760
    %v2467 = vsub.f32 %v51, %v2466
    %v2468 = vand.u32 %v2467, 4294901760
    %v2469 = vsub.f32 %v2467, %v2468
    %v2470 = vand.u32 %v2469, 4294901760
    %2471 = vmatpush1.msra.mxu0 %v2470
    %2472 = vmatprep.subr.mxu0 0.0
    %2473 = vmatpush2.msra.mxu0 0.0
    %2474 = vmatprep.subr.mxu0 0.0
    %2475 = vmatpush2.msra.mxu0 0.0
    %2476 = vmatprep.subr.mxu0 0.0
    %2477 = vmatpush2.msra.mxu0 0.0
    %2478 = vmatprep.subr.mxu0 0.0
    %2479 = vmatpush2.msra.mxu0 0.0
    %2480 = vmatprep.subr.mxu0 0.0
    %2481 = vmatpush2.msra.mxu0 0.0
    %2482 = vmatprep.subr.mxu0 0.0
    %2483 = vmatpush2.msra.mxu0 0.0
    %2484 = vmatprep.subr.mxu0 0.0
    %2485 = vmatpush2.msra.mxu0 0.0
    %2486 = vmatprep.subr.mxu0 0.0
    %2487 = vmatpush2.msra.mxu0 0.0
    %2488 = vmatprep.subr.mxu0 0.0
    %2489 = vmatpush2.msra.mxu0 0.0
    %2490 = vmatprep.subr.mxu0 0.0
    %2491 = vmatpush2.msra.mxu0 0.0
    %2492 = vmatprep.subr.mxu0 0.0
    %2493 = vmatpush2.msra.mxu0 0.0
    %2494 = vmatprep.subr.mxu0 0.0
    %2495 = vmatpush2.msra.mxu0 0.0
    %2496 = vmatprep.subr.mxu0 0.0
    %2497 = vmatpush2.msra.mxu0 0.0
    %2498 = vmatprep.subr.mxu0 0.0
    %2499 = vmatpush2.msra.mxu0 0.0
    %2500 = vmatprep.subr.mxu0 0.0
    %2501 = vmatpush2.msra.mxu0 0.0
    %2502 = vmatprep.subr.mxu0 0.0
    %2503 = vmatpush2.msra.mxu0 0.0
    %2504 = vmatprep.mubr.f32.mxu0 0.0
    %v2505 = vand.u32 %v2357, 4294901760
    %2506 = vmatmul.mubr.f32.gmra.mxu0 %v2505
    %v2507 = vpop.f32.mrf.mxu0
    %v2508 = vadd.f32 %v2432, %v2507
    %v2509 = vpop.f32.mrf.mxu0
    %2510 = vdwg.mxu0
    %2511 = vmatprep.subr.mxu0 0.0
    %2512 = vmatpush1.msra.mxu0 0.0
    %2513 = vmatprep.subr.mxu0 0.0
    %2514 = vmatpush1.msra.mxu0 0.0
    %2515 = vmatprep.subr.mxu0 0.0
    %2516 = vmatpush1.msra.mxu0 0.0
    %2517 = vmatprep.subr.mxu0 0.0
    %2518 = vmatpush1.msra.mxu0 0.0
    %2519 = vmatprep.subr.mxu0 0.0
    %2520 = vmatpush1.msra.mxu0 0.0
    %2521 = vmatprep.subr.mxu0 0.0
    %2522 = vmatpush1.msra.mxu0 0.0
    %2523 = vmatprep.subr.mxu0 0.0
    %2524 = vmatpush1.msra.mxu0 0.0
    %2525 = vmatprep.subr.mxu0 0.0
    %2526 = vmatpush1.msra.mxu0 0.0
    %2527 = vmatprep.subr.mxu0 0.0
    %2528 = vmatpush1.msra.mxu0 0.0
    %2529 = vmatprep.subr.mxu0 0.0
    %2530 = vmatpush1.msra.mxu0 0.0
    %2531 = vmatprep.subr.mxu0 0.0
    %2532 = vmatpush1.msra.mxu0 0.0
    %2533 = vmatprep.subr.mxu0 0.0
    %2534 = vmatpush1.msra.mxu0 0.0
    %2535 = vmatprep.subr.mxu0 0.0
    %2536 = vmatpush1.msra.mxu0 0.0
    %2537 = vmatprep.subr.mxu0 0.0
    %2538 = vmatpush1.msra.mxu0 0.0
    %2539 = vmatprep.subr.mxu0 0.0
    %2540 = vmatpush1.msra.mxu0 0.0
    %2541 = vmatprep.subr.mxu0 0.0
    %v2542 = vand.u32 %v51, 4294901760
    %v2543 = vsub.f32 %v51, %v2542
    %2544 = vmatpush1.msra.mxu0 %v2543
    %2545 = vmatprep.subr.mxu0 0.0
    %2546 = vmatpush2.msra.mxu0 0.0
    %2547 = vmatprep.subr.mxu0 0.0
    %2548 = vmatpush2.msra.mxu0 0.0
    %2549 = vmatprep.subr.mxu0 0.0
    %2550 = vmatpush2.msra.mxu0 0.0
    %2551 = vmatprep.subr.mxu0 0.0
    %2552 = vmatpush2.msra.mxu0 0.0
    %2553 = vmatprep.subr.mxu0 0.0
    %2554 = vmatpush2.msra.mxu0 0.0
    %2555 = vmatprep.subr.mxu0 0.0
    %2556 = vmatpush2.msra.mxu0 0.0
    %2557 = vmatprep.subr.mxu0 0.0
    %2558 = vmatpush2.msra.mxu0 0.0
    %2559 = vmatprep.subr.mxu0 0.0
    %2560 = vmatpush2.msra.mxu0 0.0
    %2561 = vmatprep.subr.mxu0 0.0
    %2562 = vmatpush2.msra.mxu0 0.0
    %2563 = vmatprep.subr.mxu0 0.0
    %2564 = vmatpush2.msra.mxu0 0.0
    %2565 = vmatprep.subr.mxu0 0.0
    %2566 = vmatpush2.msra.mxu0 0.0
    %2567 = vmatprep.subr.mxu0 0.0
    %2568 = vmatpush2.msra.mxu0 0.0
    %2569 = vmatprep.subr.mxu0 0.0
    %2570 = vmatpush2.msra.mxu0 0.0
    %2571 = vmatprep.subr.mxu0 0.0
    %2572 = vmatpush2.msra.mxu0 0.0
    %2573 = vmatprep.subr.mxu0 0.0
    %2574 = vmatpush2.msra.mxu0 0.0
    %2575 = vmatprep.subr.mxu0 0.0
    %2576 = vmatpush2.msra.mxu0 0.0
    %2577 = vmatprep.mubr.f32.mxu0 0.0
    %v2578 = vand.u32 %v2357, 4294901760
    %v2579 = vsub.f32 %v2357, %v2578
    %2580 = vmatmul.mubr.f32.gmra.mxu0 %v2579
    %v2581 = vpop.f32.mrf.mxu0
    %v2582 = vadd.f32 %v2508, %v2581
    %v2583 = vpop.f32.mrf.mxu0
    %2584 = vdwg.mxu0
    %2585 = vmatprep.subr.mxu0 0.0
    %2586 = vmatpush1.msra.mxu0 0.0
    %2587 = vmatprep.subr.mxu0 0.0
    %2588 = vmatpush1.msra.mxu0 0.0
    %2589 = vmatprep.subr.mxu0 0.0
    %2590 = vmatpush1.msra.mxu0 0.0
    %2591 = vmatprep.subr.mxu0 0.0
    %2592 = vmatpush1.msra.mxu0 0.0
    %2593 = vmatprep.subr.mxu0 0.0
    %2594 = vmatpush1.msra.mxu0 0.0
    %2595 = vmatprep.subr.mxu0 0.0
    %2596 = vmatpush1.msra.mxu0 0.0
    %2597 = vmatprep.subr.mxu0 0.0
    %2598 = vmatpush1.msra.mxu0 0.0
    %2599 = vmatprep.subr.mxu0 0.0
    %2600 = vmatpush1.msra.mxu0 0.0
    %2601 = vmatprep.subr.mxu0 0.0
    %2602 = vmatpush1.msra.mxu0 0.0
    %2603 = vmatprep.subr.mxu0 0.0
    %2604 = vmatpush1.msra.mxu0 0.0
    %2605 = vmatprep.subr.mxu0 0.0
    %2606 = vmatpush1.msra.mxu0 0.0
    %2607 = vmatprep.subr.mxu0 0.0
    %2608 = vmatpush1.msra.mxu0 0.0
    %2609 = vmatprep.subr.mxu0 0.0
    %2610 = vmatpush1.msra.mxu0 0.0
    %2611 = vmatprep.subr.mxu0 0.0
    %2612 = vmatpush1.msra.mxu0 0.0
    %2613 = vmatprep.subr.mxu0 0.0
    %2614 = vmatpush1.msra.mxu0 0.0
    %2615 = vmatprep.subr.mxu0 0.0
    %v2616 = vand.u32 %v51, 4294901760
    %2617 = vmatpush1.msra.mxu0 %v2616
    %2618 = vmatprep.subr.mxu0 0.0
    %2619 = vmatpush2.msra.mxu0 0.0
    %2620 = vmatprep.subr.mxu0 0.0
    %2621 = vmatpush2.msra.mxu0 0.0
    %2622 = vmatprep.subr.mxu0 0.0
    %2623 = vmatpush2.msra.mxu0 0.0
    %2624 = vmatprep.subr.mxu0 0.0
    %2625 = vmatpush2.msra.mxu0 0.0
    %2626 = vmatprep.subr.mxu0 0.0
    %2627 = vmatpush2.msra.mxu0 0.0
    %2628 = vmatprep.subr.mxu0 0.0
    %2629 = vmatpush2.msra.mxu0 0.0
    %2630 = vmatprep.subr.mxu0 0.0
    %2631 = vmatpush2.msra.mxu0 0.0
    %2632 = vmatprep.subr.mxu0 0.0
    %2633 = vmatpush2.msra.mxu0 0.0
    %2634 = vmatprep.subr.mxu0 0.0
    %2635 = vmatpush2.msra.mxu0 0.0
    %2636 = vmatprep.subr.mxu0 0.0
    %2637 = vmatpush2.msra.mxu0 0.0
    %2638 = vmatprep.subr.mxu0 0.0
    %2639 = vmatpush2.msra.mxu0 0.0
    %2640 = vmatprep.subr.mxu0 0.0
    %2641 = vmatpush2.msra.mxu0 0.0
    %2642 = vmatprep.subr.mxu0 0.0
    %2643 = vmatpush2.msra.mxu0 0.0
    %2644 = vmatprep.subr.mxu0 0.0
    %2645 = vmatpush2.msra.mxu0 0.0
    %2646 = vmatprep.subr.mxu0 0.0
    %2647 = vmatpush2.msra.mxu0 0.0
    %2648 = vmatprep.subr.mxu0 0.0
    %2649 = vmatpush2.msra.mxu0 0.0
    %2650 = vmatprep.mubr.f32.mxu0 0.0
    %v2651 = vand.u32 %v2357, 4294901760
    %v2652 = vsub.f32 %v2357, %v2651
    %v2653 = vand.u32 %v2652, 4294901760
    %2654 = vmatmul.mubr.f32.gmra.mxu0 %v2653
    %v2655 = vpop.f32.mrf.mxu0
    %v2656 = vadd.f32 %v2582, %v2655
    %v2657 = vpop.f32.mrf.mxu0
    %2658 = vdwg.mxu0
    %2659 = vmatprep.subr.mxu0 0.0
    %2660 = vmatpush1.msra.mxu0 0.0
    %2661 = vmatprep.subr.mxu0 0.0
    %2662 = vmatpush1.msra.mxu0 0.0
    %2663 = vmatprep.subr.mxu0 0.0
    %2664 = vmatpush1.msra.mxu0 0.0
    %2665 = vmatprep.subr.mxu0 0.0
    %2666 = vmatpush1.msra.mxu0 0.0
    %2667 = vmatprep.subr.mxu0 0.0
    %2668 = vmatpush1.msra.mxu0 0.0
    %2669 = vmatprep.subr.mxu0 0.0
    %2670 = vmatpush1.msra.mxu0 0.0
    %2671 = vmatprep.subr.mxu0 0.0
    %2672 = vmatpush1.msra.mxu0 0.0
    %2673 = vmatprep.subr.mxu0 0.0
    %2674 = vmatpush1.msra.mxu0 0.0
    %2675 = vmatprep.subr.mxu0 0.0
    %2676 = vmatpush1.msra.mxu0 0.0
    %2677 = vmatprep.subr.mxu0 0.0
    %2678 = vmatpush1.msra.mxu0 0.0
    %2679 = vmatprep.subr.mxu0 0.0
    %2680 = vmatpush1.msra.mxu0 0.0
    %2681 = vmatprep.subr.mxu0 0.0
    %2682 = vmatpush1.msra.mxu0 0.0
    %2683 = vmatprep.subr.mxu0 0.0
    %2684 = vmatpush1.msra.mxu0 0.0
    %2685 = vmatprep.subr.mxu0 0.0
    %2686 = vmatpush1.msra.mxu0 0.0
    %2687 = vmatprep.subr.mxu0 0.0
    %2688 = vmatpush1.msra.mxu0 0.0
    %2689 = vmatprep.subr.mxu0 0.0
    %v2690 = vand.u32 %v51, 4294901760
    %v2691 = vsub.f32 %v51, %v2690
    %v2692 = vand.u32 %v2691, 4294901760
    %2693 = vmatpush1.msra.mxu0 %v2692
    %2694 = vmatprep.subr.mxu0 0.0
    %2695 = vmatpush2.msra.mxu0 0.0
    %2696 = vmatprep.subr.mxu0 0.0
    %2697 = vmatpush2.msra.mxu0 0.0
    %2698 = vmatprep.subr.mxu0 0.0
    %2699 = vmatpush2.msra.mxu0 0.0
    %2700 = vmatprep.subr.mxu0 0.0
    %2701 = vmatpush2.msra.mxu0 0.0
    %2702 = vmatprep.subr.mxu0 0.0
    %2703 = vmatpush2.msra.mxu0 0.0
    %2704 = vmatprep.subr.mxu0 0.0
    %2705 = vmatpush2.msra.mxu0 0.0
    %2706 = vmatprep.subr.mxu0 0.0
    %2707 = vmatpush2.msra.mxu0 0.0
    %2708 = vmatprep.subr.mxu0 0.0
    %2709 = vmatpush2.msra.mxu0 0.0
    %2710 = vmatprep.subr.mxu0 0.0
    %2711 = vmatpush2.msra.mxu0 0.0
    %2712 = vmatprep.subr.mxu0 0.0
    %2713 = vmatpush2.msra.mxu0 0.0
    %2714 = vmatprep.subr.mxu0 0.0
    %2715 = vmatpush2.msra.mxu0 0.0
    %2716 = vmatprep.subr.mxu0 0.0
    %2717 = vmatpush2.msra.mxu0 0.0
    %2718 = vmatprep.subr.mxu0 0.0
    %2719 = vmatpush2.msra.mxu0 0.0
    %2720 = vmatprep.subr.mxu0 0.0
    %2721 = vmatpush2.msra.mxu0 0.0
    %2722 = vmatprep.subr.mxu0 0.0
    %2723 = vmatpush2.msra.mxu0 0.0
    %2724 = vmatprep.subr.mxu0 0.0
    %2725 = vmatpush2.msra.mxu0 0.0
    %2726 = vmatprep.mubr.f32.mxu0 0.0
    %v2727 = vand.u32 %v2357, 4294901760
    %2728 = vmatmul.mubr.f32.gmra.mxu0 %v2727
    %v2729 = vpop.f32.mrf.mxu0
    %v2730 = vadd.f32 %v2656, %v2729
    %v2731 = vpop.f32.mrf.mxu0
    %2732 = vdwg.mxu0
    %2733 = vmatprep.subr.mxu0 0.0
    %2734 = vmatpush1.msra.mxu0 0.0
    %2735 = vmatprep.subr.mxu0 0.0
    %2736 = vmatpush1.msra.mxu0 0.0
    %2737 = vmatprep.subr.mxu0 0.0
    %2738 = vmatpush1.msra.mxu0 0.0
    %2739 = vmatprep.subr.mxu0 0.0
    %2740 = vmatpush1.msra.mxu0 0.0
    %2741 = vmatprep.subr.mxu0 0.0
    %2742 = vmatpush1.msra.mxu0 0.0
    %2743 = vmatprep.subr.mxu0 0.0
    %2744 = vmatpush1.msra.mxu0 0.0
    %2745 = vmatprep.subr.mxu0 0.0
    %2746 = vmatpush1.msra.mxu0 0.0
    %2747 = vmatprep.subr.mxu0 0.0
    %2748 = vmatpush1.msra.mxu0 0.0
    %2749 = vmatprep.subr.mxu0 0.0
    %2750 = vmatpush1.msra.mxu0 0.0
    %2751 = vmatprep.subr.mxu0 0.0
    %2752 = vmatpush1.msra.mxu0 0.0
    %2753 = vmatprep.subr.mxu0 0.0
    %2754 = vmatpush1.msra.mxu0 0.0
    %2755 = vmatprep.subr.mxu0 0.0
    %2756 = vmatpush1.msra.mxu0 0.0
    %2757 = vmatprep.subr.mxu0 0.0
    %2758 = vmatpush1.msra.mxu0 0.0
    %2759 = vmatprep.subr.mxu0 0.0
    %2760 = vmatpush1.msra.mxu0 0.0
    %2761 = vmatprep.subr.mxu0 0.0
    %2762 = vmatpush1.msra.mxu0 0.0
    %2763 = vmatprep.subr.mxu0 0.0
    %v2764 = vand.u32 %v51, 4294901760
    %2765 = vmatpush1.msra.mxu0 %v2764
    %2766 = vmatprep.subr.mxu0 0.0
    %2767 = vmatpush2.msra.mxu0 0.0
    %2768 = vmatprep.subr.mxu0 0.0
    %2769 = vmatpush2.msra.mxu0 0.0
    %2770 = vmatprep.subr.mxu0 0.0
    %2771 = vmatpush2.msra.mxu0 0.0
    %2772 = vmatprep.subr.mxu0 0.0
    %2773 = vmatpush2.msra.mxu0 0.0
    %2774 = vmatprep.subr.mxu0 0.0
    %2775 = vmatpush2.msra.mxu0 0.0
    %2776 = vmatprep.subr.mxu0 0.0
    %2777 = vmatpush2.msra.mxu0 0.0
    %2778 = vmatprep.subr.mxu0 0.0
    %2779 = vmatpush2.msra.mxu0 0.0
    %2780 = vmatprep.subr.mxu0 0.0
    %2781 = vmatpush2.msra.mxu0 0.0
    %2782 = vmatprep.subr.mxu0 0.0
    %2783 = vmatpush2.msra.mxu0 0.0
    %2784 = vmatprep.subr.mxu0 0.0
    %2785 = vmatpush2.msra.mxu0 0.0
    %2786 = vmatprep.subr.mxu0 0.0
    %2787 = vmatpush2.msra.mxu0 0.0
    %2788 = vmatprep.subr.mxu0 0.0
    %2789 = vmatpush2.msra.mxu0 0.0
    %2790 = vmatprep.subr.mxu0 0.0
    %2791 = vmatpush2.msra.mxu0 0.0
    %2792 = vmatprep.subr.mxu0 0.0
    %2793 = vmatpush2.msra.mxu0 0.0
    %2794 = vmatprep.subr.mxu0 0.0
    %2795 = vmatpush2.msra.mxu0 0.0
    %2796 = vmatprep.subr.mxu0 0.0
    %2797 = vmatpush2.msra.mxu0 0.0
    %2798 = vmatprep.mubr.f32.mxu0 0.0
    %v2799 = vand.u32 %v2357, 4294901760
    %2800 = vmatmul.mubr.f32.gmra.mxu0 %v2799
    %v2801 = vpop.f32.mrf.mxu0
    %v2802 = vadd.f32 %v2730, %v2801
    %v2803 = vpop.f32.mrf.mxu0
    %2804 = vdwg.mxu0
    %v2805 = vadd.f32 %v2802, %v503
    %s2806 = scalar_lea.vmem %s0, 12
    %v2807 = vld [vmem:[%s2806] sm:$0x3]
    %s2808 = scalar_lea.vmem %s1, 12
    %v2809 = vld [vmem:[%s2808] sm:$0x3]
    %2811 = vset.pattern.permute.xlu0 0
    %2812 = vperm.xlu0 %2811, %v2809
    %v2813 = vpop.permute.xlu0 %2812
    %v2815 = vmul.f32 %v2813, %v42
    %v2817 = vsel %vm45, %v2807, 0
    %2819 = vmatprep.subr.mxu0 0.0
    %2820 = vmatpush1.msra.mxu0 0.0
    %2821 = vmatprep.subr.mxu0 0.0
    %2822 = vmatpush1.msra.mxu0 0.0
    %2823 = vmatprep.subr.mxu0 0.0
    %2824 = vmatpush1.msra.mxu0 0.0
    %2825 = vmatprep.subr.mxu0 0.0
    %2826 = vmatpush1.msra.mxu0 0.0
    %2827 = vmatprep.subr.mxu0 0.0
    %2828 = vmatpush1.msra.mxu0 0.0
    %2829 = vmatprep.subr.mxu0 0.0
    %2830 = vmatpush1.msra.mxu0 0.0
    %2831 = vmatprep.subr.mxu0 0.0
    %2832 = vmatpush1.msra.mxu0 0.0
    %2833 = vmatprep.subr.mxu0 0.0
    %2834 = vmatpush1.msra.mxu0 0.0
    %2835 = vmatprep.subr.mxu0 0.0
    %2836 = vmatpush1.msra.mxu0 0.0
    %2837 = vmatprep.subr.mxu0 0.0
    %2838 = vmatpush1.msra.mxu0 0.0
    %2839 = vmatprep.subr.mxu0 0.0
    %2840 = vmatpush1.msra.mxu0 0.0
    %2841 = vmatprep.subr.mxu0 0.0
    %2842 = vmatpush1.msra.mxu0 0.0
    %2843 = vmatprep.subr.mxu0 0.0
    %2844 = vmatpush1.msra.mxu0 0.0
    %2845 = vmatprep.subr.mxu0 0.0
    %2846 = vmatpush1.msra.mxu0 0.0
    %2847 = vmatprep.subr.mxu0 0.0
    %2848 = vmatpush1.msra.mxu0 0.0
    %2849 = vmatprep.subr.mxu0 0.0
    %v2850 = vand.u32 %v51, 4294901760
    %2851 = vmatpush1.msra.mxu0 %v2850
    %2852 = vmatprep.subr.mxu0 0.0
    %2853 = vmatpush2.msra.mxu0 0.0
    %2854 = vmatprep.subr.mxu0 0.0
    %2855 = vmatpush2.msra.mxu0 0.0
    %2856 = vmatprep.subr.mxu0 0.0
    %2857 = vmatpush2.msra.mxu0 0.0
    %2858 = vmatprep.subr.mxu0 0.0
    %2859 = vmatpush2.msra.mxu0 0.0
    %2860 = vmatprep.subr.mxu0 0.0
    %2861 = vmatpush2.msra.mxu0 0.0
    %2862 = vmatprep.subr.mxu0 0.0
    %2863 = vmatpush2.msra.mxu0 0.0
    %2864 = vmatprep.subr.mxu0 0.0
    %2865 = vmatpush2.msra.mxu0 0.0
    %2866 = vmatprep.subr.mxu0 0.0
    %2867 = vmatpush2.msra.mxu0 0.0
    %2868 = vmatprep.subr.mxu0 0.0
    %2869 = vmatpush2.msra.mxu0 0.0
    %2870 = vmatprep.subr.mxu0 0.0
    %2871 = vmatpush2.msra.mxu0 0.0
    %2872 = vmatprep.subr.mxu0 0.0
    %2873 = vmatpush2.msra.mxu0 0.0
    %2874 = vmatprep.subr.mxu0 0.0
    %2875 = vmatpush2.msra.mxu0 0.0
    %2876 = vmatprep.subr.mxu0 0.0
    %2877 = vmatpush2.msra.mxu0 0.0
    %2878 = vmatprep.subr.mxu0 0.0
    %2879 = vmatpush2.msra.mxu0 0.0
    %2880 = vmatprep.subr.mxu0 0.0
    %2881 = vmatpush2.msra.mxu0 0.0
    %2882 = vmatprep.subr.mxu0 0.0
    %2883 = vmatpush2.msra.mxu0 0.0
    %2884 = vmatprep.mubr.f32.mxu0 0.0
    %v2885 = vand.u32 %v2817, 4294901760
    %v2886 = vsub.f32 %v2817, %v2885
    %v2887 = vand.u32 %v2886, 4294901760
    %v2888 = vsub.f32 %v2886, %v2887
    %v2889 = vand.u32 %v2888, 4294901760
    %2890 = vmatmul.mubr.f32.gmra.mxu0 %v2889
    %v2891 = vpop.f32.mrf.mxu0
    %v2892 = vadd.f32 %v2815, %v2891
    %v2893 = vpop.f32.mrf.mxu0
    %2894 = vdwg.mxu0
    %2895 = vmatprep.subr.mxu0 0.0
    %2896 = vmatpush1.msra.mxu0 0.0
    %2897 = vmatprep.subr.mxu0 0.0
    %2898 = vmatpush1.msra.mxu0 0.0
    %2899 = vmatprep.subr.mxu0 0.0
    %2900 = vmatpush1.msra.mxu0 0.0
    %2901 = vmatprep.subr.mxu0 0.0
    %2902 = vmatpush1.msra.mxu0 0.0
    %2903 = vmatprep.subr.mxu0 0.0
    %2904 = vmatpush1.msra.mxu0 0.0
    %2905 = vmatprep.subr.mxu0 0.0
    %2906 = vmatpush1.msra.mxu0 0.0
    %2907 = vmatprep.subr.mxu0 0.0
    %2908 = vmatpush1.msra.mxu0 0.0
    %2909 = vmatprep.subr.mxu0 0.0
    %2910 = vmatpush1.msra.mxu0 0.0
    %2911 = vmatprep.subr.mxu0 0.0
    %2912 = vmatpush1.msra.mxu0 0.0
    %2913 = vmatprep.subr.mxu0 0.0
    %2914 = vmatpush1.msra.mxu0 0.0
    %2915 = vmatprep.subr.mxu0 0.0
    %2916 = vmatpush1.msra.mxu0 0.0
    %2917 = vmatprep.subr.mxu0 0.0
    %2918 = vmatpush1.msra.mxu0 0.0
    %2919 = vmatprep.subr.mxu0 0.0
    %2920 = vmatpush1.msra.mxu0 0.0
    %2921 = vmatprep.subr.mxu0 0.0
    %2922 = vmatpush1.msra.mxu0 0.0
    %2923 = vmatprep.subr.mxu0 0.0
    %2924 = vmatpush1.msra.mxu0 0.0
    %2925 = vmatprep.subr.mxu0 0.0
    %v2926 = vand.u32 %v51, 4294901760
    %v2927 = vsub.f32 %v51, %v2926
    %v2928 = vand.u32 %v2927, 4294901760
    %v2929 = vsub.f32 %v2927, %v2928
    %v2930 = vand.u32 %v2929, 4294901760
    %2931 = vmatpush1.msra.mxu0 %v2930
    %2932 = vmatprep.subr.mxu0 0.0
    %2933 = vmatpush2.msra.mxu0 0.0
    %2934 = vmatprep.subr.mxu0 0.0
    %2935 = vmatpush2.msra.mxu0 0.0
    %2936 = vmatprep.subr.mxu0 0.0
    %2937 = vmatpush2.msra.mxu0 0.0
    %2938 = vmatprep.subr.mxu0 0.0
    %2939 = vmatpush2.msra.mxu0 0.0
    %2940 = vmatprep.subr.mxu0 0.0
    %2941 = vmatpush2.msra.mxu0 0.0
    %2942 = vmatprep.subr.mxu0 0.0
    %2943 = vmatpush2.msra.mxu0 0.0
    %2944 = vmatprep.subr.mxu0 0.0
    %2945 = vmatpush2.msra.mxu0 0.0
    %2946 = vmatprep.subr.mxu0 0.0
    %2947 = vmatpush2.msra.mxu0 0.0
    %2948 = vmatprep.subr.mxu0 0.0
    %2949 = vmatpush2.msra.mxu0 0.0
    %2950 = vmatprep.subr.mxu0 0.0
    %2951 = vmatpush2.msra.mxu0 0.0
    %2952 = vmatprep.subr.mxu0 0.0
    %2953 = vmatpush2.msra.mxu0 0.0
    %2954 = vmatprep.subr.mxu0 0.0
    %2955 = vmatpush2.msra.mxu0 0.0
    %2956 = vmatprep.subr.mxu0 0.0
    %2957 = vmatpush2.msra.mxu0 0.0
    %2958 = vmatprep.subr.mxu0 0.0
    %2959 = vmatpush2.msra.mxu0 0.0
    %2960 = vmatprep.subr.mxu0 0.0
    %2961 = vmatpush2.msra.mxu0 0.0
    %2962 = vmatprep.subr.mxu0 0.0
    %2963 = vmatpush2.msra.mxu0 0.0
    %2964 = vmatprep.mubr.f32.mxu0 0.0
    %v2965 = vand.u32 %v2817, 4294901760
    %2966 = vmatmul.mubr.f32.gmra.mxu0 %v2965
    %v2967 = vpop.f32.mrf.mxu0
    %v2968 = vadd.f32 %v2892, %v2967
    %v2969 = vpop.f32.mrf.mxu0
    %2970 = vdwg.mxu0
    %2971 = vmatprep.subr.mxu0 0.0
    %2972 = vmatpush1.msra.mxu0 0.0
    %2973 = vmatprep.subr.mxu0 0.0
    %2974 = vmatpush1.msra.mxu0 0.0
    %2975 = vmatprep.subr.mxu0 0.0
    %2976 = vmatpush1.msra.mxu0 0.0
    %2977 = vmatprep.subr.mxu0 0.0
    %2978 = vmatpush1.msra.mxu0 0.0
    %2979 = vmatprep.subr.mxu0 0.0
    %2980 = vmatpush1.msra.mxu0 0.0
    %2981 = vmatprep.subr.mxu0 0.0
    %2982 = vmatpush1.msra.mxu0 0.0
    %2983 = vmatprep.subr.mxu0 0.0
    %2984 = vmatpush1.msra.mxu0 0.0
    %2985 = vmatprep.subr.mxu0 0.0
    %2986 = vmatpush1.msra.mxu0 0.0
    %2987 = vmatprep.subr.mxu0 0.0
    %2988 = vmatpush1.msra.mxu0 0.0
    %2989 = vmatprep.subr.mxu0 0.0
    %2990 = vmatpush1.msra.mxu0 0.0
    %2991 = vmatprep.subr.mxu0 0.0
    %2992 = vmatpush1.msra.mxu0 0.0
    %2993 = vmatprep.subr.mxu0 0.0
    %2994 = vmatpush1.msra.mxu0 0.0
    %2995 = vmatprep.subr.mxu0 0.0
    %2996 = vmatpush1.msra.mxu0 0.0
    %2997 = vmatprep.subr.mxu0 0.0
    %2998 = vmatpush1.msra.mxu0 0.0
    %2999 = vmatprep.subr.mxu0 0.0
    %3000 = vmatpush1.msra.mxu0 0.0
    %3001 = vmatprep.subr.mxu0 0.0
    %v3002 = vand.u32 %v51, 4294901760
    %v3003 = vsub.f32 %v51, %v3002
    %3004 = vmatpush1.msra.mxu0 %v3003
    %3005 = vmatprep.subr.mxu0 0.0
    %3006 = vmatpush2.msra.mxu0 0.0
    %3007 = vmatprep.subr.mxu0 0.0
    %3008 = vmatpush2.msra.mxu0 0.0
    %3009 = vmatprep.subr.mxu0 0.0
    %3010 = vmatpush2.msra.mxu0 0.0
    %3011 = vmatprep.subr.mxu0 0.0
    %3012 = vmatpush2.msra.mxu0 0.0
    %3013 = vmatprep.subr.mxu0 0.0
    %3014 = vmatpush2.msra.mxu0 0.0
    %3015 = vmatprep.subr.mxu0 0.0
    %3016 = vmatpush2.msra.mxu0 0.0
    %3017 = vmatprep.subr.mxu0 0.0
    %3018 = vmatpush2.msra.mxu0 0.0
    %3019 = vmatprep.subr.mxu0 0.0
    %3020 = vmatpush2.msra.mxu0 0.0
    %3021 = vmatprep.subr.mxu0 0.0
    %3022 = vmatpush2.msra.mxu0 0.0
    %3023 = vmatprep.subr.mxu0 0.0
    %3024 = vmatpush2.msra.mxu0 0.0
    %3025 = vmatprep.subr.mxu0 0.0
    %3026 = vmatpush2.msra.mxu0 0.0
    %3027 = vmatprep.subr.mxu0 0.0
    %3028 = vmatpush2.msra.mxu0 0.0
    %3029 = vmatprep.subr.mxu0 0.0
    %3030 = vmatpush2.msra.mxu0 0.0
    %3031 = vmatprep.subr.mxu0 0.0
    %3032 = vmatpush2.msra.mxu0 0.0
    %3033 = vmatprep.subr.mxu0 0.0
    %3034 = vmatpush2.msra.mxu0 0.0
    %3035 = vmatprep.subr.mxu0 0.0
    %3036 = vmatpush2.msra.mxu0 0.0
    %3037 = vmatprep.mubr.f32.mxu0 0.0
    %v3038 = vand.u32 %v2817, 4294901760
    %v3039 = vsub.f32 %v2817, %v3038
    %3040 = vmatmul.mubr.f32.gmra.mxu0 %v3039
    %v3041 = vpop.f32.mrf.mxu0
    %v3042 = vadd.f32 %v2968, %v3041
    %v3043 = vpop.f32.mrf.mxu0
    %3044 = vdwg.mxu0
    %3045 = vmatprep.subr.mxu0 0.0
    %3046 = vmatpush1.msra.mxu0 0.0
    %3047 = vmatprep.subr.mxu0 0.0
    %3048 = vmatpush1.msra.mxu0 0.0
    %3049 = vmatprep.subr.mxu0 0.0
    %3050 = vmatpush1.msra.mxu0 0.0
    %3051 = vmatprep.subr.mxu0 0.0
    %3052 = vmatpush1.msra.mxu0 0.0
    %3053 = vmatprep.subr.mxu0 0.0
    %3054 = vmatpush1.msra.mxu0 0.0
    %3055 = vmatprep.subr.mxu0 0.0
    %3056 = vmatpush1.msra.mxu0 0.0
    %3057 = vmatprep.subr.mxu0 0.0
    %3058 = vmatpush1.msra.mxu0 0.0
    %3059 = vmatprep.subr.mxu0 0.0
    %3060 = vmatpush1.msra.mxu0 0.0
    %3061 = vmatprep.subr.mxu0 0.0
    %3062 = vmatpush1.msra.mxu0 0.0
    %3063 = vmatprep.subr.mxu0 0.0
    %3064 = vmatpush1.msra.mxu0 0.0
    %3065 = vmatprep.subr.mxu0 0.0
    %3066 = vmatpush1.msra.mxu0 0.0
    %3067 = vmatprep.subr.mxu0 0.0
    %3068 = vmatpush1.msra.mxu0 0.0
    %3069 = vmatprep.subr.mxu0 0.0
    %3070 = vmatpush1.msra.mxu0 0.0
    %3071 = vmatprep.subr.mxu0 0.0
    %3072 = vmatpush1.msra.mxu0 0.0
    %3073 = vmatprep.subr.mxu0 0.0
    %3074 = vmatpush1.msra.mxu0 0.0
    %3075 = vmatprep.subr.mxu0 0.0
    %v3076 = vand.u32 %v51, 4294901760
    %3077 = vmatpush1.msra.mxu0 %v3076
    %3078 = vmatprep.subr.mxu0 0.0
    %3079 = vmatpush2.msra.mxu0 0.0
    %3080 = vmatprep.subr.mxu0 0.0
    %3081 = vmatpush2.msra.mxu0 0.0
    %3082 = vmatprep.subr.mxu0 0.0
    %3083 = vmatpush2.msra.mxu0 0.0
    %3084 = vmatprep.subr.mxu0 0.0
    %3085 = vmatpush2.msra.mxu0 0.0
    %3086 = vmatprep.subr.mxu0 0.0
    %3087 = vmatpush2.msra.mxu0 0.0
    %3088 = vmatprep.subr.mxu0 0.0
    %3089 = vmatpush2.msra.mxu0 0.0
    %3090 = vmatprep.subr.mxu0 0.0
    %3091 = vmatpush2.msra.mxu0 0.0
    %3092 = vmatprep.subr.mxu0 0.0
    %3093 = vmatpush2.msra.mxu0 0.0
    %3094 = vmatprep.subr.mxu0 0.0
    %3095 = vmatpush2.msra.mxu0 0.0
    %3096 = vmatprep.subr.mxu0 0.0
    %3097 = vmatpush2.msra.mxu0 0.0
    %3098 = vmatprep.subr.mxu0 0.0
    %3099 = vmatpush2.msra.mxu0 0.0
    %3100 = vmatprep.subr.mxu0 0.0
    %3101 = vmatpush2.msra.mxu0 0.0
    %3102 = vmatprep.subr.mxu0 0.0
    %3103 = vmatpush2.msra.mxu0 0.0
    %3104 = vmatprep.subr.mxu0 0.0
    %3105 = vmatpush2.msra.mxu0 0.0
    %3106 = vmatprep.subr.mxu0 0.0
    %3107 = vmatpush2.msra.mxu0 0.0
    %3108 = vmatprep.subr.mxu0 0.0
    %3109 = vmatpush2.msra.mxu0 0.0
    %3110 = vmatprep.mubr.f32.mxu0 0.0
    %v3111 = vand.u32 %v2817, 4294901760
    %v3112 = vsub.f32 %v2817, %v3111
    %v3113 = vand.u32 %v3112, 4294901760
    %3114 = vmatmul.mubr.f32.gmra.mxu0 %v3113
    %v3115 = vpop.f32.mrf.mxu0
    %v3116 = vadd.f32 %v3042, %v3115
    %v3117 = vpop.f32.mrf.mxu0
    %3118 = vdwg.mxu0
    %3119 = vmatprep.subr.mxu0 0.0
    %3120 = vmatpush1.msra.mxu0 0.0
    %3121 = vmatprep.subr.mxu0 0.0
    %3122 = vmatpush1.msra.mxu0 0.0
    %3123 = vmatprep.subr.mxu0 0.0
    %3124 = vmatpush1.msra.mxu0 0.0
    %3125 = vmatprep.subr.mxu0 0.0
    %3126 = vmatpush1.msra.mxu0 0.0
    %3127 = vmatprep.subr.mxu0 0.0
    %3128 = vmatpush1.msra.mxu0 0.0
    %3129 = vmatprep.subr.mxu0 0.0
    %3130 = vmatpush1.msra.mxu0 0.0
    %3131 = vmatprep.subr.mxu0 0.0
    %3132 = vmatpush1.msra.mxu0 0.0
    %3133 = vmatprep.subr.mxu0 0.0
    %3134 = vmatpush1.msra.mxu0 0.0
    %3135 = vmatprep.subr.mxu0 0.0
    %3136 = vmatpush1.msra.mxu0 0.0
    %3137 = vmatprep.subr.mxu0 0.0
    %3138 = vmatpush1.msra.mxu0 0.0
    %3139 = vmatprep.subr.mxu0 0.0
    %3140 = vmatpush1.msra.mxu0 0.0
    %3141 = vmatprep.subr.mxu0 0.0
    %3142 = vmatpush1.msra.mxu0 0.0
    %3143 = vmatprep.subr.mxu0 0.0
    %3144 = vmatpush1.msra.mxu0 0.0
    %3145 = vmatprep.subr.mxu0 0.0
    %3146 = vmatpush1.msra.mxu0 0.0
    %3147 = vmatprep.subr.mxu0 0.0
    %3148 = vmatpush1.msra.mxu0 0.0
    %3149 = vmatprep.subr.mxu0 0.0
    %v3150 = vand.u32 %v51, 4294901760
    %v3151 = vsub.f32 %v51, %v3150
    %v3152 = vand.u32 %v3151, 4294901760
    %3153 = vmatpush1.msra.mxu0 %v3152
    %3154 = vmatprep.subr.mxu0 0.0
    %3155 = vmatpush2.msra.mxu0 0.0
    %3156 = vmatprep.subr.mxu0 0.0
    %3157 = vmatpush2.msra.mxu0 0.0
    %3158 = vmatprep.subr.mxu0 0.0
    %3159 = vmatpush2.msra.mxu0 0.0
    %3160 = vmatprep.subr.mxu0 0.0
    %3161 = vmatpush2.msra.mxu0 0.0
    %3162 = vmatprep.subr.mxu0 0.0
    %3163 = vmatpush2.msra.mxu0 0.0
    %3164 = vmatprep.subr.mxu0 0.0
    %3165 = vmatpush2.msra.mxu0 0.0
    %3166 = vmatprep.subr.mxu0 0.0
    %3167 = vmatpush2.msra.mxu0 0.0
    %3168 = vmatprep.subr.mxu0 0.0
    %3169 = vmatpush2.msra.mxu0 0.0
    %3170 = vmatprep.subr.mxu0 0.0
    %3171 = vmatpush2.msra.mxu0 0.0
    %3172 = vmatprep.subr.mxu0 0.0
    %3173 = vmatpush2.msra.mxu0 0.0
    %3174 = vmatprep.subr.mxu0 0.0
    %3175 = vmatpush2.msra.mxu0 0.0
    %3176 = vmatprep.subr.mxu0 0.0
    %3177 = vmatpush2.msra.mxu0 0.0
    %3178 = vmatprep.subr.mxu0 0.0
    %3179 = vmatpush2.msra.mxu0 0.0
    %3180 = vmatprep.subr.mxu0 0.0
    %3181 = vmatpush2.msra.mxu0 0.0
    %3182 = vmatprep.subr.mxu0 0.0
    %3183 = vmatpush2.msra.mxu0 0.0
    %3184 = vmatprep.subr.mxu0 0.0
    %3185 = vmatpush2.msra.mxu0 0.0
    %3186 = vmatprep.mubr.f32.mxu0 0.0
    %v3187 = vand.u32 %v2817, 4294901760
    %3188 = vmatmul.mubr.f32.gmra.mxu0 %v3187
    %v3189 = vpop.f32.mrf.mxu0
    %v3190 = vadd.f32 %v3116, %v3189
    %v3191 = vpop.f32.mrf.mxu0
    %3192 = vdwg.mxu0
    %3193 = vmatprep.subr.mxu0 0.0
    %3194 = vmatpush1.msra.mxu0 0.0
    %3195 = vmatprep.subr.mxu0 0.0
    %3196 = vmatpush1.msra.mxu0 0.0
    %3197 = vmatprep.subr.mxu0 0.0
    %3198 = vmatpush1.msra.mxu0 0.0
    %3199 = vmatprep.subr.mxu0 0.0
    %3200 = vmatpush1.msra.mxu0 0.0
    %3201 = vmatprep.subr.mxu0 0.0
    %3202 = vmatpush1.msra.mxu0 0.0
    %3203 = vmatprep.subr.mxu0 0.0
    %3204 = vmatpush1.msra.mxu0 0.0
    %3205 = vmatprep.subr.mxu0 0.0
    %3206 = vmatpush1.msra.mxu0 0.0
    %3207 = vmatprep.subr.mxu0 0.0
    %3208 = vmatpush1.msra.mxu0 0.0
    %3209 = vmatprep.subr.mxu0 0.0
    %3210 = vmatpush1.msra.mxu0 0.0
    %3211 = vmatprep.subr.mxu0 0.0
    %3212 = vmatpush1.msra.mxu0 0.0
    %3213 = vmatprep.subr.mxu0 0.0
    %3214 = vmatpush1.msra.mxu0 0.0
    %3215 = vmatprep.subr.mxu0 0.0
    %3216 = vmatpush1.msra.mxu0 0.0
    %3217 = vmatprep.subr.mxu0 0.0
    %3218 = vmatpush1.msra.mxu0 0.0
    %3219 = vmatprep.subr.mxu0 0.0
    %3220 = vmatpush1.msra.mxu0 0.0
    %3221 = vmatprep.subr.mxu0 0.0
    %3222 = vmatpush1.msra.mxu0 0.0
    %3223 = vmatprep.subr.mxu0 0.0
    %v3224 = vand.u32 %v51, 4294901760
    %3225 = vmatpush1.msra.mxu0 %v3224
    %3226 = vmatprep.subr.mxu0 0.0
    %3227 = vmatpush2.msra.mxu0 0.0
    %3228 = vmatprep.subr.mxu0 0.0
    %3229 = vmatpush2.msra.mxu0 0.0
    %3230 = vmatprep.subr.mxu0 0.0
    %3231 = vmatpush2.msra.mxu0 0.0
    %3232 = vmatprep.subr.mxu0 0.0
    %3233 = vmatpush2.msra.mxu0 0.0
    %3234 = vmatprep.subr.mxu0 0.0
    %3235 = vmatpush2.msra.mxu0 0.0
    %3236 = vmatprep.subr.mxu0 0.0
    %3237 = vmatpush2.msra.mxu0 0.0
    %3238 = vmatprep.subr.mxu0 0.0
    %3239 = vmatpush2.msra.mxu0 0.0
    %3240 = vmatprep.subr.mxu0 0.0
    %3241 = vmatpush2.msra.mxu0 0.0
    %3242 = vmatprep.subr.mxu0 0.0
    %3243 = vmatpush2.msra.mxu0 0.0
    %3244 = vmatprep.subr.mxu0 0.0
    %3245 = vmatpush2.msra.mxu0 0.0
    %3246 = vmatprep.subr.mxu0 0.0
    %3247 = vmatpush2.msra.mxu0 0.0
    %3248 = vmatprep.subr.mxu0 0.0
    %3249 = vmatpush2.msra.mxu0 0.0
    %3250 = vmatprep.subr.mxu0 0.0
    %3251 = vmatpush2.msra.mxu0 0.0
    %3252 = vmatprep.subr.mxu0 0.0
    %3253 = vmatpush2.msra.mxu0 0.0
    %3254 = vmatprep.subr.mxu0 0.0
    %3255 = vmatpush2.msra.mxu0 0.0
    %3256 = vmatprep.subr.mxu0 0.0
    %3257 = vmatpush2.msra.mxu0 0.0
    %3258 = vmatprep.mubr.f32.mxu0 0.0
    %v3259 = vand.u32 %v2817, 4294901760
    %3260 = vmatmul.mubr.f32.gmra.mxu0 %v3259
    %v3261 = vpop.f32.mrf.mxu0
    %v3262 = vadd.f32 %v3190, %v3261
    %v3263 = vpop.f32.mrf.mxu0
    %3264 = vdwg.mxu0
    %v3265 = vadd.f32 %v3262, %v503
    %s3266 = scalar_lea.vmem %s0, 14
    %v3267 = vld [vmem:[%s3266] sm:$0x3]
    %s3268 = scalar_lea.vmem %s1, 14
    %v3269 = vld [vmem:[%s3268] sm:$0x3]
    %3271 = vset.pattern.permute.xlu0 0
    %3272 = vperm.xlu0 %3271, %v3269
    %v3273 = vpop.permute.xlu0 %3272
    %v3275 = vmul.f32 %v3273, %v42
    %v3277 = vsel %vm45, %v3267, 0
    %3279 = vmatprep.subr.mxu0 0.0
    %3280 = vmatpush1.msra.mxu0 0.0
    %3281 = vmatprep.subr.mxu0 0.0
    %3282 = vmatpush1.msra.mxu0 0.0
    %3283 = vmatprep.subr.mxu0 0.0
    %3284 = vmatpush1.msra.mxu0 0.0
    %3285 = vmatprep.subr.mxu0 0.0
    %3286 = vmatpush1.msra.mxu0 0.0
    %3287 = vmatprep.subr.mxu0 0.0
    %3288 = vmatpush1.msra.mxu0 0.0
    %3289 = vmatprep.subr.mxu0 0.0
    %3290 = vmatpush1.msra.mxu0 0.0
    %3291 = vmatprep.subr.mxu0 0.0
    %3292 = vmatpush1.msra.mxu0 0.0
    %3293 = vmatprep.subr.mxu0 0.0
    %3294 = vmatpush1.msra.mxu0 0.0
    %3295 = vmatprep.subr.mxu0 0.0
    %3296 = vmatpush1.msra.mxu0 0.0
    %3297 = vmatprep.subr.mxu0 0.0
    %3298 = vmatpush1.msra.mxu0 0.0
    %3299 = vmatprep.subr.mxu0 0.0
    %3300 = vmatpush1.msra.mxu0 0.0
    %3301 = vmatprep.subr.mxu0 0.0
    %3302 = vmatpush1.msra.mxu0 0.0
    %3303 = vmatprep.subr.mxu0 0.0
    %3304 = vmatpush1.msra.mxu0 0.0
    %3305 = vmatprep.subr.mxu0 0.0
    %3306 = vmatpush1.msra.mxu0 0.0
    %3307 = vmatprep.subr.mxu0 0.0
    %3308 = vmatpush1.msra.mxu0 0.0
    %3309 = vmatprep.subr.mxu0 0.0
    %v3310 = vand.u32 %v51, 4294901760
    %3311 = vmatpush1.msra.mxu0 %v3310
    %3312 = vmatprep.subr.mxu0 0.0
    %3313 = vmatpush2.msra.mxu0 0.0
    %3314 = vmatprep.subr.mxu0 0.0
    %3315 = vmatpush2.msra.mxu0 0.0
    %3316 = vmatprep.subr.mxu0 0.0
    %3317 = vmatpush2.msra.mxu0 0.0
    %3318 = vmatprep.subr.mxu0 0.0
    %3319 = vmatpush2.msra.mxu0 0.0
    %3320 = vmatprep.subr.mxu0 0.0
    %3321 = vmatpush2.msra.mxu0 0.0
    %3322 = vmatprep.subr.mxu0 0.0
    %3323 = vmatpush2.msra.mxu0 0.0
    %3324 = vmatprep.subr.mxu0 0.0
    %3325 = vmatpush2.msra.mxu0 0.0
    %3326 = vmatprep.subr.mxu0 0.0
    %3327 = vmatpush2.msra.mxu0 0.0
    %3328 = vmatprep.subr.mxu0 0.0
    %3329 = vmatpush2.msra.mxu0 0.0
    %3330 = vmatprep.subr.mxu0 0.0
    %3331 = vmatpush2.msra.mxu0 0.0
    %3332 = vmatprep.subr.mxu0 0.0
    %3333 = vmatpush2.msra.mxu0 0.0
    %3334 = vmatprep.subr.mxu0 0.0
    %3335 = vmatpush2.msra.mxu0 0.0
    %3336 = vmatprep.subr.mxu0 0.0
    %3337 = vmatpush2.msra.mxu0 0.0
    %3338 = vmatprep.subr.mxu0 0.0
    %3339 = vmatpush2.msra.mxu0 0.0
    %3340 = vmatprep.subr.mxu0 0.0
    %3341 = vmatpush2.msra.mxu0 0.0
    %3342 = vmatprep.subr.mxu0 0.0
    %3343 = vmatpush2.msra.mxu0 0.0
    %3344 = vmatprep.mubr.f32.mxu0 0.0
    %v3345 = vand.u32 %v3277, 4294901760
    %v3346 = vsub.f32 %v3277, %v3345
    %v3347 = vand.u32 %v3346, 4294901760
    %v3348 = vsub.f32 %v3346, %v3347
    %v3349 = vand.u32 %v3348, 4294901760
    %3350 = vmatmul.mubr.f32.gmra.mxu0 %v3349
    %v3351 = vpop.f32.mrf.mxu0
    %v3352 = vadd.f32 %v3275, %v3351
    %v3353 = vpop.f32.mrf.mxu0
    %3354 = vdwg.mxu0
    %3355 = vmatprep.subr.mxu0 0.0
    %3356 = vmatpush1.msra.mxu0 0.0
    %3357 = vmatprep.subr.mxu0 0.0
    %3358 = vmatpush1.msra.mxu0 0.0
    %3359 = vmatprep.subr.mxu0 0.0
    %3360 = vmatpush1.msra.mxu0 0.0
    %3361 = vmatprep.subr.mxu0 0.0
    %3362 = vmatpush1.msra.mxu0 0.0
    %3363 = vmatprep.subr.mxu0 0.0
    %3364 = vmatpush1.msra.mxu0 0.0
    %3365 = vmatprep.subr.mxu0 0.0
    %3366 = vmatpush1.msra.mxu0 0.0
    %3367 = vmatprep.subr.mxu0 0.0
    %3368 = vmatpush1.msra.mxu0 0.0
    %3369 = vmatprep.subr.mxu0 0.0
    %3370 = vmatpush1.msra.mxu0 0.0
    %3371 = vmatprep.subr.mxu0 0.0
    %3372 = vmatpush1.msra.mxu0 0.0
    %3373 = vmatprep.subr.mxu0 0.0
    %3374 = vmatpush1.msra.mxu0 0.0
    %3375 = vmatprep.subr.mxu0 0.0
    %3376 = vmatpush1.msra.mxu0 0.0
    %3377 = vmatprep.subr.mxu0 0.0
    %3378 = vmatpush1.msra.mxu0 0.0
    %3379 = vmatprep.subr.mxu0 0.0
    %3380 = vmatpush1.msra.mxu0 0.0
    %3381 = vmatprep.subr.mxu0 0.0
    %3382 = vmatpush1.msra.mxu0 0.0
    %3383 = vmatprep.subr.mxu0 0.0
    %3384 = vmatpush1.msra.mxu0 0.0
    %3385 = vmatprep.subr.mxu0 0.0
    %v3386 = vand.u32 %v51, 4294901760
    %v3387 = vsub.f32 %v51, %v3386
    %v3388 = vand.u32 %v3387, 4294901760
    %v3389 = vsub.f32 %v3387, %v3388
    %v3390 = vand.u32 %v3389, 4294901760
    %3391 = vmatpush1.msra.mxu0 %v3390
    %3392 = vmatprep.subr.mxu0 0.0
    %3393 = vmatpush2.msra.mxu0 0.0
    %3394 = vmatprep.subr.mxu0 0.0
    %3395 = vmatpush2.msra.mxu0 0.0
    %3396 = vmatprep.subr.mxu0 0.0
    %3397 = vmatpush2.msra.mxu0 0.0
    %3398 = vmatprep.subr.mxu0 0.0
    %3399 = vmatpush2.msra.mxu0 0.0
    %3400 = vmatprep.subr.mxu0 0.0
    %3401 = vmatpush2.msra.mxu0 0.0
    %3402 = vmatprep.subr.mxu0 0.0
    %3403 = vmatpush2.msra.mxu0 0.0
    %3404 = vmatprep.subr.mxu0 0.0
    %3405 = vmatpush2.msra.mxu0 0.0
    %3406 = vmatprep.subr.mxu0 0.0
    %3407 = vmatpush2.msra.mxu0 0.0
    %3408 = vmatprep.subr.mxu0 0.0
    %3409 = vmatpush2.msra.mxu0 0.0
    %3410 = vmatprep.subr.mxu0 0.0
    %3411 = vmatpush2.msra.mxu0 0.0
    %3412 = vmatprep.subr.mxu0 0.0
    %3413 = vmatpush2.msra.mxu0 0.0
    %3414 = vmatprep.subr.mxu0 0.0
    %3415 = vmatpush2.msra.mxu0 0.0
    %3416 = vmatprep.subr.mxu0 0.0
    %3417 = vmatpush2.msra.mxu0 0.0
    %3418 = vmatprep.subr.mxu0 0.0
    %3419 = vmatpush2.msra.mxu0 0.0
    %3420 = vmatprep.subr.mxu0 0.0
    %3421 = vmatpush2.msra.mxu0 0.0
    %3422 = vmatprep.subr.mxu0 0.0
    %3423 = vmatpush2.msra.mxu0 0.0
    %3424 = vmatprep.mubr.f32.mxu0 0.0
    %v3425 = vand.u32 %v3277, 4294901760
    %3426 = vmatmul.mubr.f32.gmra.mxu0 %v3425
    %v3427 = vpop.f32.mrf.mxu0
    %v3428 = vadd.f32 %v3352, %v3427
    %v3429 = vpop.f32.mrf.mxu0
    %3430 = vdwg.mxu0
    %3431 = vmatprep.subr.mxu0 0.0
    %3432 = vmatpush1.msra.mxu0 0.0
    %3433 = vmatprep.subr.mxu0 0.0
    %3434 = vmatpush1.msra.mxu0 0.0
    %3435 = vmatprep.subr.mxu0 0.0
    %3436 = vmatpush1.msra.mxu0 0.0
    %3437 = vmatprep.subr.mxu0 0.0
    %3438 = vmatpush1.msra.mxu0 0.0
    %3439 = vmatprep.subr.mxu0 0.0
    %3440 = vmatpush1.msra.mxu0 0.0
    %3441 = vmatprep.subr.mxu0 0.0
    %3442 = vmatpush1.msra.mxu0 0.0
    %3443 = vmatprep.subr.mxu0 0.0
    %3444 = vmatpush1.msra.mxu0 0.0
    %3445 = vmatprep.subr.mxu0 0.0
    %3446 = vmatpush1.msra.mxu0 0.0
    %3447 = vmatprep.subr.mxu0 0.0
    %3448 = vmatpush1.msra.mxu0 0.0
    %3449 = vmatprep.subr.mxu0 0.0
    %3450 = vmatpush1.msra.mxu0 0.0
    %3451 = vmatprep.subr.mxu0 0.0
    %3452 = vmatpush1.msra.mxu0 0.0
    %3453 = vmatprep.subr.mxu0 0.0
    %3454 = vmatpush1.msra.mxu0 0.0
    %3455 = vmatprep.subr.mxu0 0.0
    %3456 = vmatpush1.msra.mxu0 0.0
    %3457 = vmatprep.subr.mxu0 0.0
    %3458 = vmatpush1.msra.mxu0 0.0
    %3459 = vmatprep.subr.mxu0 0.0
    %3460 = vmatpush1.msra.mxu0 0.0
    %3461 = vmatprep.subr.mxu0 0.0
    %v3462 = vand.u32 %v51, 4294901760
    %v3463 = vsub.f32 %v51, %v3462
    %3464 = vmatpush1.msra.mxu0 %v3463
    %3465 = vmatprep.subr.mxu0 0.0
    %3466 = vmatpush2.msra.mxu0 0.0
    %3467 = vmatprep.subr.mxu0 0.0
    %3468 = vmatpush2.msra.mxu0 0.0
    %3469 = vmatprep.subr.mxu0 0.0
    %3470 = vmatpush2.msra.mxu0 0.0
    %3471 = vmatprep.subr.mxu0 0.0
    %3472 = vmatpush2.msra.mxu0 0.0
    %3473 = vmatprep.subr.mxu0 0.0
    %3474 = vmatpush2.msra.mxu0 0.0
    %3475 = vmatprep.subr.mxu0 0.0
    %3476 = vmatpush2.msra.mxu0 0.0
    %3477 = vmatprep.subr.mxu0 0.0
    %3478 = vmatpush2.msra.mxu0 0.0
    %3479 = vmatprep.subr.mxu0 0.0
    %3480 = vmatpush2.msra.mxu0 0.0
    %3481 = vmatprep.subr.mxu0 0.0
    %3482 = vmatpush2.msra.mxu0 0.0
    %3483 = vmatprep.subr.mxu0 0.0
    %3484 = vmatpush2.msra.mxu0 0.0
    %3485 = vmatprep.subr.mxu0 0.0
    %3486 = vmatpush2.msra.mxu0 0.0
    %3487 = vmatprep.subr.mxu0 0.0
    %3488 = vmatpush2.msra.mxu0 0.0
    %3489 = vmatprep.subr.mxu0 0.0
    %3490 = vmatpush2.msra.mxu0 0.0
    %3491 = vmatprep.subr.mxu0 0.0
    %3492 = vmatpush2.msra.mxu0 0.0
    %3493 = vmatprep.subr.mxu0 0.0
    %3494 = vmatpush2.msra.mxu0 0.0
    %3495 = vmatprep.subr.mxu0 0.0
    %3496 = vmatpush2.msra.mxu0 0.0
    %3497 = vmatprep.mubr.f32.mxu0 0.0
    %v3498 = vand.u32 %v3277, 4294901760
    %v3499 = vsub.f32 %v3277, %v3498
    %3500 = vmatmul.mubr.f32.gmra.mxu0 %v3499
    %v3501 = vpop.f32.mrf.mxu0
    %v3502 = vadd.f32 %v3428, %v3501
    %v3503 = vpop.f32.mrf.mxu0
    %3504 = vdwg.mxu0
    %3505 = vmatprep.subr.mxu0 0.0
    %3506 = vmatpush1.msra.mxu0 0.0
    %3507 = vmatprep.subr.mxu0 0.0
    %3508 = vmatpush1.msra.mxu0 0.0
    %3509 = vmatprep.subr.mxu0 0.0
    %3510 = vmatpush1.msra.mxu0 0.0
    %3511 = vmatprep.subr.mxu0 0.0
    %3512 = vmatpush1.msra.mxu0 0.0
    %3513 = vmatprep.subr.mxu0 0.0
    %3514 = vmatpush1.msra.mxu0 0.0
    %3515 = vmatprep.subr.mxu0 0.0
    %3516 = vmatpush1.msra.mxu0 0.0
    %3517 = vmatprep.subr.mxu0 0.0
    %3518 = vmatpush1.msra.mxu0 0.0
    %3519 = vmatprep.subr.mxu0 0.0
    %3520 = vmatpush1.msra.mxu0 0.0
    %3521 = vmatprep.subr.mxu0 0.0
    %3522 = vmatpush1.msra.mxu0 0.0
    %3523 = vmatprep.subr.mxu0 0.0
    %3524 = vmatpush1.msra.mxu0 0.0
    %3525 = vmatprep.subr.mxu0 0.0
    %3526 = vmatpush1.msra.mxu0 0.0
    %3527 = vmatprep.subr.mxu0 0.0
    %3528 = vmatpush1.msra.mxu0 0.0
    %3529 = vmatprep.subr.mxu0 0.0
    %3530 = vmatpush1.msra.mxu0 0.0
    %3531 = vmatprep.subr.mxu0 0.0
    %3532 = vmatpush1.msra.mxu0 0.0
    %3533 = vmatprep.subr.mxu0 0.0
    %3534 = vmatpush1.msra.mxu0 0.0
    %3535 = vmatprep.subr.mxu0 0.0
    %v3536 = vand.u32 %v51, 4294901760
    %3537 = vmatpush1.msra.mxu0 %v3536
    %3538 = vmatprep.subr.mxu0 0.0
    %3539 = vmatpush2.msra.mxu0 0.0
    %3540 = vmatprep.subr.mxu0 0.0
    %3541 = vmatpush2.msra.mxu0 0.0
    %3542 = vmatprep.subr.mxu0 0.0
    %3543 = vmatpush2.msra.mxu0 0.0
    %3544 = vmatprep.subr.mxu0 0.0
    %3545 = vmatpush2.msra.mxu0 0.0
    %3546 = vmatprep.subr.mxu0 0.0
    %3547 = vmatpush2.msra.mxu0 0.0
    %3548 = vmatprep.subr.mxu0 0.0
    %3549 = vmatpush2.msra.mxu0 0.0
    %3550 = vmatprep.subr.mxu0 0.0
    %3551 = vmatpush2.msra.mxu0 0.0
    %3552 = vmatprep.subr.mxu0 0.0
    %3553 = vmatpush2.msra.mxu0 0.0
    %3554 = vmatprep.subr.mxu0 0.0
    %3555 = vmatpush2.msra.mxu0 0.0
    %3556 = vmatprep.subr.mxu0 0.0
    %3557 = vmatpush2.msra.mxu0 0.0
    %3558 = vmatprep.subr.mxu0 0.0
    %3559 = vmatpush2.msra.mxu0 0.0
    %3560 = vmatprep.subr.mxu0 0.0
    %3561 = vmatpush2.msra.mxu0 0.0
    %3562 = vmatprep.subr.mxu0 0.0
    %3563 = vmatpush2.msra.mxu0 0.0
    %3564 = vmatprep.subr.mxu0 0.0
    %3565 = vmatpush2.msra.mxu0 0.0
    %3566 = vmatprep.subr.mxu0 0.0
    %3567 = vmatpush2.msra.mxu0 0.0
    %3568 = vmatprep.subr.mxu0 0.0
    %3569 = vmatpush2.msra.mxu0 0.0
    %3570 = vmatprep.mubr.f32.mxu0 0.0
    %v3571 = vand.u32 %v3277, 4294901760
    %v3572 = vsub.f32 %v3277, %v3571
    %v3573 = vand.u32 %v3572, 4294901760
    %3574 = vmatmul.mubr.f32.gmra.mxu0 %v3573
    %v3575 = vpop.f32.mrf.mxu0
    %v3576 = vadd.f32 %v3502, %v3575
    %v3577 = vpop.f32.mrf.mxu0
    %3578 = vdwg.mxu0
    %3579 = vmatprep.subr.mxu0 0.0
    %3580 = vmatpush1.msra.mxu0 0.0
    %3581 = vmatprep.subr.mxu0 0.0
    %3582 = vmatpush1.msra.mxu0 0.0
    %3583 = vmatprep.subr.mxu0 0.0
    %3584 = vmatpush1.msra.mxu0 0.0
    %3585 = vmatprep.subr.mxu0 0.0
    %3586 = vmatpush1.msra.mxu0 0.0
    %3587 = vmatprep.subr.mxu0 0.0
    %3588 = vmatpush1.msra.mxu0 0.0
    %3589 = vmatprep.subr.mxu0 0.0
    %3590 = vmatpush1.msra.mxu0 0.0
    %3591 = vmatprep.subr.mxu0 0.0
    %3592 = vmatpush1.msra.mxu0 0.0
    %3593 = vmatprep.subr.mxu0 0.0
    %3594 = vmatpush1.msra.mxu0 0.0
    %3595 = vmatprep.subr.mxu0 0.0
    %3596 = vmatpush1.msra.mxu0 0.0
    %3597 = vmatprep.subr.mxu0 0.0
    %3598 = vmatpush1.msra.mxu0 0.0
    %3599 = vmatprep.subr.mxu0 0.0
    %3600 = vmatpush1.msra.mxu0 0.0
    %3601 = vmatprep.subr.mxu0 0.0
    %3602 = vmatpush1.msra.mxu0 0.0
    %3603 = vmatprep.subr.mxu0 0.0
    %3604 = vmatpush1.msra.mxu0 0.0
    %3605 = vmatprep.subr.mxu0 0.0
    %3606 = vmatpush1.msra.mxu0 0.0
    %3607 = vmatprep.subr.mxu0 0.0
    %3608 = vmatpush1.msra.mxu0 0.0
    %3609 = vmatprep.subr.mxu0 0.0
    %v3610 = vand.u32 %v51, 4294901760
    %v3611 = vsub.f32 %v51, %v3610
    %v3612 = vand.u32 %v3611, 4294901760
    %3613 = vmatpush1.msra.mxu0 %v3612
    %3614 = vmatprep.subr.mxu0 0.0
    %3615 = vmatpush2.msra.mxu0 0.0
    %3616 = vmatprep.subr.mxu0 0.0
    %3617 = vmatpush2.msra.mxu0 0.0
    %3618 = vmatprep.subr.mxu0 0.0
    %3619 = vmatpush2.msra.mxu0 0.0
    %3620 = vmatprep.subr.mxu0 0.0
    %3621 = vmatpush2.msra.mxu0 0.0
    %3622 = vmatprep.subr.mxu0 0.0
    %3623 = vmatpush2.msra.mxu0 0.0
    %3624 = vmatprep.subr.mxu0 0.0
    %3625 = vmatpush2.msra.mxu0 0.0
    %3626 = vmatprep.subr.mxu0 0.0
    %3627 = vmatpush2.msra.mxu0 0.0
    %3628 = vmatprep.subr.mxu0 0.0
    %3629 = vmatpush2.msra.mxu0 0.0
    %3630 = vmatprep.subr.mxu0 0.0
    %3631 = vmatpush2.msra.mxu0 0.0
    %3632 = vmatprep.subr.mxu0 0.0
    %3633 = vmatpush2.msra.mxu0 0.0
    %3634 = vmatprep.subr.mxu0 0.0
    %3635 = vmatpush2.msra.mxu0 0.0
    %3636 = vmatprep.subr.mxu0 0.0
    %3637 = vmatpush2.msra.mxu0 0.0
    %3638 = vmatprep.subr.mxu0 0.0
    %3639 = vmatpush2.msra.mxu0 0.0
    %3640 = vmatprep.subr.mxu0 0.0
    %3641 = vmatpush2.msra.mxu0 0.0
    %3642 = vmatprep.subr.mxu0 0.0
    %3643 = vmatpush2.msra.mxu0 0.0
    %3644 = vmatprep.subr.mxu0 0.0
    %3645 = vmatpush2.msra.mxu0 0.0
    %3646 = vmatprep.mubr.f32.mxu0 0.0
    %v3647 = vand.u32 %v3277, 4294901760
    %3648 = vmatmul.mubr.f32.gmra.mxu0 %v3647
    %v3649 = vpop.f32.mrf.mxu0
    %v3650 = vadd.f32 %v3576, %v3649
    %v3651 = vpop.f32.mrf.mxu0
    %3652 = vdwg.mxu0
    %3653 = vmatprep.subr.mxu0 0.0
    %3654 = vmatpush1.msra.mxu0 0.0
    %3655 = vmatprep.subr.mxu0 0.0
    %3656 = vmatpush1.msra.mxu0 0.0
    %3657 = vmatprep.subr.mxu0 0.0
    %3658 = vmatpush1.msra.mxu0 0.0
    %3659 = vmatprep.subr.mxu0 0.0
    %3660 = vmatpush1.msra.mxu0 0.0
    %3661 = vmatprep.subr.mxu0 0.0
    %3662 = vmatpush1.msra.mxu0 0.0
    %3663 = vmatprep.subr.mxu0 0.0
    %3664 = vmatpush1.msra.mxu0 0.0
    %3665 = vmatprep.subr.mxu0 0.0
    %3666 = vmatpush1.msra.mxu0 0.0
    %3667 = vmatprep.subr.mxu0 0.0
    %3668 = vmatpush1.msra.mxu0 0.0
    %3669 = vmatprep.subr.mxu0 0.0
    %3670 = vmatpush1.msra.mxu0 0.0
    %3671 = vmatprep.subr.mxu0 0.0
    %3672 = vmatpush1.msra.mxu0 0.0
    %3673 = vmatprep.subr.mxu0 0.0
    %3674 = vmatpush1.msra.mxu0 0.0
    %3675 = vmatprep.subr.mxu0 0.0
    %3676 = vmatpush1.msra.mxu0 0.0
    %3677 = vmatprep.subr.mxu0 0.0
    %3678 = vmatpush1.msra.mxu0 0.0
    %3679 = vmatprep.subr.mxu0 0.0
    %3680 = vmatpush1.msra.mxu0 0.0
    %3681 = vmatprep.subr.mxu0 0.0
    %3682 = vmatpush1.msra.mxu0 0.0
    %3683 = vmatprep.subr.mxu0 0.0
    %v3684 = vand.u32 %v51, 4294901760
    %3685 = vmatpush1.msra.mxu0 %v3684
    %3686 = vmatprep.subr.mxu0 0.0
    %3687 = vmatpush2.msra.mxu0 0.0
    %3688 = vmatprep.subr.mxu0 0.0
    %3689 = vmatpush2.msra.mxu0 0.0
    %3690 = vmatprep.subr.mxu0 0.0
    %3691 = vmatpush2.msra.mxu0 0.0
    %3692 = vmatprep.subr.mxu0 0.0
    %3693 = vmatpush2.msra.mxu0 0.0
    %3694 = vmatprep.subr.mxu0 0.0
    %3695 = vmatpush2.msra.mxu0 0.0
    %3696 = vmatprep.subr.mxu0 0.0
    %3697 = vmatpush2.msra.mxu0 0.0
    %3698 = vmatprep.subr.mxu0 0.0
    %3699 = vmatpush2.msra.mxu0 0.0
    %3700 = vmatprep.subr.mxu0 0.0
    %3701 = vmatpush2.msra.mxu0 0.0
    %3702 = vmatprep.subr.mxu0 0.0
    %3703 = vmatpush2.msra.mxu0 0.0
    %3704 = vmatprep.subr.mxu0 0.0
    %3705 = vmatpush2.msra.mxu0 0.0
    %3706 = vmatprep.subr.mxu0 0.0
    %3707 = vmatpush2.msra.mxu0 0.0
    %3708 = vmatprep.subr.mxu0 0.0
    %3709 = vmatpush2.msra.mxu0 0.0
    %3710 = vmatprep.subr.mxu0 0.0
    %3711 = vmatpush2.msra.mxu0 0.0
    %3712 = vmatprep.subr.mxu0 0.0
    %3713 = vmatpush2.msra.mxu0 0.0
    %3714 = vmatprep.subr.mxu0 0.0
    %3715 = vmatpush2.msra.mxu0 0.0
    %3716 = vmatprep.subr.mxu0 0.0
    %3717 = vmatpush2.msra.mxu0 0.0
    %3718 = vmatprep.mubr.f32.mxu0 0.0
    %v3719 = vand.u32 %v3277, 4294901760
    %3720 = vmatmul.mubr.f32.gmra.mxu0 %v3719
    %v3721 = vpop.f32.mrf.mxu0
    %v3722 = vadd.f32 %v3650, %v3721
    %v3723 = vpop.f32.mrf.mxu0
    %3724 = vdwg.mxu0
    %v3725 = vadd.f32 %v3722, %v503
    %vm3726 = vcmask 261120
    %v3728 = vsel %vm3726, 0.0, 0
    %3730 = vmatprep.subr.mxu0 0.0
    %3731 = vmatpush1.msra.mxu0 0.0
    %3732 = vmatprep.subr.mxu0 0.0
    %3733 = vmatpush1.msra.mxu0 0.0
    %3734 = vmatprep.subr.mxu0 0.0
    %3735 = vmatpush1.msra.mxu0 0.0
    %3736 = vmatprep.subr.mxu0 0.0
    %3737 = vmatpush1.msra.mxu0 0.0
    %3738 = vmatprep.subr.mxu0 0.0
    %3739 = vmatpush1.msra.mxu0 0.0
    %3740 = vmatprep.subr.mxu0 0.0
    %3741 = vmatpush1.msra.mxu0 0.0
    %3742 = vmatprep.subr.mxu0 0.0
    %3743 = vmatpush1.msra.mxu0 0.0
    %3744 = vmatprep.subr.mxu0 0.0
    %3745 = vmatpush1.msra.mxu0 0.0
    %3746 = vmatprep.subr.mxu0 0.0
    %3747 = vmatpush1.msra.mxu0 0.0
    %3748 = vmatprep.subr.mxu0 0.0
    %3749 = vmatpush1.msra.mxu0 0.0
    %3750 = vmatprep.subr.mxu0 0.0
    %3751 = vmatpush1.msra.mxu0 0.0
    %3752 = vmatprep.subr.mxu0 0.0
    %3753 = vmatpush1.msra.mxu0 0.0
    %3754 = vmatprep.subr.mxu0 0.0
    %v3755 = vand.u32 %v29, 4294901760
    %3756 = vmatpush1.msra.mxu0 %v3755
    %3757 = vmatprep.subr.mxu0 0.0
    %v3758 = vand.u32 %v28, 4294901760
    %3759 = vmatpush1.msra.mxu0 %v3758
    %3760 = vmatprep.subr.mxu0 0.0
    %v3761 = vand.u32 %v27, 4294901760
    %3762 = vmatpush1.msra.mxu0 %v3761
    %3763 = vmatprep.subr.mxu0 0.0
    %v3764 = vand.u32 %v26, 4294901760
    %3765 = vmatpush1.msra.mxu0 %v3764
    %3766 = vmatprep.subr.mxu0 0.0
    %3767 = vmatpush2.msra.mxu0 0.0
    %3768 = vmatprep.subr.mxu0 0.0
    %3769 = vmatpush2.msra.mxu0 0.0
    %3770 = vmatprep.subr.mxu0 0.0
    %3771 = vmatpush2.msra.mxu0 0.0
    %3772 = vmatprep.subr.mxu0 0.0
    %3773 = vmatpush2.msra.mxu0 0.0
    %3774 = vmatprep.subr.mxu0 0.0
    %3775 = vmatpush2.msra.mxu0 0.0
    %3776 = vmatprep.subr.mxu0 0.0
    %3777 = vmatpush2.msra.mxu0 0.0
    %3778 = vmatprep.subr.mxu0 0.0
    %3779 = vmatpush2.msra.mxu0 0.0
    %3780 = vmatprep.subr.mxu0 0.0
    %3781 = vmatpush2.msra.mxu0 0.0
    %3782 = vmatprep.subr.mxu0 0.0
    %3783 = vmatpush2.msra.mxu0 0.0
    %3784 = vmatprep.subr.mxu0 0.0
    %3785 = vmatpush2.msra.mxu0 0.0
    %3786 = vmatprep.subr.mxu0 0.0
    %3787 = vmatpush2.msra.mxu0 0.0
    %3788 = vmatprep.subr.mxu0 0.0
    %3789 = vmatpush2.msra.mxu0 0.0
    %3790 = vmatprep.subr.mxu0 0.0
    %3791 = vmatpush2.msra.mxu0 0.0
    %3792 = vmatprep.subr.mxu0 0.0
    %3793 = vmatpush2.msra.mxu0 0.0
    %3794 = vmatprep.subr.mxu0 0.0
    %3795 = vmatpush2.msra.mxu0 0.0
    %3796 = vmatprep.subr.mxu0 0.0
    %3797 = vmatpush2.msra.mxu0 0.0
    %3798 = vmatprep.mubr.f32.mxu0 0.0
    %v3799 = vand.u32 %v3728, 4294901760
    %v3800 = vsub.f32 %v3728, %v3799
    %v3801 = vand.u32 %v3800, 4294901760
    %v3802 = vsub.f32 %v3800, %v3801
    %v3803 = vand.u32 %v3802, 4294901760
    %3804 = vmatmul.mubr.f32.gmra.mxu0 %v3803
    %v3805 = vpop.f32.mrf.mxu0
    %v3806 = vadd.f32 0.0, %v3805
    %v3807 = vpop.f32.mrf.mxu0
    %3808 = vdwg.mxu0
    %3809 = vmatprep.subr.mxu0 0.0
    %3810 = vmatpush1.msra.mxu0 0.0
    %3811 = vmatprep.subr.mxu0 0.0
    %3812 = vmatpush1.msra.mxu0 0.0
    %3813 = vmatprep.subr.mxu0 0.0
    %3814 = vmatpush1.msra.mxu0 0.0
    %3815 = vmatprep.subr.mxu0 0.0
    %3816 = vmatpush1.msra.mxu0 0.0
    %3817 = vmatprep.subr.mxu0 0.0
    %3818 = vmatpush1.msra.mxu0 0.0
    %3819 = vmatprep.subr.mxu0 0.0
    %3820 = vmatpush1.msra.mxu0 0.0
    %3821 = vmatprep.subr.mxu0 0.0
    %3822 = vmatpush1.msra.mxu0 0.0
    %3823 = vmatprep.subr.mxu0 0.0
    %3824 = vmatpush1.msra.mxu0 0.0
    %3825 = vmatprep.subr.mxu0 0.0
    %3826 = vmatpush1.msra.mxu0 0.0
    %3827 = vmatprep.subr.mxu0 0.0
    %3828 = vmatpush1.msra.mxu0 0.0
    %3829 = vmatprep.subr.mxu0 0.0
    %3830 = vmatpush1.msra.mxu0 0.0
    %3831 = vmatprep.subr.mxu0 0.0
    %3832 = vmatpush1.msra.mxu0 0.0
    %3833 = vmatprep.subr.mxu0 0.0
    %v3834 = vand.u32 %v29, 4294901760
    %v3835 = vsub.f32 %v29, %v3834
    %v3836 = vand.u32 %v3835, 4294901760
    %v3837 = vsub.f32 %v3835, %v3836
    %v3838 = vand.u32 %v3837, 4294901760
    %3839 = vmatpush1.msra.mxu0 %v3838
    %3840 = vmatprep.subr.mxu0 0.0
    %v3841 = vand.u32 %v28, 4294901760
    %v3842 = vsub.f32 %v28, %v3841
    %v3843 = vand.u32 %v3842, 4294901760
    %v3844 = vsub.f32 %v3842, %v3843
    %v3845 = vand.u32 %v3844, 4294901760
    %3846 = vmatpush1.msra.mxu0 %v3845
    %3847 = vmatprep.subr.mxu0 0.0
    %v3848 = vand.u32 %v27, 4294901760
    %v3849 = vsub.f32 %v27, %v3848
    %v3850 = vand.u32 %v3849, 4294901760
    %v3851 = vsub.f32 %v3849, %v3850
    %v3852 = vand.u32 %v3851, 4294901760
    %3853 = vmatpush1.msra.mxu0 %v3852
    %3854 = vmatprep.subr.mxu0 0.0
    %v3855 = vand.u32 %v26, 4294901760
    %v3856 = vsub.f32 %v26, %v3855
    %v3857 = vand.u32 %v3856, 4294901760
    %v3858 = vsub.f32 %v3856, %v3857
    %v3859 = vand.u32 %v3858, 4294901760
    %3860 = vmatpush1.msra.mxu0 %v3859
    %3861 = vmatprep.subr.mxu0 0.0
    %3862 = vmatpush2.msra.mxu0 0.0
    %3863 = vmatprep.subr.mxu0 0.0
    %3864 = vmatpush2.msra.mxu0 0.0
    %3865 = vmatprep.subr.mxu0 0.0
    %3866 = vmatpush2.msra.mxu0 0.0
    %3867 = vmatprep.subr.mxu0 0.0
    %3868 = vmatpush2.msra.mxu0 0.0
    %3869 = vmatprep.subr.mxu0 0.0
    %3870 = vmatpush2.msra.mxu0 0.0
    %3871 = vmatprep.subr.mxu0 0.0
    %3872 = vmatpush2.msra.mxu0 0.0
    %3873 = vmatprep.subr.mxu0 0.0
    %3874 = vmatpush2.msra.mxu0 0.0
    %3875 = vmatprep.subr.mxu0 0.0
    %3876 = vmatpush2.msra.mxu0 0.0
    %3877 = vmatprep.subr.mxu0 0.0
    %3878 = vmatpush2.msra.mxu0 0.0
    %3879 = vmatprep.subr.mxu0 0.0
    %3880 = vmatpush2.msra.mxu0 0.0
    %3881 = vmatprep.subr.mxu0 0.0
    %3882 = vmatpush2.msra.mxu0 0.0
    %3883 = vmatprep.subr.mxu0 0.0
    %3884 = vmatpush2.msra.mxu0 0.0
    %3885 = vmatprep.subr.mxu0 0.0
    %3886 = vmatpush2.msra.mxu0 0.0
    %3887 = vmatprep.subr.mxu0 0.0
    %3888 = vmatpush2.msra.mxu0 0.0
    %3889 = vmatprep.subr.mxu0 0.0
    %3890 = vmatpush2.msra.mxu0 0.0
    %3891 = vmatprep.subr.mxu0 0.0
    %3892 = vmatpush2.msra.mxu0 0.0
    %3893 = vmatprep.mubr.f32.mxu0 0.0
    %v3894 = vand.u32 %v3728, 4294901760
    %3895 = vmatmul.mubr.f32.gmra.mxu0 %v3894
    %v3896 = vpop.f32.mrf.mxu0
    %v3897 = vadd.f32 %v3806, %v3896
    %v3898 = vpop.f32.mrf.mxu0
    %3899 = vdwg.mxu0
    %3900 = vmatprep.subr.mxu0 0.0
    %3901 = vmatpush1.msra.mxu0 0.0
    %3902 = vmatprep.subr.mxu0 0.0
    %3903 = vmatpush1.msra.mxu0 0.0
    %3904 = vmatprep.subr.mxu0 0.0
    %3905 = vmatpush1.msra.mxu0 0.0
    %3906 = vmatprep.subr.mxu0 0.0
    %3907 = vmatpush1.msra.mxu0 0.0
    %3908 = vmatprep.subr.mxu0 0.0
    %3909 = vmatpush1.msra.mxu0 0.0
    %3910 = vmatprep.subr.mxu0 0.0
    %3911 = vmatpush1.msra.mxu0 0.0
    %3912 = vmatprep.subr.mxu0 0.0
    %3913 = vmatpush1.msra.mxu0 0.0
    %3914 = vmatprep.subr.mxu0 0.0
    %3915 = vmatpush1.msra.mxu0 0.0
    %3916 = vmatprep.subr.mxu0 0.0
    %3917 = vmatpush1.msra.mxu0 0.0
    %3918 = vmatprep.subr.mxu0 0.0
    %3919 = vmatpush1.msra.mxu0 0.0
    %3920 = vmatprep.subr.mxu0 0.0
    %3921 = vmatpush1.msra.mxu0 0.0
    %3922 = vmatprep.subr.mxu0 0.0
    %3923 = vmatpush1.msra.mxu0 0.0
    %3924 = vmatprep.subr.mxu0 0.0
    %v3925 = vand.u32 %v29, 4294901760
    %v3926 = vsub.f32 %v29, %v3925
    %3927 = vmatpush1.msra.mxu0 %v3926
    %3928 = vmatprep.subr.mxu0 0.0
    %v3929 = vand.u32 %v28, 4294901760
    %v3930 = vsub.f32 %v28, %v3929
    %3931 = vmatpush1.msra.mxu0 %v3930
    %3932 = vmatprep.subr.mxu0 0.0
    %v3933 = vand.u32 %v27, 4294901760
    %v3934 = vsub.f32 %v27, %v3933
    %3935 = vmatpush1.msra.mxu0 %v3934
    %3936 = vmatprep.subr.mxu0 0.0
    %v3937 = vand.u32 %v26, 4294901760
    %v3938 = vsub.f32 %v26, %v3937
    %3939 = vmatpush1.msra.mxu0 %v3938
    %3940 = vmatprep.subr.mxu0 0.0
    %3941 = vmatpush2.msra.mxu0 0.0
    %3942 = vmatprep.subr.mxu0 0.0
    %3943 = vmatpush2.msra.mxu0 0.0
    %3944 = vmatprep.subr.mxu0 0.0
    %3945 = vmatpush2.msra.mxu0 0.0
    %3946 = vmatprep.subr.mxu0 0.0
    %3947 = vmatpush2.msra.mxu0 0.0
    %3948 = vmatprep.subr.mxu0 0.0
    %3949 = vmatpush2.msra.mxu0 0.0
    %3950 = vmatprep.subr.mxu0 0.0
    %3951 = vmatpush2.msra.mxu0 0.0
    %3952 = vmatprep.subr.mxu0 0.0
    %3953 = vmatpush2.msra.mxu0 0.0
    %3954 = vmatprep.subr.mxu0 0.0
    %3955 = vmatpush2.msra.mxu0 0.0
    %3956 = vmatprep.subr.mxu0 0.0
    %3957 = vmatpush2.msra.mxu0 0.0
    %3958 = vmatprep.subr.mxu0 0.0
    %3959 = vmatpush2.msra.mxu0 0.0
    %3960 = vmatprep.subr.mxu0 0.0
    %3961 = vmatpush2.msra.mxu0 0.0
    %3962 = vmatprep.subr.mxu0 0.0
    %3963 = vmatpush2.msra.mxu0 0.0
    %3964 = vmatprep.subr.mxu0 0.0
    %3965 = vmatpush2.msra.mxu0 0.0
    %3966 = vmatprep.subr.mxu0 0.0
    %3967 = vmatpush2.msra.mxu0 0.0
    %3968 = vmatprep.subr.mxu0 0.0
    %3969 = vmatpush2.msra.mxu0 0.0
    %3970 = vmatprep.subr.mxu0 0.0
    %3971 = vmatpush2.msra.mxu0 0.0
    %3972 = vmatprep.mubr.f32.mxu0 0.0
    %v3973 = vand.u32 %v3728, 4294901760
    %v3974 = vsub.f32 %v3728, %v3973
    %3975 = vmatmul.mubr.f32.gmra.mxu0 %v3974
    %v3976 = vpop.f32.mrf.mxu0
    %v3977 = vadd.f32 %v3897, %v3976
    %v3978 = vpop.f32.mrf.mxu0
    %3979 = vdwg.mxu0
    %3980 = vmatprep.subr.mxu0 0.0
    %3981 = vmatpush1.msra.mxu0 0.0
    %3982 = vmatprep.subr.mxu0 0.0
    %3983 = vmatpush1.msra.mxu0 0.0
    %3984 = vmatprep.subr.mxu0 0.0
    %3985 = vmatpush1.msra.mxu0 0.0
    %3986 = vmatprep.subr.mxu0 0.0
    %3987 = vmatpush1.msra.mxu0 0.0
    %3988 = vmatprep.subr.mxu0 0.0
    %3989 = vmatpush1.msra.mxu0 0.0
    %3990 = vmatprep.subr.mxu0 0.0
    %3991 = vmatpush1.msra.mxu0 0.0
    %3992 = vmatprep.subr.mxu0 0.0
    %3993 = vmatpush1.msra.mxu0 0.0
    %3994 = vmatprep.subr.mxu0 0.0
    %3995 = vmatpush1.msra.mxu0 0.0
    %3996 = vmatprep.subr.mxu0 0.0
    %3997 = vmatpush1.msra.mxu0 0.0
    %3998 = vmatprep.subr.mxu0 0.0
    %3999 = vmatpush1.msra.mxu0 0.0
    %4000 = vmatprep.subr.mxu0 0.0
    %4001 = vmatpush1.msra.mxu0 0.0
    %4002 = vmatprep.subr.mxu0 0.0
    %4003 = vmatpush1.msra.mxu0 0.0
    %4004 = vmatprep.subr.mxu0 0.0
    %v4005 = vand.u32 %v29, 4294901760
    %4006 = vmatpush1.msra.mxu0 %v4005
    %4007 = vmatprep.subr.mxu0 0.0
    %v4008 = vand.u32 %v28, 4294901760
    %4009 = vmatpush1.msra.mxu0 %v4008
    %4010 = vmatprep.subr.mxu0 0.0
    %v4011 = vand.u32 %v27, 4294901760
    %4012 = vmatpush1.msra.mxu0 %v4011
    %4013 = vmatprep.subr.mxu0 0.0
    %v4014 = vand.u32 %v26, 4294901760
    %4015 = vmatpush1.msra.mxu0 %v4014
    %4016 = vmatprep.subr.mxu0 0.0
    %4017 = vmatpush2.msra.mxu0 0.0
    %4018 = vmatprep.subr.mxu0 0.0
    %4019 = vmatpush2.msra.mxu0 0.0
    %4020 = vmatprep.subr.mxu0 0.0
    %4021 = vmatpush2.msra.mxu0 0.0
    %4022 = vmatprep.subr.mxu0 0.0
    %4023 = vmatpush2.msra.mxu0 0.0
    %4024 = vmatprep.subr.mxu0 0.0
    %4025 = vmatpush2.msra.mxu0 0.0
    %4026 = vmatprep.subr.mxu0 0.0
    %4027 = vmatpush2.msra.mxu0 0.0
    %4028 = vmatprep.subr.mxu0 0.0
    %4029 = vmatpush2.msra.mxu0 0.0
    %4030 = vmatprep.subr.mxu0 0.0
    %4031 = vmatpush2.msra.mxu0 0.0
    %4032 = vmatprep.subr.mxu0 0.0
    %4033 = vmatpush2.msra.mxu0 0.0
    %4034 = vmatprep.subr.mxu0 0.0
    %4035 = vmatpush2.msra.mxu0 0.0
    %4036 = vmatprep.subr.mxu0 0.0
    %4037 = vmatpush2.msra.mxu0 0.0
    %4038 = vmatprep.subr.mxu0 0.0
    %4039 = vmatpush2.msra.mxu0 0.0
    %4040 = vmatprep.subr.mxu0 0.0
    %4041 = vmatpush2.msra.mxu0 0.0
    %4042 = vmatprep.subr.mxu0 0.0
    %4043 = vmatpush2.msra.mxu0 0.0
    %4044 = vmatprep.subr.mxu0 0.0
    %4045 = vmatpush2.msra.mxu0 0.0
    %4046 = vmatprep.subr.mxu0 0.0
    %4047 = vmatpush2.msra.mxu0 0.0
    %4048 = vmatprep.mubr.f32.mxu0 0.0
    %v4049 = vand.u32 %v3728, 4294901760
    %v4050 = vsub.f32 %v3728, %v4049
    %v4051 = vand.u32 %v4050, 4294901760
    %4052 = vmatmul.mubr.f32.gmra.mxu0 %v4051
    %v4053 = vpop.f32.mrf.mxu0
    %v4054 = vadd.f32 %v3977, %v4053
    %v4055 = vpop.f32.mrf.mxu0
    %4056 = vdwg.mxu0
    %4057 = vmatprep.subr.mxu0 0.0
    %4058 = vmatpush1.msra.mxu0 0.0
    %4059 = vmatprep.subr.mxu0 0.0
    %4060 = vmatpush1.msra.mxu0 0.0
    %4061 = vmatprep.subr.mxu0 0.0
    %4062 = vmatpush1.msra.mxu0 0.0
    %4063 = vmatprep.subr.mxu0 0.0
    %4064 = vmatpush1.msra.mxu0 0.0
    %4065 = vmatprep.subr.mxu0 0.0
    %4066 = vmatpush1.msra.mxu0 0.0
    %4067 = vmatprep.subr.mxu0 0.0
    %4068 = vmatpush1.msra.mxu0 0.0
    %4069 = vmatprep.subr.mxu0 0.0
    %4070 = vmatpush1.msra.mxu0 0.0
    %4071 = vmatprep.subr.mxu0 0.0
    %4072 = vmatpush1.msra.mxu0 0.0
    %4073 = vmatprep.subr.mxu0 0.0
    %4074 = vmatpush1.msra.mxu0 0.0
    %4075 = vmatprep.subr.mxu0 0.0
    %4076 = vmatpush1.msra.mxu0 0.0
    %4077 = vmatprep.subr.mxu0 0.0
    %4078 = vmatpush1.msra.mxu0 0.0
    %4079 = vmatprep.subr.mxu0 0.0
    %4080 = vmatpush1.msra.mxu0 0.0
    %4081 = vmatprep.subr.mxu0 0.0
    %v4082 = vand.u32 %v29, 4294901760
    %v4083 = vsub.f32 %v29, %v4082
    %v4084 = vand.u32 %v4083, 4294901760
    %4085 = vmatpush1.msra.mxu0 %v4084
    %4086 = vmatprep.subr.mxu0 0.0
    %v4087 = vand.u32 %v28, 4294901760
    %v4088 = vsub.f32 %v28, %v4087
    %v4089 = vand.u32 %v4088, 4294901760
    %4090 = vmatpush1.msra.mxu0 %v4089
    %4091 = vmatprep.subr.mxu0 0.0
    %v4092 = vand.u32 %v27, 4294901760
    %v4093 = vsub.f32 %v27, %v4092
    %v4094 = vand.u32 %v4093, 4294901760
    %4095 = vmatpush1.msra.mxu0 %v4094
    %4096 = vmatprep.subr.mxu0 0.0
    %v4097 = vand.u32 %v26, 4294901760
    %v4098 = vsub.f32 %v26, %v4097
    %v4099 = vand.u32 %v4098, 4294901760
    %4100 = vmatpush1.msra.mxu0 %v4099
    %4101 = vmatprep.subr.mxu0 0.0
    %4102 = vmatpush2.msra.mxu0 0.0
    %4103 = vmatprep.subr.mxu0 0.0
    %4104 = vmatpush2.msra.mxu0 0.0
    %4105 = vmatprep.subr.mxu0 0.0
    %4106 = vmatpush2.msra.mxu0 0.0
    %4107 = vmatprep.subr.mxu0 0.0
    %4108 = vmatpush2.msra.mxu0 0.0
    %4109 = vmatprep.subr.mxu0 0.0
    %4110 = vmatpush2.msra.mxu0 0.0
    %4111 = vmatprep.subr.mxu0 0.0
    %4112 = vmatpush2.msra.mxu0 0.0
    %4113 = vmatprep.subr.mxu0 0.0
    %4114 = vmatpush2.msra.mxu0 0.0
    %4115 = vmatprep.subr.mxu0 0.0
    %4116 = vmatpush2.msra.mxu0 0.0
    %4117 = vmatprep.subr.mxu0 0.0
    %4118 = vmatpush2.msra.mxu0 0.0
    %4119 = vmatprep.subr.mxu0 0.0
    %4120 = vmatpush2.msra.mxu0 0.0
    %4121 = vmatprep.subr.mxu0 0.0
    %4122 = vmatpush2.msra.mxu0 0.0
    %4123 = vmatprep.subr.mxu0 0.0
    %4124 = vmatpush2.msra.mxu0 0.0
    %4125 = vmatprep.subr.mxu0 0.0
    %4126 = vmatpush2.msra.mxu0 0.0
    %4127 = vmatprep.subr.mxu0 0.0
    %4128 = vmatpush2.msra.mxu0 0.0
    %4129 = vmatprep.subr.mxu0 0.0
    %4130 = vmatpush2.msra.mxu0 0.0
    %4131 = vmatprep.subr.mxu0 0.0
    %4132 = vmatpush2.msra.mxu0 0.0
    %4133 = vmatprep.mubr.f32.mxu0 0.0
    %v4134 = vand.u32 %v3728, 4294901760
    %4135 = vmatmul.mubr.f32.gmra.mxu0 %v4134
    %v4136 = vpop.f32.mrf.mxu0
    %v4137 = vadd.f32 %v4054, %v4136
    %v4138 = vpop.f32.mrf.mxu0
    %4139 = vdwg.mxu0
    %4140 = vmatprep.subr.mxu0 0.0
    %4141 = vmatpush1.msra.mxu0 0.0
    %4142 = vmatprep.subr.mxu0 0.0
    %4143 = vmatpush1.msra.mxu0 0.0
    %4144 = vmatprep.subr.mxu0 0.0
    %4145 = vmatpush1.msra.mxu0 0.0
    %4146 = vmatprep.subr.mxu0 0.0
    %4147 = vmatpush1.msra.mxu0 0.0
    %4148 = vmatprep.subr.mxu0 0.0
    %4149 = vmatpush1.msra.mxu0 0.0
    %4150 = vmatprep.subr.mxu0 0.0
    %4151 = vmatpush1.msra.mxu0 0.0
    %4152 = vmatprep.subr.mxu0 0.0
    %4153 = vmatpush1.msra.mxu0 0.0
    %4154 = vmatprep.subr.mxu0 0.0
    %4155 = vmatpush1.msra.mxu0 0.0
    %4156 = vmatprep.subr.mxu0 0.0
    %4157 = vmatpush1.msra.mxu0 0.0
    %4158 = vmatprep.subr.mxu0 0.0
    %4159 = vmatpush1.msra.mxu0 0.0
    %4160 = vmatprep.subr.mxu0 0.0
    %4161 = vmatpush1.msra.mxu0 0.0
    %4162 = vmatprep.subr.mxu0 0.0
    %4163 = vmatpush1.msra.mxu0 0.0
    %4164 = vmatprep.subr.mxu0 0.0
    %v4165 = vand.u32 %v29, 4294901760
    %4166 = vmatpush1.msra.mxu0 %v4165
    %4167 = vmatprep.subr.mxu0 0.0
    %v4168 = vand.u32 %v28, 4294901760
    %4169 = vmatpush1.msra.mxu0 %v4168
    %4170 = vmatprep.subr.mxu0 0.0
    %v4171 = vand.u32 %v27, 4294901760
    %4172 = vmatpush1.msra.mxu0 %v4171
    %4173 = vmatprep.subr.mxu0 0.0
    %v4174 = vand.u32 %v26, 4294901760
    %4175 = vmatpush1.msra.mxu0 %v4174
    %4176 = vmatprep.subr.mxu0 0.0
    %4177 = vmatpush2.msra.mxu0 0.0
    %4178 = vmatprep.subr.mxu0 0.0
    %4179 = vmatpush2.msra.mxu0 0.0
    %4180 = vmatprep.subr.mxu0 0.0
    %4181 = vmatpush2.msra.mxu0 0.0
    %4182 = vmatprep.subr.mxu0 0.0
    %4183 = vmatpush2.msra.mxu0 0.0
    %4184 = vmatprep.subr.mxu0 0.0
    %4185 = vmatpush2.msra.mxu0 0.0
    %4186 = vmatprep.subr.mxu0 0.0
    %4187 = vmatpush2.msra.mxu0 0.0
    %4188 = vmatprep.subr.mxu0 0.0
    %4189 = vmatpush2.msra.mxu0 0.0
    %4190 = vmatprep.subr.mxu0 0.0
    %4191 = vmatpush2.msra.mxu0 0.0
    %4192 = vmatprep.subr.mxu0 0.0
    %4193 = vmatpush2.msra.mxu0 0.0
    %4194 = vmatprep.subr.mxu0 0.0
    %4195 = vmatpush2.msra.mxu0 0.0
    %4196 = vmatprep.subr.mxu0 0.0
    %4197 = vmatpush2.msra.mxu0 0.0
    %4198 = vmatprep.subr.mxu0 0.0
    %4199 = vmatpush2.msra.mxu0 0.0
    %4200 = vmatprep.subr.mxu0 0.0
    %4201 = vmatpush2.msra.mxu0 0.0
    %4202 = vmatprep.subr.mxu0 0.0
    %4203 = vmatpush2.msra.mxu0 0.0
    %4204 = vmatprep.subr.mxu0 0.0
    %4205 = vmatpush2.msra.mxu0 0.0
    %4206 = vmatprep.subr.mxu0 0.0
    %4207 = vmatpush2.msra.mxu0 0.0
    %4208 = vmatprep.mubr.f32.mxu0 0.0
    %v4209 = vand.u32 %v3728, 4294901760
    %4210 = vmatmul.mubr.f32.gmra.mxu0 %v4209
    %v4211 = vpop.f32.mrf.mxu0
    %v4212 = vadd.f32 %v4137, %v4211
    %v4213 = vpop.f32.mrf.mxu0
    %4214 = vdwg.mxu0
    %v4215 = vadd.f32 %v505, %v4212
    %v4216 = vxor.u32 %v4215, 2147483648
    %v4217 = vmul.f32 %v4216, 1.442695
    %v4218 = vpow.pop %v4217
    %v4219 = vadd.f32 %v4218, 1.0
    %v4220 = vrcp.pop %v4219
    %v4221 = vmul.f32 1.0, %v4220
    %v4222 = vtanh.pop %v4215
    %v4223 = vmul.f32 %v4221, 0.0
    %4225 = vrot.lane.b32.xlu0 %v4222, 64
    %v4226 = vpop.permute.xlu0 %4225
    %v4228 = vmul.f32 %v4221, %v4226
    %4230 = vrot.lane.b32.xlu0 %v4228, 32
    %v4231 = vpop.permute.xlu0 %4230
    %v4233 = vadd.f32 %v4223, %v4231
    %v4234 = vtanh.pop %v4233
    %4236 = vrot.lane.b32.xlu0 %v4234, 64
    %v4237 = vpop.permute.xlu0 %4236
    %v4239 = vmul.f32 %v4221, %v4237
    %4241 = vrot.lane.b32.xlu0 %v4239, 32
    %v4242 = vpop.permute.xlu0 %4241
    %v4243 = vsel %vm3726, %v4242, 0
    %4245 = vmatprep.subr.mxu0 0.0
    %4246 = vmatpush1.msra.mxu0 0.0
    %4247 = vmatprep.subr.mxu0 0.0
    %4248 = vmatpush1.msra.mxu0 0.0
    %4249 = vmatprep.subr.mxu0 0.0
    %4250 = vmatpush1.msra.mxu0 0.0
    %4251 = vmatprep.subr.mxu0 0.0
    %4252 = vmatpush1.msra.mxu0 0.0
    %4253 = vmatprep.subr.mxu0 0.0
    %4254 = vmatpush1.msra.mxu0 0.0
    %4255 = vmatprep.subr.mxu0 0.0
    %4256 = vmatpush1.msra.mxu0 0.0
    %4257 = vmatprep.subr.mxu0 0.0
    %4258 = vmatpush1.msra.mxu0 0.0
    %4259 = vmatprep.subr.mxu0 0.0
    %4260 = vmatpush1.msra.mxu0 0.0
    %4261 = vmatprep.subr.mxu0 0.0
    %4262 = vmatpush1.msra.mxu0 0.0
    %4263 = vmatprep.subr.mxu0 0.0
    %4264 = vmatpush1.msra.mxu0 0.0
    %4265 = vmatprep.subr.mxu0 0.0
    %4266 = vmatpush1.msra.mxu0 0.0
    %4267 = vmatprep.subr.mxu0 0.0
    %4268 = vmatpush1.msra.mxu0 0.0
    %4269 = vmatprep.subr.mxu0 0.0
    %v4270 = vand.u32 %v29, 4294901760
    %4271 = vmatpush1.msra.mxu0 %v4270
    %4272 = vmatprep.subr.mxu0 0.0
    %v4273 = vand.u32 %v28, 4294901760
    %4274 = vmatpush1.msra.mxu0 %v4273
    %4275 = vmatprep.subr.mxu0 0.0
    %v4276 = vand.u32 %v27, 4294901760
    %4277 = vmatpush1.msra.mxu0 %v4276
    %4278 = vmatprep.subr.mxu0 0.0
    %v4279 = vand.u32 %v26, 4294901760
    %4280 = vmatpush1.msra.mxu0 %v4279
    %4281 = vmatprep.subr.mxu0 0.0
    %4282 = vmatpush2.msra.mxu0 0.0
    %4283 = vmatprep.subr.mxu0 0.0
    %4284 = vmatpush2.msra.mxu0 0.0
    %4285 = vmatprep.subr.mxu0 0.0
    %4286 = vmatpush2.msra.mxu0 0.0
    %4287 = vmatprep.subr.mxu0 0.0
    %4288 = vmatpush2.msra.mxu0 0.0
    %4289 = vmatprep.subr.mxu0 0.0
    %4290 = vmatpush2.msra.mxu0 0.0
    %4291 = vmatprep.subr.mxu0 0.0
    %4292 = vmatpush2.msra.mxu0 0.0
    %4293 = vmatprep.subr.mxu0 0.0
    %4294 = vmatpush2.msra.mxu0 0.0
    %4295 = vmatprep.subr.mxu0 0.0
    %4296 = vmatpush2.msra.mxu0 0.0
    %4297 = vmatprep.subr.mxu0 0.0
    %4298 = vmatpush2.msra.mxu0 0.0
    %4299 = vmatprep.subr.mxu0 0.0
    %4300 = vmatpush2.msra.mxu0 0.0
    %4301 = vmatprep.subr.mxu0 0.0
    %4302 = vmatpush2.msra.mxu0 0.0
    %4303 = vmatprep.subr.mxu0 0.0
    %4304 = vmatpush2.msra.mxu0 0.0
    %4305 = vmatprep.subr.mxu0 0.0
    %4306 = vmatpush2.msra.mxu0 0.0
    %4307 = vmatprep.subr.mxu0 0.0
    %4308 = vmatpush2.msra.mxu0 0.0
    %4309 = vmatprep.subr.mxu0 0.0
    %4310 = vmatpush2.msra.mxu0 0.0
    %4311 = vmatprep.subr.mxu0 0.0
    %4312 = vmatpush2.msra.mxu0 0.0
    %4313 = vmatprep.mubr.f32.mxu0 0.0
    %v4314 = vand.u32 %v4243, 4294901760
    %v4315 = vsub.f32 %v4243, %v4314
    %v4316 = vand.u32 %v4315, 4294901760
    %v4317 = vsub.f32 %v4315, %v4316
    %v4318 = vand.u32 %v4317, 4294901760
    %4319 = vmatmul.mubr.f32.gmra.mxu0 %v4318
    %v4320 = vpop.f32.mrf.mxu0
    %v4321 = vadd.f32 0.0, %v4320
    %v4322 = vpop.f32.mrf.mxu0
    %4323 = vdwg.mxu0
    %4324 = vmatprep.subr.mxu0 0.0
    %4325 = vmatpush1.msra.mxu0 0.0
    %4326 = vmatprep.subr.mxu0 0.0
    %4327 = vmatpush1.msra.mxu0 0.0
    %4328 = vmatprep.subr.mxu0 0.0
    %4329 = vmatpush1.msra.mxu0 0.0
    %4330 = vmatprep.subr.mxu0 0.0
    %4331 = vmatpush1.msra.mxu0 0.0
    %4332 = vmatprep.subr.mxu0 0.0
    %4333 = vmatpush1.msra.mxu0 0.0
    %4334 = vmatprep.subr.mxu0 0.0
    %4335 = vmatpush1.msra.mxu0 0.0
    %4336 = vmatprep.subr.mxu0 0.0
    %4337 = vmatpush1.msra.mxu0 0.0
    %4338 = vmatprep.subr.mxu0 0.0
    %4339 = vmatpush1.msra.mxu0 0.0
    %4340 = vmatprep.subr.mxu0 0.0
    %4341 = vmatpush1.msra.mxu0 0.0
    %4342 = vmatprep.subr.mxu0 0.0
    %4343 = vmatpush1.msra.mxu0 0.0
    %4344 = vmatprep.subr.mxu0 0.0
    %4345 = vmatpush1.msra.mxu0 0.0
    %4346 = vmatprep.subr.mxu0 0.0
    %4347 = vmatpush1.msra.mxu0 0.0
    %4348 = vmatprep.subr.mxu0 0.0
    %v4349 = vand.u32 %v29, 4294901760
    %v4350 = vsub.f32 %v29, %v4349
    %v4351 = vand.u32 %v4350, 4294901760
    %v4352 = vsub.f32 %v4350, %v4351
    %v4353 = vand.u32 %v4352, 4294901760
    %4354 = vmatpush1.msra.mxu0 %v4353
    %4355 = vmatprep.subr.mxu0 0.0
    %v4356 = vand.u32 %v28, 4294901760
    %v4357 = vsub.f32 %v28, %v4356
    %v4358 = vand.u32 %v4357, 4294901760
    %v4359 = vsub.f32 %v4357, %v4358
    %v4360 = vand.u32 %v4359, 4294901760
    %4361 = vmatpush1.msra.mxu0 %v4360
    %4362 = vmatprep.subr.mxu0 0.0
    %v4363 = vand.u32 %v27, 4294901760
    %v4364 = vsub.f32 %v27, %v4363
    %v4365 = vand.u32 %v4364, 4294901760
    %v4366 = vsub.f32 %v4364, %v4365
    %v4367 = vand.u32 %v4366, 4294901760
    %4368 = vmatpush1.msra.mxu0 %v4367
    %4369 = vmatprep.subr.mxu0 0.0
    %v4370 = vand.u32 %v26, 4294901760
    %v4371 = vsub.f32 %v26, %v4370
    %v4372 = vand.u32 %v4371, 4294901760
    %v4373 = vsub.f32 %v4371, %v4372
    %v4374 = vand.u32 %v4373, 4294901760
    %4375 = vmatpush1.msra.mxu0 %v4374
    %4376 = vmatprep.subr.mxu0 0.0
    %4377 = vmatpush2.msra.mxu0 0.0
    %4378 = vmatprep.subr.mxu0 0.0
    %4379 = vmatpush2.msra.mxu0 0.0
    %4380 = vmatprep.subr.mxu0 0.0
    %4381 = vmatpush2.msra.mxu0 0.0
    %4382 = vmatprep.subr.mxu0 0.0
    %4383 = vmatpush2.msra.mxu0 0.0
    %4384 = vmatprep.subr.mxu0 0.0
    %4385 = vmatpush2.msra.mxu0 0.0
    %4386 = vmatprep.subr.mxu0 0.0
    %4387 = vmatpush2.msra.mxu0 0.0
    %4388 = vmatprep.subr.mxu0 0.0
    %4389 = vmatpush2.msra.mxu0 0.0
    %4390 = vmatprep.subr.mxu0 0.0
    %4391 = vmatpush2.msra.mxu0 0.0
    %4392 = vmatprep.subr.mxu0 0.0
    %4393 = vmatpush2.msra.mxu0 0.0
    %4394 = vmatprep.subr.mxu0 0.0
    %4395 = vmatpush2.msra.mxu0 0.0
    %4396 = vmatprep.subr.mxu0 0.0
    %4397 = vmatpush2.msra.mxu0 0.0
    %4398 = vmatprep.subr.mxu0 0.0
    %4399 = vmatpush2.msra.mxu0 0.0
    %4400 = vmatprep.subr.mxu0 0.0
    %4401 = vmatpush2.msra.mxu0 0.0
    %4402 = vmatprep.subr.mxu0 0.0
    %4403 = vmatpush2.msra.mxu0 0.0
    %4404 = vmatprep.subr.mxu0 0.0
    %4405 = vmatpush2.msra.mxu0 0.0
    %4406 = vmatprep.subr.mxu0 0.0
    %4407 = vmatpush2.msra.mxu0 0.0
    %4408 = vmatprep.mubr.f32.mxu0 0.0
    %v4409 = vand.u32 %v4243, 4294901760
    %4410 = vmatmul.mubr.f32.gmra.mxu0 %v4409
    %v4411 = vpop.f32.mrf.mxu0
    %v4412 = vadd.f32 %v4321, %v4411
    %v4413 = vpop.f32.mrf.mxu0
    %4414 = vdwg.mxu0
    %4415 = vmatprep.subr.mxu0 0.0
    %4416 = vmatpush1.msra.mxu0 0.0
    %4417 = vmatprep.subr.mxu0 0.0
    %4418 = vmatpush1.msra.mxu0 0.0
    %4419 = vmatprep.subr.mxu0 0.0
    %4420 = vmatpush1.msra.mxu0 0.0
    %4421 = vmatprep.subr.mxu0 0.0
    %4422 = vmatpush1.msra.mxu0 0.0
    %4423 = vmatprep.subr.mxu0 0.0
    %4424 = vmatpush1.msra.mxu0 0.0
    %4425 = vmatprep.subr.mxu0 0.0
    %4426 = vmatpush1.msra.mxu0 0.0
    %4427 = vmatprep.subr.mxu0 0.0
    %4428 = vmatpush1.msra.mxu0 0.0
    %4429 = vmatprep.subr.mxu0 0.0
    %4430 = vmatpush1.msra.mxu0 0.0
    %4431 = vmatprep.subr.mxu0 0.0
    %4432 = vmatpush1.msra.mxu0 0.0
    %4433 = vmatprep.subr.mxu0 0.0
    %4434 = vmatpush1.msra.mxu0 0.0
    %4435 = vmatprep.subr.mxu0 0.0
    %4436 = vmatpush1.msra.mxu0 0.0
    %4437 = vmatprep.subr.mxu0 0.0
    %4438 = vmatpush1.msra.mxu0 0.0
    %4439 = vmatprep.subr.mxu0 0.0
    %v4440 = vand.u32 %v29, 4294901760
    %v4441 = vsub.f32 %v29, %v4440
    %4442 = vmatpush1.msra.mxu0 %v4441
    %4443 = vmatprep.subr.mxu0 0.0
    %v4444 = vand.u32 %v28, 4294901760
    %v4445 = vsub.f32 %v28, %v4444
    %4446 = vmatpush1.msra.mxu0 %v4445
    %4447 = vmatprep.subr.mxu0 0.0
    %v4448 = vand.u32 %v27, 4294901760
    %v4449 = vsub.f32 %v27, %v4448
    %4450 = vmatpush1.msra.mxu0 %v4449
    %4451 = vmatprep.subr.mxu0 0.0
    %v4452 = vand.u32 %v26, 4294901760
    %v4453 = vsub.f32 %v26, %v4452
    %4454 = vmatpush1.msra.mxu0 %v4453
    %4455 = vmatprep.subr.mxu0 0.0
    %4456 = vmatpush2.msra.mxu0 0.0
    %4457 = vmatprep.subr.mxu0 0.0
    %4458 = vmatpush2.msra.mxu0 0.0
    %4459 = vmatprep.subr.mxu0 0.0
    %4460 = vmatpush2.msra.mxu0 0.0
    %4461 = vmatprep.subr.mxu0 0.0
    %4462 = vmatpush2.msra.mxu0 0.0
    %4463 = vmatprep.subr.mxu0 0.0
    %4464 = vmatpush2.msra.mxu0 0.0
    %4465 = vmatprep.subr.mxu0 0.0
    %4466 = vmatpush2.msra.mxu0 0.0
    %4467 = vmatprep.subr.mxu0 0.0
    %4468 = vmatpush2.msra.mxu0 0.0
    %4469 = vmatprep.subr.mxu0 0.0
    %4470 = vmatpush2.msra.mxu0 0.0
    %4471 = vmatprep.subr.mxu0 0.0
    %4472 = vmatpush2.msra.mxu0 0.0
    %4473 = vmatprep.subr.mxu0 0.0
    %4474 = vmatpush2.msra.mxu0 0.0
    %4475 = vmatprep.subr.mxu0 0.0
    %4476 = vmatpush2.msra.mxu0 0.0
    %4477 = vmatprep.subr.mxu0 0.0
    %4478 = vmatpush2.msra.mxu0 0.0
    %4479 = vmatprep.subr.mxu0 0.0
    %4480 = vmatpush2.msra.mxu0 0.0
    %4481 = vmatprep.subr.mxu0 0.0
    %4482 = vmatpush2.msra.mxu0 0.0
    %4483 = vmatprep.subr.mxu0 0.0
    %4484 = vmatpush2.msra.mxu0 0.0
    %4485 = vmatprep.subr.mxu0 0.0
    %4486 = vmatpush2.msra.mxu0 0.0
    %4487 = vmatprep.mubr.f32.mxu0 0.0
    %v4488 = vand.u32 %v4243, 4294901760
    %v4489 = vsub.f32 %v4243, %v4488
    %4490 = vmatmul.mubr.f32.gmra.mxu0 %v4489
    %v4491 = vpop.f32.mrf.mxu0
    %v4492 = vadd.f32 %v4412, %v4491
    %v4493 = vpop.f32.mrf.mxu0
    %4494 = vdwg.mxu0
    %4495 = vmatprep.subr.mxu0 0.0
    %4496 = vmatpush1.msra.mxu0 0.0
    %4497 = vmatprep.subr.mxu0 0.0
    %4498 = vmatpush1.msra.mxu0 0.0
    %4499 = vmatprep.subr.mxu0 0.0
    %4500 = vmatpush1.msra.mxu0 0.0
    %4501 = vmatprep.subr.mxu0 0.0
    %4502 = vmatpush1.msra.mxu0 0.0
    %4503 = vmatprep.subr.mxu0 0.0
    %4504 = vmatpush1.msra.mxu0 0.0
    %4505 = vmatprep.subr.mxu0 0.0
    %4506 = vmatpush1.msra.mxu0 0.0
    %4507 = vmatprep.subr.mxu0 0.0
    %4508 = vmatpush1.msra.mxu0 0.0
    %4509 = vmatprep.subr.mxu0 0.0
    %4510 = vmatpush1.msra.mxu0 0.0
    %4511 = vmatprep.subr.mxu0 0.0
    %4512 = vmatpush1.msra.mxu0 0.0
    %4513 = vmatprep.subr.mxu0 0.0
    %4514 = vmatpush1.msra.mxu0 0.0
    %4515 = vmatprep.subr.mxu0 0.0
    %4516 = vmatpush1.msra.mxu0 0.0
    %4517 = vmatprep.subr.mxu0 0.0
    %4518 = vmatpush1.msra.mxu0 0.0
    %4519 = vmatprep.subr.mxu0 0.0
    %v4520 = vand.u32 %v29, 4294901760
    %4521 = vmatpush1.msra.mxu0 %v4520
    %4522 = vmatprep.subr.mxu0 0.0
    %v4523 = vand.u32 %v28, 4294901760
    %4524 = vmatpush1.msra.mxu0 %v4523
    %4525 = vmatprep.subr.mxu0 0.0
    %v4526 = vand.u32 %v27, 4294901760
    %4527 = vmatpush1.msra.mxu0 %v4526
    %4528 = vmatprep.subr.mxu0 0.0
    %v4529 = vand.u32 %v26, 4294901760
    %4530 = vmatpush1.msra.mxu0 %v4529
    %4531 = vmatprep.subr.mxu0 0.0
    %4532 = vmatpush2.msra.mxu0 0.0
    %4533 = vmatprep.subr.mxu0 0.0
    %4534 = vmatpush2.msra.mxu0 0.0
    %4535 = vmatprep.subr.mxu0 0.0
    %4536 = vmatpush2.msra.mxu0 0.0
    %4537 = vmatprep.subr.mxu0 0.0
    %4538 = vmatpush2.msra.mxu0 0.0
    %4539 = vmatprep.subr.mxu0 0.0
    %4540 = vmatpush2.msra.mxu0 0.0
    %4541 = vmatprep.subr.mxu0 0.0
    %4542 = vmatpush2.msra.mxu0 0.0
    %4543 = vmatprep.subr.mxu0 0.0
    %4544 = vmatpush2.msra.mxu0 0.0
    %4545 = vmatprep.subr.mxu0 0.0
    %4546 = vmatpush2.msra.mxu0 0.0
    %4547 = vmatprep.subr.mxu0 0.0
    %4548 = vmatpush2.msra.mxu0 0.0
    %4549 = vmatprep.subr.mxu0 0.0
    %4550 = vmatpush2.msra.mxu0 0.0
    %4551 = vmatprep.subr.mxu0 0.0
    %4552 = vmatpush2.msra.mxu0 0.0
    %4553 = vmatprep.subr.mxu0 0.0
    %4554 = vmatpush2.msra.mxu0 0.0
    %4555 = vmatprep.subr.mxu0 0.0
    %4556 = vmatpush2.msra.mxu0 0.0
    %4557 = vmatprep.subr.mxu0 0.0
    %4558 = vmatpush2.msra.mxu0 0.0
    %4559 = vmatprep.subr.mxu0 0.0
    %4560 = vmatpush2.msra.mxu0 0.0
    %4561 = vmatprep.subr.mxu0 0.0
    %4562 = vmatpush2.msra.mxu0 0.0
    %4563 = vmatprep.mubr.f32.mxu0 0.0
    %v4564 = vand.u32 %v4243, 4294901760
    %v4565 = vsub.f32 %v4243, %v4564
    %v4566 = vand.u32 %v4565, 4294901760
    %4567 = vmatmul.mubr.f32.gmra.mxu0 %v4566
    %v4568 = vpop.f32.mrf.mxu0
    %v4569 = vadd.f32 %v4492, %v4568
    %v4570 = vpop.f32.mrf.mxu0
    %4571 = vdwg.mxu0
    %4572 = vmatprep.subr.mxu0 0.0
    %4573 = vmatpush1.msra.mxu0 0.0
    %4574 = vmatprep.subr.mxu0 0.0
    %4575 = vmatpush1.msra.mxu0 0.0
    %4576 = vmatprep.subr.mxu0 0.0
    %4577 = vmatpush1.msra.mxu0 0.0
    %4578 = vmatprep.subr.mxu0 0.0
    %4579 = vmatpush1.msra.mxu0 0.0
    %4580 = vmatprep.subr.mxu0 0.0
    %4581 = vmatpush1.msra.mxu0 0.0
    %4582 = vmatprep.subr.mxu0 0.0
    %4583 = vmatpush1.msra.mxu0 0.0
    %4584 = vmatprep.subr.mxu0 0.0
    %4585 = vmatpush1.msra.mxu0 0.0
    %4586 = vmatprep.subr.mxu0 0.0
    %4587 = vmatpush1.msra.mxu0 0.0
    %4588 = vmatprep.subr.mxu0 0.0
    %4589 = vmatpush1.msra.mxu0 0.0
    %4590 = vmatprep.subr.mxu0 0.0
    %4591 = vmatpush1.msra.mxu0 0.0
    %4592 = vmatprep.subr.mxu0 0.0
    %4593 = vmatpush1.msra.mxu0 0.0
    %4594 = vmatprep.subr.mxu0 0.0
    %4595 = vmatpush1.msra.mxu0 0.0
    %4596 = vmatprep.subr.mxu0 0.0
    %v4597 = vand.u32 %v29, 4294901760
    %v4598 = vsub.f32 %v29, %v4597
    %v4599 = vand.u32 %v4598, 4294901760
    %4600 = vmatpush1.msra.mxu0 %v4599
    %4601 = vmatprep.subr.mxu0 0.0
    %v4602 = vand.u32 %v28, 4294901760
    %v4603 = vsub.f32 %v28, %v4602
    %v4604 = vand.u32 %v4603, 4294901760
    %4605 = vmatpush1.msra.mxu0 %v4604
    %4606 = vmatprep.subr.mxu0 0.0
    %v4607 = vand.u32 %v27, 4294901760
    %v4608 = vsub.f32 %v27, %v4607
    %v4609 = vand.u32 %v4608, 4294901760
    %4610 = vmatpush1.msra.mxu0 %v4609
    %4611 = vmatprep.subr.mxu0 0.0
    %v4612 = vand.u32 %v26, 4294901760
    %v4613 = vsub.f32 %v26, %v4612
    %v4614 = vand.u32 %v4613, 4294901760
    %4615 = vmatpush1.msra.mxu0 %v4614
    %4616 = vmatprep.subr.mxu0 0.0
    %4617 = vmatpush2.msra.mxu0 0.0
    %4618 = vmatprep.subr.mxu0 0.0
    %4619 = vmatpush2.msra.mxu0 0.0
    %4620 = vmatprep.subr.mxu0 0.0
    %4621 = vmatpush2.msra.mxu0 0.0
    %4622 = vmatprep.subr.mxu0 0.0
    %4623 = vmatpush2.msra.mxu0 0.0
    %4624 = vmatprep.subr.mxu0 0.0
    %4625 = vmatpush2.msra.mxu0 0.0
    %4626 = vmatprep.subr.mxu0 0.0
    %4627 = vmatpush2.msra.mxu0 0.0
    %4628 = vmatprep.subr.mxu0 0.0
    %4629 = vmatpush2.msra.mxu0 0.0
    %4630 = vmatprep.subr.mxu0 0.0
    %4631 = vmatpush2.msra.mxu0 0.0
    %4632 = vmatprep.subr.mxu0 0.0
    %4633 = vmatpush2.msra.mxu0 0.0
    %4634 = vmatprep.subr.mxu0 0.0
    %4635 = vmatpush2.msra.mxu0 0.0
    %4636 = vmatprep.subr.mxu0 0.0
    %4637 = vmatpush2.msra.mxu0 0.0
    %4638 = vmatprep.subr.mxu0 0.0
    %4639 = vmatpush2.msra.mxu0 0.0
    %4640 = vmatprep.subr.mxu0 0.0
    %4641 = vmatpush2.msra.mxu0 0.0
    %4642 = vmatprep.subr.mxu0 0.0
    %4643 = vmatpush2.msra.mxu0 0.0
    %4644 = vmatprep.subr.mxu0 0.0
    %4645 = vmatpush2.msra.mxu0 0.0
    %4646 = vmatprep.subr.mxu0 0.0
    %4647 = vmatpush2.msra.mxu0 0.0
    %4648 = vmatprep.mubr.f32.mxu0 0.0
    %v4649 = vand.u32 %v4243, 4294901760
    %4650 = vmatmul.mubr.f32.gmra.mxu0 %v4649
    %v4651 = vpop.f32.mrf.mxu0
    %v4652 = vadd.f32 %v4569, %v4651
    %v4653 = vpop.f32.mrf.mxu0
    %4654 = vdwg.mxu0
    %4655 = vmatprep.subr.mxu0 0.0
    %4656 = vmatpush1.msra.mxu0 0.0
    %4657 = vmatprep.subr.mxu0 0.0
    %4658 = vmatpush1.msra.mxu0 0.0
    %4659 = vmatprep.subr.mxu0 0.0
    %4660 = vmatpush1.msra.mxu0 0.0
    %4661 = vmatprep.subr.mxu0 0.0
    %4662 = vmatpush1.msra.mxu0 0.0
    %4663 = vmatprep.subr.mxu0 0.0
    %4664 = vmatpush1.msra.mxu0 0.0
    %4665 = vmatprep.subr.mxu0 0.0
    %4666 = vmatpush1.msra.mxu0 0.0
    %4667 = vmatprep.subr.mxu0 0.0
    %4668 = vmatpush1.msra.mxu0 0.0
    %4669 = vmatprep.subr.mxu0 0.0
    %4670 = vmatpush1.msra.mxu0 0.0
    %4671 = vmatprep.subr.mxu0 0.0
    %4672 = vmatpush1.msra.mxu0 0.0
    %4673 = vmatprep.subr.mxu0 0.0
    %4674 = vmatpush1.msra.mxu0 0.0
    %4675 = vmatprep.subr.mxu0 0.0
    %4676 = vmatpush1.msra.mxu0 0.0
    %4677 = vmatprep.subr.mxu0 0.0
    %4678 = vmatpush1.msra.mxu0 0.0
    %4679 = vmatprep.subr.mxu0 0.0
    %v4680 = vand.u32 %v29, 4294901760
    %4681 = vmatpush1.msra.mxu0 %v4680
    %4682 = vmatprep.subr.mxu0 0.0
    %v4683 = vand.u32 %v28, 4294901760
    %4684 = vmatpush1.msra.mxu0 %v4683
    %4685 = vmatprep.subr.mxu0 0.0
    %v4686 = vand.u32 %v27, 4294901760
    %4687 = vmatpush1.msra.mxu0 %v4686
    %4688 = vmatprep.subr.mxu0 0.0
    %v4689 = vand.u32 %v26, 4294901760
    %4690 = vmatpush1.msra.mxu0 %v4689
    %4691 = vmatprep.subr.mxu0 0.0
    %4692 = vmatpush2.msra.mxu0 0.0
    %4693 = vmatprep.subr.mxu0 0.0
    %4694 = vmatpush2.msra.mxu0 0.0
    %4695 = vmatprep.subr.mxu0 0.0
    %4696 = vmatpush2.msra.mxu0 0.0
    %4697 = vmatprep.subr.mxu0 0.0
    %4698 = vmatpush2.msra.mxu0 0.0
    %4699 = vmatprep.subr.mxu0 0.0
    %4700 = vmatpush2.msra.mxu0 0.0
    %4701 = vmatprep.subr.mxu0 0.0
    %4702 = vmatpush2.msra.mxu0 0.0
    %4703 = vmatprep.subr.mxu0 0.0
    %4704 = vmatpush2.msra.mxu0 0.0
    %4705 = vmatprep.subr.mxu0 0.0
    %4706 = vmatpush2.msra.mxu0 0.0
    %4707 = vmatprep.subr.mxu0 0.0
    %4708 = vmatpush2.msra.mxu0 0.0
    %4709 = vmatprep.subr.mxu0 0.0
    %4710 = vmatpush2.msra.mxu0 0.0
    %4711 = vmatprep.subr.mxu0 0.0
    %4712 = vmatpush2.msra.mxu0 0.0
    %4713 = vmatprep.subr.mxu0 0.0
    %4714 = vmatpush2.msra.mxu0 0.0
    %4715 = vmatprep.subr.mxu0 0.0
    %4716 = vmatpush2.msra.mxu0 0.0
    %4717 = vmatprep.subr.mxu0 0.0
    %4718 = vmatpush2.msra.mxu0 0.0
    %4719 = vmatprep.subr.mxu0 0.0
    %4720 = vmatpush2.msra.mxu0 0.0
    %4721 = vmatprep.subr.mxu0 0.0
    %4722 = vmatpush2.msra.mxu0 0.0
    %4723 = vmatprep.mubr.f32.mxu0 0.0
    %v4724 = vand.u32 %v4243, 4294901760
    %4725 = vmatmul.mubr.f32.gmra.mxu0 %v4724
    %v4726 = vpop.f32.mrf.mxu0
    %v4727 = vadd.f32 %v4652, %v4726
    %v4728 = vpop.f32.mrf.mxu0
    %4729 = vdwg.mxu0
    %v4730 = vadd.f32 %v965, %v4727
    %v4731 = vxor.u32 %v4730, 2147483648
    %v4732 = vmul.f32 %v4731, 1.442695
    %v4733 = vpow.pop %v4732
    %v4734 = vadd.f32 %v4733, 1.0
    %v4735 = vrcp.pop %v4734
    %v4736 = vmul.f32 1.0, %v4735
    %v4737 = vtanh.pop %v4730
    %v4738 = vmul.f32 %v4736, %v4233
    %4740 = vrot.lane.b32.xlu0 %v4737, 64
    %v4741 = vpop.permute.xlu0 %4740
    %v4743 = vmul.f32 %v4736, %v4741
    %4745 = vrot.lane.b32.xlu0 %v4743, 32
    %v4746 = vpop.permute.xlu0 %4745
    %v4748 = vadd.f32 %v4738, %v4746
    %v4749 = vtanh.pop %v4748
    %4751 = vrot.lane.b32.xlu0 %v4749, 64
    %v4752 = vpop.permute.xlu0 %4751
    %v4754 = vmul.f32 %v4736, %v4752
    %4756 = vrot.lane.b32.xlu0 %v4754, 32
    %v4757 = vpop.permute.xlu0 %4756
    %v4758 = vsel %vm3726, %v4757, 0
    %4760 = vmatprep.subr.mxu0 0.0
    %4761 = vmatpush1.msra.mxu0 0.0
    %4762 = vmatprep.subr.mxu0 0.0
    %4763 = vmatpush1.msra.mxu0 0.0
    %4764 = vmatprep.subr.mxu0 0.0
    %4765 = vmatpush1.msra.mxu0 0.0
    %4766 = vmatprep.subr.mxu0 0.0
    %4767 = vmatpush1.msra.mxu0 0.0
    %4768 = vmatprep.subr.mxu0 0.0
    %4769 = vmatpush1.msra.mxu0 0.0
    %4770 = vmatprep.subr.mxu0 0.0
    %4771 = vmatpush1.msra.mxu0 0.0
    %4772 = vmatprep.subr.mxu0 0.0
    %4773 = vmatpush1.msra.mxu0 0.0
    %4774 = vmatprep.subr.mxu0 0.0
    %4775 = vmatpush1.msra.mxu0 0.0
    %4776 = vmatprep.subr.mxu0 0.0
    %4777 = vmatpush1.msra.mxu0 0.0
    %4778 = vmatprep.subr.mxu0 0.0
    %4779 = vmatpush1.msra.mxu0 0.0
    %4780 = vmatprep.subr.mxu0 0.0
    %4781 = vmatpush1.msra.mxu0 0.0
    %4782 = vmatprep.subr.mxu0 0.0
    %4783 = vmatpush1.msra.mxu0 0.0
    %4784 = vmatprep.subr.mxu0 0.0
    %v4785 = vand.u32 %v29, 4294901760
    %4786 = vmatpush1.msra.mxu0 %v4785
    %4787 = vmatprep.subr.mxu0 0.0
    %v4788 = vand.u32 %v28, 4294901760
    %4789 = vmatpush1.msra.mxu0 %v4788
    %4790 = vmatprep.subr.mxu0 0.0
    %v4791 = vand.u32 %v27, 4294901760
    %4792 = vmatpush1.msra.mxu0 %v4791
    %4793 = vmatprep.subr.mxu0 0.0
    %v4794 = vand.u32 %v26, 4294901760
    %4795 = vmatpush1.msra.mxu0 %v4794
    %4796 = vmatprep.subr.mxu0 0.0
    %4797 = vmatpush2.msra.mxu0 0.0
    %4798 = vmatprep.subr.mxu0 0.0
    %4799 = vmatpush2.msra.mxu0 0.0
    %4800 = vmatprep.subr.mxu0 0.0
    %4801 = vmatpush2.msra.mxu0 0.0
    %4802 = vmatprep.subr.mxu0 0.0
    %4803 = vmatpush2.msra.mxu0 0.0
    %4804 = vmatprep.subr.mxu0 0.0
    %4805 = vmatpush2.msra.mxu0 0.0
    %4806 = vmatprep.subr.mxu0 0.0
    %4807 = vmatpush2.msra.mxu0 0.0
    %4808 = vmatprep.subr.mxu0 0.0
    %4809 = vmatpush2.msra.mxu0 0.0
    %4810 = vmatprep.subr.mxu0 0.0
    %4811 = vmatpush2.msra.mxu0 0.0
    %4812 = vmatprep.subr.mxu0 0.0
    %4813 = vmatpush2.msra.mxu0 0.0
    %4814 = vmatprep.subr.mxu0 0.0
    %4815 = vmatpush2.msra.mxu0 0.0
    %4816 = vmatprep.subr.mxu0 0.0
    %4817 = vmatpush2.msra.mxu0 0.0
    %4818 = vmatprep.subr.mxu0 0.0
    %4819 = vmatpush2.msra.mxu0 0.0
    %4820 = vmatprep.subr.mxu0 0.0
    %4821 = vmatpush2.msra.mxu0 0.0
    %4822 = vmatprep.subr.mxu0 0.0
    %4823 = vmatpush2.msra.mxu0 0.0
    %4824 = vmatprep.subr.mxu0 0.0
    %4825 = vmatpush2.msra.mxu0 0.0
    %4826 = vmatprep.subr.mxu0 0.0
    %4827 = vmatpush2.msra.mxu0 0.0
    %4828 = vmatprep.mubr.f32.mxu0 0.0
    %v4829 = vand.u32 %v4758, 4294901760
    %v4830 = vsub.f32 %v4758, %v4829
    %v4831 = vand.u32 %v4830, 4294901760
    %v4832 = vsub.f32 %v4830, %v4831
    %v4833 = vand.u32 %v4832, 4294901760
    %4834 = vmatmul.mubr.f32.gmra.mxu0 %v4833
    %v4835 = vpop.f32.mrf.mxu0
    %v4836 = vadd.f32 0.0, %v4835
    %v4837 = vpop.f32.mrf.mxu0
    %4838 = vdwg.mxu0
    %4839 = vmatprep.subr.mxu0 0.0
    %4840 = vmatpush1.msra.mxu0 0.0
    %4841 = vmatprep.subr.mxu0 0.0
    %4842 = vmatpush1.msra.mxu0 0.0
    %4843 = vmatprep.subr.mxu0 0.0
    %4844 = vmatpush1.msra.mxu0 0.0
    %4845 = vmatprep.subr.mxu0 0.0
    %4846 = vmatpush1.msra.mxu0 0.0
    %4847 = vmatprep.subr.mxu0 0.0
    %4848 = vmatpush1.msra.mxu0 0.0
    %4849 = vmatprep.subr.mxu0 0.0
    %4850 = vmatpush1.msra.mxu0 0.0
    %4851 = vmatprep.subr.mxu0 0.0
    %4852 = vmatpush1.msra.mxu0 0.0
    %4853 = vmatprep.subr.mxu0 0.0
    %4854 = vmatpush1.msra.mxu0 0.0
    %4855 = vmatprep.subr.mxu0 0.0
    %4856 = vmatpush1.msra.mxu0 0.0
    %4857 = vmatprep.subr.mxu0 0.0
    %4858 = vmatpush1.msra.mxu0 0.0
    %4859 = vmatprep.subr.mxu0 0.0
    %4860 = vmatpush1.msra.mxu0 0.0
    %4861 = vmatprep.subr.mxu0 0.0
    %4862 = vmatpush1.msra.mxu0 0.0
    %4863 = vmatprep.subr.mxu0 0.0
    %v4864 = vand.u32 %v29, 4294901760
    %v4865 = vsub.f32 %v29, %v4864
    %v4866 = vand.u32 %v4865, 4294901760
    %v4867 = vsub.f32 %v4865, %v4866
    %v4868 = vand.u32 %v4867, 4294901760
    %4869 = vmatpush1.msra.mxu0 %v4868
    %4870 = vmatprep.subr.mxu0 0.0
    %v4871 = vand.u32 %v28, 4294901760
    %v4872 = vsub.f32 %v28, %v4871
    %v4873 = vand.u32 %v4872, 4294901760
    %v4874 = vsub.f32 %v4872, %v4873
    %v4875 = vand.u32 %v4874, 4294901760
    %4876 = vmatpush1.msra.mxu0 %v4875
    %4877 = vmatprep.subr.mxu0 0.0
    %v4878 = vand.u32 %v27, 4294901760
    %v4879 = vsub.f32 %v27, %v4878
    %v4880 = vand.u32 %v4879, 4294901760
    %v4881 = vsub.f32 %v4879, %v4880
    %v4882 = vand.u32 %v4881, 4294901760
    %4883 = vmatpush1.msra.mxu0 %v4882
    %4884 = vmatprep.subr.mxu0 0.0
    %v4885 = vand.u32 %v26, 4294901760
    %v4886 = vsub.f32 %v26, %v4885
    %v4887 = vand.u32 %v4886, 4294901760
    %v4888 = vsub.f32 %v4886, %v4887
    %v4889 = vand.u32 %v4888, 4294901760
    %4890 = vmatpush1.msra.mxu0 %v4889
    %4891 = vmatprep.subr.mxu0 0.0
    %4892 = vmatpush2.msra.mxu0 0.0
    %4893 = vmatprep.subr.mxu0 0.0
    %4894 = vmatpush2.msra.mxu0 0.0
    %4895 = vmatprep.subr.mxu0 0.0
    %4896 = vmatpush2.msra.mxu0 0.0
    %4897 = vmatprep.subr.mxu0 0.0
    %4898 = vmatpush2.msra.mxu0 0.0
    %4899 = vmatprep.subr.mxu0 0.0
    %4900 = vmatpush2.msra.mxu0 0.0
    %4901 = vmatprep.subr.mxu0 0.0
    %4902 = vmatpush2.msra.mxu0 0.0
    %4903 = vmatprep.subr.mxu0 0.0
    %4904 = vmatpush2.msra.mxu0 0.0
    %4905 = vmatprep.subr.mxu0 0.0
    %4906 = vmatpush2.msra.mxu0 0.0
    %4907 = vmatprep.subr.mxu0 0.0
    %4908 = vmatpush2.msra.mxu0 0.0
    %4909 = vmatprep.subr.mxu0 0.0
    %4910 = vmatpush2.msra.mxu0 0.0
    %4911 = vmatprep.subr.mxu0 0.0
    %4912 = vmatpush2.msra.mxu0 0.0
    %4913 = vmatprep.subr.mxu0 0.0
    %4914 = vmatpush2.msra.mxu0 0.0
    %4915 = vmatprep.subr.mxu0 0.0
    %4916 = vmatpush2.msra.mxu0 0.0
    %4917 = vmatprep.subr.mxu0 0.0
    %4918 = vmatpush2.msra.mxu0 0.0
    %4919 = vmatprep.subr.mxu0 0.0
    %4920 = vmatpush2.msra.mxu0 0.0
    %4921 = vmatprep.subr.mxu0 0.0
    %4922 = vmatpush2.msra.mxu0 0.0
    %4923 = vmatprep.mubr.f32.mxu0 0.0
    %v4924 = vand.u32 %v4758, 4294901760
    %4925 = vmatmul.mubr.f32.gmra.mxu0 %v4924
    %v4926 = vpop.f32.mrf.mxu0
    %v4927 = vadd.f32 %v4836, %v4926
    %v4928 = vpop.f32.mrf.mxu0
    %4929 = vdwg.mxu0
    %4930 = vmatprep.subr.mxu0 0.0
    %4931 = vmatpush1.msra.mxu0 0.0
    %4932 = vmatprep.subr.mxu0 0.0
    %4933 = vmatpush1.msra.mxu0 0.0
    %4934 = vmatprep.subr.mxu0 0.0
    %4935 = vmatpush1.msra.mxu0 0.0
    %4936 = vmatprep.subr.mxu0 0.0
    %4937 = vmatpush1.msra.mxu0 0.0
    %4938 = vmatprep.subr.mxu0 0.0
    %4939 = vmatpush1.msra.mxu0 0.0
    %4940 = vmatprep.subr.mxu0 0.0
    %4941 = vmatpush1.msra.mxu0 0.0
    %4942 = vmatprep.subr.mxu0 0.0
    %4943 = vmatpush1.msra.mxu0 0.0
    %4944 = vmatprep.subr.mxu0 0.0
    %4945 = vmatpush1.msra.mxu0 0.0
    %4946 = vmatprep.subr.mxu0 0.0
    %4947 = vmatpush1.msra.mxu0 0.0
    %4948 = vmatprep.subr.mxu0 0.0
    %4949 = vmatpush1.msra.mxu0 0.0
    %4950 = vmatprep.subr.mxu0 0.0
    %4951 = vmatpush1.msra.mxu0 0.0
    %4952 = vmatprep.subr.mxu0 0.0
    %4953 = vmatpush1.msra.mxu0 0.0
    %4954 = vmatprep.subr.mxu0 0.0
    %v4955 = vand.u32 %v29, 4294901760
    %v4956 = vsub.f32 %v29, %v4955
    %4957 = vmatpush1.msra.mxu0 %v4956
    %4958 = vmatprep.subr.mxu0 0.0
    %v4959 = vand.u32 %v28, 4294901760
    %v4960 = vsub.f32 %v28, %v4959
    %4961 = vmatpush1.msra.mxu0 %v4960
    %4962 = vmatprep.subr.mxu0 0.0
    %v4963 = vand.u32 %v27, 4294901760
    %v4964 = vsub.f32 %v27, %v4963
    %4965 = vmatpush1.msra.mxu0 %v4964
    %4966 = vmatprep.subr.mxu0 0.0
    %v4967 = vand.u32 %v26, 4294901760
    %v4968 = vsub.f32 %v26, %v4967
    %4969 = vmatpush1.msra.mxu0 %v4968
    %4970 = vmatprep.subr.mxu0 0.0
    %4971 = vmatpush2.msra.mxu0 0.0
    %4972 = vmatprep.subr.mxu0 0.0
    %4973 = vmatpush2.msra.mxu0 0.0
    %4974 = vmatprep.subr.mxu0 0.0
    %4975 = vmatpush2.msra.mxu0 0.0
    %4976 = vmatprep.subr.mxu0 0.0
    %4977 = vmatpush2.msra.mxu0 0.0
    %4978 = vmatprep.subr.mxu0 0.0
    %4979 = vmatpush2.msra.mxu0 0.0
    %4980 = vmatprep.subr.mxu0 0.0
    %4981 = vmatpush2.msra.mxu0 0.0
    %4982 = vmatprep.subr.mxu0 0.0
    %4983 = vmatpush2.msra.mxu0 0.0
    %4984 = vmatprep.subr.mxu0 0.0
    %4985 = vmatpush2.msra.mxu0 0.0
    %4986 = vmatprep.subr.mxu0 0.0
    %4987 = vmatpush2.msra.mxu0 0.0
    %4988 = vmatprep.subr.mxu0 0.0
    %4989 = vmatpush2.msra.mxu0 0.0
    %4990 = vmatprep.subr.mxu0 0.0
    %4991 = vmatpush2.msra.mxu0 0.0
    %4992 = vmatprep.subr.mxu0 0.0
    %4993 = vmatpush2.msra.mxu0 0.0
    %4994 = vmatprep.subr.mxu0 0.0
    %4995 = vmatpush2.msra.mxu0 0.0
    %4996 = vmatprep.subr.mxu0 0.0
    %4997 = vmatpush2.msra.mxu0 0.0
    %4998 = vmatprep.subr.mxu0 0.0
    %4999 = vmatpush2.msra.mxu0 0.0
    %5000 = vmatprep.subr.mxu0 0.0
    %5001 = vmatpush2.msra.mxu0 0.0
    %5002 = vmatprep.mubr.f32.mxu0 0.0
    %v5003 = vand.u32 %v4758, 4294901760
    %v5004 = vsub.f32 %v4758, %v5003
    %5005 = vmatmul.mubr.f32.gmra.mxu0 %v5004
    %v5006 = vpop.f32.mrf.mxu0
    %v5007 = vadd.f32 %v4927, %v5006
    %v5008 = vpop.f32.mrf.mxu0
    %5009 = vdwg.mxu0
    %5010 = vmatprep.subr.mxu0 0.0
    %5011 = vmatpush1.msra.mxu0 0.0
    %5012 = vmatprep.subr.mxu0 0.0
    %5013 = vmatpush1.msra.mxu0 0.0
    %5014 = vmatprep.subr.mxu0 0.0
    %5015 = vmatpush1.msra.mxu0 0.0
    %5016 = vmatprep.subr.mxu0 0.0
    %5017 = vmatpush1.msra.mxu0 0.0
    %5018 = vmatprep.subr.mxu0 0.0
    %5019 = vmatpush1.msra.mxu0 0.0
    %5020 = vmatprep.subr.mxu0 0.0
    %5021 = vmatpush1.msra.mxu0 0.0
    %5022 = vmatprep.subr.mxu0 0.0
    %5023 = vmatpush1.msra.mxu0 0.0
    %5024 = vmatprep.subr.mxu0 0.0
    %5025 = vmatpush1.msra.mxu0 0.0
    %5026 = vmatprep.subr.mxu0 0.0
    %5027 = vmatpush1.msra.mxu0 0.0
    %5028 = vmatprep.subr.mxu0 0.0
    %5029 = vmatpush1.msra.mxu0 0.0
    %5030 = vmatprep.subr.mxu0 0.0
    %5031 = vmatpush1.msra.mxu0 0.0
    %5032 = vmatprep.subr.mxu0 0.0
    %5033 = vmatpush1.msra.mxu0 0.0
    %5034 = vmatprep.subr.mxu0 0.0
    %v5035 = vand.u32 %v29, 4294901760
    %5036 = vmatpush1.msra.mxu0 %v5035
    %5037 = vmatprep.subr.mxu0 0.0
    %v5038 = vand.u32 %v28, 4294901760
    %5039 = vmatpush1.msra.mxu0 %v5038
    %5040 = vmatprep.subr.mxu0 0.0
    %v5041 = vand.u32 %v27, 4294901760
    %5042 = vmatpush1.msra.mxu0 %v5041
    %5043 = vmatprep.subr.mxu0 0.0
    %v5044 = vand.u32 %v26, 4294901760
    %5045 = vmatpush1.msra.mxu0 %v5044
    %5046 = vmatprep.subr.mxu0 0.0
    %5047 = vmatpush2.msra.mxu0 0.0
    %5048 = vmatprep.subr.mxu0 0.0
    %5049 = vmatpush2.msra.mxu0 0.0
    %5050 = vmatprep.subr.mxu0 0.0
    %5051 = vmatpush2.msra.mxu0 0.0
    %5052 = vmatprep.subr.mxu0 0.0
    %5053 = vmatpush2.msra.mxu0 0.0
    %5054 = vmatprep.subr.mxu0 0.0
    %5055 = vmatpush2.msra.mxu0 0.0
    %5056 = vmatprep.subr.mxu0 0.0
    %5057 = vmatpush2.msra.mxu0 0.0
    %5058 = vmatprep.subr.mxu0 0.0
    %5059 = vmatpush2.msra.mxu0 0.0
    %5060 = vmatprep.subr.mxu0 0.0
    %5061 = vmatpush2.msra.mxu0 0.0
    %5062 = vmatprep.subr.mxu0 0.0
    %5063 = vmatpush2.msra.mxu0 0.0
    %5064 = vmatprep.subr.mxu0 0.0
    %5065 = vmatpush2.msra.mxu0 0.0
    %5066 = vmatprep.subr.mxu0 0.0
    %5067 = vmatpush2.msra.mxu0 0.0
    %5068 = vmatprep.subr.mxu0 0.0
    %5069 = vmatpush2.msra.mxu0 0.0
    %5070 = vmatprep.subr.mxu0 0.0
    %5071 = vmatpush2.msra.mxu0 0.0
    %5072 = vmatprep.subr.mxu0 0.0
    %5073 = vmatpush2.msra.mxu0 0.0
    %5074 = vmatprep.subr.mxu0 0.0
    %5075 = vmatpush2.msra.mxu0 0.0
    %5076 = vmatprep.subr.mxu0 0.0
    %5077 = vmatpush2.msra.mxu0 0.0
    %5078 = vmatprep.mubr.f32.mxu0 0.0
    %v5079 = vand.u32 %v4758, 4294901760
    %v5080 = vsub.f32 %v4758, %v5079
    %v5081 = vand.u32 %v5080, 4294901760
    %5082 = vmatmul.mubr.f32.gmra.mxu0 %v5081
    %v5083 = vpop.f32.mrf.mxu0
    %v5084 = vadd.f32 %v5007, %v5083
    %v5085 = vpop.f32.mrf.mxu0
    %5086 = vdwg.mxu0
    %5087 = vmatprep.subr.mxu0 0.0
    %5088 = vmatpush1.msra.mxu0 0.0
    %5089 = vmatprep.subr.mxu0 0.0
    %5090 = vmatpush1.msra.mxu0 0.0
    %5091 = vmatprep.subr.mxu0 0.0
    %5092 = vmatpush1.msra.mxu0 0.0
    %5093 = vmatprep.subr.mxu0 0.0
    %5094 = vmatpush1.msra.mxu0 0.0
    %5095 = vmatprep.subr.mxu0 0.0
    %5096 = vmatpush1.msra.mxu0 0.0
    %5097 = vmatprep.subr.mxu0 0.0
    %5098 = vmatpush1.msra.mxu0 0.0
    %5099 = vmatprep.subr.mxu0 0.0
    %5100 = vmatpush1.msra.mxu0 0.0
    %5101 = vmatprep.subr.mxu0 0.0
    %5102 = vmatpush1.msra.mxu0 0.0
    %5103 = vmatprep.subr.mxu0 0.0
    %5104 = vmatpush1.msra.mxu0 0.0
    %5105 = vmatprep.subr.mxu0 0.0
    %5106 = vmatpush1.msra.mxu0 0.0
    %5107 = vmatprep.subr.mxu0 0.0
    %5108 = vmatpush1.msra.mxu0 0.0
    %5109 = vmatprep.subr.mxu0 0.0
    %5110 = vmatpush1.msra.mxu0 0.0
    %5111 = vmatprep.subr.mxu0 0.0
    %v5112 = vand.u32 %v29, 4294901760
    %v5113 = vsub.f32 %v29, %v5112
    %v5114 = vand.u32 %v5113, 4294901760
    %5115 = vmatpush1.msra.mxu0 %v5114
    %5116 = vmatprep.subr.mxu0 0.0
    %v5117 = vand.u32 %v28, 4294901760
    %v5118 = vsub.f32 %v28, %v5117
    %v5119 = vand.u32 %v5118, 4294901760
    %5120 = vmatpush1.msra.mxu0 %v5119
    %5121 = vmatprep.subr.mxu0 0.0
    %v5122 = vand.u32 %v27, 4294901760
    %v5123 = vsub.f32 %v27, %v5122
    %v5124 = vand.u32 %v5123, 4294901760
    %5125 = vmatpush1.msra.mxu0 %v5124
    %5126 = vmatprep.subr.mxu0 0.0
    %v5127 = vand.u32 %v26, 4294901760
    %v5128 = vsub.f32 %v26, %v5127
    %v5129 = vand.u32 %v5128, 4294901760
    %5130 = vmatpush1.msra.mxu0 %v5129
    %5131 = vmatprep.subr.mxu0 0.0
    %5132 = vmatpush2.msra.mxu0 0.0
    %5133 = vmatprep.subr.mxu0 0.0
    %5134 = vmatpush2.msra.mxu0 0.0
    %5135 = vmatprep.subr.mxu0 0.0
    %5136 = vmatpush2.msra.mxu0 0.0
    %5137 = vmatprep.subr.mxu0 0.0
    %5138 = vmatpush2.msra.mxu0 0.0
    %5139 = vmatprep.subr.mxu0 0.0
    %5140 = vmatpush2.msra.mxu0 0.0
    %5141 = vmatprep.subr.mxu0 0.0
    %5142 = vmatpush2.msra.mxu0 0.0
    %5143 = vmatprep.subr.mxu0 0.0
    %5144 = vmatpush2.msra.mxu0 0.0
    %5145 = vmatprep.subr.mxu0 0.0
    %5146 = vmatpush2.msra.mxu0 0.0
    %5147 = vmatprep.subr.mxu0 0.0
    %5148 = vmatpush2.msra.mxu0 0.0
    %5149 = vmatprep.subr.mxu0 0.0
    %5150 = vmatpush2.msra.mxu0 0.0
    %5151 = vmatprep.subr.mxu0 0.0
    %5152 = vmatpush2.msra.mxu0 0.0
    %5153 = vmatprep.subr.mxu0 0.0
    %5154 = vmatpush2.msra.mxu0 0.0
    %5155 = vmatprep.subr.mxu0 0.0
    %5156 = vmatpush2.msra.mxu0 0.0
    %5157 = vmatprep.subr.mxu0 0.0
    %5158 = vmatpush2.msra.mxu0 0.0
    %5159 = vmatprep.subr.mxu0 0.0
    %5160 = vmatpush2.msra.mxu0 0.0
    %5161 = vmatprep.subr.mxu0 0.0
    %5162 = vmatpush2.msra.mxu0 0.0
    %5163 = vmatprep.mubr.f32.mxu0 0.0
    %v5164 = vand.u32 %v4758, 4294901760
    %5165 = vmatmul.mubr.f32.gmra.mxu0 %v5164
    %v5166 = vpop.f32.mrf.mxu0
    %v5167 = vadd.f32 %v5084, %v5166
    %v5168 = vpop.f32.mrf.mxu0
    %5169 = vdwg.mxu0
    %5170 = vmatprep.subr.mxu0 0.0
    %5171 = vmatpush1.msra.mxu0 0.0
    %5172 = vmatprep.subr.mxu0 0.0
    %5173 = vmatpush1.msra.mxu0 0.0
    %5174 = vmatprep.subr.mxu0 0.0
    %5175 = vmatpush1.msra.mxu0 0.0
    %5176 = vmatprep.subr.mxu0 0.0
    %5177 = vmatpush1.msra.mxu0 0.0
    %5178 = vmatprep.subr.mxu0 0.0
    %5179 = vmatpush1.msra.mxu0 0.0
    %5180 = vmatprep.subr.mxu0 0.0
    %5181 = vmatpush1.msra.mxu0 0.0
    %5182 = vmatprep.subr.mxu0 0.0
    %5183 = vmatpush1.msra.mxu0 0.0
    %5184 = vmatprep.subr.mxu0 0.0
    %5185 = vmatpush1.msra.mxu0 0.0
    %5186 = vmatprep.subr.mxu0 0.0
    %5187 = vmatpush1.msra.mxu0 0.0
    %5188 = vmatprep.subr.mxu0 0.0
    %5189 = vmatpush1.msra.mxu0 0.0
    %5190 = vmatprep.subr.mxu0 0.0
    %5191 = vmatpush1.msra.mxu0 0.0
    %5192 = vmatprep.subr.mxu0 0.0
    %5193 = vmatpush1.msra.mxu0 0.0
    %5194 = vmatprep.subr.mxu0 0.0
    %v5195 = vand.u32 %v29, 4294901760
    %5196 = vmatpush1.msra.mxu0 %v5195
    %5197 = vmatprep.subr.mxu0 0.0
    %v5198 = vand.u32 %v28, 4294901760
    %5199 = vmatpush1.msra.mxu0 %v5198
    %5200 = vmatprep.subr.mxu0 0.0
    %v5201 = vand.u32 %v27, 4294901760
    %5202 = vmatpush1.msra.mxu0 %v5201
    %5203 = vmatprep.subr.mxu0 0.0
    %v5204 = vand.u32 %v26, 4294901760
    %5205 = vmatpush1.msra.mxu0 %v5204
    %5206 = vmatprep.subr.mxu0 0.0
    %5207 = vmatpush2.msra.mxu0 0.0
    %5208 = vmatprep.subr.mxu0 0.0
    %5209 = vmatpush2.msra.mxu0 0.0
    %5210 = vmatprep.subr.mxu0 0.0
    %5211 = vmatpush2.msra.mxu0 0.0
    %5212 = vmatprep.subr.mxu0 0.0
    %5213 = vmatpush2.msra.mxu0 0.0
    %5214 = vmatprep.subr.mxu0 0.0
    %5215 = vmatpush2.msra.mxu0 0.0
    %5216 = vmatprep.subr.mxu0 0.0
    %5217 = vmatpush2.msra.mxu0 0.0
    %5218 = vmatprep.subr.mxu0 0.0
    %5219 = vmatpush2.msra.mxu0 0.0
    %5220 = vmatprep.subr.mxu0 0.0
    %5221 = vmatpush2.msra.mxu0 0.0
    %5222 = vmatprep.subr.mxu0 0.0
    %5223 = vmatpush2.msra.mxu0 0.0
    %5224 = vmatprep.subr.mxu0 0.0
    %5225 = vmatpush2.msra.mxu0 0.0
    %5226 = vmatprep.subr.mxu0 0.0
    %5227 = vmatpush2.msra.mxu0 0.0
    %5228 = vmatprep.subr.mxu0 0.0
    %5229 = vmatpush2.msra.mxu0 0.0
    %5230 = vmatprep.subr.mxu0 0.0
    %5231 = vmatpush2.msra.mxu0 0.0
    %5232 = vmatprep.subr.mxu0 0.0
    %5233 = vmatpush2.msra.mxu0 0.0
    %5234 = vmatprep.subr.mxu0 0.0
    %5235 = vmatpush2.msra.mxu0 0.0
    %5236 = vmatprep.subr.mxu0 0.0
    %5237 = vmatpush2.msra.mxu0 0.0
    %5238 = vmatprep.mubr.f32.mxu0 0.0
    %v5239 = vand.u32 %v4758, 4294901760
    %5240 = vmatmul.mubr.f32.gmra.mxu0 %v5239
    %v5241 = vpop.f32.mrf.mxu0
    %v5242 = vadd.f32 %v5167, %v5241
    %v5243 = vpop.f32.mrf.mxu0
    %5244 = vdwg.mxu0
    %v5245 = vadd.f32 %v1425, %v5242
    %v5246 = vxor.u32 %v5245, 2147483648
    %v5247 = vmul.f32 %v5246, 1.442695
    %v5248 = vpow.pop %v5247
    %v5249 = vadd.f32 %v5248, 1.0
    %v5250 = vrcp.pop %v5249
    %v5251 = vmul.f32 1.0, %v5250
    %v5252 = vtanh.pop %v5245
    %v5253 = vmul.f32 %v5251, %v4748
    %5255 = vrot.lane.b32.xlu0 %v5252, 64
    %v5256 = vpop.permute.xlu0 %5255
    %v5258 = vmul.f32 %v5251, %v5256
    %5260 = vrot.lane.b32.xlu0 %v5258, 32
    %v5261 = vpop.permute.xlu0 %5260
    %v5263 = vadd.f32 %v5253, %v5261
    %v5264 = vtanh.pop %v5263
    %5266 = vrot.lane.b32.xlu0 %v5264, 64
    %v5267 = vpop.permute.xlu0 %5266
    %v5269 = vmul.f32 %v5251, %v5267
    %5271 = vrot.lane.b32.xlu0 %v5269, 32
    %v5272 = vpop.permute.xlu0 %5271
    %v5273 = vsel %vm3726, %v5272, 0
    %5275 = vmatprep.subr.mxu0 0.0
    %5276 = vmatpush1.msra.mxu0 0.0
    %5277 = vmatprep.subr.mxu0 0.0
    %5278 = vmatpush1.msra.mxu0 0.0
    %5279 = vmatprep.subr.mxu0 0.0
    %5280 = vmatpush1.msra.mxu0 0.0
    %5281 = vmatprep.subr.mxu0 0.0
    %5282 = vmatpush1.msra.mxu0 0.0
    %5283 = vmatprep.subr.mxu0 0.0
    %5284 = vmatpush1.msra.mxu0 0.0
    %5285 = vmatprep.subr.mxu0 0.0
    %5286 = vmatpush1.msra.mxu0 0.0
    %5287 = vmatprep.subr.mxu0 0.0
    %5288 = vmatpush1.msra.mxu0 0.0
    %5289 = vmatprep.subr.mxu0 0.0
    %5290 = vmatpush1.msra.mxu0 0.0
    %5291 = vmatprep.subr.mxu0 0.0
    %5292 = vmatpush1.msra.mxu0 0.0
    %5293 = vmatprep.subr.mxu0 0.0
    %5294 = vmatpush1.msra.mxu0 0.0
    %5295 = vmatprep.subr.mxu0 0.0
    %5296 = vmatpush1.msra.mxu0 0.0
    %5297 = vmatprep.subr.mxu0 0.0
    %5298 = vmatpush1.msra.mxu0 0.0
    %5299 = vmatprep.subr.mxu0 0.0
    %v5300 = vand.u32 %v29, 4294901760
    %5301 = vmatpush1.msra.mxu0 %v5300
    %5302 = vmatprep.subr.mxu0 0.0
    %v5303 = vand.u32 %v28, 4294901760
    %5304 = vmatpush1.msra.mxu0 %v5303
    %5305 = vmatprep.subr.mxu0 0.0
    %v5306 = vand.u32 %v27, 4294901760
    %5307 = vmatpush1.msra.mxu0 %v5306
    %5308 = vmatprep.subr.mxu0 0.0
    %v5309 = vand.u32 %v26, 4294901760
    %5310 = vmatpush1.msra.mxu0 %v5309
    %5311 = vmatprep.subr.mxu0 0.0
    %5312 = vmatpush2.msra.mxu0 0.0
    %5313 = vmatprep.subr.mxu0 0.0
    %5314 = vmatpush2.msra.mxu0 0.0
    %5315 = vmatprep.subr.mxu0 0.0
    %5316 = vmatpush2.msra.mxu0 0.0
    %5317 = vmatprep.subr.mxu0 0.0
    %5318 = vmatpush2.msra.mxu0 0.0
    %5319 = vmatprep.subr.mxu0 0.0
    %5320 = vmatpush2.msra.mxu0 0.0
    %5321 = vmatprep.subr.mxu0 0.0
    %5322 = vmatpush2.msra.mxu0 0.0
    %5323 = vmatprep.subr.mxu0 0.0
    %5324 = vmatpush2.msra.mxu0 0.0
    %5325 = vmatprep.subr.mxu0 0.0
    %5326 = vmatpush2.msra.mxu0 0.0
    %5327 = vmatprep.subr.mxu0 0.0
    %5328 = vmatpush2.msra.mxu0 0.0
    %5329 = vmatprep.subr.mxu0 0.0
    %5330 = vmatpush2.msra.mxu0 0.0
    %5331 = vmatprep.subr.mxu0 0.0
    %5332 = vmatpush2.msra.mxu0 0.0
    %5333 = vmatprep.subr.mxu0 0.0
    %5334 = vmatpush2.msra.mxu0 0.0
    %5335 = vmatprep.subr.mxu0 0.0
    %5336 = vmatpush2.msra.mxu0 0.0
    %5337 = vmatprep.subr.mxu0 0.0
    %5338 = vmatpush2.msra.mxu0 0.0
    %5339 = vmatprep.subr.mxu0 0.0
    %5340 = vmatpush2.msra.mxu0 0.0
    %5341 = vmatprep.subr.mxu0 0.0
    %5342 = vmatpush2.msra.mxu0 0.0
    %5343 = vmatprep.mubr.f32.mxu0 0.0
    %v5344 = vand.u32 %v5273, 4294901760
    %v5345 = vsub.f32 %v5273, %v5344
    %v5346 = vand.u32 %v5345, 4294901760
    %v5347 = vsub.f32 %v5345, %v5346
    %v5348 = vand.u32 %v5347, 4294901760
    %5349 = vmatmul.mubr.f32.gmra.mxu0 %v5348
    %v5350 = vpop.f32.mrf.mxu0
    %v5351 = vadd.f32 0.0, %v5350
    %v5352 = vpop.f32.mrf.mxu0
    %5353 = vdwg.mxu0
    %5354 = vmatprep.subr.mxu0 0.0
    %5355 = vmatpush1.msra.mxu0 0.0
    %5356 = vmatprep.subr.mxu0 0.0
    %5357 = vmatpush1.msra.mxu0 0.0
    %5358 = vmatprep.subr.mxu0 0.0
    %5359 = vmatpush1.msra.mxu0 0.0
    %5360 = vmatprep.subr.mxu0 0.0
    %5361 = vmatpush1.msra.mxu0 0.0
    %5362 = vmatprep.subr.mxu0 0.0
    %5363 = vmatpush1.msra.mxu0 0.0
    %5364 = vmatprep.subr.mxu0 0.0
    %5365 = vmatpush1.msra.mxu0 0.0
    %5366 = vmatprep.subr.mxu0 0.0
    %5367 = vmatpush1.msra.mxu0 0.0
    %5368 = vmatprep.subr.mxu0 0.0
    %5369 = vmatpush1.msra.mxu0 0.0
    %5370 = vmatprep.subr.mxu0 0.0
    %5371 = vmatpush1.msra.mxu0 0.0
    %5372 = vmatprep.subr.mxu0 0.0
    %5373 = vmatpush1.msra.mxu0 0.0
    %5374 = vmatprep.subr.mxu0 0.0
    %5375 = vmatpush1.msra.mxu0 0.0
    %5376 = vmatprep.subr.mxu0 0.0
    %5377 = vmatpush1.msra.mxu0 0.0
    %5378 = vmatprep.subr.mxu0 0.0
    %v5379 = vand.u32 %v29, 4294901760
    %v5380 = vsub.f32 %v29, %v5379
    %v5381 = vand.u32 %v5380, 4294901760
    %v5382 = vsub.f32 %v5380, %v5381
    %v5383 = vand.u32 %v5382, 4294901760
    %5384 = vmatpush1.msra.mxu0 %v5383
    %5385 = vmatprep.subr.mxu0 0.0
    %v5386 = vand.u32 %v28, 4294901760
    %v5387 = vsub.f32 %v28, %v5386
    %v5388 = vand.u32 %v5387, 4294901760
    %v5389 = vsub.f32 %v5387, %v5388
    %v5390 = vand.u32 %v5389, 4294901760
    %5391 = vmatpush1.msra.mxu0 %v5390
    %5392 = vmatprep.subr.mxu0 0.0
    %v5393 = vand.u32 %v27, 4294901760
    %v5394 = vsub.f32 %v27, %v5393
    %v5395 = vand.u32 %v5394, 4294901760
    %v5396 = vsub.f32 %v5394, %v5395
    %v5397 = vand.u32 %v5396, 4294901760
    %5398 = vmatpush1.msra.mxu0 %v5397
    %5399 = vmatprep.subr.mxu0 0.0
    %v5400 = vand.u32 %v26, 4294901760
    %v5401 = vsub.f32 %v26, %v5400
    %v5402 = vand.u32 %v5401, 4294901760
    %v5403 = vsub.f32 %v5401, %v5402
    %v5404 = vand.u32 %v5403, 4294901760
    %5405 = vmatpush1.msra.mxu0 %v5404
    %5406 = vmatprep.subr.mxu0 0.0
    %5407 = vmatpush2.msra.mxu0 0.0
    %5408 = vmatprep.subr.mxu0 0.0
    %5409 = vmatpush2.msra.mxu0 0.0
    %5410 = vmatprep.subr.mxu0 0.0
    %5411 = vmatpush2.msra.mxu0 0.0
    %5412 = vmatprep.subr.mxu0 0.0
    %5413 = vmatpush2.msra.mxu0 0.0
    %5414 = vmatprep.subr.mxu0 0.0
    %5415 = vmatpush2.msra.mxu0 0.0
    %5416 = vmatprep.subr.mxu0 0.0
    %5417 = vmatpush2.msra.mxu0 0.0
    %5418 = vmatprep.subr.mxu0 0.0
    %5419 = vmatpush2.msra.mxu0 0.0
    %5420 = vmatprep.subr.mxu0 0.0
    %5421 = vmatpush2.msra.mxu0 0.0
    %5422 = vmatprep.subr.mxu0 0.0
    %5423 = vmatpush2.msra.mxu0 0.0
    %5424 = vmatprep.subr.mxu0 0.0
    %5425 = vmatpush2.msra.mxu0 0.0
    %5426 = vmatprep.subr.mxu0 0.0
    %5427 = vmatpush2.msra.mxu0 0.0
    %5428 = vmatprep.subr.mxu0 0.0
    %5429 = vmatpush2.msra.mxu0 0.0
    %5430 = vmatprep.subr.mxu0 0.0
    %5431 = vmatpush2.msra.mxu0 0.0
    %5432 = vmatprep.subr.mxu0 0.0
    %5433 = vmatpush2.msra.mxu0 0.0
    %5434 = vmatprep.subr.mxu0 0.0
    %5435 = vmatpush2.msra.mxu0 0.0
    %5436 = vmatprep.subr.mxu0 0.0
    %5437 = vmatpush2.msra.mxu0 0.0
    %5438 = vmatprep.mubr.f32.mxu0 0.0
    %v5439 = vand.u32 %v5273, 4294901760
    %5440 = vmatmul.mubr.f32.gmra.mxu0 %v5439
    %v5441 = vpop.f32.mrf.mxu0
    %v5442 = vadd.f32 %v5351, %v5441
    %v5443 = vpop.f32.mrf.mxu0
    %5444 = vdwg.mxu0
    %5445 = vmatprep.subr.mxu0 0.0
    %5446 = vmatpush1.msra.mxu0 0.0
    %5447 = vmatprep.subr.mxu0 0.0
    %5448 = vmatpush1.msra.mxu0 0.0
    %5449 = vmatprep.subr.mxu0 0.0
    %5450 = vmatpush1.msra.mxu0 0.0
    %5451 = vmatprep.subr.mxu0 0.0
    %5452 = vmatpush1.msra.mxu0 0.0
    %5453 = vmatprep.subr.mxu0 0.0
    %5454 = vmatpush1.msra.mxu0 0.0
    %5455 = vmatprep.subr.mxu0 0.0
    %5456 = vmatpush1.msra.mxu0 0.0
    %5457 = vmatprep.subr.mxu0 0.0
    %5458 = vmatpush1.msra.mxu0 0.0
    %5459 = vmatprep.subr.mxu0 0.0
    %5460 = vmatpush1.msra.mxu0 0.0
    %5461 = vmatprep.subr.mxu0 0.0
    %5462 = vmatpush1.msra.mxu0 0.0
    %5463 = vmatprep.subr.mxu0 0.0
    %5464 = vmatpush1.msra.mxu0 0.0
    %5465 = vmatprep.subr.mxu0 0.0
    %5466 = vmatpush1.msra.mxu0 0.0
    %5467 = vmatprep.subr.mxu0 0.0
    %5468 = vmatpush1.msra.mxu0 0.0
    %5469 = vmatprep.subr.mxu0 0.0
    %v5470 = vand.u32 %v29, 4294901760
    %v5471 = vsub.f32 %v29, %v5470
    %5472 = vmatpush1.msra.mxu0 %v5471
    %5473 = vmatprep.subr.mxu0 0.0
    %v5474 = vand.u32 %v28, 4294901760
    %v5475 = vsub.f32 %v28, %v5474
    %5476 = vmatpush1.msra.mxu0 %v5475
    %5477 = vmatprep.subr.mxu0 0.0
    %v5478 = vand.u32 %v27, 4294901760
    %v5479 = vsub.f32 %v27, %v5478
    %5480 = vmatpush1.msra.mxu0 %v5479
    %5481 = vmatprep.subr.mxu0 0.0
    %v5482 = vand.u32 %v26, 4294901760
    %v5483 = vsub.f32 %v26, %v5482
    %5484 = vmatpush1.msra.mxu0 %v5483
    %5485 = vmatprep.subr.mxu0 0.0
    %5486 = vmatpush2.msra.mxu0 0.0
    %5487 = vmatprep.subr.mxu0 0.0
    %5488 = vmatpush2.msra.mxu0 0.0
    %5489 = vmatprep.subr.mxu0 0.0
    %5490 = vmatpush2.msra.mxu0 0.0
    %5491 = vmatprep.subr.mxu0 0.0
    %5492 = vmatpush2.msra.mxu0 0.0
    %5493 = vmatprep.subr.mxu0 0.0
    %5494 = vmatpush2.msra.mxu0 0.0
    %5495 = vmatprep.subr.mxu0 0.0
    %5496 = vmatpush2.msra.mxu0 0.0
    %5497 = vmatprep.subr.mxu0 0.0
    %5498 = vmatpush2.msra.mxu0 0.0
    %5499 = vmatprep.subr.mxu0 0.0
    %5500 = vmatpush2.msra.mxu0 0.0
    %5501 = vmatprep.subr.mxu0 0.0
    %5502 = vmatpush2.msra.mxu0 0.0
    %5503 = vmatprep.subr.mxu0 0.0
    %5504 = vmatpush2.msra.mxu0 0.0
    %5505 = vmatprep.subr.mxu0 0.0
    %5506 = vmatpush2.msra.mxu0 0.0
    %5507 = vmatprep.subr.mxu0 0.0
    %5508 = vmatpush2.msra.mxu0 0.0
    %5509 = vmatprep.subr.mxu0 0.0
    %5510 = vmatpush2.msra.mxu0 0.0
    %5511 = vmatprep.subr.mxu0 0.0
    %5512 = vmatpush2.msra.mxu0 0.0
    %5513 = vmatprep.subr.mxu0 0.0
    %5514 = vmatpush2.msra.mxu0 0.0
    %5515 = vmatprep.subr.mxu0 0.0
    %5516 = vmatpush2.msra.mxu0 0.0
    %5517 = vmatprep.mubr.f32.mxu0 0.0
    %v5518 = vand.u32 %v5273, 4294901760
    %v5519 = vsub.f32 %v5273, %v5518
    %5520 = vmatmul.mubr.f32.gmra.mxu0 %v5519
    %v5521 = vpop.f32.mrf.mxu0
    %v5522 = vadd.f32 %v5442, %v5521
    %v5523 = vpop.f32.mrf.mxu0
    %5524 = vdwg.mxu0
    %5525 = vmatprep.subr.mxu0 0.0
    %5526 = vmatpush1.msra.mxu0 0.0
    %5527 = vmatprep.subr.mxu0 0.0
    %5528 = vmatpush1.msra.mxu0 0.0
    %5529 = vmatprep.subr.mxu0 0.0
    %5530 = vmatpush1.msra.mxu0 0.0
    %5531 = vmatprep.subr.mxu0 0.0
    %5532 = vmatpush1.msra.mxu0 0.0
    %5533 = vmatprep.subr.mxu0 0.0
    %5534 = vmatpush1.msra.mxu0 0.0
    %5535 = vmatprep.subr.mxu0 0.0
    %5536 = vmatpush1.msra.mxu0 0.0
    %5537 = vmatprep.subr.mxu0 0.0
    %5538 = vmatpush1.msra.mxu0 0.0
    %5539 = vmatprep.subr.mxu0 0.0
    %5540 = vmatpush1.msra.mxu0 0.0
    %5541 = vmatprep.subr.mxu0 0.0
    %5542 = vmatpush1.msra.mxu0 0.0
    %5543 = vmatprep.subr.mxu0 0.0
    %5544 = vmatpush1.msra.mxu0 0.0
    %5545 = vmatprep.subr.mxu0 0.0
    %5546 = vmatpush1.msra.mxu0 0.0
    %5547 = vmatprep.subr.mxu0 0.0
    %5548 = vmatpush1.msra.mxu0 0.0
    %5549 = vmatprep.subr.mxu0 0.0
    %v5550 = vand.u32 %v29, 4294901760
    %5551 = vmatpush1.msra.mxu0 %v5550
    %5552 = vmatprep.subr.mxu0 0.0
    %v5553 = vand.u32 %v28, 4294901760
    %5554 = vmatpush1.msra.mxu0 %v5553
    %5555 = vmatprep.subr.mxu0 0.0
    %v5556 = vand.u32 %v27, 4294901760
    %5557 = vmatpush1.msra.mxu0 %v5556
    %5558 = vmatprep.subr.mxu0 0.0
    %v5559 = vand.u32 %v26, 4294901760
    %5560 = vmatpush1.msra.mxu0 %v5559
    %5561 = vmatprep.subr.mxu0 0.0
    %5562 = vmatpush2.msra.mxu0 0.0
    %5563 = vmatprep.subr.mxu0 0.0
    %5564 = vmatpush2.msra.mxu0 0.0
    %5565 = vmatprep.subr.mxu0 0.0
    %5566 = vmatpush2.msra.mxu0 0.0
    %5567 = vmatprep.subr.mxu0 0.0
    %5568 = vmatpush2.msra.mxu0 0.0
    %5569 = vmatprep.subr.mxu0 0.0
    %5570 = vmatpush2.msra.mxu0 0.0
    %5571 = vmatprep.subr.mxu0 0.0
    %5572 = vmatpush2.msra.mxu0 0.0
    %5573 = vmatprep.subr.mxu0 0.0
    %5574 = vmatpush2.msra.mxu0 0.0
    %5575 = vmatprep.subr.mxu0 0.0
    %5576 = vmatpush2.msra.mxu0 0.0
    %5577 = vmatprep.subr.mxu0 0.0
    %5578 = vmatpush2.msra.mxu0 0.0
    %5579 = vmatprep.subr.mxu0 0.0
    %5580 = vmatpush2.msra.mxu0 0.0
    %5581 = vmatprep.subr.mxu0 0.0
    %5582 = vmatpush2.msra.mxu0 0.0
    %5583 = vmatprep.subr.mxu0 0.0
    %5584 = vmatpush2.msra.mxu0 0.0
    %5585 = vmatprep.subr.mxu0 0.0
    %5586 = vmatpush2.msra.mxu0 0.0
    %5587 = vmatprep.subr.mxu0 0.0
    %5588 = vmatpush2.msra.mxu0 0.0
    %5589 = vmatprep.subr.mxu0 0.0
    %5590 = vmatpush2.msra.mxu0 0.0
    %5591 = vmatprep.subr.mxu0 0.0
    %5592 = vmatpush2.msra.mxu0 0.0
    %5593 = vmatprep.mubr.f32.mxu0 0.0
    %v5594 = vand.u32 %v5273, 4294901760
    %v5595 = vsub.f32 %v5273, %v5594
    %v5596 = vand.u32 %v5595, 4294901760
    %5597 = vmatmul.mubr.f32.gmra.mxu0 %v5596
    %v5598 = vpop.f32.mrf.mxu0
    %v5599 = vadd.f32 %v5522, %v5598
    %v5600 = vpop.f32.mrf.mxu0
    %5601 = vdwg.mxu0
    %5602 = vmatprep.subr.mxu0 0.0
    %5603 = vmatpush1.msra.mxu0 0.0
    %5604 = vmatprep.subr.mxu0 0.0
    %5605 = vmatpush1.msra.mxu0 0.0
    %5606 = vmatprep.subr.mxu0 0.0
    %5607 = vmatpush1.msra.mxu0 0.0
    %5608 = vmatprep.subr.mxu0 0.0
    %5609 = vmatpush1.msra.mxu0 0.0
    %5610 = vmatprep.subr.mxu0 0.0
    %5611 = vmatpush1.msra.mxu0 0.0
    %5612 = vmatprep.subr.mxu0 0.0
    %5613 = vmatpush1.msra.mxu0 0.0
    %5614 = vmatprep.subr.mxu0 0.0
    %5615 = vmatpush1.msra.mxu0 0.0
    %5616 = vmatprep.subr.mxu0 0.0
    %5617 = vmatpush1.msra.mxu0 0.0
    %5618 = vmatprep.subr.mxu0 0.0
    %5619 = vmatpush1.msra.mxu0 0.0
    %5620 = vmatprep.subr.mxu0 0.0
    %5621 = vmatpush1.msra.mxu0 0.0
    %5622 = vmatprep.subr.mxu0 0.0
    %5623 = vmatpush1.msra.mxu0 0.0
    %5624 = vmatprep.subr.mxu0 0.0
    %5625 = vmatpush1.msra.mxu0 0.0
    %5626 = vmatprep.subr.mxu0 0.0
    %v5627 = vand.u32 %v29, 4294901760
    %v5628 = vsub.f32 %v29, %v5627
    %v5629 = vand.u32 %v5628, 4294901760
    %5630 = vmatpush1.msra.mxu0 %v5629
    %5631 = vmatprep.subr.mxu0 0.0
    %v5632 = vand.u32 %v28, 4294901760
    %v5633 = vsub.f32 %v28, %v5632
    %v5634 = vand.u32 %v5633, 4294901760
    %5635 = vmatpush1.msra.mxu0 %v5634
    %5636 = vmatprep.subr.mxu0 0.0
    %v5637 = vand.u32 %v27, 4294901760
    %v5638 = vsub.f32 %v27, %v5637
    %v5639 = vand.u32 %v5638, 4294901760
    %5640 = vmatpush1.msra.mxu0 %v5639
    %5641 = vmatprep.subr.mxu0 0.0
    %v5642 = vand.u32 %v26, 4294901760
    %v5643 = vsub.f32 %v26, %v5642
    %v5644 = vand.u32 %v5643, 4294901760
    %5645 = vmatpush1.msra.mxu0 %v5644
    %5646 = vmatprep.subr.mxu0 0.0
    %5647 = vmatpush2.msra.mxu0 0.0
    %5648 = vmatprep.subr.mxu0 0.0
    %5649 = vmatpush2.msra.mxu0 0.0
    %5650 = vmatprep.subr.mxu0 0.0
    %5651 = vmatpush2.msra.mxu0 0.0
    %5652 = vmatprep.subr.mxu0 0.0
    %5653 = vmatpush2.msra.mxu0 0.0
    %5654 = vmatprep.subr.mxu0 0.0
    %5655 = vmatpush2.msra.mxu0 0.0
    %5656 = vmatprep.subr.mxu0 0.0
    %5657 = vmatpush2.msra.mxu0 0.0
    %5658 = vmatprep.subr.mxu0 0.0
    %5659 = vmatpush2.msra.mxu0 0.0
    %5660 = vmatprep.subr.mxu0 0.0
    %5661 = vmatpush2.msra.mxu0 0.0
    %5662 = vmatprep.subr.mxu0 0.0
    %5663 = vmatpush2.msra.mxu0 0.0
    %5664 = vmatprep.subr.mxu0 0.0
    %5665 = vmatpush2.msra.mxu0 0.0
    %5666 = vmatprep.subr.mxu0 0.0
    %5667 = vmatpush2.msra.mxu0 0.0
    %5668 = vmatprep.subr.mxu0 0.0
    %5669 = vmatpush2.msra.mxu0 0.0
    %5670 = vmatprep.subr.mxu0 0.0
    %5671 = vmatpush2.msra.mxu0 0.0
    %5672 = vmatprep.subr.mxu0 0.0
    %5673 = vmatpush2.msra.mxu0 0.0
    %5674 = vmatprep.subr.mxu0 0.0
    %5675 = vmatpush2.msra.mxu0 0.0
    %5676 = vmatprep.subr.mxu0 0.0
    %5677 = vmatpush2.msra.mxu0 0.0
    %5678 = vmatprep.mubr.f32.mxu0 0.0
    %v5679 = vand.u32 %v5273, 4294901760
    %5680 = vmatmul.mubr.f32.gmra.mxu0 %v5679
    %v5681 = vpop.f32.mrf.mxu0
    %v5682 = vadd.f32 %v5599, %v5681
    %v5683 = vpop.f32.mrf.mxu0
    %5684 = vdwg.mxu0
    %5685 = vmatprep.subr.mxu0 0.0
    %5686 = vmatpush1.msra.mxu0 0.0
    %5687 = vmatprep.subr.mxu0 0.0
    %5688 = vmatpush1.msra.mxu0 0.0
    %5689 = vmatprep.subr.mxu0 0.0
    %5690 = vmatpush1.msra.mxu0 0.0
    %5691 = vmatprep.subr.mxu0 0.0
    %5692 = vmatpush1.msra.mxu0 0.0
    %5693 = vmatprep.subr.mxu0 0.0
    %5694 = vmatpush1.msra.mxu0 0.0
    %5695 = vmatprep.subr.mxu0 0.0
    %5696 = vmatpush1.msra.mxu0 0.0
    %5697 = vmatprep.subr.mxu0 0.0
    %5698 = vmatpush1.msra.mxu0 0.0
    %5699 = vmatprep.subr.mxu0 0.0
    %5700 = vmatpush1.msra.mxu0 0.0
    %5701 = vmatprep.subr.mxu0 0.0
    %5702 = vmatpush1.msra.mxu0 0.0
    %5703 = vmatprep.subr.mxu0 0.0
    %5704 = vmatpush1.msra.mxu0 0.0
    %5705 = vmatprep.subr.mxu0 0.0
    %5706 = vmatpush1.msra.mxu0 0.0
    %5707 = vmatprep.subr.mxu0 0.0
    %5708 = vmatpush1.msra.mxu0 0.0
    %5709 = vmatprep.subr.mxu0 0.0
    %v5710 = vand.u32 %v29, 4294901760
    %5711 = vmatpush1.msra.mxu0 %v5710
    %5712 = vmatprep.subr.mxu0 0.0
    %v5713 = vand.u32 %v28, 4294901760
    %5714 = vmatpush1.msra.mxu0 %v5713
    %5715 = vmatprep.subr.mxu0 0.0
    %v5716 = vand.u32 %v27, 4294901760
    %5717 = vmatpush1.msra.mxu0 %v5716
    %5718 = vmatprep.subr.mxu0 0.0
    %v5719 = vand.u32 %v26, 4294901760
    %5720 = vmatpush1.msra.mxu0 %v5719
    %5721 = vmatprep.subr.mxu0 0.0
    %5722 = vmatpush2.msra.mxu0 0.0
    %5723 = vmatprep.subr.mxu0 0.0
    %5724 = vmatpush2.msra.mxu0 0.0
    %5725 = vmatprep.subr.mxu0 0.0
    %5726 = vmatpush2.msra.mxu0 0.0
    %5727 = vmatprep.subr.mxu0 0.0
    %5728 = vmatpush2.msra.mxu0 0.0
    %5729 = vmatprep.subr.mxu0 0.0
    %5730 = vmatpush2.msra.mxu0 0.0
    %5731 = vmatprep.subr.mxu0 0.0
    %5732 = vmatpush2.msra.mxu0 0.0
    %5733 = vmatprep.subr.mxu0 0.0
    %5734 = vmatpush2.msra.mxu0 0.0
    %5735 = vmatprep.subr.mxu0 0.0
    %5736 = vmatpush2.msra.mxu0 0.0
    %5737 = vmatprep.subr.mxu0 0.0
    %5738 = vmatpush2.msra.mxu0 0.0
    %5739 = vmatprep.subr.mxu0 0.0
    %5740 = vmatpush2.msra.mxu0 0.0
    %5741 = vmatprep.subr.mxu0 0.0
    %5742 = vmatpush2.msra.mxu0 0.0
    %5743 = vmatprep.subr.mxu0 0.0
    %5744 = vmatpush2.msra.mxu0 0.0
    %5745 = vmatprep.subr.mxu0 0.0
    %5746 = vmatpush2.msra.mxu0 0.0
    %5747 = vmatprep.subr.mxu0 0.0
    %5748 = vmatpush2.msra.mxu0 0.0
    %5749 = vmatprep.subr.mxu0 0.0
    %5750 = vmatpush2.msra.mxu0 0.0
    %5751 = vmatprep.subr.mxu0 0.0
    %5752 = vmatpush2.msra.mxu0 0.0
    %5753 = vmatprep.mubr.f32.mxu0 0.0
    %v5754 = vand.u32 %v5273, 4294901760
    %5755 = vmatmul.mubr.f32.gmra.mxu0 %v5754
    %v5756 = vpop.f32.mrf.mxu0
    %v5757 = vadd.f32 %v5682, %v5756
    %v5758 = vpop.f32.mrf.mxu0
    %5759 = vdwg.mxu0
    %v5760 = vadd.f32 %v1885, %v5757
    %v5761 = vxor.u32 %v5760, 2147483648
    %v5762 = vmul.f32 %v5761, 1.442695
    %v5763 = vpow.pop %v5762
    %v5764 = vadd.f32 %v5763, 1.0
    %v5765 = vrcp.pop %v5764
    %v5766 = vmul.f32 1.0, %v5765
    %v5767 = vtanh.pop %v5760
    %v5768 = vmul.f32 %v5766, %v5263
    %5770 = vrot.lane.b32.xlu0 %v5767, 64
    %v5771 = vpop.permute.xlu0 %5770
    %v5773 = vmul.f32 %v5766, %v5771
    %5775 = vrot.lane.b32.xlu0 %v5773, 32
    %v5776 = vpop.permute.xlu0 %5775
    %v5778 = vadd.f32 %v5768, %v5776
    %v5779 = vtanh.pop %v5778
    %5781 = vrot.lane.b32.xlu0 %v5779, 64
    %v5782 = vpop.permute.xlu0 %5781
    %v5784 = vmul.f32 %v5766, %v5782
    %5786 = vrot.lane.b32.xlu0 %v5784, 32
    %v5787 = vpop.permute.xlu0 %5786
    %v5788 = vsel %vm3726, %v5787, 0
    %5790 = vmatprep.subr.mxu0 0.0
    %5791 = vmatpush1.msra.mxu0 0.0
    %5792 = vmatprep.subr.mxu0 0.0
    %5793 = vmatpush1.msra.mxu0 0.0
    %5794 = vmatprep.subr.mxu0 0.0
    %5795 = vmatpush1.msra.mxu0 0.0
    %5796 = vmatprep.subr.mxu0 0.0
    %5797 = vmatpush1.msra.mxu0 0.0
    %5798 = vmatprep.subr.mxu0 0.0
    %5799 = vmatpush1.msra.mxu0 0.0
    %5800 = vmatprep.subr.mxu0 0.0
    %5801 = vmatpush1.msra.mxu0 0.0
    %5802 = vmatprep.subr.mxu0 0.0
    %5803 = vmatpush1.msra.mxu0 0.0
    %5804 = vmatprep.subr.mxu0 0.0
    %5805 = vmatpush1.msra.mxu0 0.0
    %5806 = vmatprep.subr.mxu0 0.0
    %5807 = vmatpush1.msra.mxu0 0.0
    %5808 = vmatprep.subr.mxu0 0.0
    %5809 = vmatpush1.msra.mxu0 0.0
    %5810 = vmatprep.subr.mxu0 0.0
    %5811 = vmatpush1.msra.mxu0 0.0
    %5812 = vmatprep.subr.mxu0 0.0
    %5813 = vmatpush1.msra.mxu0 0.0
    %5814 = vmatprep.subr.mxu0 0.0
    %v5815 = vand.u32 %v29, 4294901760
    %5816 = vmatpush1.msra.mxu0 %v5815
    %5817 = vmatprep.subr.mxu0 0.0
    %v5818 = vand.u32 %v28, 4294901760
    %5819 = vmatpush1.msra.mxu0 %v5818
    %5820 = vmatprep.subr.mxu0 0.0
    %v5821 = vand.u32 %v27, 4294901760
    %5822 = vmatpush1.msra.mxu0 %v5821
    %5823 = vmatprep.subr.mxu0 0.0
    %v5824 = vand.u32 %v26, 4294901760
    %5825 = vmatpush1.msra.mxu0 %v5824
    %5826 = vmatprep.subr.mxu0 0.0
    %5827 = vmatpush2.msra.mxu0 0.0
    %5828 = vmatprep.subr.mxu0 0.0
    %5829 = vmatpush2.msra.mxu0 0.0
    %5830 = vmatprep.subr.mxu0 0.0
    %5831 = vmatpush2.msra.mxu0 0.0
    %5832 = vmatprep.subr.mxu0 0.0
    %5833 = vmatpush2.msra.mxu0 0.0
    %5834 = vmatprep.subr.mxu0 0.0
    %5835 = vmatpush2.msra.mxu0 0.0
    %5836 = vmatprep.subr.mxu0 0.0
    %5837 = vmatpush2.msra.mxu0 0.0
    %5838 = vmatprep.subr.mxu0 0.0
    %5839 = vmatpush2.msra.mxu0 0.0
    %5840 = vmatprep.subr.mxu0 0.0
    %5841 = vmatpush2.msra.mxu0 0.0
    %5842 = vmatprep.subr.mxu0 0.0
    %5843 = vmatpush2.msra.mxu0 0.0
    %5844 = vmatprep.subr.mxu0 0.0
    %5845 = vmatpush2.msra.mxu0 0.0
    %5846 = vmatprep.subr.mxu0 0.0
    %5847 = vmatpush2.msra.mxu0 0.0
    %5848 = vmatprep.subr.mxu0 0.0
    %5849 = vmatpush2.msra.mxu0 0.0
    %5850 = vmatprep.subr.mxu0 0.0
    %5851 = vmatpush2.msra.mxu0 0.0
    %5852 = vmatprep.subr.mxu0 0.0
    %5853 = vmatpush2.msra.mxu0 0.0
    %5854 = vmatprep.subr.mxu0 0.0
    %5855 = vmatpush2.msra.mxu0 0.0
    %5856 = vmatprep.subr.mxu0 0.0
    %5857 = vmatpush2.msra.mxu0 0.0
    %5858 = vmatprep.mubr.f32.mxu0 0.0
    %v5859 = vand.u32 %v5788, 4294901760
    %v5860 = vsub.f32 %v5788, %v5859
    %v5861 = vand.u32 %v5860, 4294901760
    %v5862 = vsub.f32 %v5860, %v5861
    %v5863 = vand.u32 %v5862, 4294901760
    %5864 = vmatmul.mubr.f32.gmra.mxu0 %v5863
    %v5865 = vpop.f32.mrf.mxu0
    %v5866 = vadd.f32 0.0, %v5865
    %v5867 = vpop.f32.mrf.mxu0
    %5868 = vdwg.mxu0
    %5869 = vmatprep.subr.mxu0 0.0
    %5870 = vmatpush1.msra.mxu0 0.0
    %5871 = vmatprep.subr.mxu0 0.0
    %5872 = vmatpush1.msra.mxu0 0.0
    %5873 = vmatprep.subr.mxu0 0.0
    %5874 = vmatpush1.msra.mxu0 0.0
    %5875 = vmatprep.subr.mxu0 0.0
    %5876 = vmatpush1.msra.mxu0 0.0
    %5877 = vmatprep.subr.mxu0 0.0
    %5878 = vmatpush1.msra.mxu0 0.0
    %5879 = vmatprep.subr.mxu0 0.0
    %5880 = vmatpush1.msra.mxu0 0.0
    %5881 = vmatprep.subr.mxu0 0.0
    %5882 = vmatpush1.msra.mxu0 0.0
    %5883 = vmatprep.subr.mxu0 0.0
    %5884 = vmatpush1.msra.mxu0 0.0
    %5885 = vmatprep.subr.mxu0 0.0
    %5886 = vmatpush1.msra.mxu0 0.0
    %5887 = vmatprep.subr.mxu0 0.0
    %5888 = vmatpush1.msra.mxu0 0.0
    %5889 = vmatprep.subr.mxu0 0.0
    %5890 = vmatpush1.msra.mxu0 0.0
    %5891 = vmatprep.subr.mxu0 0.0
    %5892 = vmatpush1.msra.mxu0 0.0
    %5893 = vmatprep.subr.mxu0 0.0
    %v5894 = vand.u32 %v29, 4294901760
    %v5895 = vsub.f32 %v29, %v5894
    %v5896 = vand.u32 %v5895, 4294901760
    %v5897 = vsub.f32 %v5895, %v5896
    %v5898 = vand.u32 %v5897, 4294901760
    %5899 = vmatpush1.msra.mxu0 %v5898
    %5900 = vmatprep.subr.mxu0 0.0
    %v5901 = vand.u32 %v28, 4294901760
    %v5902 = vsub.f32 %v28, %v5901
    %v5903 = vand.u32 %v5902, 4294901760
    %v5904 = vsub.f32 %v5902, %v5903
    %v5905 = vand.u32 %v5904, 4294901760
    %5906 = vmatpush1.msra.mxu0 %v5905
    %5907 = vmatprep.subr.mxu0 0.0
    %v5908 = vand.u32 %v27, 4294901760
    %v5909 = vsub.f32 %v27, %v5908
    %v5910 = vand.u32 %v5909, 4294901760
    %v5911 = vsub.f32 %v5909, %v5910
    %v5912 = vand.u32 %v5911, 4294901760
    %5913 = vmatpush1.msra.mxu0 %v5912
    %5914 = vmatprep.subr.mxu0 0.0
    %v5915 = vand.u32 %v26, 4294901760
    %v5916 = vsub.f32 %v26, %v5915
    %v5917 = vand.u32 %v5916, 4294901760
    %v5918 = vsub.f32 %v5916, %v5917
    %v5919 = vand.u32 %v5918, 4294901760
    %5920 = vmatpush1.msra.mxu0 %v5919
    %5921 = vmatprep.subr.mxu0 0.0
    %5922 = vmatpush2.msra.mxu0 0.0
    %5923 = vmatprep.subr.mxu0 0.0
    %5924 = vmatpush2.msra.mxu0 0.0
    %5925 = vmatprep.subr.mxu0 0.0
    %5926 = vmatpush2.msra.mxu0 0.0
    %5927 = vmatprep.subr.mxu0 0.0
    %5928 = vmatpush2.msra.mxu0 0.0
    %5929 = vmatprep.subr.mxu0 0.0
    %5930 = vmatpush2.msra.mxu0 0.0
    %5931 = vmatprep.subr.mxu0 0.0
    %5932 = vmatpush2.msra.mxu0 0.0
    %5933 = vmatprep.subr.mxu0 0.0
    %5934 = vmatpush2.msra.mxu0 0.0
    %5935 = vmatprep.subr.mxu0 0.0
    %5936 = vmatpush2.msra.mxu0 0.0
    %5937 = vmatprep.subr.mxu0 0.0
    %5938 = vmatpush2.msra.mxu0 0.0
    %5939 = vmatprep.subr.mxu0 0.0
    %5940 = vmatpush2.msra.mxu0 0.0
    %5941 = vmatprep.subr.mxu0 0.0
    %5942 = vmatpush2.msra.mxu0 0.0
    %5943 = vmatprep.subr.mxu0 0.0
    %5944 = vmatpush2.msra.mxu0 0.0
    %5945 = vmatprep.subr.mxu0 0.0
    %5946 = vmatpush2.msra.mxu0 0.0
    %5947 = vmatprep.subr.mxu0 0.0
    %5948 = vmatpush2.msra.mxu0 0.0
    %5949 = vmatprep.subr.mxu0 0.0
    %5950 = vmatpush2.msra.mxu0 0.0
    %5951 = vmatprep.subr.mxu0 0.0
    %5952 = vmatpush2.msra.mxu0 0.0
    %5953 = vmatprep.mubr.f32.mxu0 0.0
    %v5954 = vand.u32 %v5788, 4294901760
    %5955 = vmatmul.mubr.f32.gmra.mxu0 %v5954
    %v5956 = vpop.f32.mrf.mxu0
    %v5957 = vadd.f32 %v5866, %v5956
    %v5958 = vpop.f32.mrf.mxu0
    %5959 = vdwg.mxu0
    %5960 = vmatprep.subr.mxu0 0.0
    %5961 = vmatpush1.msra.mxu0 0.0
    %5962 = vmatprep.subr.mxu0 0.0
    %5963 = vmatpush1.msra.mxu0 0.0
    %5964 = vmatprep.subr.mxu0 0.0
    %5965 = vmatpush1.msra.mxu0 0.0
    %5966 = vmatprep.subr.mxu0 0.0
    %5967 = vmatpush1.msra.mxu0 0.0
    %5968 = vmatprep.subr.mxu0 0.0
    %5969 = vmatpush1.msra.mxu0 0.0
    %5970 = vmatprep.subr.mxu0 0.0
    %5971 = vmatpush1.msra.mxu0 0.0
    %5972 = vmatprep.subr.mxu0 0.0
    %5973 = vmatpush1.msra.mxu0 0.0
    %5974 = vmatprep.subr.mxu0 0.0
    %5975 = vmatpush1.msra.mxu0 0.0
    %5976 = vmatprep.subr.mxu0 0.0
    %5977 = vmatpush1.msra.mxu0 0.0
    %5978 = vmatprep.subr.mxu0 0.0
    %5979 = vmatpush1.msra.mxu0 0.0
    %5980 = vmatprep.subr.mxu0 0.0
    %5981 = vmatpush1.msra.mxu0 0.0
    %5982 = vmatprep.subr.mxu0 0.0
    %5983 = vmatpush1.msra.mxu0 0.0
    %5984 = vmatprep.subr.mxu0 0.0
    %v5985 = vand.u32 %v29, 4294901760
    %v5986 = vsub.f32 %v29, %v5985
    %5987 = vmatpush1.msra.mxu0 %v5986
    %5988 = vmatprep.subr.mxu0 0.0
    %v5989 = vand.u32 %v28, 4294901760
    %v5990 = vsub.f32 %v28, %v5989
    %5991 = vmatpush1.msra.mxu0 %v5990
    %5992 = vmatprep.subr.mxu0 0.0
    %v5993 = vand.u32 %v27, 4294901760
    %v5994 = vsub.f32 %v27, %v5993
    %5995 = vmatpush1.msra.mxu0 %v5994
    %5996 = vmatprep.subr.mxu0 0.0
    %v5997 = vand.u32 %v26, 4294901760
    %v5998 = vsub.f32 %v26, %v5997
    %5999 = vmatpush1.msra.mxu0 %v5998
    %6000 = vmatprep.subr.mxu0 0.0
    %6001 = vmatpush2.msra.mxu0 0.0
    %6002 = vmatprep.subr.mxu0 0.0
    %6003 = vmatpush2.msra.mxu0 0.0
    %6004 = vmatprep.subr.mxu0 0.0
    %6005 = vmatpush2.msra.mxu0 0.0
    %6006 = vmatprep.subr.mxu0 0.0
    %6007 = vmatpush2.msra.mxu0 0.0
    %6008 = vmatprep.subr.mxu0 0.0
    %6009 = vmatpush2.msra.mxu0 0.0
    %6010 = vmatprep.subr.mxu0 0.0
    %6011 = vmatpush2.msra.mxu0 0.0
    %6012 = vmatprep.subr.mxu0 0.0
    %6013 = vmatpush2.msra.mxu0 0.0
    %6014 = vmatprep.subr.mxu0 0.0
    %6015 = vmatpush2.msra.mxu0 0.0
    %6016 = vmatprep.subr.mxu0 0.0
    %6017 = vmatpush2.msra.mxu0 0.0
    %6018 = vmatprep.subr.mxu0 0.0
    %6019 = vmatpush2.msra.mxu0 0.0
    %6020 = vmatprep.subr.mxu0 0.0
    %6021 = vmatpush2.msra.mxu0 0.0
    %6022 = vmatprep.subr.mxu0 0.0
    %6023 = vmatpush2.msra.mxu0 0.0
    %6024 = vmatprep.subr.mxu0 0.0
    %6025 = vmatpush2.msra.mxu0 0.0
    %6026 = vmatprep.subr.mxu0 0.0
    %6027 = vmatpush2.msra.mxu0 0.0
    %6028 = vmatprep.subr.mxu0 0.0
    %6029 = vmatpush2.msra.mxu0 0.0
    %6030 = vmatprep.subr.mxu0 0.0
    %6031 = vmatpush2.msra.mxu0 0.0
    %6032 = vmatprep.mubr.f32.mxu0 0.0
    %v6033 = vand.u32 %v5788, 4294901760
    %v6034 = vsub.f32 %v5788, %v6033
    %6035 = vmatmul.mubr.f32.gmra.mxu0 %v6034
    %v6036 = vpop.f32.mrf.mxu0
    %v6037 = vadd.f32 %v5957, %v6036
    %v6038 = vpop.f32.mrf.mxu0
    %6039 = vdwg.mxu0
    %6040 = vmatprep.subr.mxu0 0.0
    %6041 = vmatpush1.msra.mxu0 0.0
    %6042 = vmatprep.subr.mxu0 0.0
    %6043 = vmatpush1.msra.mxu0 0.0
    %6044 = vmatprep.subr.mxu0 0.0
    %6045 = vmatpush1.msra.mxu0 0.0
    %6046 = vmatprep.subr.mxu0 0.0
    %6047 = vmatpush1.msra.mxu0 0.0
    %6048 = vmatprep.subr.mxu0 0.0
    %6049 = vmatpush1.msra.mxu0 0.0
    %6050 = vmatprep.subr.mxu0 0.0
    %6051 = vmatpush1.msra.mxu0 0.0
    %6052 = vmatprep.subr.mxu0 0.0
    %6053 = vmatpush1.msra.mxu0 0.0
    %6054 = vmatprep.subr.mxu0 0.0
    %6055 = vmatpush1.msra.mxu0 0.0
    %6056 = vmatprep.subr.mxu0 0.0
    %6057 = vmatpush1.msra.mxu0 0.0
    %6058 = vmatprep.subr.mxu0 0.0
    %6059 = vmatpush1.msra.mxu0 0.0
    %6060 = vmatprep.subr.mxu0 0.0
    %6061 = vmatpush1.msra.mxu0 0.0
    %6062 = vmatprep.subr.mxu0 0.0
    %6063 = vmatpush1.msra.mxu0 0.0
    %6064 = vmatprep.subr.mxu0 0.0
    %v6065 = vand.u32 %v29, 4294901760
    %6066 = vmatpush1.msra.mxu0 %v6065
    %6067 = vmatprep.subr.mxu0 0.0
    %v6068 = vand.u32 %v28, 4294901760
    %6069 = vmatpush1.msra.mxu0 %v6068
    %6070 = vmatprep.subr.mxu0 0.0
    %v6071 = vand.u32 %v27, 4294901760
    %6072 = vmatpush1.msra.mxu0 %v6071
    %6073 = vmatprep.subr.mxu0 0.0
    %v6074 = vand.u32 %v26, 4294901760
    %6075 = vmatpush1.msra.mxu0 %v6074
    %6076 = vmatprep.subr.mxu0 0.0
    %6077 = vmatpush2.msra.mxu0 0.0
    %6078 = vmatprep.subr.mxu0 0.0
    %6079 = vmatpush2.msra.mxu0 0.0
    %6080 = vmatprep.subr.mxu0 0.0
    %6081 = vmatpush2.msra.mxu0 0.0
    %6082 = vmatprep.subr.mxu0 0.0
    %6083 = vmatpush2.msra.mxu0 0.0
    %6084 = vmatprep.subr.mxu0 0.0
    %6085 = vmatpush2.msra.mxu0 0.0
    %6086 = vmatprep.subr.mxu0 0.0
    %6087 = vmatpush2.msra.mxu0 0.0
    %6088 = vmatprep.subr.mxu0 0.0
    %6089 = vmatpush2.msra.mxu0 0.0
    %6090 = vmatprep.subr.mxu0 0.0
    %6091 = vmatpush2.msra.mxu0 0.0
    %6092 = vmatprep.subr.mxu0 0.0
    %6093 = vmatpush2.msra.mxu0 0.0
    %6094 = vmatprep.subr.mxu0 0.0
    %6095 = vmatpush2.msra.mxu0 0.0
    %6096 = vmatprep.subr.mxu0 0.0
    %6097 = vmatpush2.msra.mxu0 0.0
    %6098 = vmatprep.subr.mxu0 0.0
    %6099 = vmatpush2.msra.mxu0 0.0
    %6100 = vmatprep.subr.mxu0 0.0
    %6101 = vmatpush2.msra.mxu0 0.0
    %6102 = vmatprep.subr.mxu0 0.0
    %6103 = vmatpush2.msra.mxu0 0.0
    %6104 = vmatprep.subr.mxu0 0.0
    %6105 = vmatpush2.msra.mxu0 0.0
    %6106 = vmatprep.subr.mxu0 0.0
    %6107 = vmatpush2.msra.mxu0 0.0
    %6108 = vmatprep.mubr.f32.mxu0 0.0
    %v6109 = vand.u32 %v5788, 4294901760
    %v6110 = vsub.f32 %v5788, %v6109
    %v6111 = vand.u32 %v6110, 4294901760
    %6112 = vmatmul.mubr.f32.gmra.mxu0 %v6111
    %v6113 = vpop.f32.mrf.mxu0
    %v6114 = vadd.f32 %v6037, %v6113
    %v6115 = vpop.f32.mrf.mxu0
    %6116 = vdwg.mxu0
    %6117 = vmatprep.subr.mxu0 0.0
    %6118 = vmatpush1.msra.mxu0 0.0
    %6119 = vmatprep.subr.mxu0 0.0
    %6120 = vmatpush1.msra.mxu0 0.0
    %6121 = vmatprep.subr.mxu0 0.0
    %6122 = vmatpush1.msra.mxu0 0.0
    %6123 = vmatprep.subr.mxu0 0.0
    %6124 = vmatpush1.msra.mxu0 0.0
    %6125 = vmatprep.subr.mxu0 0.0
    %6126 = vmatpush1.msra.mxu0 0.0
    %6127 = vmatprep.subr.mxu0 0.0
    %6128 = vmatpush1.msra.mxu0 0.0
    %6129 = vmatprep.subr.mxu0 0.0
    %6130 = vmatpush1.msra.mxu0 0.0
    %6131 = vmatprep.subr.mxu0 0.0
    %6132 = vmatpush1.msra.mxu0 0.0
    %6133 = vmatprep.subr.mxu0 0.0
    %6134 = vmatpush1.msra.mxu0 0.0
    %6135 = vmatprep.subr.mxu0 0.0
    %6136 = vmatpush1.msra.mxu0 0.0
    %6137 = vmatprep.subr.mxu0 0.0
    %6138 = vmatpush1.msra.mxu0 0.0
    %6139 = vmatprep.subr.mxu0 0.0
    %6140 = vmatpush1.msra.mxu0 0.0
    %6141 = vmatprep.subr.mxu0 0.0
    %v6142 = vand.u32 %v29, 4294901760
    %v6143 = vsub.f32 %v29, %v6142
    %v6144 = vand.u32 %v6143, 4294901760
    %6145 = vmatpush1.msra.mxu0 %v6144
    %6146 = vmatprep.subr.mxu0 0.0
    %v6147 = vand.u32 %v28, 4294901760
    %v6148 = vsub.f32 %v28, %v6147
    %v6149 = vand.u32 %v6148, 4294901760
    %6150 = vmatpush1.msra.mxu0 %v6149
    %6151 = vmatprep.subr.mxu0 0.0
    %v6152 = vand.u32 %v27, 4294901760
    %v6153 = vsub.f32 %v27, %v6152
    %v6154 = vand.u32 %v6153, 4294901760
    %6155 = vmatpush1.msra.mxu0 %v6154
    %6156 = vmatprep.subr.mxu0 0.0
    %v6157 = vand.u32 %v26, 4294901760
    %v6158 = vsub.f32 %v26, %v6157
    %v6159 = vand.u32 %v6158, 4294901760
    %6160 = vmatpush1.msra.mxu0 %v6159
    %6161 = vmatprep.subr.mxu0 0.0
    %6162 = vmatpush2.msra.mxu0 0.0
    %6163 = vmatprep.subr.mxu0 0.0
    %6164 = vmatpush2.msra.mxu0 0.0
    %6165 = vmatprep.subr.mxu0 0.0
    %6166 = vmatpush2.msra.mxu0 0.0
    %6167 = vmatprep.subr.mxu0 0.0
    %6168 = vmatpush2.msra.mxu0 0.0
    %6169 = vmatprep.subr.mxu0 0.0
    %6170 = vmatpush2.msra.mxu0 0.0
    %6171 = vmatprep.subr.mxu0 0.0
    %6172 = vmatpush2.msra.mxu0 0.0
    %6173 = vmatprep.subr.mxu0 0.0
    %6174 = vmatpush2.msra.mxu0 0.0
    %6175 = vmatprep.subr.mxu0 0.0
    %6176 = vmatpush2.msra.mxu0 0.0
    %6177 = vmatprep.subr.mxu0 0.0
    %6178 = vmatpush2.msra.mxu0 0.0
    %6179 = vmatprep.subr.mxu0 0.0
    %6180 = vmatpush2.msra.mxu0 0.0
    %6181 = vmatprep.subr.mxu0 0.0
    %6182 = vmatpush2.msra.mxu0 0.0
    %6183 = vmatprep.subr.mxu0 0.0
    %6184 = vmatpush2.msra.mxu0 0.0
    %6185 = vmatprep.subr.mxu0 0.0
    %6186 = vmatpush2.msra.mxu0 0.0
    %6187 = vmatprep.subr.mxu0 0.0
    %6188 = vmatpush2.msra.mxu0 0.0
    %6189 = vmatprep.subr.mxu0 0.0
    %6190 = vmatpush2.msra.mxu0 0.0
    %6191 = vmatprep.subr.mxu0 0.0
    %6192 = vmatpush2.msra.mxu0 0.0
    %6193 = vmatprep.mubr.f32.mxu0 0.0
    %v6194 = vand.u32 %v5788, 4294901760
    %6195 = vmatmul.mubr.f32.gmra.mxu0 %v6194
    %v6196 = vpop.f32.mrf.mxu0
    %v6197 = vadd.f32 %v6114, %v6196
    %v6198 = vpop.f32.mrf.mxu0
    %6199 = vdwg.mxu0
    %6200 = vmatprep.subr.mxu0 0.0
    %6201 = vmatpush1.msra.mxu0 0.0
    %6202 = vmatprep.subr.mxu0 0.0
    %6203 = vmatpush1.msra.mxu0 0.0
    %6204 = vmatprep.subr.mxu0 0.0
    %6205 = vmatpush1.msra.mxu0 0.0
    %6206 = vmatprep.subr.mxu0 0.0
    %6207 = vmatpush1.msra.mxu0 0.0
    %6208 = vmatprep.subr.mxu0 0.0
    %6209 = vmatpush1.msra.mxu0 0.0
    %6210 = vmatprep.subr.mxu0 0.0
    %6211 = vmatpush1.msra.mxu0 0.0
    %6212 = vmatprep.subr.mxu0 0.0
    %6213 = vmatpush1.msra.mxu0 0.0
    %6214 = vmatprep.subr.mxu0 0.0
    %6215 = vmatpush1.msra.mxu0 0.0
    %6216 = vmatprep.subr.mxu0 0.0
    %6217 = vmatpush1.msra.mxu0 0.0
    %6218 = vmatprep.subr.mxu0 0.0
    %6219 = vmatpush1.msra.mxu0 0.0
    %6220 = vmatprep.subr.mxu0 0.0
    %6221 = vmatpush1.msra.mxu0 0.0
    %6222 = vmatprep.subr.mxu0 0.0
    %6223 = vmatpush1.msra.mxu0 0.0
    %6224 = vmatprep.subr.mxu0 0.0
    %v6225 = vand.u32 %v29, 4294901760
    %6226 = vmatpush1.msra.mxu0 %v6225
    %6227 = vmatprep.subr.mxu0 0.0
    %v6228 = vand.u32 %v28, 4294901760
    %6229 = vmatpush1.msra.mxu0 %v6228
    %6230 = vmatprep.subr.mxu0 0.0
    %v6231 = vand.u32 %v27, 4294901760
    %6232 = vmatpush1.msra.mxu0 %v6231
    %6233 = vmatprep.subr.mxu0 0.0
    %v6234 = vand.u32 %v26, 4294901760
    %6235 = vmatpush1.msra.mxu0 %v6234
    %6236 = vmatprep.subr.mxu0 0.0
    %6237 = vmatpush2.msra.mxu0 0.0
    %6238 = vmatprep.subr.mxu0 0.0
    %6239 = vmatpush2.msra.mxu0 0.0
    %6240 = vmatprep.subr.mxu0 0.0
    %6241 = vmatpush2.msra.mxu0 0.0
    %6242 = vmatprep.subr.mxu0 0.0
    %6243 = vmatpush2.msra.mxu0 0.0
    %6244 = vmatprep.subr.mxu0 0.0
    %6245 = vmatpush2.msra.mxu0 0.0
    %6246 = vmatprep.subr.mxu0 0.0
    %6247 = vmatpush2.msra.mxu0 0.0
    %6248 = vmatprep.subr.mxu0 0.0
    %6249 = vmatpush2.msra.mxu0 0.0
    %6250 = vmatprep.subr.mxu0 0.0
    %6251 = vmatpush2.msra.mxu0 0.0
    %6252 = vmatprep.subr.mxu0 0.0
    %6253 = vmatpush2.msra.mxu0 0.0
    %6254 = vmatprep.subr.mxu0 0.0
    %6255 = vmatpush2.msra.mxu0 0.0
    %6256 = vmatprep.subr.mxu0 0.0
    %6257 = vmatpush2.msra.mxu0 0.0
    %6258 = vmatprep.subr.mxu0 0.0
    %6259 = vmatpush2.msra.mxu0 0.0
    %6260 = vmatprep.subr.mxu0 0.0
    %6261 = vmatpush2.msra.mxu0 0.0
    %6262 = vmatprep.subr.mxu0 0.0
    %6263 = vmatpush2.msra.mxu0 0.0
    %6264 = vmatprep.subr.mxu0 0.0
    %6265 = vmatpush2.msra.mxu0 0.0
    %6266 = vmatprep.subr.mxu0 0.0
    %6267 = vmatpush2.msra.mxu0 0.0
    %6268 = vmatprep.mubr.f32.mxu0 0.0
    %v6269 = vand.u32 %v5788, 4294901760
    %6270 = vmatmul.mubr.f32.gmra.mxu0 %v6269
    %v6271 = vpop.f32.mrf.mxu0
    %v6272 = vadd.f32 %v6197, %v6271
    %v6273 = vpop.f32.mrf.mxu0
    %6274 = vdwg.mxu0
    %v6275 = vadd.f32 %v2345, %v6272
    %v6276 = vxor.u32 %v6275, 2147483648
    %v6277 = vmul.f32 %v6276, 1.442695
    %v6278 = vpow.pop %v6277
    %v6279 = vadd.f32 %v6278, 1.0
    %v6280 = vrcp.pop %v6279
    %v6281 = vmul.f32 1.0, %v6280
    %v6282 = vtanh.pop %v6275
    %v6283 = vmul.f32 %v6281, %v5778
    %6285 = vrot.lane.b32.xlu0 %v6282, 64
    %v6286 = vpop.permute.xlu0 %6285
    %v6288 = vmul.f32 %v6281, %v6286
    %6290 = vrot.lane.b32.xlu0 %v6288, 32
    %v6291 = vpop.permute.xlu0 %6290
    %v6293 = vadd.f32 %v6283, %v6291
    %v6294 = vtanh.pop %v6293
    %6296 = vrot.lane.b32.xlu0 %v6294, 64
    %v6297 = vpop.permute.xlu0 %6296
    %v6299 = vmul.f32 %v6281, %v6297
    %6301 = vrot.lane.b32.xlu0 %v6299, 32
    %v6302 = vpop.permute.xlu0 %6301
    %v6303 = vsel %vm3726, %v6302, 0
    %6305 = vmatprep.subr.mxu0 0.0
    %6306 = vmatpush1.msra.mxu0 0.0
    %6307 = vmatprep.subr.mxu0 0.0
    %6308 = vmatpush1.msra.mxu0 0.0
    %6309 = vmatprep.subr.mxu0 0.0
    %6310 = vmatpush1.msra.mxu0 0.0
    %6311 = vmatprep.subr.mxu0 0.0
    %6312 = vmatpush1.msra.mxu0 0.0
    %6313 = vmatprep.subr.mxu0 0.0
    %6314 = vmatpush1.msra.mxu0 0.0
    %6315 = vmatprep.subr.mxu0 0.0
    %6316 = vmatpush1.msra.mxu0 0.0
    %6317 = vmatprep.subr.mxu0 0.0
    %6318 = vmatpush1.msra.mxu0 0.0
    %6319 = vmatprep.subr.mxu0 0.0
    %6320 = vmatpush1.msra.mxu0 0.0
    %6321 = vmatprep.subr.mxu0 0.0
    %6322 = vmatpush1.msra.mxu0 0.0
    %6323 = vmatprep.subr.mxu0 0.0
    %6324 = vmatpush1.msra.mxu0 0.0
    %6325 = vmatprep.subr.mxu0 0.0
    %6326 = vmatpush1.msra.mxu0 0.0
    %6327 = vmatprep.subr.mxu0 0.0
    %6328 = vmatpush1.msra.mxu0 0.0
    %6329 = vmatprep.subr.mxu0 0.0
    %v6330 = vand.u32 %v29, 4294901760
    %6331 = vmatpush1.msra.mxu0 %v6330
    %6332 = vmatprep.subr.mxu0 0.0
    %v6333 = vand.u32 %v28, 4294901760
    %6334 = vmatpush1.msra.mxu0 %v6333
    %6335 = vmatprep.subr.mxu0 0.0
    %v6336 = vand.u32 %v27, 4294901760
    %6337 = vmatpush1.msra.mxu0 %v6336
    %6338 = vmatprep.subr.mxu0 0.0
    %v6339 = vand.u32 %v26, 4294901760
    %6340 = vmatpush1.msra.mxu0 %v6339
    %6341 = vmatprep.subr.mxu0 0.0
    %6342 = vmatpush2.msra.mxu0 0.0
    %6343 = vmatprep.subr.mxu0 0.0
    %6344 = vmatpush2.msra.mxu0 0.0
    %6345 = vmatprep.subr.mxu0 0.0
    %6346 = vmatpush2.msra.mxu0 0.0
    %6347 = vmatprep.subr.mxu0 0.0
    %6348 = vmatpush2.msra.mxu0 0.0
    %6349 = vmatprep.subr.mxu0 0.0
    %6350 = vmatpush2.msra.mxu0 0.0
    %6351 = vmatprep.subr.mxu0 0.0
    %6352 = vmatpush2.msra.mxu0 0.0
    %6353 = vmatprep.subr.mxu0 0.0
    %6354 = vmatpush2.msra.mxu0 0.0
    %6355 = vmatprep.subr.mxu0 0.0
    %6356 = vmatpush2.msra.mxu0 0.0
    %6357 = vmatprep.subr.mxu0 0.0
    %6358 = vmatpush2.msra.mxu0 0.0
    %6359 = vmatprep.subr.mxu0 0.0
    %6360 = vmatpush2.msra.mxu0 0.0
    %6361 = vmatprep.subr.mxu0 0.0
    %6362 = vmatpush2.msra.mxu0 0.0
    %6363 = vmatprep.subr.mxu0 0.0
    %6364 = vmatpush2.msra.mxu0 0.0
    %6365 = vmatprep.subr.mxu0 0.0
    %6366 = vmatpush2.msra.mxu0 0.0
    %6367 = vmatprep.subr.mxu0 0.0
    %6368 = vmatpush2.msra.mxu0 0.0
    %6369 = vmatprep.subr.mxu0 0.0
    %6370 = vmatpush2.msra.mxu0 0.0
    %6371 = vmatprep.subr.mxu0 0.0
    %6372 = vmatpush2.msra.mxu0 0.0
    %6373 = vmatprep.mubr.f32.mxu0 0.0
    %v6374 = vand.u32 %v6303, 4294901760
    %v6375 = vsub.f32 %v6303, %v6374
    %v6376 = vand.u32 %v6375, 4294901760
    %v6377 = vsub.f32 %v6375, %v6376
    %v6378 = vand.u32 %v6377, 4294901760
    %6379 = vmatmul.mubr.f32.gmra.mxu0 %v6378
    %v6380 = vpop.f32.mrf.mxu0
    %v6381 = vadd.f32 0.0, %v6380
    %v6382 = vpop.f32.mrf.mxu0
    %6383 = vdwg.mxu0
    %6384 = vmatprep.subr.mxu0 0.0
    %6385 = vmatpush1.msra.mxu0 0.0
    %6386 = vmatprep.subr.mxu0 0.0
    %6387 = vmatpush1.msra.mxu0 0.0
    %6388 = vmatprep.subr.mxu0 0.0
    %6389 = vmatpush1.msra.mxu0 0.0
    %6390 = vmatprep.subr.mxu0 0.0
    %6391 = vmatpush1.msra.mxu0 0.0
    %6392 = vmatprep.subr.mxu0 0.0
    %6393 = vmatpush1.msra.mxu0 0.0
    %6394 = vmatprep.subr.mxu0 0.0
    %6395 = vmatpush1.msra.mxu0 0.0
    %6396 = vmatprep.subr.mxu0 0.0
    %6397 = vmatpush1.msra.mxu0 0.0
    %6398 = vmatprep.subr.mxu0 0.0
    %6399 = vmatpush1.msra.mxu0 0.0
    %6400 = vmatprep.subr.mxu0 0.0
    %6401 = vmatpush1.msra.mxu0 0.0
    %6402 = vmatprep.subr.mxu0 0.0
    %6403 = vmatpush1.msra.mxu0 0.0
    %6404 = vmatprep.subr.mxu0 0.0
    %6405 = vmatpush1.msra.mxu0 0.0
    %6406 = vmatprep.subr.mxu0 0.0
    %6407 = vmatpush1.msra.mxu0 0.0
    %6408 = vmatprep.subr.mxu0 0.0
    %v6409 = vand.u32 %v29, 4294901760
    %v6410 = vsub.f32 %v29, %v6409
    %v6411 = vand.u32 %v6410, 4294901760
    %v6412 = vsub.f32 %v6410, %v6411
    %v6413 = vand.u32 %v6412, 4294901760
    %6414 = vmatpush1.msra.mxu0 %v6413
    %6415 = vmatprep.subr.mxu0 0.0
    %v6416 = vand.u32 %v28, 4294901760
    %v6417 = vsub.f32 %v28, %v6416
    %v6418 = vand.u32 %v6417, 4294901760
    %v6419 = vsub.f32 %v6417, %v6418
    %v6420 = vand.u32 %v6419, 4294901760
    %6421 = vmatpush1.msra.mxu0 %v6420
    %6422 = vmatprep.subr.mxu0 0.0
    %v6423 = vand.u32 %v27, 4294901760
    %v6424 = vsub.f32 %v27, %v6423
    %v6425 = vand.u32 %v6424, 4294901760
    %v6426 = vsub.f32 %v6424, %v6425
    %v6427 = vand.u32 %v6426, 4294901760
    %6428 = vmatpush1.msra.mxu0 %v6427
    %6429 = vmatprep.subr.mxu0 0.0
    %v6430 = vand.u32 %v26, 4294901760
    %v6431 = vsub.f32 %v26, %v6430
    %v6432 = vand.u32 %v6431, 4294901760
    %v6433 = vsub.f32 %v6431, %v6432
    %v6434 = vand.u32 %v6433, 4294901760
    %6435 = vmatpush1.msra.mxu0 %v6434
    %6436 = vmatprep.subr.mxu0 0.0
    %6437 = vmatpush2.msra.mxu0 0.0
    %6438 = vmatprep.subr.mxu0 0.0
    %6439 = vmatpush2.msra.mxu0 0.0
    %6440 = vmatprep.subr.mxu0 0.0
    %6441 = vmatpush2.msra.mxu0 0.0
    %6442 = vmatprep.subr.mxu0 0.0
    %6443 = vmatpush2.msra.mxu0 0.0
    %6444 = vmatprep.subr.mxu0 0.0
    %6445 = vmatpush2.msra.mxu0 0.0
    %6446 = vmatprep.subr.mxu0 0.0
    %6447 = vmatpush2.msra.mxu0 0.0
    %6448 = vmatprep.subr.mxu0 0.0
    %6449 = vmatpush2.msra.mxu0 0.0
    %6450 = vmatprep.subr.mxu0 0.0
    %6451 = vmatpush2.msra.mxu0 0.0
    %6452 = vmatprep.subr.mxu0 0.0
    %6453 = vmatpush2.msra.mxu0 0.0
    %6454 = vmatprep.subr.mxu0 0.0
    %6455 = vmatpush2.msra.mxu0 0.0
    %6456 = vmatprep.subr.mxu0 0.0
    %6457 = vmatpush2.msra.mxu0 0.0
    %6458 = vmatprep.subr.mxu0 0.0
    %6459 = vmatpush2.msra.mxu0 0.0
    %6460 = vmatprep.subr.mxu0 0.0
    %6461 = vmatpush2.msra.mxu0 0.0
    %6462 = vmatprep.subr.mxu0 0.0
    %6463 = vmatpush2.msra.mxu0 0.0
    %6464 = vmatprep.subr.mxu0 0.0
    %6465 = vmatpush2.msra.mxu0 0.0
    %6466 = vmatprep.subr.mxu0 0.0
    %6467 = vmatpush2.msra.mxu0 0.0
    %6468 = vmatprep.mubr.f32.mxu0 0.0
    %v6469 = vand.u32 %v6303, 4294901760
    %6470 = vmatmul.mubr.f32.gmra.mxu0 %v6469
    %v6471 = vpop.f32.mrf.mxu0
    %v6472 = vadd.f32 %v6381, %v6471
    %v6473 = vpop.f32.mrf.mxu0
    %6474 = vdwg.mxu0
    %6475 = vmatprep.subr.mxu0 0.0
    %6476 = vmatpush1.msra.mxu0 0.0
    %6477 = vmatprep.subr.mxu0 0.0
    %6478 = vmatpush1.msra.mxu0 0.0
    %6479 = vmatprep.subr.mxu0 0.0
    %6480 = vmatpush1.msra.mxu0 0.0
    %6481 = vmatprep.subr.mxu0 0.0
    %6482 = vmatpush1.msra.mxu0 0.0
    %6483 = vmatprep.subr.mxu0 0.0
    %6484 = vmatpush1.msra.mxu0 0.0
    %6485 = vmatprep.subr.mxu0 0.0
    %6486 = vmatpush1.msra.mxu0 0.0
    %6487 = vmatprep.subr.mxu0 0.0
    %6488 = vmatpush1.msra.mxu0 0.0
    %6489 = vmatprep.subr.mxu0 0.0
    %6490 = vmatpush1.msra.mxu0 0.0
    %6491 = vmatprep.subr.mxu0 0.0
    %6492 = vmatpush1.msra.mxu0 0.0
    %6493 = vmatprep.subr.mxu0 0.0
    %6494 = vmatpush1.msra.mxu0 0.0
    %6495 = vmatprep.subr.mxu0 0.0
    %6496 = vmatpush1.msra.mxu0 0.0
    %6497 = vmatprep.subr.mxu0 0.0
    %6498 = vmatpush1.msra.mxu0 0.0
    %6499 = vmatprep.subr.mxu0 0.0
    %v6500 = vand.u32 %v29, 4294901760
    %v6501 = vsub.f32 %v29, %v6500
    %6502 = vmatpush1.msra.mxu0 %v6501
    %6503 = vmatprep.subr.mxu0 0.0
    %v6504 = vand.u32 %v28, 4294901760
    %v6505 = vsub.f32 %v28, %v6504
    %6506 = vmatpush1.msra.mxu0 %v6505
    %6507 = vmatprep.subr.mxu0 0.0
    %v6508 = vand.u32 %v27, 4294901760
    %v6509 = vsub.f32 %v27, %v6508
    %6510 = vmatpush1.msra.mxu0 %v6509
    %6511 = vmatprep.subr.mxu0 0.0
    %v6512 = vand.u32 %v26, 4294901760
    %v6513 = vsub.f32 %v26, %v6512
    %6514 = vmatpush1.msra.mxu0 %v6513
    %6515 = vmatprep.subr.mxu0 0.0
    %6516 = vmatpush2.msra.mxu0 0.0
    %6517 = vmatprep.subr.mxu0 0.0
    %6518 = vmatpush2.msra.mxu0 0.0
    %6519 = vmatprep.subr.mxu0 0.0
    %6520 = vmatpush2.msra.mxu0 0.0
    %6521 = vmatprep.subr.mxu0 0.0
    %6522 = vmatpush2.msra.mxu0 0.0
    %6523 = vmatprep.subr.mxu0 0.0
    %6524 = vmatpush2.msra.mxu0 0.0
    %6525 = vmatprep.subr.mxu0 0.0
    %6526 = vmatpush2.msra.mxu0 0.0
    %6527 = vmatprep.subr.mxu0 0.0
    %6528 = vmatpush2.msra.mxu0 0.0
    %6529 = vmatprep.subr.mxu0 0.0
    %6530 = vmatpush2.msra.mxu0 0.0
    %6531 = vmatprep.subr.mxu0 0.0
    %6532 = vmatpush2.msra.mxu0 0.0
    %6533 = vmatprep.subr.mxu0 0.0
    %6534 = vmatpush2.msra.mxu0 0.0
    %6535 = vmatprep.subr.mxu0 0.0
    %6536 = vmatpush2.msra.mxu0 0.0
    %6537 = vmatprep.subr.mxu0 0.0
    %6538 = vmatpush2.msra.mxu0 0.0
    %6539 = vmatprep.subr.mxu0 0.0
    %6540 = vmatpush2.msra.mxu0 0.0
    %6541 = vmatprep.subr.mxu0 0.0
    %6542 = vmatpush2.msra.mxu0 0.0
    %6543 = vmatprep.subr.mxu0 0.0
    %6544 = vmatpush2.msra.mxu0 0.0
    %6545 = vmatprep.subr.mxu0 0.0
    %6546 = vmatpush2.msra.mxu0 0.0
    %6547 = vmatprep.mubr.f32.mxu0 0.0
    %v6548 = vand.u32 %v6303, 4294901760
    %v6549 = vsub.f32 %v6303, %v6548
    %6550 = vmatmul.mubr.f32.gmra.mxu0 %v6549
    %v6551 = vpop.f32.mrf.mxu0
    %v6552 = vadd.f32 %v6472, %v6551
    %v6553 = vpop.f32.mrf.mxu0
    %6554 = vdwg.mxu0
    %6555 = vmatprep.subr.mxu0 0.0
    %6556 = vmatpush1.msra.mxu0 0.0
    %6557 = vmatprep.subr.mxu0 0.0
    %6558 = vmatpush1.msra.mxu0 0.0
    %6559 = vmatprep.subr.mxu0 0.0
    %6560 = vmatpush1.msra.mxu0 0.0
    %6561 = vmatprep.subr.mxu0 0.0
    %6562 = vmatpush1.msra.mxu0 0.0
    %6563 = vmatprep.subr.mxu0 0.0
    %6564 = vmatpush1.msra.mxu0 0.0
    %6565 = vmatprep.subr.mxu0 0.0
    %6566 = vmatpush1.msra.mxu0 0.0
    %6567 = vmatprep.subr.mxu0 0.0
    %6568 = vmatpush1.msra.mxu0 0.0
    %6569 = vmatprep.subr.mxu0 0.0
    %6570 = vmatpush1.msra.mxu0 0.0
    %6571 = vmatprep.subr.mxu0 0.0
    %6572 = vmatpush1.msra.mxu0 0.0
    %6573 = vmatprep.subr.mxu0 0.0
    %6574 = vmatpush1.msra.mxu0 0.0
    %6575 = vmatprep.subr.mxu0 0.0
    %6576 = vmatpush1.msra.mxu0 0.0
    %6577 = vmatprep.subr.mxu0 0.0
    %6578 = vmatpush1.msra.mxu0 0.0
    %6579 = vmatprep.subr.mxu0 0.0
    %v6580 = vand.u32 %v29, 4294901760
    %6581 = vmatpush1.msra.mxu0 %v6580
    %6582 = vmatprep.subr.mxu0 0.0
    %v6583 = vand.u32 %v28, 4294901760
    %6584 = vmatpush1.msra.mxu0 %v6583
    %6585 = vmatprep.subr.mxu0 0.0
    %v6586 = vand.u32 %v27, 4294901760
    %6587 = vmatpush1.msra.mxu0 %v6586
    %6588 = vmatprep.subr.mxu0 0.0
    %v6589 = vand.u32 %v26, 4294901760
    %6590 = vmatpush1.msra.mxu0 %v6589
    %6591 = vmatprep.subr.mxu0 0.0
    %6592 = vmatpush2.msra.mxu0 0.0
    %6593 = vmatprep.subr.mxu0 0.0
    %6594 = vmatpush2.msra.mxu0 0.0
    %6595 = vmatprep.subr.mxu0 0.0
    %6596 = vmatpush2.msra.mxu0 0.0
    %6597 = vmatprep.subr.mxu0 0.0
    %6598 = vmatpush2.msra.mxu0 0.0
    %6599 = vmatprep.subr.mxu0 0.0
    %6600 = vmatpush2.msra.mxu0 0.0
    %6601 = vmatprep.subr.mxu0 0.0
    %6602 = vmatpush2.msra.mxu0 0.0
    %6603 = vmatprep.subr.mxu0 0.0
    %6604 = vmatpush2.msra.mxu0 0.0
    %6605 = vmatprep.subr.mxu0 0.0
    %6606 = vmatpush2.msra.mxu0 0.0
    %6607 = vmatprep.subr.mxu0 0.0
    %6608 = vmatpush2.msra.mxu0 0.0
    %6609 = vmatprep.subr.mxu0 0.0
    %6610 = vmatpush2.msra.mxu0 0.0
    %6611 = vmatprep.subr.mxu0 0.0
    %6612 = vmatpush2.msra.mxu0 0.0
    %6613 = vmatprep.subr.mxu0 0.0
    %6614 = vmatpush2.msra.mxu0 0.0
    %6615 = vmatprep.subr.mxu0 0.0
    %6616 = vmatpush2.msra.mxu0 0.0
    %6617 = vmatprep.subr.mxu0 0.0
    %6618 = vmatpush2.msra.mxu0 0.0
    %6619 = vmatprep.subr.mxu0 0.0
    %6620 = vmatpush2.msra.mxu0 0.0
    %6621 = vmatprep.subr.mxu0 0.0
    %6622 = vmatpush2.msra.mxu0 0.0
    %6623 = vmatprep.mubr.f32.mxu0 0.0
    %v6624 = vand.u32 %v6303, 4294901760
    %v6625 = vsub.f32 %v6303, %v6624
    %v6626 = vand.u32 %v6625, 4294901760
    %6627 = vmatmul.mubr.f32.gmra.mxu0 %v6626
    %v6628 = vpop.f32.mrf.mxu0
    %v6629 = vadd.f32 %v6552, %v6628
    %v6630 = vpop.f32.mrf.mxu0
    %6631 = vdwg.mxu0
    %6632 = vmatprep.subr.mxu0 0.0
    %6633 = vmatpush1.msra.mxu0 0.0
    %6634 = vmatprep.subr.mxu0 0.0
    %6635 = vmatpush1.msra.mxu0 0.0
    %6636 = vmatprep.subr.mxu0 0.0
    %6637 = vmatpush1.msra.mxu0 0.0
    %6638 = vmatprep.subr.mxu0 0.0
    %6639 = vmatpush1.msra.mxu0 0.0
    %6640 = vmatprep.subr.mxu0 0.0
    %6641 = vmatpush1.msra.mxu0 0.0
    %6642 = vmatprep.subr.mxu0 0.0
    %6643 = vmatpush1.msra.mxu0 0.0
    %6644 = vmatprep.subr.mxu0 0.0
    %6645 = vmatpush1.msra.mxu0 0.0
    %6646 = vmatprep.subr.mxu0 0.0
    %6647 = vmatpush1.msra.mxu0 0.0
    %6648 = vmatprep.subr.mxu0 0.0
    %6649 = vmatpush1.msra.mxu0 0.0
    %6650 = vmatprep.subr.mxu0 0.0
    %6651 = vmatpush1.msra.mxu0 0.0
    %6652 = vmatprep.subr.mxu0 0.0
    %6653 = vmatpush1.msra.mxu0 0.0
    %6654 = vmatprep.subr.mxu0 0.0
    %6655 = vmatpush1.msra.mxu0 0.0
    %6656 = vmatprep.subr.mxu0 0.0
    %v6657 = vand.u32 %v29, 4294901760
    %v6658 = vsub.f32 %v29, %v6657
    %v6659 = vand.u32 %v6658, 4294901760
    %6660 = vmatpush1.msra.mxu0 %v6659
    %6661 = vmatprep.subr.mxu0 0.0
    %v6662 = vand.u32 %v28, 4294901760
    %v6663 = vsub.f32 %v28, %v6662
    %v6664 = vand.u32 %v6663, 4294901760
    %6665 = vmatpush1.msra.mxu0 %v6664
    %6666 = vmatprep.subr.mxu0 0.0
    %v6667 = vand.u32 %v27, 4294901760
    %v6668 = vsub.f32 %v27, %v6667
    %v6669 = vand.u32 %v6668, 4294901760
    %6670 = vmatpush1.msra.mxu0 %v6669
    %6671 = vmatprep.subr.mxu0 0.0
    %v6672 = vand.u32 %v26, 4294901760
    %v6673 = vsub.f32 %v26, %v6672
    %v6674 = vand.u32 %v6673, 4294901760
    %6675 = vmatpush1.msra.mxu0 %v6674
    %6676 = vmatprep.subr.mxu0 0.0
    %6677 = vmatpush2.msra.mxu0 0.0
    %6678 = vmatprep.subr.mxu0 0.0
    %6679 = vmatpush2.msra.mxu0 0.0
    %6680 = vmatprep.subr.mxu0 0.0
    %6681 = vmatpush2.msra.mxu0 0.0
    %6682 = vmatprep.subr.mxu0 0.0
    %6683 = vmatpush2.msra.mxu0 0.0
    %6684 = vmatprep.subr.mxu0 0.0
    %6685 = vmatpush2.msra.mxu0 0.0
    %6686 = vmatprep.subr.mxu0 0.0
    %6687 = vmatpush2.msra.mxu0 0.0
    %6688 = vmatprep.subr.mxu0 0.0
    %6689 = vmatpush2.msra.mxu0 0.0
    %6690 = vmatprep.subr.mxu0 0.0
    %6691 = vmatpush2.msra.mxu0 0.0
    %6692 = vmatprep.subr.mxu0 0.0
    %6693 = vmatpush2.msra.mxu0 0.0
    %6694 = vmatprep.subr.mxu0 0.0
    %6695 = vmatpush2.msra.mxu0 0.0
    %6696 = vmatprep.subr.mxu0 0.0
    %6697 = vmatpush2.msra.mxu0 0.0
    %6698 = vmatprep.subr.mxu0 0.0
    %6699 = vmatpush2.msra.mxu0 0.0
    %6700 = vmatprep.subr.mxu0 0.0
    %6701 = vmatpush2.msra.mxu0 0.0
    %6702 = vmatprep.subr.mxu0 0.0
    %6703 = vmatpush2.msra.mxu0 0.0
    %6704 = vmatprep.subr.mxu0 0.0
    %6705 = vmatpush2.msra.mxu0 0.0
    %6706 = vmatprep.subr.mxu0 0.0
    %6707 = vmatpush2.msra.mxu0 0.0
    %6708 = vmatprep.mubr.f32.mxu0 0.0
    %v6709 = vand.u32 %v6303, 4294901760
    %6710 = vmatmul.mubr.f32.gmra.mxu0 %v6709
    %v6711 = vpop.f32.mrf.mxu0
    %v6712 = vadd.f32 %v6629, %v6711
    %v6713 = vpop.f32.mrf.mxu0
    %6714 = vdwg.mxu0
    %6715 = vmatprep.subr.mxu0 0.0
    %6716 = vmatpush1.msra.mxu0 0.0
    %6717 = vmatprep.subr.mxu0 0.0
    %6718 = vmatpush1.msra.mxu0 0.0
    %6719 = vmatprep.subr.mxu0 0.0
    %6720 = vmatpush1.msra.mxu0 0.0
    %6721 = vmatprep.subr.mxu0 0.0
    %6722 = vmatpush1.msra.mxu0 0.0
    %6723 = vmatprep.subr.mxu0 0.0
    %6724 = vmatpush1.msra.mxu0 0.0
    %6725 = vmatprep.subr.mxu0 0.0
    %6726 = vmatpush1.msra.mxu0 0.0
    %6727 = vmatprep.subr.mxu0 0.0
    %6728 = vmatpush1.msra.mxu0 0.0
    %6729 = vmatprep.subr.mxu0 0.0
    %6730 = vmatpush1.msra.mxu0 0.0
    %6731 = vmatprep.subr.mxu0 0.0
    %6732 = vmatpush1.msra.mxu0 0.0
    %6733 = vmatprep.subr.mxu0 0.0
    %6734 = vmatpush1.msra.mxu0 0.0
    %6735 = vmatprep.subr.mxu0 0.0
    %6736 = vmatpush1.msra.mxu0 0.0
    %6737 = vmatprep.subr.mxu0 0.0
    %6738 = vmatpush1.msra.mxu0 0.0
    %6739 = vmatprep.subr.mxu0 0.0
    %v6740 = vand.u32 %v29, 4294901760
    %6741 = vmatpush1.msra.mxu0 %v6740
    %6742 = vmatprep.subr.mxu0 0.0
    %v6743 = vand.u32 %v28, 4294901760
    %6744 = vmatpush1.msra.mxu0 %v6743
    %6745 = vmatprep.subr.mxu0 0.0
    %v6746 = vand.u32 %v27, 4294901760
    %6747 = vmatpush1.msra.mxu0 %v6746
    %6748 = vmatprep.subr.mxu0 0.0
    %v6749 = vand.u32 %v26, 4294901760
    %6750 = vmatpush1.msra.mxu0 %v6749
    %6751 = vmatprep.subr.mxu0 0.0
    %6752 = vmatpush2.msra.mxu0 0.0
    %6753 = vmatprep.subr.mxu0 0.0
    %6754 = vmatpush2.msra.mxu0 0.0
    %6755 = vmatprep.subr.mxu0 0.0
    %6756 = vmatpush2.msra.mxu0 0.0
    %6757 = vmatprep.subr.mxu0 0.0
    %6758 = vmatpush2.msra.mxu0 0.0
    %6759 = vmatprep.subr.mxu0 0.0
    %6760 = vmatpush2.msra.mxu0 0.0
    %6761 = vmatprep.subr.mxu0 0.0
    %6762 = vmatpush2.msra.mxu0 0.0
    %6763 = vmatprep.subr.mxu0 0.0
    %6764 = vmatpush2.msra.mxu0 0.0
    %6765 = vmatprep.subr.mxu0 0.0
    %6766 = vmatpush2.msra.mxu0 0.0
    %6767 = vmatprep.subr.mxu0 0.0
    %6768 = vmatpush2.msra.mxu0 0.0
    %6769 = vmatprep.subr.mxu0 0.0
    %6770 = vmatpush2.msra.mxu0 0.0
    %6771 = vmatprep.subr.mxu0 0.0
    %6772 = vmatpush2.msra.mxu0 0.0
    %6773 = vmatprep.subr.mxu0 0.0
    %6774 = vmatpush2.msra.mxu0 0.0
    %6775 = vmatprep.subr.mxu0 0.0
    %6776 = vmatpush2.msra.mxu0 0.0
    %6777 = vmatprep.subr.mxu0 0.0
    %6778 = vmatpush2.msra.mxu0 0.0
    %6779 = vmatprep.subr.mxu0 0.0
    %6780 = vmatpush2.msra.mxu0 0.0
    %6781 = vmatprep.subr.mxu0 0.0
    %6782 = vmatpush2.msra.mxu0 0.0
    %6783 = vmatprep.mubr.f32.mxu0 0.0
    %v6784 = vand.u32 %v6303, 4294901760
    %6785 = vmatmul.mubr.f32.gmra.mxu0 %v6784
    %v6786 = vpop.f32.mrf.mxu0
    %v6787 = vadd.f32 %v6712, %v6786
    %v6788 = vpop.f32.mrf.mxu0
    %6789 = vdwg.mxu0
    %v6790 = vadd.f32 %v2805, %v6787
    %v6791 = vxor.u32 %v6790, 2147483648
    %v6792 = vmul.f32 %v6791, 1.442695
    %v6793 = vpow.pop %v6792
    %v6794 = vadd.f32 %v6793, 1.0
    %v6795 = vrcp.pop %v6794
    %v6796 = vmul.f32 1.0, %v6795
    %v6797 = vtanh.pop %v6790
    %v6798 = vmul.f32 %v6796, %v6293
    %6800 = vrot.lane.b32.xlu0 %v6797, 64
    %v6801 = vpop.permute.xlu0 %6800
    %v6803 = vmul.f32 %v6796, %v6801
    %6805 = vrot.lane.b32.xlu0 %v6803, 32
    %v6806 = vpop.permute.xlu0 %6805
    %v6808 = vadd.f32 %v6798, %v6806
    %v6809 = vtanh.pop %v6808
    %6811 = vrot.lane.b32.xlu0 %v6809, 64
    %v6812 = vpop.permute.xlu0 %6811
    %v6814 = vmul.f32 %v6796, %v6812
    %6816 = vrot.lane.b32.xlu0 %v6814, 32
    %v6817 = vpop.permute.xlu0 %6816
    %v6818 = vsel %vm3726, %v6817, 0
    %6820 = vmatprep.subr.mxu0 0.0
    %6821 = vmatpush1.msra.mxu0 0.0
    %6822 = vmatprep.subr.mxu0 0.0
    %6823 = vmatpush1.msra.mxu0 0.0
    %6824 = vmatprep.subr.mxu0 0.0
    %6825 = vmatpush1.msra.mxu0 0.0
    %6826 = vmatprep.subr.mxu0 0.0
    %6827 = vmatpush1.msra.mxu0 0.0
    %6828 = vmatprep.subr.mxu0 0.0
    %6829 = vmatpush1.msra.mxu0 0.0
    %6830 = vmatprep.subr.mxu0 0.0
    %6831 = vmatpush1.msra.mxu0 0.0
    %6832 = vmatprep.subr.mxu0 0.0
    %6833 = vmatpush1.msra.mxu0 0.0
    %6834 = vmatprep.subr.mxu0 0.0
    %6835 = vmatpush1.msra.mxu0 0.0
    %6836 = vmatprep.subr.mxu0 0.0
    %6837 = vmatpush1.msra.mxu0 0.0
    %6838 = vmatprep.subr.mxu0 0.0
    %6839 = vmatpush1.msra.mxu0 0.0
    %6840 = vmatprep.subr.mxu0 0.0
    %6841 = vmatpush1.msra.mxu0 0.0
    %6842 = vmatprep.subr.mxu0 0.0
    %6843 = vmatpush1.msra.mxu0 0.0
    %6844 = vmatprep.subr.mxu0 0.0
    %v6845 = vand.u32 %v29, 4294901760
    %6846 = vmatpush1.msra.mxu0 %v6845
    %6847 = vmatprep.subr.mxu0 0.0
    %v6848 = vand.u32 %v28, 4294901760
    %6849 = vmatpush1.msra.mxu0 %v6848
    %6850 = vmatprep.subr.mxu0 0.0
    %v6851 = vand.u32 %v27, 4294901760
    %6852 = vmatpush1.msra.mxu0 %v6851
    %6853 = vmatprep.subr.mxu0 0.0
    %v6854 = vand.u32 %v26, 4294901760
    %6855 = vmatpush1.msra.mxu0 %v6854
    %6856 = vmatprep.subr.mxu0 0.0
    %6857 = vmatpush2.msra.mxu0 0.0
    %6858 = vmatprep.subr.mxu0 0.0
    %6859 = vmatpush2.msra.mxu0 0.0
    %6860 = vmatprep.subr.mxu0 0.0
    %6861 = vmatpush2.msra.mxu0 0.0
    %6862 = vmatprep.subr.mxu0 0.0
    %6863 = vmatpush2.msra.mxu0 0.0
    %6864 = vmatprep.subr.mxu0 0.0
    %6865 = vmatpush2.msra.mxu0 0.0
    %6866 = vmatprep.subr.mxu0 0.0
    %6867 = vmatpush2.msra.mxu0 0.0
    %6868 = vmatprep.subr.mxu0 0.0
    %6869 = vmatpush2.msra.mxu0 0.0
    %6870 = vmatprep.subr.mxu0 0.0
    %6871 = vmatpush2.msra.mxu0 0.0
    %6872 = vmatprep.subr.mxu0 0.0
    %6873 = vmatpush2.msra.mxu0 0.0
    %6874 = vmatprep.subr.mxu0 0.0
    %6875 = vmatpush2.msra.mxu0 0.0
    %6876 = vmatprep.subr.mxu0 0.0
    %6877 = vmatpush2.msra.mxu0 0.0
    %6878 = vmatprep.subr.mxu0 0.0
    %6879 = vmatpush2.msra.mxu0 0.0
    %6880 = vmatprep.subr.mxu0 0.0
    %6881 = vmatpush2.msra.mxu0 0.0
    %6882 = vmatprep.subr.mxu0 0.0
    %6883 = vmatpush2.msra.mxu0 0.0
    %6884 = vmatprep.subr.mxu0 0.0
    %6885 = vmatpush2.msra.mxu0 0.0
    %6886 = vmatprep.subr.mxu0 0.0
    %6887 = vmatpush2.msra.mxu0 0.0
    %6888 = vmatprep.mubr.f32.mxu0 0.0
    %v6889 = vand.u32 %v6818, 4294901760
    %v6890 = vsub.f32 %v6818, %v6889
    %v6891 = vand.u32 %v6890, 4294901760
    %v6892 = vsub.f32 %v6890, %v6891
    %v6893 = vand.u32 %v6892, 4294901760
    %6894 = vmatmul.mubr.f32.gmra.mxu0 %v6893
    %v6895 = vpop.f32.mrf.mxu0
    %v6896 = vadd.f32 0.0, %v6895
    %v6897 = vpop.f32.mrf.mxu0
    %6898 = vdwg.mxu0
    %6899 = vmatprep.subr.mxu0 0.0
    %6900 = vmatpush1.msra.mxu0 0.0
    %6901 = vmatprep.subr.mxu0 0.0
    %6902 = vmatpush1.msra.mxu0 0.0
    %6903 = vmatprep.subr.mxu0 0.0
    %6904 = vmatpush1.msra.mxu0 0.0
    %6905 = vmatprep.subr.mxu0 0.0
    %6906 = vmatpush1.msra.mxu0 0.0
    %6907 = vmatprep.subr.mxu0 0.0
    %6908 = vmatpush1.msra.mxu0 0.0
    %6909 = vmatprep.subr.mxu0 0.0
    %6910 = vmatpush1.msra.mxu0 0.0
    %6911 = vmatprep.subr.mxu0 0.0
    %6912 = vmatpush1.msra.mxu0 0.0
    %6913 = vmatprep.subr.mxu0 0.0
    %6914 = vmatpush1.msra.mxu0 0.0
    %6915 = vmatprep.subr.mxu0 0.0
    %6916 = vmatpush1.msra.mxu0 0.0
    %6917 = vmatprep.subr.mxu0 0.0
    %6918 = vmatpush1.msra.mxu0 0.0
    %6919 = vmatprep.subr.mxu0 0.0
    %6920 = vmatpush1.msra.mxu0 0.0
    %6921 = vmatprep.subr.mxu0 0.0
    %6922 = vmatpush1.msra.mxu0 0.0
    %6923 = vmatprep.subr.mxu0 0.0
    %v6924 = vand.u32 %v29, 4294901760
    %v6925 = vsub.f32 %v29, %v6924
    %v6926 = vand.u32 %v6925, 4294901760
    %v6927 = vsub.f32 %v6925, %v6926
    %v6928 = vand.u32 %v6927, 4294901760
    %6929 = vmatpush1.msra.mxu0 %v6928
    %6930 = vmatprep.subr.mxu0 0.0
    %v6931 = vand.u32 %v28, 4294901760
    %v6932 = vsub.f32 %v28, %v6931
    %v6933 = vand.u32 %v6932, 4294901760
    %v6934 = vsub.f32 %v6932, %v6933
    %v6935 = vand.u32 %v6934, 4294901760
    %6936 = vmatpush1.msra.mxu0 %v6935
    %6937 = vmatprep.subr.mxu0 0.0
    %v6938 = vand.u32 %v27, 4294901760
    %v6939 = vsub.f32 %v27, %v6938
    %v6940 = vand.u32 %v6939, 4294901760
    %v6941 = vsub.f32 %v6939, %v6940
    %v6942 = vand.u32 %v6941, 4294901760
    %6943 = vmatpush1.msra.mxu0 %v6942
    %6944 = vmatprep.subr.mxu0 0.0
    %v6945 = vand.u32 %v26, 4294901760
    %v6946 = vsub.f32 %v26, %v6945
    %v6947 = vand.u32 %v6946, 4294901760
    %v6948 = vsub.f32 %v6946, %v6947
    %v6949 = vand.u32 %v6948, 4294901760
    %6950 = vmatpush1.msra.mxu0 %v6949
    %6951 = vmatprep.subr.mxu0 0.0
    %6952 = vmatpush2.msra.mxu0 0.0
    %6953 = vmatprep.subr.mxu0 0.0
    %6954 = vmatpush2.msra.mxu0 0.0
    %6955 = vmatprep.subr.mxu0 0.0
    %6956 = vmatpush2.msra.mxu0 0.0
    %6957 = vmatprep.subr.mxu0 0.0
    %6958 = vmatpush2.msra.mxu0 0.0
    %6959 = vmatprep.subr.mxu0 0.0
    %6960 = vmatpush2.msra.mxu0 0.0
    %6961 = vmatprep.subr.mxu0 0.0
    %6962 = vmatpush2.msra.mxu0 0.0
    %6963 = vmatprep.subr.mxu0 0.0
    %6964 = vmatpush2.msra.mxu0 0.0
    %6965 = vmatprep.subr.mxu0 0.0
    %6966 = vmatpush2.msra.mxu0 0.0
    %6967 = vmatprep.subr.mxu0 0.0
    %6968 = vmatpush2.msra.mxu0 0.0
    %6969 = vmatprep.subr.mxu0 0.0
    %6970 = vmatpush2.msra.mxu0 0.0
    %6971 = vmatprep.subr.mxu0 0.0
    %6972 = vmatpush2.msra.mxu0 0.0
    %6973 = vmatprep.subr.mxu0 0.0
    %6974 = vmatpush2.msra.mxu0 0.0
    %6975 = vmatprep.subr.mxu0 0.0
    %6976 = vmatpush2.msra.mxu0 0.0
    %6977 = vmatprep.subr.mxu0 0.0
    %6978 = vmatpush2.msra.mxu0 0.0
    %6979 = vmatprep.subr.mxu0 0.0
    %6980 = vmatpush2.msra.mxu0 0.0
    %6981 = vmatprep.subr.mxu0 0.0
    %6982 = vmatpush2.msra.mxu0 0.0
    %6983 = vmatprep.mubr.f32.mxu0 0.0
    %v6984 = vand.u32 %v6818, 4294901760
    %6985 = vmatmul.mubr.f32.gmra.mxu0 %v6984
    %v6986 = vpop.f32.mrf.mxu0
    %v6987 = vadd.f32 %v6896, %v6986
    %v6988 = vpop.f32.mrf.mxu0
    %6989 = vdwg.mxu0
    %6990 = vmatprep.subr.mxu0 0.0
    %6991 = vmatpush1.msra.mxu0 0.0
    %6992 = vmatprep.subr.mxu0 0.0
    %6993 = vmatpush1.msra.mxu0 0.0
    %6994 = vmatprep.subr.mxu0 0.0
    %6995 = vmatpush1.msra.mxu0 0.0
    %6996 = vmatprep.subr.mxu0 0.0
    %6997 = vmatpush1.msra.mxu0 0.0
    %6998 = vmatprep.subr.mxu0 0.0
    %6999 = vmatpush1.msra.mxu0 0.0
    %7000 = vmatprep.subr.mxu0 0.0
    %7001 = vmatpush1.msra.mxu0 0.0
    %7002 = vmatprep.subr.mxu0 0.0
    %7003 = vmatpush1.msra.mxu0 0.0
    %7004 = vmatprep.subr.mxu0 0.0
    %7005 = vmatpush1.msra.mxu0 0.0
    %7006 = vmatprep.subr.mxu0 0.0
    %7007 = vmatpush1.msra.mxu0 0.0
    %7008 = vmatprep.subr.mxu0 0.0
    %7009 = vmatpush1.msra.mxu0 0.0
    %7010 = vmatprep.subr.mxu0 0.0
    %7011 = vmatpush1.msra.mxu0 0.0
    %7012 = vmatprep.subr.mxu0 0.0
    %7013 = vmatpush1.msra.mxu0 0.0
    %7014 = vmatprep.subr.mxu0 0.0
    %v7015 = vand.u32 %v29, 4294901760
    %v7016 = vsub.f32 %v29, %v7015
    %7017 = vmatpush1.msra.mxu0 %v7016
    %7018 = vmatprep.subr.mxu0 0.0
    %v7019 = vand.u32 %v28, 4294901760
    %v7020 = vsub.f32 %v28, %v7019
    %7021 = vmatpush1.msra.mxu0 %v7020
    %7022 = vmatprep.subr.mxu0 0.0
    %v7023 = vand.u32 %v27, 4294901760
    %v7024 = vsub.f32 %v27, %v7023
    %7025 = vmatpush1.msra.mxu0 %v7024
    %7026 = vmatprep.subr.mxu0 0.0
    %v7027 = vand.u32 %v26, 4294901760
    %v7028 = vsub.f32 %v26, %v7027
    %7029 = vmatpush1.msra.mxu0 %v7028
    %7030 = vmatprep.subr.mxu0 0.0
    %7031 = vmatpush2.msra.mxu0 0.0
    %7032 = vmatprep.subr.mxu0 0.0
    %7033 = vmatpush2.msra.mxu0 0.0
    %7034 = vmatprep.subr.mxu0 0.0
    %7035 = vmatpush2.msra.mxu0 0.0
    %7036 = vmatprep.subr.mxu0 0.0
    %7037 = vmatpush2.msra.mxu0 0.0
    %7038 = vmatprep.subr.mxu0 0.0
    %7039 = vmatpush2.msra.mxu0 0.0
    %7040 = vmatprep.subr.mxu0 0.0
    %7041 = vmatpush2.msra.mxu0 0.0
    %7042 = vmatprep.subr.mxu0 0.0
    %7043 = vmatpush2.msra.mxu0 0.0
    %7044 = vmatprep.subr.mxu0 0.0
    %7045 = vmatpush2.msra.mxu0 0.0
    %7046 = vmatprep.subr.mxu0 0.0
    %7047 = vmatpush2.msra.mxu0 0.0
    %7048 = vmatprep.subr.mxu0 0.0
    %7049 = vmatpush2.msra.mxu0 0.0
    %7050 = vmatprep.subr.mxu0 0.0
    %7051 = vmatpush2.msra.mxu0 0.0
    %7052 = vmatprep.subr.mxu0 0.0
    %7053 = vmatpush2.msra.mxu0 0.0
    %7054 = vmatprep.subr.mxu0 0.0
    %7055 = vmatpush2.msra.mxu0 0.0
    %7056 = vmatprep.subr.mxu0 0.0
    %7057 = vmatpush2.msra.mxu0 0.0
    %7058 = vmatprep.subr.mxu0 0.0
    %7059 = vmatpush2.msra.mxu0 0.0
    %7060 = vmatprep.subr.mxu0 0.0
    %7061 = vmatpush2.msra.mxu0 0.0
    %7062 = vmatprep.mubr.f32.mxu0 0.0
    %v7063 = vand.u32 %v6818, 4294901760
    %v7064 = vsub.f32 %v6818, %v7063
    %7065 = vmatmul.mubr.f32.gmra.mxu0 %v7064
    %v7066 = vpop.f32.mrf.mxu0
    %v7067 = vadd.f32 %v6987, %v7066
    %v7068 = vpop.f32.mrf.mxu0
    %7069 = vdwg.mxu0
    %7070 = vmatprep.subr.mxu0 0.0
    %7071 = vmatpush1.msra.mxu0 0.0
    %7072 = vmatprep.subr.mxu0 0.0
    %7073 = vmatpush1.msra.mxu0 0.0
    %7074 = vmatprep.subr.mxu0 0.0
    %7075 = vmatpush1.msra.mxu0 0.0
    %7076 = vmatprep.subr.mxu0 0.0
    %7077 = vmatpush1.msra.mxu0 0.0
    %7078 = vmatprep.subr.mxu0 0.0
    %7079 = vmatpush1.msra.mxu0 0.0
    %7080 = vmatprep.subr.mxu0 0.0
    %7081 = vmatpush1.msra.mxu0 0.0
    %7082 = vmatprep.subr.mxu0 0.0
    %7083 = vmatpush1.msra.mxu0 0.0
    %7084 = vmatprep.subr.mxu0 0.0
    %7085 = vmatpush1.msra.mxu0 0.0
    %7086 = vmatprep.subr.mxu0 0.0
    %7087 = vmatpush1.msra.mxu0 0.0
    %7088 = vmatprep.subr.mxu0 0.0
    %7089 = vmatpush1.msra.mxu0 0.0
    %7090 = vmatprep.subr.mxu0 0.0
    %7091 = vmatpush1.msra.mxu0 0.0
    %7092 = vmatprep.subr.mxu0 0.0
    %7093 = vmatpush1.msra.mxu0 0.0
    %7094 = vmatprep.subr.mxu0 0.0
    %v7095 = vand.u32 %v29, 4294901760
    %7096 = vmatpush1.msra.mxu0 %v7095
    %7097 = vmatprep.subr.mxu0 0.0
    %v7098 = vand.u32 %v28, 4294901760
    %7099 = vmatpush1.msra.mxu0 %v7098
    %7100 = vmatprep.subr.mxu0 0.0
    %v7101 = vand.u32 %v27, 4294901760
    %7102 = vmatpush1.msra.mxu0 %v7101
    %7103 = vmatprep.subr.mxu0 0.0
    %v7104 = vand.u32 %v26, 4294901760
    %7105 = vmatpush1.msra.mxu0 %v7104
    %7106 = vmatprep.subr.mxu0 0.0
    %7107 = vmatpush2.msra.mxu0 0.0
    %7108 = vmatprep.subr.mxu0 0.0
    %7109 = vmatpush2.msra.mxu0 0.0
    %7110 = vmatprep.subr.mxu0 0.0
    %7111 = vmatpush2.msra.mxu0 0.0
    %7112 = vmatprep.subr.mxu0 0.0
    %7113 = vmatpush2.msra.mxu0 0.0
    %7114 = vmatprep.subr.mxu0 0.0
    %7115 = vmatpush2.msra.mxu0 0.0
    %7116 = vmatprep.subr.mxu0 0.0
    %7117 = vmatpush2.msra.mxu0 0.0
    %7118 = vmatprep.subr.mxu0 0.0
    %7119 = vmatpush2.msra.mxu0 0.0
    %7120 = vmatprep.subr.mxu0 0.0
    %7121 = vmatpush2.msra.mxu0 0.0
    %7122 = vmatprep.subr.mxu0 0.0
    %7123 = vmatpush2.msra.mxu0 0.0
    %7124 = vmatprep.subr.mxu0 0.0
    %7125 = vmatpush2.msra.mxu0 0.0
    %7126 = vmatprep.subr.mxu0 0.0
    %7127 = vmatpush2.msra.mxu0 0.0
    %7128 = vmatprep.subr.mxu0 0.0
    %7129 = vmatpush2.msra.mxu0 0.0
    %7130 = vmatprep.subr.mxu0 0.0
    %7131 = vmatpush2.msra.mxu0 0.0
    %7132 = vmatprep.subr.mxu0 0.0
    %7133 = vmatpush2.msra.mxu0 0.0
    %7134 = vmatprep.subr.mxu0 0.0
    %7135 = vmatpush2.msra.mxu0 0.0
    %7136 = vmatprep.subr.mxu0 0.0
    %7137 = vmatpush2.msra.mxu0 0.0
    %7138 = vmatprep.mubr.f32.mxu0 0.0
    %v7139 = vand.u32 %v6818, 4294901760
    %v7140 = vsub.f32 %v6818, %v7139
    %v7141 = vand.u32 %v7140, 4294901760
    %7142 = vmatmul.mubr.f32.gmra.mxu0 %v7141
    %v7143 = vpop.f32.mrf.mxu0
    %v7144 = vadd.f32 %v7067, %v7143
    %v7145 = vpop.f32.mrf.mxu0
    %7146 = vdwg.mxu0
    %7147 = vmatprep.subr.mxu0 0.0
    %7148 = vmatpush1.msra.mxu0 0.0
    %7149 = vmatprep.subr.mxu0 0.0
    %7150 = vmatpush1.msra.mxu0 0.0
    %7151 = vmatprep.subr.mxu0 0.0
    %7152 = vmatpush1.msra.mxu0 0.0
    %7153 = vmatprep.subr.mxu0 0.0
    %7154 = vmatpush1.msra.mxu0 0.0
    %7155 = vmatprep.subr.mxu0 0.0
    %7156 = vmatpush1.msra.mxu0 0.0
    %7157 = vmatprep.subr.mxu0 0.0
    %7158 = vmatpush1.msra.mxu0 0.0
    %7159 = vmatprep.subr.mxu0 0.0
    %7160 = vmatpush1.msra.mxu0 0.0
    %7161 = vmatprep.subr.mxu0 0.0
    %7162 = vmatpush1.msra.mxu0 0.0
    %7163 = vmatprep.subr.mxu0 0.0
    %7164 = vmatpush1.msra.mxu0 0.0
    %7165 = vmatprep.subr.mxu0 0.0
    %7166 = vmatpush1.msra.mxu0 0.0
    %7167 = vmatprep.subr.mxu0 0.0
    %7168 = vmatpush1.msra.mxu0 0.0
    %7169 = vmatprep.subr.mxu0 0.0
    %7170 = vmatpush1.msra.mxu0 0.0
    %7171 = vmatprep.subr.mxu0 0.0
    %v7172 = vand.u32 %v29, 4294901760
    %v7173 = vsub.f32 %v29, %v7172
    %v7174 = vand.u32 %v7173, 4294901760
    %7175 = vmatpush1.msra.mxu0 %v7174
    %7176 = vmatprep.subr.mxu0 0.0
    %v7177 = vand.u32 %v28, 4294901760
    %v7178 = vsub.f32 %v28, %v7177
    %v7179 = vand.u32 %v7178, 4294901760
    %7180 = vmatpush1.msra.mxu0 %v7179
    %7181 = vmatprep.subr.mxu0 0.0
    %v7182 = vand.u32 %v27, 4294901760
    %v7183 = vsub.f32 %v27, %v7182
    %v7184 = vand.u32 %v7183, 4294901760
    %7185 = vmatpush1.msra.mxu0 %v7184
    %7186 = vmatprep.subr.mxu0 0.0
    %v7187 = vand.u32 %v26, 4294901760
    %v7188 = vsub.f32 %v26, %v7187
    %v7189 = vand.u32 %v7188, 4294901760
    %7190 = vmatpush1.msra.mxu0 %v7189
    %7191 = vmatprep.subr.mxu0 0.0
    %7192 = vmatpush2.msra.mxu0 0.0
    %7193 = vmatprep.subr.mxu0 0.0
    %7194 = vmatpush2.msra.mxu0 0.0
    %7195 = vmatprep.subr.mxu0 0.0
    %7196 = vmatpush2.msra.mxu0 0.0
    %7197 = vmatprep.subr.mxu0 0.0
    %7198 = vmatpush2.msra.mxu0 0.0
    %7199 = vmatprep.subr.mxu0 0.0
    %7200 = vmatpush2.msra.mxu0 0.0
    %7201 = vmatprep.subr.mxu0 0.0
    %7202 = vmatpush2.msra.mxu0 0.0
    %7203 = vmatprep.subr.mxu0 0.0
    %7204 = vmatpush2.msra.mxu0 0.0
    %7205 = vmatprep.subr.mxu0 0.0
    %7206 = vmatpush2.msra.mxu0 0.0
    %7207 = vmatprep.subr.mxu0 0.0
    %7208 = vmatpush2.msra.mxu0 0.0
    %7209 = vmatprep.subr.mxu0 0.0
    %7210 = vmatpush2.msra.mxu0 0.0
    %7211 = vmatprep.subr.mxu0 0.0
    %7212 = vmatpush2.msra.mxu0 0.0
    %7213 = vmatprep.subr.mxu0 0.0
    %7214 = vmatpush2.msra.mxu0 0.0
    %7215 = vmatprep.subr.mxu0 0.0
    %7216 = vmatpush2.msra.mxu0 0.0
    %7217 = vmatprep.subr.mxu0 0.0
    %7218 = vmatpush2.msra.mxu0 0.0
    %7219 = vmatprep.subr.mxu0 0.0
    %7220 = vmatpush2.msra.mxu0 0.0
    %7221 = vmatprep.subr.mxu0 0.0
    %7222 = vmatpush2.msra.mxu0 0.0
    %7223 = vmatprep.mubr.f32.mxu0 0.0
    %v7224 = vand.u32 %v6818, 4294901760
    %7225 = vmatmul.mubr.f32.gmra.mxu0 %v7224
    %v7226 = vpop.f32.mrf.mxu0
    %v7227 = vadd.f32 %v7144, %v7226
    %v7228 = vpop.f32.mrf.mxu0
    %7229 = vdwg.mxu0
    %7230 = vmatprep.subr.mxu0 0.0
    %7231 = vmatpush1.msra.mxu0 0.0
    %7232 = vmatprep.subr.mxu0 0.0
    %7233 = vmatpush1.msra.mxu0 0.0
    %7234 = vmatprep.subr.mxu0 0.0
    %7235 = vmatpush1.msra.mxu0 0.0
    %7236 = vmatprep.subr.mxu0 0.0
    %7237 = vmatpush1.msra.mxu0 0.0
    %7238 = vmatprep.subr.mxu0 0.0
    %7239 = vmatpush1.msra.mxu0 0.0
    %7240 = vmatprep.subr.mxu0 0.0
    %7241 = vmatpush1.msra.mxu0 0.0
    %7242 = vmatprep.subr.mxu0 0.0
    %7243 = vmatpush1.msra.mxu0 0.0
    %7244 = vmatprep.subr.mxu0 0.0
    %7245 = vmatpush1.msra.mxu0 0.0
    %7246 = vmatprep.subr.mxu0 0.0
    %7247 = vmatpush1.msra.mxu0 0.0
    %7248 = vmatprep.subr.mxu0 0.0
    %7249 = vmatpush1.msra.mxu0 0.0
    %7250 = vmatprep.subr.mxu0 0.0
    %7251 = vmatpush1.msra.mxu0 0.0
    %7252 = vmatprep.subr.mxu0 0.0
    %7253 = vmatpush1.msra.mxu0 0.0
    %7254 = vmatprep.subr.mxu0 0.0
    %v7255 = vand.u32 %v29, 4294901760
    %7256 = vmatpush1.msra.mxu0 %v7255
    %7257 = vmatprep.subr.mxu0 0.0
    %v7258 = vand.u32 %v28, 4294901760
    %7259 = vmatpush1.msra.mxu0 %v7258
    %7260 = vmatprep.subr.mxu0 0.0
    %v7261 = vand.u32 %v27, 4294901760
    %7262 = vmatpush1.msra.mxu0 %v7261
    %7263 = vmatprep.subr.mxu0 0.0
    %v7264 = vand.u32 %v26, 4294901760
    %7265 = vmatpush1.msra.mxu0 %v7264
    %7266 = vmatprep.subr.mxu0 0.0
    %7267 = vmatpush2.msra.mxu0 0.0
    %7268 = vmatprep.subr.mxu0 0.0
    %7269 = vmatpush2.msra.mxu0 0.0
    %7270 = vmatprep.subr.mxu0 0.0
    %7271 = vmatpush2.msra.mxu0 0.0
    %7272 = vmatprep.subr.mxu0 0.0
    %7273 = vmatpush2.msra.mxu0 0.0
    %7274 = vmatprep.subr.mxu0 0.0
    %7275 = vmatpush2.msra.mxu0 0.0
    %7276 = vmatprep.subr.mxu0 0.0
    %7277 = vmatpush2.msra.mxu0 0.0
    %7278 = vmatprep.subr.mxu0 0.0
    %7279 = vmatpush2.msra.mxu0 0.0
    %7280 = vmatprep.subr.mxu0 0.0
    %7281 = vmatpush2.msra.mxu0 0.0
    %7282 = vmatprep.subr.mxu0 0.0
    %7283 = vmatpush2.msra.mxu0 0.0
    %7284 = vmatprep.subr.mxu0 0.0
    %7285 = vmatpush2.msra.mxu0 0.0
    %7286 = vmatprep.subr.mxu0 0.0
    %7287 = vmatpush2.msra.mxu0 0.0
    %7288 = vmatprep.subr.mxu0 0.0
    %7289 = vmatpush2.msra.mxu0 0.0
    %7290 = vmatprep.subr.mxu0 0.0
    %7291 = vmatpush2.msra.mxu0 0.0
    %7292 = vmatprep.subr.mxu0 0.0
    %7293 = vmatpush2.msra.mxu0 0.0
    %7294 = vmatprep.subr.mxu0 0.0
    %7295 = vmatpush2.msra.mxu0 0.0
    %7296 = vmatprep.subr.mxu0 0.0
    %7297 = vmatpush2.msra.mxu0 0.0
    %7298 = vmatprep.mubr.f32.mxu0 0.0
    %v7299 = vand.u32 %v6818, 4294901760
    %7300 = vmatmul.mubr.f32.gmra.mxu0 %v7299
    %v7301 = vpop.f32.mrf.mxu0
    %v7302 = vadd.f32 %v7227, %v7301
    %v7303 = vpop.f32.mrf.mxu0
    %7304 = vdwg.mxu0
    %v7305 = vadd.f32 %v3265, %v7302
    %v7306 = vxor.u32 %v7305, 2147483648
    %v7307 = vmul.f32 %v7306, 1.442695
    %v7308 = vpow.pop %v7307
    %v7309 = vadd.f32 %v7308, 1.0
    %v7310 = vrcp.pop %v7309
    %v7311 = vmul.f32 1.0, %v7310
    %v7312 = vtanh.pop %v7305
    %v7313 = vmul.f32 %v7311, %v6808
    %7315 = vrot.lane.b32.xlu0 %v7312, 64
    %v7316 = vpop.permute.xlu0 %7315
    %v7318 = vmul.f32 %v7311, %v7316
    %7320 = vrot.lane.b32.xlu0 %v7318, 32
    %v7321 = vpop.permute.xlu0 %7320
    %v7323 = vadd.f32 %v7313, %v7321
    %v7324 = vtanh.pop %v7323
    %7326 = vrot.lane.b32.xlu0 %v7324, 64
    %v7327 = vpop.permute.xlu0 %7326
    %v7329 = vmul.f32 %v7311, %v7327
    %7331 = vrot.lane.b32.xlu0 %v7329, 32
    %v7332 = vpop.permute.xlu0 %7331
    %v7333 = vsel %vm3726, %v7332, 0
    %7335 = vmatprep.subr.mxu0 0.0
    %7336 = vmatpush1.msra.mxu0 0.0
    %7337 = vmatprep.subr.mxu0 0.0
    %7338 = vmatpush1.msra.mxu0 0.0
    %7339 = vmatprep.subr.mxu0 0.0
    %7340 = vmatpush1.msra.mxu0 0.0
    %7341 = vmatprep.subr.mxu0 0.0
    %7342 = vmatpush1.msra.mxu0 0.0
    %7343 = vmatprep.subr.mxu0 0.0
    %7344 = vmatpush1.msra.mxu0 0.0
    %7345 = vmatprep.subr.mxu0 0.0
    %7346 = vmatpush1.msra.mxu0 0.0
    %7347 = vmatprep.subr.mxu0 0.0
    %7348 = vmatpush1.msra.mxu0 0.0
    %7349 = vmatprep.subr.mxu0 0.0
    %7350 = vmatpush1.msra.mxu0 0.0
    %7351 = vmatprep.subr.mxu0 0.0
    %7352 = vmatpush1.msra.mxu0 0.0
    %7353 = vmatprep.subr.mxu0 0.0
    %7354 = vmatpush1.msra.mxu0 0.0
    %7355 = vmatprep.subr.mxu0 0.0
    %7356 = vmatpush1.msra.mxu0 0.0
    %7357 = vmatprep.subr.mxu0 0.0
    %7358 = vmatpush1.msra.mxu0 0.0
    %7359 = vmatprep.subr.mxu0 0.0
    %v7360 = vand.u32 %v29, 4294901760
    %7361 = vmatpush1.msra.mxu0 %v7360
    %7362 = vmatprep.subr.mxu0 0.0
    %v7363 = vand.u32 %v28, 4294901760
    %7364 = vmatpush1.msra.mxu0 %v7363
    %7365 = vmatprep.subr.mxu0 0.0
    %v7366 = vand.u32 %v27, 4294901760
    %7367 = vmatpush1.msra.mxu0 %v7366
    %7368 = vmatprep.subr.mxu0 0.0
    %v7369 = vand.u32 %v26, 4294901760
    %7370 = vmatpush1.msra.mxu0 %v7369
    %7371 = vmatprep.subr.mxu0 0.0
    %7372 = vmatpush2.msra.mxu0 0.0
    %7373 = vmatprep.subr.mxu0 0.0
    %7374 = vmatpush2.msra.mxu0 0.0
    %7375 = vmatprep.subr.mxu0 0.0
    %7376 = vmatpush2.msra.mxu0 0.0
    %7377 = vmatprep.subr.mxu0 0.0
    %7378 = vmatpush2.msra.mxu0 0.0
    %7379 = vmatprep.subr.mxu0 0.0
    %7380 = vmatpush2.msra.mxu0 0.0
    %7381 = vmatprep.subr.mxu0 0.0
    %7382 = vmatpush2.msra.mxu0 0.0
    %7383 = vmatprep.subr.mxu0 0.0
    %7384 = vmatpush2.msra.mxu0 0.0
    %7385 = vmatprep.subr.mxu0 0.0
    %7386 = vmatpush2.msra.mxu0 0.0
    %7387 = vmatprep.subr.mxu0 0.0
    %7388 = vmatpush2.msra.mxu0 0.0
    %7389 = vmatprep.subr.mxu0 0.0
    %7390 = vmatpush2.msra.mxu0 0.0
    %7391 = vmatprep.subr.mxu0 0.0
    %7392 = vmatpush2.msra.mxu0 0.0
    %7393 = vmatprep.subr.mxu0 0.0
    %7394 = vmatpush2.msra.mxu0 0.0
    %7395 = vmatprep.subr.mxu0 0.0
    %7396 = vmatpush2.msra.mxu0 0.0
    %7397 = vmatprep.subr.mxu0 0.0
    %7398 = vmatpush2.msra.mxu0 0.0
    %7399 = vmatprep.subr.mxu0 0.0
    %7400 = vmatpush2.msra.mxu0 0.0
    %7401 = vmatprep.subr.mxu0 0.0
    %7402 = vmatpush2.msra.mxu0 0.0
    %7403 = vmatprep.mubr.f32.mxu0 0.0
    %v7404 = vand.u32 %v7333, 4294901760
    %v7405 = vsub.f32 %v7333, %v7404
    %v7406 = vand.u32 %v7405, 4294901760
    %v7407 = vsub.f32 %v7405, %v7406
    %v7408 = vand.u32 %v7407, 4294901760
    %7409 = vmatmul.mubr.f32.gmra.mxu0 %v7408
    %v7410 = vpop.f32.mrf.mxu0
    %v7411 = vadd.f32 0.0, %v7410
    %v7412 = vpop.f32.mrf.mxu0
    %7413 = vdwg.mxu0
    %7414 = vmatprep.subr.mxu0 0.0
    %7415 = vmatpush1.msra.mxu0 0.0
    %7416 = vmatprep.subr.mxu0 0.0
    %7417 = vmatpush1.msra.mxu0 0.0
    %7418 = vmatprep.subr.mxu0 0.0
    %7419 = vmatpush1.msra.mxu0 0.0
    %7420 = vmatprep.subr.mxu0 0.0
    %7421 = vmatpush1.msra.mxu0 0.0
    %7422 = vmatprep.subr.mxu0 0.0
    %7423 = vmatpush1.msra.mxu0 0.0
    %7424 = vmatprep.subr.mxu0 0.0
    %7425 = vmatpush1.msra.mxu0 0.0
    %7426 = vmatprep.subr.mxu0 0.0
    %7427 = vmatpush1.msra.mxu0 0.0
    %7428 = vmatprep.subr.mxu0 0.0
    %7429 = vmatpush1.msra.mxu0 0.0
    %7430 = vmatprep.subr.mxu0 0.0
    %7431 = vmatpush1.msra.mxu0 0.0
    %7432 = vmatprep.subr.mxu0 0.0
    %7433 = vmatpush1.msra.mxu0 0.0
    %7434 = vmatprep.subr.mxu0 0.0
    %7435 = vmatpush1.msra.mxu0 0.0
    %7436 = vmatprep.subr.mxu0 0.0
    %7437 = vmatpush1.msra.mxu0 0.0
    %7438 = vmatprep.subr.mxu0 0.0
    %v7439 = vand.u32 %v29, 4294901760
    %v7440 = vsub.f32 %v29, %v7439
    %v7441 = vand.u32 %v7440, 4294901760
    %v7442 = vsub.f32 %v7440, %v7441
    %v7443 = vand.u32 %v7442, 4294901760
    %7444 = vmatpush1.msra.mxu0 %v7443
    %7445 = vmatprep.subr.mxu0 0.0
    %v7446 = vand.u32 %v28, 4294901760
    %v7447 = vsub.f32 %v28, %v7446
    %v7448 = vand.u32 %v7447, 4294901760
    %v7449 = vsub.f32 %v7447, %v7448
    %v7450 = vand.u32 %v7449, 4294901760
    %7451 = vmatpush1.msra.mxu0 %v7450
    %7452 = vmatprep.subr.mxu0 0.0
    %v7453 = vand.u32 %v27, 4294901760
    %v7454 = vsub.f32 %v27, %v7453
    %v7455 = vand.u32 %v7454, 4294901760
    %v7456 = vsub.f32 %v7454, %v7455
    %v7457 = vand.u32 %v7456, 4294901760
    %7458 = vmatpush1.msra.mxu0 %v7457
    %7459 = vmatprep.subr.mxu0 0.0
    %v7460 = vand.u32 %v26, 4294901760
    %v7461 = vsub.f32 %v26, %v7460
    %v7462 = vand.u32 %v7461, 4294901760
    %v7463 = vsub.f32 %v7461, %v7462
    %v7464 = vand.u32 %v7463, 4294901760
    %7465 = vmatpush1.msra.mxu0 %v7464
    %7466 = vmatprep.subr.mxu0 0.0
    %7467 = vmatpush2.msra.mxu0 0.0
    %7468 = vmatprep.subr.mxu0 0.0
    %7469 = vmatpush2.msra.mxu0 0.0
    %7470 = vmatprep.subr.mxu0 0.0
    %7471 = vmatpush2.msra.mxu0 0.0
    %7472 = vmatprep.subr.mxu0 0.0
    %7473 = vmatpush2.msra.mxu0 0.0
    %7474 = vmatprep.subr.mxu0 0.0
    %7475 = vmatpush2.msra.mxu0 0.0
    %7476 = vmatprep.subr.mxu0 0.0
    %7477 = vmatpush2.msra.mxu0 0.0
    %7478 = vmatprep.subr.mxu0 0.0
    %7479 = vmatpush2.msra.mxu0 0.0
    %7480 = vmatprep.subr.mxu0 0.0
    %7481 = vmatpush2.msra.mxu0 0.0
    %7482 = vmatprep.subr.mxu0 0.0
    %7483 = vmatpush2.msra.mxu0 0.0
    %7484 = vmatprep.subr.mxu0 0.0
    %7485 = vmatpush2.msra.mxu0 0.0
    %7486 = vmatprep.subr.mxu0 0.0
    %7487 = vmatpush2.msra.mxu0 0.0
    %7488 = vmatprep.subr.mxu0 0.0
    %7489 = vmatpush2.msra.mxu0 0.0
    %7490 = vmatprep.subr.mxu0 0.0
    %7491 = vmatpush2.msra.mxu0 0.0
    %7492 = vmatprep.subr.mxu0 0.0
    %7493 = vmatpush2.msra.mxu0 0.0
    %7494 = vmatprep.subr.mxu0 0.0
    %7495 = vmatpush2.msra.mxu0 0.0
    %7496 = vmatprep.subr.mxu0 0.0
    %7497 = vmatpush2.msra.mxu0 0.0
    %7498 = vmatprep.mubr.f32.mxu0 0.0
    %v7499 = vand.u32 %v7333, 4294901760
    %7500 = vmatmul.mubr.f32.gmra.mxu0 %v7499
    %v7501 = vpop.f32.mrf.mxu0
    %v7502 = vadd.f32 %v7411, %v7501
    %v7503 = vpop.f32.mrf.mxu0
    %7504 = vdwg.mxu0
    %7505 = vmatprep.subr.mxu0 0.0
    %7506 = vmatpush1.msra.mxu0 0.0
    %7507 = vmatprep.subr.mxu0 0.0
    %7508 = vmatpush1.msra.mxu0 0.0
    %7509 = vmatprep.subr.mxu0 0.0
    %7510 = vmatpush1.msra.mxu0 0.0
    %7511 = vmatprep.subr.mxu0 0.0
    %7512 = vmatpush1.msra.mxu0 0.0
    %7513 = vmatprep.subr.mxu0 0.0
    %7514 = vmatpush1.msra.mxu0 0.0
    %7515 = vmatprep.subr.mxu0 0.0
    %7516 = vmatpush1.msra.mxu0 0.0
    %7517 = vmatprep.subr.mxu0 0.0
    %7518 = vmatpush1.msra.mxu0 0.0
    %7519 = vmatprep.subr.mxu0 0.0
    %7520 = vmatpush1.msra.mxu0 0.0
    %7521 = vmatprep.subr.mxu0 0.0
    %7522 = vmatpush1.msra.mxu0 0.0
    %7523 = vmatprep.subr.mxu0 0.0
    %7524 = vmatpush1.msra.mxu0 0.0
    %7525 = vmatprep.subr.mxu0 0.0
    %7526 = vmatpush1.msra.mxu0 0.0
    %7527 = vmatprep.subr.mxu0 0.0
    %7528 = vmatpush1.msra.mxu0 0.0
    %7529 = vmatprep.subr.mxu0 0.0
    %v7530 = vand.u32 %v29, 4294901760
    %v7531 = vsub.f32 %v29, %v7530
    %7532 = vmatpush1.msra.mxu0 %v7531
    %7533 = vmatprep.subr.mxu0 0.0
    %v7534 = vand.u32 %v28, 4294901760
    %v7535 = vsub.f32 %v28, %v7534
    %7536 = vmatpush1.msra.mxu0 %v7535
    %7537 = vmatprep.subr.mxu0 0.0
    %v7538 = vand.u32 %v27, 4294901760
    %v7539 = vsub.f32 %v27, %v7538
    %7540 = vmatpush1.msra.mxu0 %v7539
    %7541 = vmatprep.subr.mxu0 0.0
    %v7542 = vand.u32 %v26, 4294901760
    %v7543 = vsub.f32 %v26, %v7542
    %7544 = vmatpush1.msra.mxu0 %v7543
    %7545 = vmatprep.subr.mxu0 0.0
    %7546 = vmatpush2.msra.mxu0 0.0
    %7547 = vmatprep.subr.mxu0 0.0
    %7548 = vmatpush2.msra.mxu0 0.0
    %7549 = vmatprep.subr.mxu0 0.0
    %7550 = vmatpush2.msra.mxu0 0.0
    %7551 = vmatprep.subr.mxu0 0.0
    %7552 = vmatpush2.msra.mxu0 0.0
    %7553 = vmatprep.subr.mxu0 0.0
    %7554 = vmatpush2.msra.mxu0 0.0
    %7555 = vmatprep.subr.mxu0 0.0
    %7556 = vmatpush2.msra.mxu0 0.0
    %7557 = vmatprep.subr.mxu0 0.0
    %7558 = vmatpush2.msra.mxu0 0.0
    %7559 = vmatprep.subr.mxu0 0.0
    %7560 = vmatpush2.msra.mxu0 0.0
    %7561 = vmatprep.subr.mxu0 0.0
    %7562 = vmatpush2.msra.mxu0 0.0
    %7563 = vmatprep.subr.mxu0 0.0
    %7564 = vmatpush2.msra.mxu0 0.0
    %7565 = vmatprep.subr.mxu0 0.0
    %7566 = vmatpush2.msra.mxu0 0.0
    %7567 = vmatprep.subr.mxu0 0.0
    %7568 = vmatpush2.msra.mxu0 0.0
    %7569 = vmatprep.subr.mxu0 0.0
    %7570 = vmatpush2.msra.mxu0 0.0
    %7571 = vmatprep.subr.mxu0 0.0
    %7572 = vmatpush2.msra.mxu0 0.0
    %7573 = vmatprep.subr.mxu0 0.0
    %7574 = vmatpush2.msra.mxu0 0.0
    %7575 = vmatprep.subr.mxu0 0.0
    %7576 = vmatpush2.msra.mxu0 0.0
    %7577 = vmatprep.mubr.f32.mxu0 0.0
    %v7578 = vand.u32 %v7333, 4294901760
    %v7579 = vsub.f32 %v7333, %v7578
    %7580 = vmatmul.mubr.f32.gmra.mxu0 %v7579
    %v7581 = vpop.f32.mrf.mxu0
    %v7582 = vadd.f32 %v7502, %v7581
    %v7583 = vpop.f32.mrf.mxu0
    %7584 = vdwg.mxu0
    %7585 = vmatprep.subr.mxu0 0.0
    %7586 = vmatpush1.msra.mxu0 0.0
    %7587 = vmatprep.subr.mxu0 0.0
    %7588 = vmatpush1.msra.mxu0 0.0
    %7589 = vmatprep.subr.mxu0 0.0
    %7590 = vmatpush1.msra.mxu0 0.0
    %7591 = vmatprep.subr.mxu0 0.0
    %7592 = vmatpush1.msra.mxu0 0.0
    %7593 = vmatprep.subr.mxu0 0.0
    %7594 = vmatpush1.msra.mxu0 0.0
    %7595 = vmatprep.subr.mxu0 0.0
    %7596 = vmatpush1.msra.mxu0 0.0
    %7597 = vmatprep.subr.mxu0 0.0
    %7598 = vmatpush1.msra.mxu0 0.0
    %7599 = vmatprep.subr.mxu0 0.0
    %7600 = vmatpush1.msra.mxu0 0.0
    %7601 = vmatprep.subr.mxu0 0.0
    %7602 = vmatpush1.msra.mxu0 0.0
    %7603 = vmatprep.subr.mxu0 0.0
    %7604 = vmatpush1.msra.mxu0 0.0
    %7605 = vmatprep.subr.mxu0 0.0
    %7606 = vmatpush1.msra.mxu0 0.0
    %7607 = vmatprep.subr.mxu0 0.0
    %7608 = vmatpush1.msra.mxu0 0.0
    %7609 = vmatprep.subr.mxu0 0.0
    %v7610 = vand.u32 %v29, 4294901760
    %7611 = vmatpush1.msra.mxu0 %v7610
    %7612 = vmatprep.subr.mxu0 0.0
    %v7613 = vand.u32 %v28, 4294901760
    %7614 = vmatpush1.msra.mxu0 %v7613
    %7615 = vmatprep.subr.mxu0 0.0
    %v7616 = vand.u32 %v27, 4294901760
    %7617 = vmatpush1.msra.mxu0 %v7616
    %7618 = vmatprep.subr.mxu0 0.0
    %v7619 = vand.u32 %v26, 4294901760
    %7620 = vmatpush1.msra.mxu0 %v7619
    %7621 = vmatprep.subr.mxu0 0.0
    %7622 = vmatpush2.msra.mxu0 0.0
    %7623 = vmatprep.subr.mxu0 0.0
    %7624 = vmatpush2.msra.mxu0 0.0
    %7625 = vmatprep.subr.mxu0 0.0
    %7626 = vmatpush2.msra.mxu0 0.0
    %7627 = vmatprep.subr.mxu0 0.0
    %7628 = vmatpush2.msra.mxu0 0.0
    %7629 = vmatprep.subr.mxu0 0.0
    %7630 = vmatpush2.msra.mxu0 0.0
    %7631 = vmatprep.subr.mxu0 0.0
    %7632 = vmatpush2.msra.mxu0 0.0
    %7633 = vmatprep.subr.mxu0 0.0
    %7634 = vmatpush2.msra.mxu0 0.0
    %7635 = vmatprep.subr.mxu0 0.0
    %7636 = vmatpush2.msra.mxu0 0.0
    %7637 = vmatprep.subr.mxu0 0.0
    %7638 = vmatpush2.msra.mxu0 0.0
    %7639 = vmatprep.subr.mxu0 0.0
    %7640 = vmatpush2.msra.mxu0 0.0
    %7641 = vmatprep.subr.mxu0 0.0
    %7642 = vmatpush2.msra.mxu0 0.0
    %7643 = vmatprep.subr.mxu0 0.0
    %7644 = vmatpush2.msra.mxu0 0.0
    %7645 = vmatprep.subr.mxu0 0.0
    %7646 = vmatpush2.msra.mxu0 0.0
    %7647 = vmatprep.subr.mxu0 0.0
    %7648 = vmatpush2.msra.mxu0 0.0
    %7649 = vmatprep.subr.mxu0 0.0
    %7650 = vmatpush2.msra.mxu0 0.0
    %7651 = vmatprep.subr.mxu0 0.0
    %7652 = vmatpush2.msra.mxu0 0.0
    %7653 = vmatprep.mubr.f32.mxu0 0.0
    %v7654 = vand.u32 %v7333, 4294901760
    %v7655 = vsub.f32 %v7333, %v7654
    %v7656 = vand.u32 %v7655, 4294901760
    %7657 = vmatmul.mubr.f32.gmra.mxu0 %v7656
    %v7658 = vpop.f32.mrf.mxu0
    %v7659 = vadd.f32 %v7582, %v7658
    %v7660 = vpop.f32.mrf.mxu0
    %7661 = vdwg.mxu0
    %7662 = vmatprep.subr.mxu0 0.0
    %7663 = vmatpush1.msra.mxu0 0.0
    %7664 = vmatprep.subr.mxu0 0.0
    %7665 = vmatpush1.msra.mxu0 0.0
    %7666 = vmatprep.subr.mxu0 0.0
    %7667 = vmatpush1.msra.mxu0 0.0
    %7668 = vmatprep.subr.mxu0 0.0
    %7669 = vmatpush1.msra.mxu0 0.0
    %7670 = vmatprep.subr.mxu0 0.0
    %7671 = vmatpush1.msra.mxu0 0.0
    %7672 = vmatprep.subr.mxu0 0.0
    %7673 = vmatpush1.msra.mxu0 0.0
    %7674 = vmatprep.subr.mxu0 0.0
    %7675 = vmatpush1.msra.mxu0 0.0
    %7676 = vmatprep.subr.mxu0 0.0
    %7677 = vmatpush1.msra.mxu0 0.0
    %7678 = vmatprep.subr.mxu0 0.0
    %7679 = vmatpush1.msra.mxu0 0.0
    %7680 = vmatprep.subr.mxu0 0.0
    %7681 = vmatpush1.msra.mxu0 0.0
    %7682 = vmatprep.subr.mxu0 0.0
    %7683 = vmatpush1.msra.mxu0 0.0
    %7684 = vmatprep.subr.mxu0 0.0
    %7685 = vmatpush1.msra.mxu0 0.0
    %7686 = vmatprep.subr.mxu0 0.0
    %v7687 = vand.u32 %v29, 4294901760
    %v7688 = vsub.f32 %v29, %v7687
    %v7689 = vand.u32 %v7688, 4294901760
    %7690 = vmatpush1.msra.mxu0 %v7689
    %7691 = vmatprep.subr.mxu0 0.0
    %v7692 = vand.u32 %v28, 4294901760
    %v7693 = vsub.f32 %v28, %v7692
    %v7694 = vand.u32 %v7693, 4294901760
    %7695 = vmatpush1.msra.mxu0 %v7694
    %7696 = vmatprep.subr.mxu0 0.0
    %v7697 = vand.u32 %v27, 4294901760
    %v7698 = vsub.f32 %v27, %v7697
    %v7699 = vand.u32 %v7698, 4294901760
    %7700 = vmatpush1.msra.mxu0 %v7699
    %7701 = vmatprep.subr.mxu0 0.0
    %v7702 = vand.u32 %v26, 4294901760
    %v7703 = vsub.f32 %v26, %v7702
    %v7704 = vand.u32 %v7703, 4294901760
    %7705 = vmatpush1.msra.mxu0 %v7704
    %7706 = vmatprep.subr.mxu0 0.0
    %7707 = vmatpush2.msra.mxu0 0.0
    %7708 = vmatprep.subr.mxu0 0.0
    %7709 = vmatpush2.msra.mxu0 0.0
    %7710 = vmatprep.subr.mxu0 0.0
    %7711 = vmatpush2.msra.mxu0 0.0
    %7712 = vmatprep.subr.mxu0 0.0
    %7713 = vmatpush2.msra.mxu0 0.0
    %7714 = vmatprep.subr.mxu0 0.0
    %7715 = vmatpush2.msra.mxu0 0.0
    %7716 = vmatprep.subr.mxu0 0.0
    %7717 = vmatpush2.msra.mxu0 0.0
    %7718 = vmatprep.subr.mxu0 0.0
    %7719 = vmatpush2.msra.mxu0 0.0
    %7720 = vmatprep.subr.mxu0 0.0
    %7721 = vmatpush2.msra.mxu0 0.0
    %7722 = vmatprep.subr.mxu0 0.0
    %7723 = vmatpush2.msra.mxu0 0.0
    %7724 = vmatprep.subr.mxu0 0.0
    %7725 = vmatpush2.msra.mxu0 0.0
    %7726 = vmatprep.subr.mxu0 0.0
    %7727 = vmatpush2.msra.mxu0 0.0
    %7728 = vmatprep.subr.mxu0 0.0
    %7729 = vmatpush2.msra.mxu0 0.0
    %7730 = vmatprep.subr.mxu0 0.0
    %7731 = vmatpush2.msra.mxu0 0.0
    %7732 = vmatprep.subr.mxu0 0.0
    %7733 = vmatpush2.msra.mxu0 0.0
    %7734 = vmatprep.subr.mxu0 0.0
    %7735 = vmatpush2.msra.mxu0 0.0
    %7736 = vmatprep.subr.mxu0 0.0
    %7737 = vmatpush2.msra.mxu0 0.0
    %7738 = vmatprep.mubr.f32.mxu0 0.0
    %v7739 = vand.u32 %v7333, 4294901760
    %7740 = vmatmul.mubr.f32.gmra.mxu0 %v7739
    %v7741 = vpop.f32.mrf.mxu0
    %v7742 = vadd.f32 %v7659, %v7741
    %v7743 = vpop.f32.mrf.mxu0
    %7744 = vdwg.mxu0
    %7745 = vmatprep.subr.mxu0 0.0
    %7746 = vmatpush1.msra.mxu0 0.0
    %7747 = vmatprep.subr.mxu0 0.0
    %7748 = vmatpush1.msra.mxu0 0.0
    %7749 = vmatprep.subr.mxu0 0.0
    %7750 = vmatpush1.msra.mxu0 0.0
    %7751 = vmatprep.subr.mxu0 0.0
    %7752 = vmatpush1.msra.mxu0 0.0
    %7753 = vmatprep.subr.mxu0 0.0
    %7754 = vmatpush1.msra.mxu0 0.0
    %7755 = vmatprep.subr.mxu0 0.0
    %7756 = vmatpush1.msra.mxu0 0.0
    %7757 = vmatprep.subr.mxu0 0.0
    %7758 = vmatpush1.msra.mxu0 0.0
    %7759 = vmatprep.subr.mxu0 0.0
    %7760 = vmatpush1.msra.mxu0 0.0
    %7761 = vmatprep.subr.mxu0 0.0
    %7762 = vmatpush1.msra.mxu0 0.0
    %7763 = vmatprep.subr.mxu0 0.0
    %7764 = vmatpush1.msra.mxu0 0.0
    %7765 = vmatprep.subr.mxu0 0.0
    %7766 = vmatpush1.msra.mxu0 0.0
    %7767 = vmatprep.subr.mxu0 0.0
    %7768 = vmatpush1.msra.mxu0 0.0
    %7769 = vmatprep.subr.mxu0 0.0
    %v7770 = vand.u32 %v29, 4294901760
    %7771 = vmatpush1.msra.mxu0 %v7770
    %7772 = vmatprep.subr.mxu0 0.0
    %v7773 = vand.u32 %v28, 4294901760
    %7774 = vmatpush1.msra.mxu0 %v7773
    %7775 = vmatprep.subr.mxu0 0.0
    %v7776 = vand.u32 %v27, 4294901760
    %7777 = vmatpush1.msra.mxu0 %v7776
    %7778 = vmatprep.subr.mxu0 0.0
    %v7779 = vand.u32 %v26, 4294901760
    %7780 = vmatpush1.msra.mxu0 %v7779
    %7781 = vmatprep.subr.mxu0 0.0
    %7782 = vmatpush2.msra.mxu0 0.0
    %7783 = vmatprep.subr.mxu0 0.0
    %7784 = vmatpush2.msra.mxu0 0.0
    %7785 = vmatprep.subr.mxu0 0.0
    %7786 = vmatpush2.msra.mxu0 0.0
    %7787 = vmatprep.subr.mxu0 0.0
    %7788 = vmatpush2.msra.mxu0 0.0
    %7789 = vmatprep.subr.mxu0 0.0
    %7790 = vmatpush2.msra.mxu0 0.0
    %7791 = vmatprep.subr.mxu0 0.0
    %7792 = vmatpush2.msra.mxu0 0.0
    %7793 = vmatprep.subr.mxu0 0.0
    %7794 = vmatpush2.msra.mxu0 0.0
    %7795 = vmatprep.subr.mxu0 0.0
    %7796 = vmatpush2.msra.mxu0 0.0
    %7797 = vmatprep.subr.mxu0 0.0
    %7798 = vmatpush2.msra.mxu0 0.0
    %7799 = vmatprep.subr.mxu0 0.0
    %7800 = vmatpush2.msra.mxu0 0.0
    %7801 = vmatprep.subr.mxu0 0.0
    %7802 = vmatpush2.msra.mxu0 0.0
    %7803 = vmatprep.subr.mxu0 0.0
    %7804 = vmatpush2.msra.mxu0 0.0
    %7805 = vmatprep.subr.mxu0 0.0
    %7806 = vmatpush2.msra.mxu0 0.0
    %7807 = vmatprep.subr.mxu0 0.0
    %7808 = vmatpush2.msra.mxu0 0.0
    %7809 = vmatprep.subr.mxu0 0.0
    %7810 = vmatpush2.msra.mxu0 0.0
    %7811 = vmatprep.subr.mxu0 0.0
    %7812 = vmatpush2.msra.mxu0 0.0
    %7813 = vmatprep.mubr.f32.mxu0 0.0
    %v7814 = vand.u32 %v7333, 4294901760
    %7815 = vmatmul.mubr.f32.gmra.mxu0 %v7814
    %v7816 = vpop.f32.mrf.mxu0
    %v7817 = vadd.f32 %v7742, %v7816
    %v7818 = vpop.f32.mrf.mxu0
    %7819 = vdwg.mxu0
    %v7820 = vadd.f32 %v3725, %v7817
    %v7821 = vxor.u32 %v7820, 2147483648
    %v7822 = vmul.f32 %v7821, 1.442695
    %v7823 = vpow.pop %v7822
    %v7824 = vadd.f32 %v7823, 1.0
    %v7825 = vrcp.pop %v7824
    %v7826 = vmul.f32 1.0, %v7825
    %v7827 = vtanh.pop %v7820
    %v7828 = vmul.f32 %v7826, %v7323
    %7830 = vrot.lane.b32.xlu0 %v7827, 64
    %v7831 = vpop.permute.xlu0 %7830
    %v7833 = vmul.f32 %v7826, %v7831
    %7835 = vrot.lane.b32.xlu0 %v7833, 32
    %v7836 = vpop.permute.xlu0 %7835
    %v7838 = vadd.f32 %v7828, %v7836
    %v7839 = vtanh.pop %v7838
    %7841 = vrot.lane.b32.xlu0 %v7839, 64
    %v7842 = vpop.permute.xlu0 %7841
    %v7844 = vmul.f32 %v7826, %v7842
    %7846 = vrot.lane.b32.xlu0 %v7844, 32
    %v7847 = vpop.permute.xlu0 %7846
    %vm7849 = vcmask 254976
    %7850 = vst.msk [vmem:[#allocation2] sm:$0x3] %vm7849, %v7847
    // Predicated region
    $region26: #{encoder_forward.1} parent=1 // pred_check
      _
    $region27: #{encoder_forward.1} parent=1 // pred_check_branch
      %7852 = sbr.rel (0) target = $region29
    $region28: #{encoder_forward.1} parent=1 // pred_region
      %s7854 = ssub.s32 32, 32
      %7855 = vsyncadd [#allocation3], %s7854
      %s7857 = sshll.u32 [#allocation2], 4
      %s7858 = int_to_ptr.vmem [resolvable:$true] %s7857
      %7860 = dma.vmem_to_hbm [thread:$0]  %s7858, 32, %s6, [#allocation3]
    $region29: #{encoder_forward.1} parent=1 // pred_fallthru
      _
    // Predicated region
    $region30: #{encoder_forward.1} parent=1 // pred_check
      _
    $region31: #{encoder_forward.1} parent=1 // pred_check_branch
      %7862 = sbr.rel (0) target = $region33
    $region32: #{encoder_forward.1} parent=1 // pred_region
      %7863 = dma.done [#allocation3], 32
    $region33: #{encoder_forward.1} parent=1 // pred_fallthru
      _
    %7864 = vsyncpa [#allocation3], 1

</llo_original>
